<compile_context>
chip_gen: v7x
topology: tpu7x:2x2x1
jax: 0.10.0
libtpu: 0.0.40
codegen_flags: <defaults>
</compile_context>

<pallas_src>
import functools

import jax
import jax.numpy as jnp
from jax.experimental import pallas as pl
from jax.experimental.pallas import tpu as pltpu

KH = KW = 3
STRIDE = 1
PADDING = 10


# ----------------------------- glue: unfold / fold (plain JAX, inside jit) -----------------------------

def _unfold_chw(img_chw, kh=KH, kw=KW, pad=PADDING):
    """torch.nn.functional.unfold equivalent. Returns (L, D) patches, D = C*kh*kw."""
    C, H, W = img_chw.shape
    padded = jnp.pad(img_chw, ((0, 0), (pad, pad), (pad, pad)))
    oh = H + 2 * pad - kh + 1
    ow = W + 2 * pad - kw + 1
    cols = jnp.stack(
        [padded[:, ki:ki + oh, kj:kj + ow] for ki in range(kh) for kj in range(kw)],
        axis=1,
    )  # (C, kh*kw, oh, ow) -> channel ordering c*kh*kw + ki*kw + kj (same as torch)
    unfolded = cols.reshape(C * kh * kw, oh * ow)  # (D, L)
    return unfolded.T, (oh, ow)                    # (L, D)


def _fold_chw(patches_ld, out_hw, C, kh=KH, kw=KW, pad=PADDING):
    """torch.nn.functional.fold equivalent (sum of overlapping patches)."""
    H, W = out_hw
    oh = H + 2 * pad - kh + 1
    ow = W + 2 * pad - kw + 1
    p = patches_ld.reshape(oh, ow, C, kh, kw)
    acc = jnp.zeros((C, H + 2 * pad, W + 2 * pad), dtype=patches_ld.dtype)
    for ki in range(kh):
        for kj in range(kw):
            acc = acc.at[:, ki:ki + oh, kj:kj + ow].add(
                jnp.transpose(p[:, :, :, ki, kj], (2, 0, 1)))
    return acc[:, pad:pad + H, pad:pad + W]


# ----------------------------- Pallas kernel: NN search + reconstruct -----------------------------

def nn_reconstruct_kernel(q_ref, memT_ref, mn_ref, mem_pad_ref, out_ref):
    """For each query row, find the L2-nearest memory row and emit that memory row.

    q_ref:       (TL, D)   bf16 query-patch tile
    memT_ref:    (D,  N)   bf16, pre-scaled (-2 * mem).T  (resident across grid steps)
    mn_ref:      (1,  N)   f32 precomputed ||m||^2 per memory row
    mem_pad_ref: (N,  Dp)  f32 memory, feature dim zero-padded to a multiple of 128
    out_ref:     (TL, Dp)  f32 lane-dense reconstructed nearest patterns
    """
    # Distance proxy: ||m||^2 - 2 q.m.  The query self-norm is constant per row and
    # cannot change the argmin, so it is omitted; the -2 is folded into memT host-side.
    dist = mn_ref[...] + jnp.dot(q_ref[...], memT_ref[...],
                                 preferred_element_type=jnp.float32)      # (TL, N) f32

    n = dist.shape[1]
    iota = jax.lax.broadcasted_iota(jnp.int32, (1, n), 1)                  # (1, N) broadcast
    minval = jnp.min(dist, axis=-1, keepdims=True)                         # (TL, 1)
    # lowest index among ties (matches argmin tie-breaking); iota/min trick lowers
    # robustly in Mosaic and at N=128 the extra reduction is negligible.
    idx = jnp.min(jnp.where(dist <= minval, iota, n), axis=-1, keepdims=True)  # (TL, 1)
    onehot = (iota == idx).astype(jnp.float32)                                  # (TL, N)
    # Gather-by-matmul against the 128-lane-padded f32 memory.  precision=HIGHEST
    # guarantees the multi-pass f32 decomposition so outputs are the exact stored rows.
    out_ref[...] = jnp.dot(onehot, mem_pad_ref[...],
                           preferred_element_type=jnp.float32,
                           precision=jax.lax.Precision.HIGHEST)


def nearest_reconstruct(queries_bf16, mem_neg2T_bf16, mn, mem_pad_f32, num_tiles=1):
    """queries (L, D) bf16 -> (L, D) f32: each row replaced by its nearest memory row."""
    L, D = queries_bf16.shape
    Dm, N = mem_neg2T_bf16.shape
    Np, Dp = mem_pad_f32.shape
    assert D == Dm and N == Np, (D, Dm, N, Np)

    tile_l = ((pl.cdiv(L, num_tiles) + 7) // 8) * 8           # sublane-aligned row tile
    Lp = tile_l * num_tiles
    qp = jnp.pad(queries_bf16, ((0, Lp - L), (0, 0)))         # row pad only; XLA fuses

    out = pl.pallas_call(
        nn_reconstruct_kernel,
        out_shape=jax.ShapeDtypeStruct((Lp, Dp), jnp.float32),
        grid_spec=pltpu.PrefetchScalarGridSpec(
            num_scalar_prefetch=0,
            grid=(num_tiles,),
            in_specs=[
                pl.BlockSpec((tile_l, D), lambda i: (i, 0)),   # query tile (bf16)
                pl.BlockSpec((Dm, N), lambda i: (0, 0)),       # (-2*mem).T bf16, resident
                pl.BlockSpec((1, N), lambda i: (0, 0)),        # ||m||^2, resident
                pl.BlockSpec((N, Dp), lambda i: (0, 0)),       # 128-padded f32 memory
            ],
            out_specs=pl.BlockSpec((tile_l, Dp), lambda i: (i, 0)),   # lane-dense output
        ),
        compiler_params=pltpu.CompilerParams(dimension_semantics=("parallel",)),
    )(qp, mem_neg2T_bf16, mn, mem_pad_f32)
    return out[:L, :D]                                          # fused into fold under jit


# ----------------------------- jitted forward -----------------------------

@functools.partial(jax.jit, static_argnames=("out_hw", "C", "num_tiles"))
def _neuralmem_forward(image_hwc, mem_neg2T_bf16, mn, mem_pad_f32, out_hw, C, num_tiles):
    img = jnp.transpose(image_hwc, (2, 0, 1))                   # CHW
    unfolded, _ = _unfold_chw(img)                              # (L, D) f32
    q_bf16 = unfolded.astype(jnp.bfloat16)                      # only used for the matmul
    recon = nearest_reconstruct(q_bf16, mem_neg2T_bf16, mn, mem_pad_f32,
                                num_tiles=num_tiles)            # (L, D) f32  Pallas hot path
    folded = _fold_chw(recon, out_hw, C)                        # (C, H, W)
    out = folded / jnp.max(folded.reshape(-1))                  # matches torch (no zero guard)
    return jnp.transpose(out, (1, 2, 0))                        # (H, W, C)


def _default_num_tiles():
    """2 parallel tiles on dual-TensorCore v7x, 1 tile on single-TC v5e/v6e."""
    try:
        kind = jax.devices()[0].device_kind.lower()
    except Exception:
        return 1
    return 2 if ("v7" in kind or "7x" in kind) else 1


# ----------------------------- NeuralMem module (JAX) -----------------------------

class NeuralMemJax:
    def __init__(self, image_size=(16, 16, 3), n_mem=128, seed=0):
        self.output_size = image_size
        self.kernel = (KH, KW)
        self.dimensions = KH * KW * image_size[2]
        # Deterministic synthetic memory bank: patterns "added" from a random style image
        # (stand-in for faiss IndexIVFFlat contents; search is exact flat-L2 here).
        key = jax.random.PRNGKey(seed)
        style = jax.random.uniform(
            key, (image_size[0], image_size[1], image_size[2]), dtype=jnp.float32)
        patt, _ = _unfold_chw(jnp.transpose(style, (2, 0, 1)))
        sel = jnp.linspace(0, patt.shape[0] - 1, n_mem).astype(jnp.int32)
        self.mem = patt[sel].astype(jnp.float32)                          # (n_mem, D)

        # Hoisted per-call constants (kernel operands), computed once:
        D = self.dimensions
        Dp = ((D + 127) // 128) * 128                                     # lane-dense width
        self.mem_pad = jnp.pad(self.mem, ((0, 0), (0, Dp - D)))           # (N, Dp) f32
        self.mem_neg2T = (-2.0 * self.mem).T.astype(jnp.bfloat16)         # (D, N) bf16
        self.mn = jnp.sum(self.mem * self.mem, axis=1)[None, :]           # (1, N) f32
        self.num_tiles = _default_num_tiles()
        # TODO(synk): faiss IVF coarse quantization (nlist=100 approximate search) is not
        # reproduced; exact nearest-neighbour search is used instead.

    def forward(self, image_hwc):
        H, W, C = self.output_size
        return _neuralmem_forward(image_hwc, self.mem_neg2T, self.mn, self.mem_pad,
                                  out_hw=(H, W), C=C, num_tiles=self.num_tiles)


# ----------------------------- demo -----------------------------

if __name__ == "__main__":
    image_size = (16, 16, 3)
    model = NeuralMemJax(image_size=image_size, n_mem=128, seed=0)

    key = jax.random.PRNGKey(0)
    image = jax.random.uniform(key, image_size, dtype=jnp.float32)   # HWC input

    out = model.forward(image)
    out = jax.block_until_ready(out)

    # Sanity check against a pure-JAX reference mirroring the kernel's distance math
    # (bf16 distance proxy with f32 accumulation, -2 folded into the memory operand);
    # the reconstruction itself is checked against the actual stored f32 memory rows.
    unfolded, _ = _unfold_chw(jnp.transpose(image, (2, 0, 1)))
    q_bf16 = unfolded.astype(jnp.bfloat16)
    proxy = model.mn + jnp.dot(q_bf16, model.mem_neg2T, preferred_element_type=jnp.float32)
    ref = model.mem[jnp.argmin(proxy, axis=1)]
    recon = nearest_reconstruct(q_bf16, model.mem_neg2T, model.mn, model.mem_pad,
                                num_tiles=model.num_tiles)
    recon = jax.block_until_ready(recon)
    match = float(jnp.mean(jnp.all(jnp.isclose(recon, ref, atol=1e-5), axis=1)))

    assert out.shape == image_size, out.shape
    assert bool(jnp.all(jnp.isfinite(out)))
    assert match > 0.99, f"NN match fraction too low: {match}"

    print("KERNEL_OK")
</pallas_src>

<mosaic_0001>
module attributes {stable_mosaic.version = 11 : i64} {
  func.func @nn_reconstruct_kernel(%arg0: i32, %arg1: memref<1160x27xbf16, #tpu.memory_space<vmem>>, %arg2: memref<27x128xbf16, #tpu.memory_space<vmem>>, %arg3: memref<1x128xf32, #tpu.memory_space<vmem>>, %arg4: memref<128x128xf32, #tpu.memory_space<vmem>>, %arg5: memref<1160x128xf32, #tpu.memory_space<vmem>>) attributes {dimension_semantics = [#tpu.dimension_semantics<parallel>], iteration_bounds = array<i64: 1>, scalar_prefetch = 0 : i64, scratch_operands = 0 : i64, tpu.core_type = #tpu.core_type<tc>, window_params = [{transform_indices = @transform_0, window_bounds = array<i64: 1160, 27>}, {pipeline_mode = #tpu.pipeline_mode<synchronous>, transform_indices = @transform_1, window_bounds = array<i64: 27, 128>}, {pipeline_mode = #tpu.pipeline_mode<synchronous>, transform_indices = @transform_2, window_bounds = array<i64: 1, 128>}, {pipeline_mode = #tpu.pipeline_mode<synchronous>, transform_indices = @transform_3, window_bounds = array<i64: 128, 128>}, {transform_indices = @transform_4, window_bounds = array<i64: 1160, 128>}]} {
    %c0 = arith.constant 0 : index
    %c0_0 = arith.constant 0 : index
    %0 = vector.load %arg3[%c0, %c0_0] : memref<1x128xf32, #tpu.memory_space<vmem>>, vector<1x128xf32>
    %c0_1 = arith.constant 0 : index
    %c0_2 = arith.constant 0 : index
    %1 = vector.load %arg1[%c0_1, %c0_2] : memref<1160x27xbf16, #tpu.memory_space<vmem>>, vector<1160x27xbf16>
    %c0_3 = arith.constant 0 : index
    %c0_4 = arith.constant 0 : index
    %2 = vector.load %arg2[%c0_3, %c0_4] : memref<27x128xbf16, #tpu.memory_space<vmem>>, vector<27x128xbf16>
    %cst = arith.constant dense<0.000000e+00> : vector<1160x128xf32>
    %3 = tpu.matmul %1, %2, %cst {dimension_numbers = #tpu.dot_dimension_numbers<[1], [0], [0], [1], [0, 0, 1, 1], [], []>} : vector<1160x27xbf16>, vector<27x128xbf16>, vector<1160x128xf32> -> vector<1160x128xf32>
    %4 = vector.broadcast %0 : vector<1x128xf32> to vector<1160x128xf32>
    %5 = arith.addf %4, %3 : vector<1160x128xf32>
    %6 = tpu.iota {dimensions = array<i32: 1>} : vector<1x128xi32>
    %cst_5 = arith.constant dense<0x7F800000> : vector<1160xf32>
    %7 = vector.multi_reduction <minimumf>, %5, %cst_5 [1] : vector<1160x128xf32> to vector<1160xf32>
    %8 = vector.shape_cast %7 : vector<1160xf32> to vector<1160x1xf32>
    %9 = vector.broadcast %8 : vector<1160x1xf32> to vector<1160x128xf32>
    %10 = arith.cmpf ole, %5, %9 : vector<1160x128xf32>
    %c128_i32 = arith.constant 128 : i32
    %11 = vector.shape_cast %6 : vector<1x128xi32> to vector<1x128xi32>
    %12 = vector.broadcast %11 : vector<1x128xi32> to vector<1160x128xi32>
    %13 = vector.broadcast %c128_i32 : i32 to vector<1160x128xi32>
    %14 = arith.select %10, %12, %13 : vector<1160x128xi1>, vector<1160x128xi32>
    %cst_6 = arith.constant dense<2147483647> : vector<1160xi32>
    %15 = vector.multi_reduction <minsi>, %14, %cst_6 [1] : vector<1160x128xi32> to vector<1160xi32>
    %16 = vector.shape_cast %15 : vector<1160xi32> to vector<1160x1xi32>
    %17 = vector.broadcast %6 : vector<1x128xi32> to vector<1160x128xi32>
    %18 = vector.broadcast %16 : vector<1160x1xi32> to vector<1160x128xi32>
    %19 = arith.cmpi eq, %17, %18 : vector<1160x128xi32>
    %20 = arith.extui %19 : vector<1160x128xi1> to vector<1160x128xi32>
    %21 = arith.sitofp %20 : vector<1160x128xi32> to vector<1160x128xf32>
    %c0_7 = arith.constant 0 : index
    %c0_8 = arith.constant 0 : index
    %22 = vector.load %arg4[%c0_7, %c0_8] : memref<128x128xf32, #tpu.memory_space<vmem>>, vector<128x128xf32>
    %cst_9 = arith.constant dense<0.000000e+00> : vector<1160x128xf32>
    %23 = tpu.matmul %21, %22, %cst_9 {dimension_numbers = #tpu.dot_dimension_numbers<[1], [0], [0], [1], [0, 0, 1, 1], [], []>, precision = #tpu.contract_precision<fp32>} : vector<1160x128xf32>, vector<128x128xf32>, vector<1160x128xf32> -> vector<1160x128xf32>
    %c0_10 = arith.constant 0 : index
    %c0_11 = arith.constant 0 : index
    %24 = vector.load %arg5[%c0_10, %c0_11] : memref<1160x128xf32, #tpu.memory_space<vmem>>, vector<1160x128xf32>
    tpu.vector_store %arg5[%c0_10, %c0_11], %23 {strides = array<i32>} : memref<1160x128xf32, #tpu.memory_space<vmem>>, vector<1160x128xf32>,
    return
  }
  func.func @transform_0(%arg0: i32) -> (i32, i32) {
    %c0_i32 = arith.constant 0 : i32
    %c0_i32_0 = arith.constant 0 : i32
    return %arg0, %c0_i32 : i32, i32
  }
  func.func @transform_1(%arg0: i32) -> (i32, i32) {
    %c0_i32 = arith.constant 0 : i32
    %c0_i32_0 = arith.constant 0 : i32
    %c0_i32_1 = arith.constant 0 : i32
    return %c0_i32, %c0_i32_0 : i32, i32
  }
  func.func @transform_2(%arg0: i32) -> (i32, i32) {
    %c0_i32 = arith.constant 0 : i32
    %c0_i32_0 = arith.constant 0 : i32
    %c0_i32_1 = arith.constant 0 : i32
    return %c0_i32, %c0_i32_0 : i32, i32
  }
  func.func @transform_3(%arg0: i32) -> (i32, i32) {
    %c0_i32 = arith.constant 0 : i32
    %c0_i32_0 = arith.constant 0 : i32
    %c0_i32_1 = arith.constant 0 : i32
    return %c0_i32, %c0_i32_0 : i32, i32
  }
  func.func @transform_4(%arg0: i32) -> (i32, i32) {
    %c0_i32 = arith.constant 0 : i32
    %c0_i32_0 = arith.constant 0 : i32
    return %arg0, %c0_i32 : i32, i32
  }
}

</mosaic_0001>

<llo_original>
// kernel: _neuralmem_forward.1
$region0: #{_neuralmem_forward.1}
  #allocation0 [shape = 'u32[]', space=smem, size = 0x4, offset = 0x4, fixed_abs, tag = 'smem constant byte address 0x4 - core index']
  #allocation1 [shape = 'u32[144,128]{1,0:T(1,128)}', space=vmem, size = 0x12000, scoped, tag = 'internal scratch']
  %s0 = inlined_call_operand.vmem [shape: bf16[1160,27], index: 0, kind: input, shape index: {}]
  %s1 = inlined_call_operand.vmem [shape: bf16[27,128], index: 1, kind: input, shape index: {}]
  %s2 = inlined_call_operand.vmem [shape: f32[1,128], index: 2, kind: input, shape index: {}]
  %s3 = inlined_call_operand.vmem [shape: f32[128,128], index: 3, kind: input, shape index: {}]
  %s4 = inlined_call_operand.vmem [shape: f32[1160,128], index: 4, kind: output, shape index: {}]
  %s5 = sld [smem:[#allocation0]]
  $region26: #{_neuralmem_forward.1} parent=0
    _
  %s7 = ssub.s32 1, %s5
  %s8 = scalar_select 0, %s7, %s5
  // Predicated region
  $region2: #{_neuralmem_forward.1} parent=0 // pred_check
    _
  $region3: #{_neuralmem_forward.1} parent=0 // pred_check_branch
    %10 = sbr.rel (0) target = $region5
  $region4: #{_neuralmem_forward.1} parent=0 // pred_region
    _
  $region5: #{_neuralmem_forward.1} parent=0 // pred_fallthru
    _
  // Predicated region
  $region6: #{_neuralmem_forward.1} parent=0 // pred_check
    _
  $region7: #{_neuralmem_forward.1} parent=0 // pred_check_branch
    %12 = sbr.rel (0) target = $region9
  $region8: #{_neuralmem_forward.1} parent=0 // pred_region
    _
  $region9: #{_neuralmem_forward.1} parent=0 // pred_fallthru
    _
  // Predicated region
  $region10: #{_neuralmem_forward.1} parent=0 // pred_check
    _
  $region11: #{_neuralmem_forward.1} parent=0 // pred_check_branch
    %14 = sbr.rel (0) target = $region13
  $region12: #{_neuralmem_forward.1} parent=0 // pred_region
    _
  $region13: #{_neuralmem_forward.1} parent=0 // pred_fallthru
    _
  // Predicated region
  $region14: #{_neuralmem_forward.1} parent=0 // pred_check
    _
  $region15: #{_neuralmem_forward.1} parent=0 // pred_check_branch
    %16 = sbr.rel (0) target = $region17
  $region16: #{_neuralmem_forward.1} parent=0 // pred_region
    _
  $region17: #{_neuralmem_forward.1} parent=0 // pred_fallthru
    _
  %v18 = vld [vmem:[%s2] sm:$0x1]
  %v19 = vld [vmem:[%s0] sm:$0xf]
  %v20 = vld [vmem:[%s0 + $0x4] sm:$0xf]
  %v21 = vld [vmem:[%s0 + $0x8] sm:$0xf]
  %v22 = vld [vmem:[%s0 + $0xc] sm:$0xf]
  %v23 = vld [vmem:[%s0 + $0x10] sm:$0xf]
  %v24 = vld [vmem:[%s0 + $0x14] sm:$0xf]
  %v25 = vld [vmem:[%s0 + $0x18] sm:$0xf]
  %v26 = vld [vmem:[%s0 + $0x1c] sm:$0xf]
  %v27 = vld [vmem:[%s0 + $0x20] sm:$0xf]
  %v28 = vld [vmem:[%s0 + $0x24] sm:$0xf]
  %v29 = vld [vmem:[%s0 + $0x28] sm:$0xf]
  %v30 = vld [vmem:[%s0 + $0x2c] sm:$0xf]
  %v31 = vld [vmem:[%s0 + $0x30] sm:$0xf]
  %v32 = vld [vmem:[%s0 + $0x34] sm:$0xf]
  %v33 = vld [vmem:[%s0 + $0x38] sm:$0xf]
  %v34 = vld [vmem:[%s0 + $0x3c] sm:$0xf]
  %v35 = vld [vmem:[%s0 + $0x40] sm:$0xf]
  %v36 = vld [vmem:[%s0 + $0x44] sm:$0xf]
  %v37 = vld [vmem:[%s0 + $0x48] sm:$0xf]
  %v38 = vld [vmem:[%s0 + $0x4c] sm:$0xf]
  %v39 = vld [vmem:[%s0 + $0x50] sm:$0xf]
  %v40 = vld [vmem:[%s0 + $0x54] sm:$0xf]
  %v41 = vld [vmem:[%s0 + $0x58] sm:$0xf]
  %v42 = vld [vmem:[%s0 + $0x5c] sm:$0xf]
  %v43 = vld [vmem:[%s0 + $0x60] sm:$0xf]
  %v44 = vld [vmem:[%s0 + $0x64] sm:$0xf]
  %v45 = vld [vmem:[%s0 + $0x68] sm:$0xf]
  %v46 = vld [vmem:[%s0 + $0x6c] sm:$0xf]
  %v47 = vld [vmem:[%s0 + $0x70] sm:$0xf]
  %v48 = vld [vmem:[%s0 + $0x74] sm:$0xf]
  %v49 = vld [vmem:[%s0 + $0x78] sm:$0xf]
  %v50 = vld [vmem:[%s0 + $0x7c] sm:$0xf]
  %v51 = vld [vmem:[%s0 + $0x80] sm:$0xf]
  %v52 = vld [vmem:[%s0 + $0x84] sm:$0xf]
  %v53 = vld [vmem:[%s0 + $0x88] sm:$0xf]
  %v54 = vld [vmem:[%s0 + $0x8c] sm:$0xf]
  %v55 = vld [vmem:[%s0 + $0x90] sm:$0xf]
  %v56 = vld [vmem:[%s0 + $0x94] sm:$0xf]
  %v57 = vld [vmem:[%s0 + $0x98] sm:$0xf]
  %v58 = vld [vmem:[%s0 + $0x9c] sm:$0xf]
  %v59 = vld [vmem:[%s0 + $0xa0] sm:$0xf]
  %v60 = vld [vmem:[%s0 + $0xa4] sm:$0xf]
  %v61 = vld [vmem:[%s0 + $0xa8] sm:$0xf]
  %v62 = vld [vmem:[%s0 + $0xac] sm:$0xf]
  %v63 = vld [vmem:[%s0 + $0xb0] sm:$0xf]
  %v64 = vld [vmem:[%s0 + $0xb4] sm:$0xf]
  %v65 = vld [vmem:[%s0 + $0xb8] sm:$0xf]
  %v66 = vld [vmem:[%s0 + $0xbc] sm:$0xf]
  %v67 = vld [vmem:[%s0 + $0xc0] sm:$0xf]
  %v68 = vld [vmem:[%s0 + $0xc4] sm:$0xf]
  %v69 = vld [vmem:[%s0 + $0xc8] sm:$0xf]
  %v70 = vld [vmem:[%s0 + $0xcc] sm:$0xf]
  %v71 = vld [vmem:[%s0 + $0xd0] sm:$0xf]
  %v72 = vld [vmem:[%s0 + $0xd4] sm:$0xf]
  %v73 = vld [vmem:[%s0 + $0xd8] sm:$0xf]
  %v74 = vld [vmem:[%s0 + $0xdc] sm:$0xf]
  %v75 = vld [vmem:[%s0 + $0xe0] sm:$0xf]
  %v76 = vld [vmem:[%s0 + $0xe4] sm:$0xf]
  %v77 = vld [vmem:[%s0 + $0xe8] sm:$0xf]
  %v78 = vld [vmem:[%s0 + $0xec] sm:$0xf]
  %v79 = vld [vmem:[%s0 + $0xf0] sm:$0xf]
  %v80 = vld [vmem:[%s0 + $0xf4] sm:$0xf]
  %v81 = vld [vmem:[%s0 + $0xf8] sm:$0xf]
  %v82 = vld [vmem:[%s0 + $0xfc] sm:$0xf]
  %v83 = vld [vmem:[%s0 + $0x100] sm:$0xf]
  %v84 = vld [vmem:[%s0 + $0x104] sm:$0xf]
  %v85 = vld [vmem:[%s0 + $0x108] sm:$0xf]
  %v86 = vld [vmem:[%s0 + $0x10c] sm:$0xf]
  %v87 = vld [vmem:[%s0 + $0x110] sm:$0xf]
  %v88 = vld [vmem:[%s0 + $0x114] sm:$0xf]
  %v89 = vld [vmem:[%s0 + $0x118] sm:$0xf]
  %v90 = vld [vmem:[%s0 + $0x11c] sm:$0xf]
  %v91 = vld [vmem:[%s0 + $0x120] sm:$0xf]
  %v92 = vld [vmem:[%s0 + $0x124] sm:$0xf]
  %v93 = vld [vmem:[%s0 + $0x128] sm:$0xf]
  %v94 = vld [vmem:[%s0 + $0x12c] sm:$0xf]
  %v95 = vld [vmem:[%s0 + $0x130] sm:$0xf]
  %v96 = vld [vmem:[%s0 + $0x134] sm:$0xf]
  %v97 = vld [vmem:[%s0 + $0x138] sm:$0xf]
  %v98 = vld [vmem:[%s0 + $0x13c] sm:$0xf]
  %v99 = vld [vmem:[%s0 + $0x140] sm:$0xf]
  %v100 = vld [vmem:[%s0 + $0x144] sm:$0xf]
  %v101 = vld [vmem:[%s0 + $0x148] sm:$0xf]
  %v102 = vld [vmem:[%s0 + $0x14c] sm:$0xf]
  %v103 = vld [vmem:[%s0 + $0x150] sm:$0xf]
  %v104 = vld [vmem:[%s0 + $0x154] sm:$0xf]
  %v105 = vld [vmem:[%s0 + $0x158] sm:$0xf]
  %v106 = vld [vmem:[%s0 + $0x15c] sm:$0xf]
  %v107 = vld [vmem:[%s0 + $0x160] sm:$0xf]
  %v108 = vld [vmem:[%s0 + $0x164] sm:$0xf]
  %v109 = vld [vmem:[%s0 + $0x168] sm:$0xf]
  %v110 = vld [vmem:[%s0 + $0x16c] sm:$0xf]
  %v111 = vld [vmem:[%s0 + $0x170] sm:$0xf]
  %v112 = vld [vmem:[%s0 + $0x174] sm:$0xf]
  %v113 = vld [vmem:[%s0 + $0x178] sm:$0xf]
  %v114 = vld [vmem:[%s0 + $0x17c] sm:$0xf]
  %v115 = vld [vmem:[%s0 + $0x180] sm:$0xf]
  %v116 = vld [vmem:[%s0 + $0x184] sm:$0xf]
  %v117 = vld [vmem:[%s0 + $0x188] sm:$0xf]
  %v118 = vld [vmem:[%s0 + $0x18c] sm:$0xf]
  %v119 = vld [vmem:[%s0 + $0x190] sm:$0xf]
  %v120 = vld [vmem:[%s0 + $0x194] sm:$0xf]
  %v121 = vld [vmem:[%s0 + $0x198] sm:$0xf]
  %v122 = vld [vmem:[%s0 + $0x19c] sm:$0xf]
  %v123 = vld [vmem:[%s0 + $0x1a0] sm:$0xf]
  %v124 = vld [vmem:[%s0 + $0x1a4] sm:$0xf]
  %v125 = vld [vmem:[%s0 + $0x1a8] sm:$0xf]
  %v126 = vld [vmem:[%s0 + $0x1ac] sm:$0xf]
  %v127 = vld [vmem:[%s0 + $0x1b0] sm:$0xf]
  %v128 = vld [vmem:[%s0 + $0x1b4] sm:$0xf]
  %v129 = vld [vmem:[%s0 + $0x1b8] sm:$0xf]
  %v130 = vld [vmem:[%s0 + $0x1bc] sm:$0xf]
  %v131 = vld [vmem:[%s0 + $0x1c0] sm:$0xf]
  %v132 = vld [vmem:[%s0 + $0x1c4] sm:$0xf]
  %v133 = vld [vmem:[%s0 + $0x1c8] sm:$0xf]
  %v134 = vld [vmem:[%s0 + $0x1cc] sm:$0xf]
  %v135 = vld [vmem:[%s0 + $0x1d0] sm:$0xf]
  %v136 = vld [vmem:[%s0 + $0x1d4] sm:$0xf]
  %v137 = vld [vmem:[%s0 + $0x1d8] sm:$0xf]
  %v138 = vld [vmem:[%s0 + $0x1dc] sm:$0xf]
  %v139 = vld [vmem:[%s0 + $0x1e0] sm:$0xf]
  %v140 = vld [vmem:[%s0 + $0x1e4] sm:$0xf]
  %v141 = vld [vmem:[%s0 + $0x1e8] sm:$0xf]
  %v142 = vld [vmem:[%s0 + $0x1ec] sm:$0xf]
  %v143 = vld [vmem:[%s0 + $0x1f0] sm:$0xf]
  %v144 = vld [vmem:[%s0 + $0x1f4] sm:$0xf]
  %v145 = vld [vmem:[%s0 + $0x1f8] sm:$0xf]
  %v146 = vld [vmem:[%s0 + $0x1fc] sm:$0xf]
  %v147 = vld [vmem:[%s0 + $0x200] sm:$0xf]
  %v148 = vld [vmem:[%s0 + $0x204] sm:$0xf]
  %v149 = vld [vmem:[%s0 + $0x208] sm:$0xf]
  %v150 = vld [vmem:[%s0 + $0x20c] sm:$0xf]
  %v151 = vld [vmem:[%s0 + $0x210] sm:$0xf]
  %v152 = vld [vmem:[%s0 + $0x214] sm:$0xf]
  %v153 = vld [vmem:[%s0 + $0x218] sm:$0xf]
  %v154 = vld [vmem:[%s0 + $0x21c] sm:$0xf]
  %v155 = vld [vmem:[%s0 + $0x220] sm:$0xf]
  %v156 = vld [vmem:[%s0 + $0x224] sm:$0xf]
  %v157 = vld [vmem:[%s0 + $0x228] sm:$0xf]
  %v158 = vld [vmem:[%s0 + $0x22c] sm:$0xf]
  %v159 = vld [vmem:[%s0 + $0x230] sm:$0xf]
  %v160 = vld [vmem:[%s0 + $0x234] sm:$0xf]
  %v161 = vld [vmem:[%s0 + $0x238] sm:$0xf]
  %v162 = vld [vmem:[%s0 + $0x23c] sm:$0xf]
  %v163 = vld [vmem:[%s0 + $0x240] sm:$0xf]
  %v164 = vld [vmem:[%s1] sm:$0xf]
  %v165 = vld [vmem:[%s1 + $0x4] sm:$0xf]
  %v166 = vld [vmem:[%s1 + $0x8] sm:$0xf]
  %v167 = vld [vmem:[%s1 + $0xc] sm:$0x3]
  %v313 = vunpack.c.l.b16 %v19
  %v314 = vunpack.c.l.b16 %v20
  %v315 = vunpack.c.l.b16 %v21
  %v316 = vunpack.c.l.b16 %v22
  %v317 = vunpack.c.l.b16 %v23
  %v318 = vunpack.c.l.b16 %v24
  %v319 = vunpack.c.l.b16 %v25
  %v320 = vunpack.c.l.b16 %v26
  %v321 = vunpack.c.l.b16 %v27
  %v322 = vunpack.c.l.b16 %v28
  %v323 = vunpack.c.l.b16 %v29
  %v324 = vunpack.c.l.b16 %v30
  %v325 = vunpack.c.l.b16 %v31
  %v326 = vunpack.c.l.b16 %v32
  %v327 = vunpack.c.l.b16 %v33
  %v328 = vunpack.c.l.b16 %v34
  %v329 = vunpack.c.l.b16 %v35
  %v330 = vunpack.c.l.b16 %v36
  %v331 = vunpack.c.l.b16 %v37
  %v332 = vunpack.c.l.b16 %v38
  %v333 = vunpack.c.l.b16 %v39
  %v334 = vunpack.c.l.b16 %v40
  %v335 = vunpack.c.l.b16 %v41
  %v336 = vunpack.c.l.b16 %v42
  %v337 = vunpack.c.l.b16 %v43
  %v338 = vunpack.c.l.b16 %v44
  %v339 = vunpack.c.l.b16 %v45
  %v340 = vunpack.c.l.b16 %v46
  %v341 = vunpack.c.l.b16 %v47
  %v342 = vunpack.c.l.b16 %v48
  %v343 = vunpack.c.l.b16 %v49
  %v344 = vunpack.c.l.b16 %v50
  %v345 = vunpack.c.l.b16 %v51
  %v346 = vunpack.c.l.b16 %v52
  %v347 = vunpack.c.l.b16 %v53
  %v348 = vunpack.c.l.b16 %v54
  %v349 = vunpack.c.l.b16 %v55
  %v350 = vunpack.c.l.b16 %v56
  %v351 = vunpack.c.l.b16 %v57
  %v352 = vunpack.c.l.b16 %v58
  %v353 = vunpack.c.l.b16 %v59
  %v354 = vunpack.c.l.b16 %v60
  %v355 = vunpack.c.l.b16 %v61
  %v356 = vunpack.c.l.b16 %v62
  %v357 = vunpack.c.l.b16 %v63
  %v358 = vunpack.c.l.b16 %v64
  %v359 = vunpack.c.l.b16 %v65
  %v360 = vunpack.c.l.b16 %v66
  %v361 = vunpack.c.l.b16 %v67
  %v362 = vunpack.c.l.b16 %v68
  %v363 = vunpack.c.l.b16 %v69
  %v364 = vunpack.c.l.b16 %v70
  %v365 = vunpack.c.l.b16 %v71
  %v366 = vunpack.c.l.b16 %v72
  %v367 = vunpack.c.l.b16 %v73
  %v368 = vunpack.c.l.b16 %v74
  %v369 = vunpack.c.l.b16 %v75
  %v370 = vunpack.c.l.b16 %v76
  %v371 = vunpack.c.l.b16 %v77
  %v372 = vunpack.c.l.b16 %v78
  %v373 = vunpack.c.l.b16 %v79
  %v374 = vunpack.c.l.b16 %v80
  %v375 = vunpack.c.l.b16 %v81
  %v376 = vunpack.c.l.b16 %v82
  %v377 = vunpack.c.l.b16 %v83
  %v378 = vunpack.c.l.b16 %v84
  %v379 = vunpack.c.l.b16 %v85
  %v380 = vunpack.c.l.b16 %v86
  %v381 = vunpack.c.l.b16 %v87
  %v382 = vunpack.c.l.b16 %v88
  %v383 = vunpack.c.l.b16 %v89
  %v384 = vunpack.c.l.b16 %v90
  %v385 = vunpack.c.l.b16 %v91
  %v386 = vunpack.c.l.b16 %v92
  %v387 = vunpack.c.l.b16 %v93
  %v388 = vunpack.c.l.b16 %v94
  %v389 = vunpack.c.l.b16 %v95
  %v390 = vunpack.c.l.b16 %v96
  %v391 = vunpack.c.l.b16 %v97
  %v392 = vunpack.c.l.b16 %v98
  %v393 = vunpack.c.l.b16 %v99
  %v394 = vunpack.c.l.b16 %v100
  %v395 = vunpack.c.l.b16 %v101
  %v396 = vunpack.c.l.b16 %v102
  %v397 = vunpack.c.l.b16 %v103
  %v398 = vunpack.c.l.b16 %v104
  %v399 = vunpack.c.l.b16 %v105
  %v400 = vunpack.c.l.b16 %v106
  %v401 = vunpack.c.l.b16 %v107
  %v402 = vunpack.c.l.b16 %v108
  %v403 = vunpack.c.l.b16 %v109
  %v404 = vunpack.c.l.b16 %v110
  %v405 = vunpack.c.l.b16 %v111
  %v406 = vunpack.c.l.b16 %v112
  %v407 = vunpack.c.l.b16 %v113
  %v408 = vunpack.c.l.b16 %v114
  %v409 = vunpack.c.l.b16 %v115
  %v410 = vunpack.c.l.b16 %v116
  %v411 = vunpack.c.l.b16 %v117
  %v412 = vunpack.c.l.b16 %v118
  %v413 = vunpack.c.l.b16 %v119
  %v414 = vunpack.c.l.b16 %v120
  %v415 = vunpack.c.l.b16 %v121
  %v416 = vunpack.c.l.b16 %v122
  %v417 = vunpack.c.l.b16 %v123
  %v418 = vunpack.c.l.b16 %v124
  %v419 = vunpack.c.l.b16 %v125
  %v420 = vunpack.c.l.b16 %v126
  %v421 = vunpack.c.l.b16 %v127
  %v422 = vunpack.c.l.b16 %v128
  %v423 = vunpack.c.l.b16 %v129
  %v424 = vunpack.c.l.b16 %v130
  %v425 = vunpack.c.l.b16 %v131
  %v426 = vunpack.c.l.b16 %v132
  %v427 = vunpack.c.l.b16 %v133
  %v428 = vunpack.c.l.b16 %v134
  %v429 = vunpack.c.l.b16 %v135
  %v430 = vunpack.c.l.b16 %v136
  %v431 = vunpack.c.l.b16 %v137
  %v432 = vunpack.c.l.b16 %v138
  %v433 = vunpack.c.l.b16 %v139
  %v434 = vunpack.c.l.b16 %v140
  %v435 = vunpack.c.l.b16 %v141
  %v436 = vunpack.c.l.b16 %v142
  %v437 = vunpack.c.l.b16 %v143
  %v438 = vunpack.c.l.b16 %v144
  %v439 = vunpack.c.l.b16 %v145
  %v440 = vunpack.c.l.b16 %v146
  %v441 = vunpack.c.l.b16 %v147
  %v442 = vunpack.c.l.b16 %v148
  %v443 = vunpack.c.l.b16 %v149
  %v444 = vunpack.c.l.b16 %v150
  %v445 = vunpack.c.l.b16 %v151
  %v446 = vunpack.c.l.b16 %v152
  %v447 = vunpack.c.l.b16 %v153
  %v448 = vunpack.c.l.b16 %v154
  %v449 = vunpack.c.l.b16 %v155
  %v450 = vunpack.c.l.b16 %v156
  %v451 = vunpack.c.l.b16 %v157
  %v452 = vunpack.c.l.b16 %v158
  %v453 = vunpack.c.l.b16 %v159
  %v454 = vunpack.c.l.b16 %v160
  %v455 = vunpack.c.l.b16 %v161
  %v456 = vunpack.c.l.b16 %v162
  %v457 = vunpack.c.l.b16 %v163
  %v458 = vpack.c.b16 %v314, %v313
  %v459 = vpack.c.b16 %v316, %v315
  %v460 = vpack.c.b16 %v318, %v317
  %v461 = vpack.c.b16 %v320, %v319
  %v462 = vpack.c.b16 %v322, %v321
  %v463 = vpack.c.b16 %v324, %v323
  %v464 = vpack.c.b16 %v326, %v325
  %v465 = vpack.c.b16 %v328, %v327
  %v466 = vpack.c.b16 %v330, %v329
  %v467 = vpack.c.b16 %v332, %v331
  %v468 = vpack.c.b16 %v334, %v333
  %v469 = vpack.c.b16 %v336, %v335
  %v470 = vpack.c.b16 %v338, %v337
  %v471 = vpack.c.b16 %v340, %v339
  %v472 = vpack.c.b16 %v342, %v341
  %v473 = vpack.c.b16 %v344, %v343
  %v474 = vpack.c.b16 %v346, %v345
  %v475 = vpack.c.b16 %v348, %v347
  %v476 = vpack.c.b16 %v350, %v349
  %v477 = vpack.c.b16 %v352, %v351
  %v478 = vpack.c.b16 %v354, %v353
  %v479 = vpack.c.b16 %v356, %v355
  %v480 = vpack.c.b16 %v358, %v357
  %v481 = vpack.c.b16 %v360, %v359
  %v482 = vpack.c.b16 %v362, %v361
  %v483 = vpack.c.b16 %v364, %v363
  %v484 = vpack.c.b16 %v366, %v365
  %v485 = vpack.c.b16 %v368, %v367
  %v486 = vpack.c.b16 %v370, %v369
  %v487 = vpack.c.b16 %v372, %v371
  %v488 = vpack.c.b16 %v374, %v373
  %v489 = vpack.c.b16 %v376, %v375
  %v490 = vpack.c.b16 %v378, %v377
  %v491 = vpack.c.b16 %v380, %v379
  %v492 = vpack.c.b16 %v382, %v381
  %v493 = vpack.c.b16 %v384, %v383
  %v494 = vpack.c.b16 %v386, %v385
  %v495 = vpack.c.b16 %v388, %v387
  %v496 = vpack.c.b16 %v390, %v389
  %v497 = vpack.c.b16 %v392, %v391
  %v498 = vpack.c.b16 %v394, %v393
  %v499 = vpack.c.b16 %v396, %v395
  %v500 = vpack.c.b16 %v398, %v397
  %v501 = vpack.c.b16 %v400, %v399
  %v502 = vpack.c.b16 %v402, %v401
  %v503 = vpack.c.b16 %v404, %v403
  %v504 = vpack.c.b16 %v406, %v405
  %v505 = vpack.c.b16 %v408, %v407
  %v506 = vpack.c.b16 %v410, %v409
  %v507 = vpack.c.b16 %v412, %v411
  %v508 = vpack.c.b16 %v414, %v413
  %v509 = vpack.c.b16 %v416, %v415
  %v510 = vpack.c.b16 %v418, %v417
  %v511 = vpack.c.b16 %v420, %v419
  %v512 = vpack.c.b16 %v422, %v421
  %v513 = vpack.c.b16 %v424, %v423
  %v514 = vpack.c.b16 %v426, %v425
  %v515 = vpack.c.b16 %v428, %v427
  %v516 = vpack.c.b16 %v430, %v429
  %v517 = vpack.c.b16 %v432, %v431
  %v518 = vpack.c.b16 %v434, %v433
  %v519 = vpack.c.b16 %v436, %v435
  %v520 = vpack.c.b16 %v438, %v437
  %v521 = vpack.c.b16 %v440, %v439
  %v522 = vpack.c.b16 %v442, %v441
  %v523 = vpack.c.b16 %v444, %v443
  %v524 = vpack.c.b16 %v446, %v445
  %v525 = vpack.c.b16 %v448, %v447
  %v526 = vpack.c.b16 %v450, %v449
  %v527 = vpack.c.b16 %v452, %v451
  %v528 = vpack.c.b16 %v454, %v453
  %v529 = vpack.c.b16 %v456, %v455
  %v530 = vpack.c.b16 %v457, %v457
  %v535 = vunpack.c.l.b16 %v164
  %v536 = vunpack.c.l.b16 %v165
  %v537 = vunpack.c.l.b16 %v166
  %v538 = vunpack.c.l.b16 %v167
  %v539 = vpack.c.b16 %v536, %v535
  %v540 = vpack.c.b16 %v538, %v537
  %vm542 = vcmask 220160
  %v544 = vsel %vm542, %v458, 0
  %v547 = vsel %vm542, %v459, 0
  %v550 = vsel %vm542, %v460, 0
  %v553 = vsel %vm542, %v461, 0
  %v556 = vsel %vm542, %v462, 0
  %v559 = vsel %vm542, %v463, 0
  %v562 = vsel %vm542, %v464, 0
  %v565 = vsel %vm542, %v465, 0
  %v568 = vsel %vm542, %v466, 0
  %v571 = vsel %vm542, %v467, 0
  %v574 = vsel %vm542, %v468, 0
  %v577 = vsel %vm542, %v469, 0
  %v580 = vsel %vm542, %v470, 0
  %v583 = vsel %vm542, %v471, 0
  %v586 = vsel %vm542, %v472, 0
  %v589 = vsel %vm542, %v473, 0
  %v592 = vsel %vm542, %v474, 0
  %v595 = vsel %vm542, %v475, 0
  %v598 = vsel %vm542, %v476, 0
  %v601 = vsel %vm542, %v477, 0
  %v604 = vsel %vm542, %v478, 0
  %v607 = vsel %vm542, %v479, 0
  %v610 = vsel %vm542, %v480, 0
  %v613 = vsel %vm542, %v481, 0
  %v616 = vsel %vm542, %v482, 0
  %v619 = vsel %vm542, %v483, 0
  %v622 = vsel %vm542, %v484, 0
  %v625 = vsel %vm542, %v485, 0
  %v628 = vsel %vm542, %v486, 0
  %v631 = vsel %vm542, %v487, 0
  %v634 = vsel %vm542, %v488, 0
  %v637 = vsel %vm542, %v489, 0
  %v640 = vsel %vm542, %v490, 0
  %v643 = vsel %vm542, %v491, 0
  %v646 = vsel %vm542, %v492, 0
  %v649 = vsel %vm542, %v493, 0
  %v652 = vsel %vm542, %v494, 0
  %v655 = vsel %vm542, %v495, 0
  %v658 = vsel %vm542, %v496, 0
  %v661 = vsel %vm542, %v497, 0
  %v664 = vsel %vm542, %v498, 0
  %v667 = vsel %vm542, %v499, 0
  %v670 = vsel %vm542, %v500, 0
  %v673 = vsel %vm542, %v501, 0
  %v676 = vsel %vm542, %v502, 0
  %v679 = vsel %vm542, %v503, 0
  %v682 = vsel %vm542, %v504, 0
  %v685 = vsel %vm542, %v505, 0
  %v688 = vsel %vm542, %v506, 0
  %v691 = vsel %vm542, %v507, 0
  %v694 = vsel %vm542, %v508, 0
  %v697 = vsel %vm542, %v509, 0
  %v700 = vsel %vm542, %v510, 0
  %v703 = vsel %vm542, %v511, 0
  %v706 = vsel %vm542, %v512, 0
  %v709 = vsel %vm542, %v513, 0
  %v712 = vsel %vm542, %v514, 0
  %v715 = vsel %vm542, %v515, 0
  %v718 = vsel %vm542, %v516, 0
  %v721 = vsel %vm542, %v517, 0
  %v724 = vsel %vm542, %v518, 0
  %v727 = vsel %vm542, %v519, 0
  %v730 = vsel %vm542, %v520, 0
  %v733 = vsel %vm542, %v521, 0
  %v736 = vsel %vm542, %v522, 0
  %v739 = vsel %vm542, %v523, 0
  %v742 = vsel %vm542, %v524, 0
  %v745 = vsel %vm542, %v525, 0
  %v748 = vsel %vm542, %v526, 0
  %v751 = vsel %vm542, %v527, 0
  %v754 = vsel %vm542, %v528, 0
  %v757 = vsel %vm542, %v529, 0
  %v760 = vsel %vm542, %v530, 0
  %vm762 = vcmask 1044480
  %vm763 = vcmask 1045504
  %v764 = vsel %vm762, 4294967295, 65535
  %v765 = vsel %vm763, %v764, 0
  %v767 = vand.u32 %v540, %v765
  %769 = vmatprep.subr.bf16.mxu0 0
  %770 = vmatpush1.bf16.msra.mxu0 %v539
  %771 = vmatprep.subr.bf16.mxu0 0
  %772 = vmatpush1.bf16.msra.mxu0 %v767
  %773 = vmatprep.subr.bf16.mxu0 0
  %774 = vmatpush1.bf16.msra.mxu0 0
  %775 = vmatprep.subr.bf16.mxu0 0
  %776 = vmatpush1.bf16.msra.mxu0 0
  %777 = vmatprep.subr.bf16.mxu0 0
  %778 = vmatpush1.bf16.msra.mxu0 0
  %779 = vmatprep.subr.bf16.mxu0 0
  %780 = vmatpush1.bf16.msra.mxu0 0
  %781 = vmatprep.subr.bf16.mxu0 0
  %782 = vmatpush1.bf16.msra.mxu0 0
  %783 = vmatprep.subr.bf16.mxu0 0
  %784 = vmatpush1.bf16.msra.mxu0 0
  %785 = vmatprep.subr.bf16.mxu0 0
  %786 = vmatpush1.bf16.msra.mxu0 0
  %787 = vmatprep.subr.bf16.mxu0 0
  %788 = vmatpush1.bf16.msra.mxu0 0
  %789 = vmatprep.subr.bf16.mxu0 0
  %790 = vmatpush1.bf16.msra.mxu0 0
  %791 = vmatprep.subr.bf16.mxu0 0
  %792 = vmatpush1.bf16.msra.mxu0 0
  %793 = vmatprep.subr.bf16.mxu0 0
  %794 = vmatpush1.bf16.msra.mxu0 0
  %795 = vmatprep.subr.bf16.mxu0 0
  %796 = vmatpush1.bf16.msra.mxu0 0
  %797 = vmatprep.subr.bf16.mxu0 0
  %798 = vmatpush1.bf16.msra.mxu0 0
  %799 = vmatprep.subr.bf16.mxu0 0
  %800 = vmatpush1.bf16.msra.mxu0 0
  %801 = vmatprep.mubr.bf16.mxu0 0
  %802 = vmatmul.mubr.bf16.gmra.mrb[0].mxu0 %v544
  %v803 = vpop.f32.mrb[0].mxu0
  %v804 = vadd.f32 0.0, %v803
  %v805 = vpop.f32.mrb[0].mxu0
  %v806 = vpop.f32.mrb[0].mxu0
  %v807 = vadd.f32 0.0, %v806
  %v808 = vpop.f32.mrb[0].mxu0
  %809 = vmatprep.mubr.bf16.mxu0 0
  %810 = vmatmul.mubr.bf16.gmra.mrb[0].mxu0 %v547
  %v811 = vpop.f32.mrb[0].mxu0
  %v812 = vadd.f32 0.0, %v811
  %v813 = vpop.f32.mrb[0].mxu0
  %v814 = vpop.f32.mrb[0].mxu0
  %v815 = vadd.f32 0.0, %v814
  %v816 = vpop.f32.mrb[0].mxu0
  %817 = vmatprep.mubr.bf16.mxu0 0
  %818 = vmatmul.mubr.bf16.gmra.mrb[0].mxu0 %v550
  %v819 = vpop.f32.mrb[0].mxu0
  %v820 = vadd.f32 0.0, %v819
  %v821 = vpop.f32.mrb[0].mxu0
  %v822 = vpop.f32.mrb[0].mxu0
  %v823 = vadd.f32 0.0, %v822
  %v824 = vpop.f32.mrb[0].mxu0
  %825 = vmatprep.mubr.bf16.mxu0 0
  %826 = vmatmul.mubr.bf16.gmra.mrb[0].mxu0 %v553
  %v827 = vpop.f32.mrb[0].mxu0
  %v828 = vadd.f32 0.0, %v827
  %v829 = vpop.f32.mrb[0].mxu0
  %v830 = vpop.f32.mrb[0].mxu0
  %v831 = vadd.f32 0.0, %v830
  %v832 = vpop.f32.mrb[0].mxu0
  %833 = vmatprep.mubr.bf16.mxu0 0
  %834 = vmatmul.mubr.bf16.gmra.mrb[0].mxu0 %v556
  %v835 = vpop.f32.mrb[0].mxu0
  %v836 = vadd.f32 0.0, %v835
  %v837 = vpop.f32.mrb[0].mxu0
  %v838 = vpop.f32.mrb[0].mxu0
  %v839 = vadd.f32 0.0, %v838
  %v840 = vpop.f32.mrb[0].mxu0
  %841 = vmatprep.mubr.bf16.mxu0 0
  %842 = vmatmul.mubr.bf16.gmra.mrb[0].mxu0 %v559
  %v843 = vpop.f32.mrb[0].mxu0
  %v844 = vadd.f32 0.0, %v843
  %v845 = vpop.f32.mrb[0].mxu0
  %v846 = vpop.f32.mrb[0].mxu0
  %v847 = vadd.f32 0.0, %v846
  %v848 = vpop.f32.mrb[0].mxu0
  %849 = vmatprep.mubr.bf16.mxu0 0
  %850 = vmatmul.mubr.bf16.gmra.mrb[0].mxu0 %v562
  %v851 = vpop.f32.mrb[0].mxu0
  %v852 = vadd.f32 0.0, %v851
  %v853 = vpop.f32.mrb[0].mxu0
  %v854 = vpop.f32.mrb[0].mxu0
  %v855 = vadd.f32 0.0, %v854
  %v856 = vpop.f32.mrb[0].mxu0
  %857 = vmatprep.mubr.bf16.mxu0 0
  %858 = vmatmul.mubr.bf16.gmra.mrb[0].mxu0 %v565
  %v859 = vpop.f32.mrb[0].mxu0
  %v860 = vadd.f32 0.0, %v859
  %v861 = vpop.f32.mrb[0].mxu0
  %v862 = vpop.f32.mrb[0].mxu0
  %v863 = vadd.f32 0.0, %v862
  %v864 = vpop.f32.mrb[0].mxu0
  %865 = vmatprep.mubr.bf16.mxu0 0
  %866 = vmatmul.mubr.bf16.gmra.mrb[0].mxu0 %v568
  %v867 = vpop.f32.mrb[0].mxu0
  %v868 = vadd.f32 0.0, %v867
  %v869 = vpop.f32.mrb[0].mxu0
  %v870 = vpop.f32.mrb[0].mxu0
  %v871 = vadd.f32 0.0, %v870
  %v872 = vpop.f32.mrb[0].mxu0
  %873 = vmatprep.mubr.bf16.mxu0 0
  %874 = vmatmul.mubr.bf16.gmra.mrb[0].mxu0 %v571
  %v875 = vpop.f32.mrb[0].mxu0
  %v876 = vadd.f32 0.0, %v875
  %v877 = vpop.f32.mrb[0].mxu0
  %v878 = vpop.f32.mrb[0].mxu0
  %v879 = vadd.f32 0.0, %v878
  %v880 = vpop.f32.mrb[0].mxu0
  %881 = vmatprep.mubr.bf16.mxu0 0
  %882 = vmatmul.mubr.bf16.gmra.mrb[0].mxu0 %v574
  %v883 = vpop.f32.mrb[0].mxu0
  %v884 = vadd.f32 0.0, %v883
  %v885 = vpop.f32.mrb[0].mxu0
  %v886 = vpop.f32.mrb[0].mxu0
  %v887 = vadd.f32 0.0, %v886
  %v888 = vpop.f32.mrb[0].mxu0
  %889 = vmatprep.mubr.bf16.mxu0 0
  %890 = vmatmul.mubr.bf16.gmra.mrb[0].mxu0 %v577
  %v891 = vpop.f32.mrb[0].mxu0
  %v892 = vadd.f32 0.0, %v891
  %v893 = vpop.f32.mrb[0].mxu0
  %v894 = vpop.f32.mrb[0].mxu0
  %v895 = vadd.f32 0.0, %v894
  %v896 = vpop.f32.mrb[0].mxu0
  %897 = vmatprep.mubr.bf16.mxu0 0
  %898 = vmatmul.mubr.bf16.gmra.mrb[0].mxu0 %v580
  %v899 = vpop.f32.mrb[0].mxu0
  %v900 = vadd.f32 0.0, %v899
  %v901 = vpop.f32.mrb[0].mxu0
  %v902 = vpop.f32.mrb[0].mxu0
  %v903 = vadd.f32 0.0, %v902
  %v904 = vpop.f32.mrb[0].mxu0
  %905 = vmatprep.mubr.bf16.mxu0 0
  %906 = vmatmul.mubr.bf16.gmra.mrb[0].mxu0 %v583
  %v907 = vpop.f32.mrb[0].mxu0
  %v908 = vadd.f32 0.0, %v907
  %v909 = vpop.f32.mrb[0].mxu0
  %v910 = vpop.f32.mrb[0].mxu0
  %v911 = vadd.f32 0.0, %v910
  %v912 = vpop.f32.mrb[0].mxu0
  %913 = vmatprep.mubr.bf16.mxu0 0
  %914 = vmatmul.mubr.bf16.gmra.mrb[0].mxu0 %v586
  %v915 = vpop.f32.mrb[0].mxu0
  %v916 = vadd.f32 0.0, %v915
  %v917 = vpop.f32.mrb[0].mxu0
  %v918 = vpop.f32.mrb[0].mxu0
  %v919 = vadd.f32 0.0, %v918
  %v920 = vpop.f32.mrb[0].mxu0
  %921 = vmatprep.mubr.bf16.mxu0 0
  %922 = vmatmul.mubr.bf16.gmra.mrb[0].mxu0 %v589
  %v923 = vpop.f32.mrb[0].mxu0
  %v924 = vadd.f32 0.0, %v923
  %v925 = vpop.f32.mrb[0].mxu0
  %v926 = vpop.f32.mrb[0].mxu0
  %v927 = vadd.f32 0.0, %v926
  %v928 = vpop.f32.mrb[0].mxu0
  %929 = vmatprep.mubr.bf16.mxu0 0
  %930 = vmatmul.mubr.bf16.gmra.mrb[0].mxu0 %v592
  %v931 = vpop.f32.mrb[0].mxu0
  %v932 = vadd.f32 0.0, %v931
  %v933 = vpop.f32.mrb[0].mxu0
  %v934 = vpop.f32.mrb[0].mxu0
  %v935 = vadd.f32 0.0, %v934
  %v936 = vpop.f32.mrb[0].mxu0
  %937 = vmatprep.mubr.bf16.mxu0 0
  %938 = vmatmul.mubr.bf16.gmra.mrb[0].mxu0 %v595
  %v939 = vpop.f32.mrb[0].mxu0
  %v940 = vadd.f32 0.0, %v939
  %v941 = vpop.f32.mrb[0].mxu0
  %v942 = vpop.f32.mrb[0].mxu0
  %v943 = vadd.f32 0.0, %v942
  %v944 = vpop.f32.mrb[0].mxu0
  %945 = vmatprep.mubr.bf16.mxu0 0
  %946 = vmatmul.mubr.bf16.gmra.mrb[0].mxu0 %v598
  %v947 = vpop.f32.mrb[0].mxu0
  %v948 = vadd.f32 0.0, %v947
  %v949 = vpop.f32.mrb[0].mxu0
  %v950 = vpop.f32.mrb[0].mxu0
  %v951 = vadd.f32 0.0, %v950
  %v952 = vpop.f32.mrb[0].mxu0
  %953 = vmatprep.mubr.bf16.mxu0 0
  %954 = vmatmul.mubr.bf16.gmra.mrb[0].mxu0 %v601
  %v955 = vpop.f32.mrb[0].mxu0
  %v956 = vadd.f32 0.0, %v955
  %v957 = vpop.f32.mrb[0].mxu0
  %v958 = vpop.f32.mrb[0].mxu0
  %v959 = vadd.f32 0.0, %v958
  %v960 = vpop.f32.mrb[0].mxu0
  %961 = vmatprep.mubr.bf16.mxu0 0
  %962 = vmatmul.mubr.bf16.gmra.mrb[0].mxu0 %v604
  %v963 = vpop.f32.mrb[0].mxu0
  %v964 = vadd.f32 0.0, %v963
  %v965 = vpop.f32.mrb[0].mxu0
  %v966 = vpop.f32.mrb[0].mxu0
  %v967 = vadd.f32 0.0, %v966
  %v968 = vpop.f32.mrb[0].mxu0
  %969 = vmatprep.mubr.bf16.mxu0 0
  %970 = vmatmul.mubr.bf16.gmra.mrb[0].mxu0 %v607
  %v971 = vpop.f32.mrb[0].mxu0
  %v972 = vadd.f32 0.0, %v971
  %v973 = vpop.f32.mrb[0].mxu0
  %v974 = vpop.f32.mrb[0].mxu0
  %v975 = vadd.f32 0.0, %v974
  %v976 = vpop.f32.mrb[0].mxu0
  %977 = vmatprep.mubr.bf16.mxu0 0
  %978 = vmatmul.mubr.bf16.gmra.mrb[0].mxu0 %v610
  %v979 = vpop.f32.mrb[0].mxu0
  %v980 = vadd.f32 0.0, %v979
  %v981 = vpop.f32.mrb[0].mxu0
  %v982 = vpop.f32.mrb[0].mxu0
  %v983 = vadd.f32 0.0, %v982
  %v984 = vpop.f32.mrb[0].mxu0
  %985 = vmatprep.mubr.bf16.mxu0 0
  %986 = vmatmul.mubr.bf16.gmra.mrb[0].mxu0 %v613
  %v987 = vpop.f32.mrb[0].mxu0
  %v988 = vadd.f32 0.0, %v987
  %v989 = vpop.f32.mrb[0].mxu0
  %v990 = vpop.f32.mrb[0].mxu0
  %v991 = vadd.f32 0.0, %v990
  %v992 = vpop.f32.mrb[0].mxu0
  %993 = vmatprep.mubr.bf16.mxu0 0
  %994 = vmatmul.mubr.bf16.gmra.mrb[0].mxu0 %v616
  %v995 = vpop.f32.mrb[0].mxu0
  %v996 = vadd.f32 0.0, %v995
  %v997 = vpop.f32.mrb[0].mxu0
  %v998 = vpop.f32.mrb[0].mxu0
  %v999 = vadd.f32 0.0, %v998
  %v1000 = vpop.f32.mrb[0].mxu0
  %1001 = vmatprep.mubr.bf16.mxu0 0
  %1002 = vmatmul.mubr.bf16.gmra.mrb[0].mxu0 %v619
  %v1003 = vpop.f32.mrb[0].mxu0
  %v1004 = vadd.f32 0.0, %v1003
  %v1005 = vpop.f32.mrb[0].mxu0
  %v1006 = vpop.f32.mrb[0].mxu0
  %v1007 = vadd.f32 0.0, %v1006
  %v1008 = vpop.f32.mrb[0].mxu0
  %1009 = vmatprep.mubr.bf16.mxu0 0
  %1010 = vmatmul.mubr.bf16.gmra.mrb[0].mxu0 %v622
  %v1011 = vpop.f32.mrb[0].mxu0
  %v1012 = vadd.f32 0.0, %v1011
  %v1013 = vpop.f32.mrb[0].mxu0
  %v1014 = vpop.f32.mrb[0].mxu0
  %v1015 = vadd.f32 0.0, %v1014
  %v1016 = vpop.f32.mrb[0].mxu0
  %1017 = vmatprep.mubr.bf16.mxu0 0
  %1018 = vmatmul.mubr.bf16.gmra.mrb[0].mxu0 %v625
  %v1019 = vpop.f32.mrb[0].mxu0
  %v1020 = vadd.f32 0.0, %v1019
  %v1021 = vpop.f32.mrb[0].mxu0
  %v1022 = vpop.f32.mrb[0].mxu0
  %v1023 = vadd.f32 0.0, %v1022
  %v1024 = vpop.f32.mrb[0].mxu0
  %1025 = vmatprep.mubr.bf16.mxu0 0
  %1026 = vmatmul.mubr.bf16.gmra.mrb[0].mxu0 %v628
  %v1027 = vpop.f32.mrb[0].mxu0
  %v1028 = vadd.f32 0.0, %v1027
  %v1029 = vpop.f32.mrb[0].mxu0
  %v1030 = vpop.f32.mrb[0].mxu0
  %v1031 = vadd.f32 0.0, %v1030
  %v1032 = vpop.f32.mrb[0].mxu0
  %1033 = vmatprep.mubr.bf16.mxu0 0
  %1034 = vmatmul.mubr.bf16.gmra.mrb[0].mxu0 %v631
  %v1035 = vpop.f32.mrb[0].mxu0
  %v1036 = vadd.f32 0.0, %v1035
  %v1037 = vpop.f32.mrb[0].mxu0
  %v1038 = vpop.f32.mrb[0].mxu0
  %v1039 = vadd.f32 0.0, %v1038
  %v1040 = vpop.f32.mrb[0].mxu0
  %1041 = vmatprep.mubr.bf16.mxu0 0
  %1042 = vmatmul.mubr.bf16.gmra.mrb[0].mxu0 %v634
  %v1043 = vpop.f32.mrb[0].mxu0
  %v1044 = vadd.f32 0.0, %v1043
  %v1045 = vpop.f32.mrb[0].mxu0
  %v1046 = vpop.f32.mrb[0].mxu0
  %v1047 = vadd.f32 0.0, %v1046
  %v1048 = vpop.f32.mrb[0].mxu0
  %1049 = vmatprep.mubr.bf16.mxu0 0
  %1050 = vmatmul.mubr.bf16.gmra.mrb[0].mxu0 %v637
  %v1051 = vpop.f32.mrb[0].mxu0
  %v1052 = vadd.f32 0.0, %v1051
  %v1053 = vpop.f32.mrb[0].mxu0
  %v1054 = vpop.f32.mrb[0].mxu0
  %v1055 = vadd.f32 0.0, %v1054
  %v1056 = vpop.f32.mrb[0].mxu0
  %1057 = vmatprep.mubr.bf16.mxu0 0
  %1058 = vmatmul.mubr.bf16.gmra.mrb[0].mxu0 %v640
  %v1059 = vpop.f32.mrb[0].mxu0
  %v1060 = vadd.f32 0.0, %v1059
  %v1061 = vpop.f32.mrb[0].mxu0
  %v1062 = vpop.f32.mrb[0].mxu0
  %v1063 = vadd.f32 0.0, %v1062
  %v1064 = vpop.f32.mrb[0].mxu0
  %1065 = vmatprep.mubr.bf16.mxu0 0
  %1066 = vmatmul.mubr.bf16.gmra.mrb[0].mxu0 %v643
  %v1067 = vpop.f32.mrb[0].mxu0
  %v1068 = vadd.f32 0.0, %v1067
  %v1069 = vpop.f32.mrb[0].mxu0
  %v1070 = vpop.f32.mrb[0].mxu0
  %v1071 = vadd.f32 0.0, %v1070
  %v1072 = vpop.f32.mrb[0].mxu0
  %1073 = vmatprep.mubr.bf16.mxu0 0
  %1074 = vmatmul.mubr.bf16.gmra.mrb[0].mxu0 %v646
  %v1075 = vpop.f32.mrb[0].mxu0
  %v1076 = vadd.f32 0.0, %v1075
  %v1077 = vpop.f32.mrb[0].mxu0
  %v1078 = vpop.f32.mrb[0].mxu0
  %v1079 = vadd.f32 0.0, %v1078
  %v1080 = vpop.f32.mrb[0].mxu0
  %1081 = vmatprep.mubr.bf16.mxu0 0
  %1082 = vmatmul.mubr.bf16.gmra.mrb[0].mxu0 %v649
  %v1083 = vpop.f32.mrb[0].mxu0
  %v1084 = vadd.f32 0.0, %v1083
  %v1085 = vpop.f32.mrb[0].mxu0
  %v1086 = vpop.f32.mrb[0].mxu0
  %v1087 = vadd.f32 0.0, %v1086
  %v1088 = vpop.f32.mrb[0].mxu0
  %1089 = vmatprep.mubr.bf16.mxu0 0
  %1090 = vmatmul.mubr.bf16.gmra.mrb[0].mxu0 %v652
  %v1091 = vpop.f32.mrb[0].mxu0
  %v1092 = vadd.f32 0.0, %v1091
  %v1093 = vpop.f32.mrb[0].mxu0
  %v1094 = vpop.f32.mrb[0].mxu0
  %v1095 = vadd.f32 0.0, %v1094
  %v1096 = vpop.f32.mrb[0].mxu0
  %1097 = vmatprep.mubr.bf16.mxu0 0
  %1098 = vmatmul.mubr.bf16.gmra.mrb[0].mxu0 %v655
  %v1099 = vpop.f32.mrb[0].mxu0
  %v1100 = vadd.f32 0.0, %v1099
  %v1101 = vpop.f32.mrb[0].mxu0
  %v1102 = vpop.f32.mrb[0].mxu0
  %v1103 = vadd.f32 0.0, %v1102
  %v1104 = vpop.f32.mrb[0].mxu0
  %1105 = vmatprep.mubr.bf16.mxu0 0
  %1106 = vmatmul.mubr.bf16.gmra.mrb[0].mxu0 %v658
  %v1107 = vpop.f32.mrb[0].mxu0
  %v1108 = vadd.f32 0.0, %v1107
  %v1109 = vpop.f32.mrb[0].mxu0
  %v1110 = vpop.f32.mrb[0].mxu0
  %v1111 = vadd.f32 0.0, %v1110
  %v1112 = vpop.f32.mrb[0].mxu0
  %1113 = vmatprep.mubr.bf16.mxu0 0
  %1114 = vmatmul.mubr.bf16.gmra.mrb[0].mxu0 %v661
  %v1115 = vpop.f32.mrb[0].mxu0
  %v1116 = vadd.f32 0.0, %v1115
  %v1117 = vpop.f32.mrb[0].mxu0
  %v1118 = vpop.f32.mrb[0].mxu0
  %v1119 = vadd.f32 0.0, %v1118
  %v1120 = vpop.f32.mrb[0].mxu0
  %1121 = vmatprep.mubr.bf16.mxu0 0
  %1122 = vmatmul.mubr.bf16.gmra.mrb[0].mxu0 %v664
  %v1123 = vpop.f32.mrb[0].mxu0
  %v1124 = vadd.f32 0.0, %v1123
  %v1125 = vpop.f32.mrb[0].mxu0
  %v1126 = vpop.f32.mrb[0].mxu0
  %v1127 = vadd.f32 0.0, %v1126
  %v1128 = vpop.f32.mrb[0].mxu0
  %1129 = vmatprep.mubr.bf16.mxu0 0
  %1130 = vmatmul.mubr.bf16.gmra.mrb[0].mxu0 %v667
  %v1131 = vpop.f32.mrb[0].mxu0
  %v1132 = vadd.f32 0.0, %v1131
  %v1133 = vpop.f32.mrb[0].mxu0
  %v1134 = vpop.f32.mrb[0].mxu0
  %v1135 = vadd.f32 0.0, %v1134
  %v1136 = vpop.f32.mrb[0].mxu0
  %1137 = vmatprep.mubr.bf16.mxu0 0
  %1138 = vmatmul.mubr.bf16.gmra.mrb[0].mxu0 %v670
  %v1139 = vpop.f32.mrb[0].mxu0
  %v1140 = vadd.f32 0.0, %v1139
  %v1141 = vpop.f32.mrb[0].mxu0
  %v1142 = vpop.f32.mrb[0].mxu0
  %v1143 = vadd.f32 0.0, %v1142
  %v1144 = vpop.f32.mrb[0].mxu0
  %1145 = vmatprep.mubr.bf16.mxu0 0
  %1146 = vmatmul.mubr.bf16.gmra.mrb[0].mxu0 %v673
  %v1147 = vpop.f32.mrb[0].mxu0
  %v1148 = vadd.f32 0.0, %v1147
  %v1149 = vpop.f32.mrb[0].mxu0
  %v1150 = vpop.f32.mrb[0].mxu0
  %v1151 = vadd.f32 0.0, %v1150
  %v1152 = vpop.f32.mrb[0].mxu0
  %1153 = vmatprep.mubr.bf16.mxu0 0
  %1154 = vmatmul.mubr.bf16.gmra.mrb[0].mxu0 %v676
  %v1155 = vpop.f32.mrb[0].mxu0
  %v1156 = vadd.f32 0.0, %v1155
  %v1157 = vpop.f32.mrb[0].mxu0
  %v1158 = vpop.f32.mrb[0].mxu0
  %v1159 = vadd.f32 0.0, %v1158
  %v1160 = vpop.f32.mrb[0].mxu0
  %1161 = vmatprep.mubr.bf16.mxu0 0
  %1162 = vmatmul.mubr.bf16.gmra.mrb[0].mxu0 %v679
  %v1163 = vpop.f32.mrb[0].mxu0
  %v1164 = vadd.f32 0.0, %v1163
  %v1165 = vpop.f32.mrb[0].mxu0
  %v1166 = vpop.f32.mrb[0].mxu0
  %v1167 = vadd.f32 0.0, %v1166
  %v1168 = vpop.f32.mrb[0].mxu0
  %1169 = vmatprep.mubr.bf16.mxu0 0
  %1170 = vmatmul.mubr.bf16.gmra.mrb[0].mxu0 %v682
  %v1171 = vpop.f32.mrb[0].mxu0
  %v1172 = vadd.f32 0.0, %v1171
  %v1173 = vpop.f32.mrb[0].mxu0
  %v1174 = vpop.f32.mrb[0].mxu0
  %v1175 = vadd.f32 0.0, %v1174
  %v1176 = vpop.f32.mrb[0].mxu0
  %1177 = vmatprep.mubr.bf16.mxu0 0
  %1178 = vmatmul.mubr.bf16.gmra.mrb[0].mxu0 %v685
  %v1179 = vpop.f32.mrb[0].mxu0
  %v1180 = vadd.f32 0.0, %v1179
  %v1181 = vpop.f32.mrb[0].mxu0
  %v1182 = vpop.f32.mrb[0].mxu0
  %v1183 = vadd.f32 0.0, %v1182
  %v1184 = vpop.f32.mrb[0].mxu0
  %1185 = vmatprep.mubr.bf16.mxu0 0
  %1186 = vmatmul.mubr.bf16.gmra.mrb[0].mxu0 %v688
  %v1187 = vpop.f32.mrb[0].mxu0
  %v1188 = vadd.f32 0.0, %v1187
  %v1189 = vpop.f32.mrb[0].mxu0
  %v1190 = vpop.f32.mrb[0].mxu0
  %v1191 = vadd.f32 0.0, %v1190
  %v1192 = vpop.f32.mrb[0].mxu0
  %1193 = vmatprep.mubr.bf16.mxu0 0
  %1194 = vmatmul.mubr.bf16.gmra.mrb[0].mxu0 %v691
  %v1195 = vpop.f32.mrb[0].mxu0
  %v1196 = vadd.f32 0.0, %v1195
  %v1197 = vpop.f32.mrb[0].mxu0
  %v1198 = vpop.f32.mrb[0].mxu0
  %v1199 = vadd.f32 0.0, %v1198
  %v1200 = vpop.f32.mrb[0].mxu0
  %1201 = vmatprep.mubr.bf16.mxu0 0
  %1202 = vmatmul.mubr.bf16.gmra.mrb[0].mxu0 %v694
  %v1203 = vpop.f32.mrb[0].mxu0
  %v1204 = vadd.f32 0.0, %v1203
  %v1205 = vpop.f32.mrb[0].mxu0
  %v1206 = vpop.f32.mrb[0].mxu0
  %v1207 = vadd.f32 0.0, %v1206
  %v1208 = vpop.f32.mrb[0].mxu0
  %1209 = vmatprep.mubr.bf16.mxu0 0
  %1210 = vmatmul.mubr.bf16.gmra.mrb[0].mxu0 %v697
  %v1211 = vpop.f32.mrb[0].mxu0
  %v1212 = vadd.f32 0.0, %v1211
  %v1213 = vpop.f32.mrb[0].mxu0
  %v1214 = vpop.f32.mrb[0].mxu0
  %v1215 = vadd.f32 0.0, %v1214
  %v1216 = vpop.f32.mrb[0].mxu0
  %1217 = vmatprep.mubr.bf16.mxu0 0
  %1218 = vmatmul.mubr.bf16.gmra.mrb[0].mxu0 %v700
  %v1219 = vpop.f32.mrb[0].mxu0
  %v1220 = vadd.f32 0.0, %v1219
  %v1221 = vpop.f32.mrb[0].mxu0
  %v1222 = vpop.f32.mrb[0].mxu0
  %v1223 = vadd.f32 0.0, %v1222
  %v1224 = vpop.f32.mrb[0].mxu0
  %1225 = vmatprep.mubr.bf16.mxu0 0
  %1226 = vmatmul.mubr.bf16.gmra.mrb[0].mxu0 %v703
  %v1227 = vpop.f32.mrb[0].mxu0
  %v1228 = vadd.f32 0.0, %v1227
  %v1229 = vpop.f32.mrb[0].mxu0
  %v1230 = vpop.f32.mrb[0].mxu0
  %v1231 = vadd.f32 0.0, %v1230
  %v1232 = vpop.f32.mrb[0].mxu0
  %1233 = vmatprep.mubr.bf16.mxu0 0
  %1234 = vmatmul.mubr.bf16.gmra.mrb[0].mxu0 %v706
  %v1235 = vpop.f32.mrb[0].mxu0
  %v1236 = vadd.f32 0.0, %v1235
  %v1237 = vpop.f32.mrb[0].mxu0
  %v1238 = vpop.f32.mrb[0].mxu0
  %v1239 = vadd.f32 0.0, %v1238
  %v1240 = vpop.f32.mrb[0].mxu0
  %1241 = vmatprep.mubr.bf16.mxu0 0
  %1242 = vmatmul.mubr.bf16.gmra.mrb[0].mxu0 %v709
  %v1243 = vpop.f32.mrb[0].mxu0
  %v1244 = vadd.f32 0.0, %v1243
  %v1245 = vpop.f32.mrb[0].mxu0
  %v1246 = vpop.f32.mrb[0].mxu0
  %v1247 = vadd.f32 0.0, %v1246
  %v1248 = vpop.f32.mrb[0].mxu0
  %1249 = vmatprep.mubr.bf16.mxu0 0
  %1250 = vmatmul.mubr.bf16.gmra.mrb[0].mxu0 %v712
  %v1251 = vpop.f32.mrb[0].mxu0
  %v1252 = vadd.f32 0.0, %v1251
  %v1253 = vpop.f32.mrb[0].mxu0
  %v1254 = vpop.f32.mrb[0].mxu0
  %v1255 = vadd.f32 0.0, %v1254
  %v1256 = vpop.f32.mrb[0].mxu0
  %1257 = vmatprep.mubr.bf16.mxu0 0
  %1258 = vmatmul.mubr.bf16.gmra.mrb[0].mxu0 %v715
  %v1259 = vpop.f32.mrb[0].mxu0
  %v1260 = vadd.f32 0.0, %v1259
  %v1261 = vpop.f32.mrb[0].mxu0
  %v1262 = vpop.f32.mrb[0].mxu0
  %v1263 = vadd.f32 0.0, %v1262
  %v1264 = vpop.f32.mrb[0].mxu0
  %1265 = vmatprep.mubr.bf16.mxu0 0
  %1266 = vmatmul.mubr.bf16.gmra.mrb[0].mxu0 %v718
  %v1267 = vpop.f32.mrb[0].mxu0
  %v1268 = vadd.f32 0.0, %v1267
  %v1269 = vpop.f32.mrb[0].mxu0
  %v1270 = vpop.f32.mrb[0].mxu0
  %v1271 = vadd.f32 0.0, %v1270
  %v1272 = vpop.f32.mrb[0].mxu0
  %1273 = vmatprep.mubr.bf16.mxu0 0
  %1274 = vmatmul.mubr.bf16.gmra.mrb[0].mxu0 %v721
  %v1275 = vpop.f32.mrb[0].mxu0
  %v1276 = vadd.f32 0.0, %v1275
  %v1277 = vpop.f32.mrb[0].mxu0
  %v1278 = vpop.f32.mrb[0].mxu0
  %v1279 = vadd.f32 0.0, %v1278
  %v1280 = vpop.f32.mrb[0].mxu0
  %1281 = vmatprep.mubr.bf16.mxu0 0
  %1282 = vmatmul.mubr.bf16.gmra.mrb[0].mxu0 %v724
  %v1283 = vpop.f32.mrb[0].mxu0
  %v1284 = vadd.f32 0.0, %v1283
  %v1285 = vpop.f32.mrb[0].mxu0
  %v1286 = vpop.f32.mrb[0].mxu0
  %v1287 = vadd.f32 0.0, %v1286
  %v1288 = vpop.f32.mrb[0].mxu0
  %1289 = vmatprep.mubr.bf16.mxu0 0
  %1290 = vmatmul.mubr.bf16.gmra.mrb[0].mxu0 %v727
  %v1291 = vpop.f32.mrb[0].mxu0
  %v1292 = vadd.f32 0.0, %v1291
  %v1293 = vpop.f32.mrb[0].mxu0
  %v1294 = vpop.f32.mrb[0].mxu0
  %v1295 = vadd.f32 0.0, %v1294
  %v1296 = vpop.f32.mrb[0].mxu0
  %1297 = vmatprep.mubr.bf16.mxu0 0
  %1298 = vmatmul.mubr.bf16.gmra.mrb[0].mxu0 %v730
  %v1299 = vpop.f32.mrb[0].mxu0
  %v1300 = vadd.f32 0.0, %v1299
  %v1301 = vpop.f32.mrb[0].mxu0
  %v1302 = vpop.f32.mrb[0].mxu0
  %v1303 = vadd.f32 0.0, %v1302
  %v1304 = vpop.f32.mrb[0].mxu0
  %1305 = vmatprep.mubr.bf16.mxu0 0
  %1306 = vmatmul.mubr.bf16.gmra.mrb[0].mxu0 %v733
  %v1307 = vpop.f32.mrb[0].mxu0
  %v1308 = vadd.f32 0.0, %v1307
  %v1309 = vpop.f32.mrb[0].mxu0
  %v1310 = vpop.f32.mrb[0].mxu0
  %v1311 = vadd.f32 0.0, %v1310
  %v1312 = vpop.f32.mrb[0].mxu0
  %1313 = vmatprep.mubr.bf16.mxu0 0
  %1314 = vmatmul.mubr.bf16.gmra.mrb[0].mxu0 %v736
  %v1315 = vpop.f32.mrb[0].mxu0
  %v1316 = vadd.f32 0.0, %v1315
  %v1317 = vpop.f32.mrb[0].mxu0
  %v1318 = vpop.f32.mrb[0].mxu0
  %v1319 = vadd.f32 0.0, %v1318
  %v1320 = vpop.f32.mrb[0].mxu0
  %1321 = vmatprep.mubr.bf16.mxu0 0
  %1322 = vmatmul.mubr.bf16.gmra.mrb[0].mxu0 %v739
  %v1323 = vpop.f32.mrb[0].mxu0
  %v1324 = vadd.f32 0.0, %v1323
  %v1325 = vpop.f32.mrb[0].mxu0
  %v1326 = vpop.f32.mrb[0].mxu0
  %v1327 = vadd.f32 0.0, %v1326
  %v1328 = vpop.f32.mrb[0].mxu0
  %1329 = vmatprep.mubr.bf16.mxu0 0
  %1330 = vmatmul.mubr.bf16.gmra.mrb[0].mxu0 %v742
  %v1331 = vpop.f32.mrb[0].mxu0
  %v1332 = vadd.f32 0.0, %v1331
  %v1333 = vpop.f32.mrb[0].mxu0
  %v1334 = vpop.f32.mrb[0].mxu0
  %v1335 = vadd.f32 0.0, %v1334
  %v1336 = vpop.f32.mrb[0].mxu0
  %1337 = vmatprep.mubr.bf16.mxu0 0
  %1338 = vmatmul.mubr.bf16.gmra.mrb[0].mxu0 %v745
  %v1339 = vpop.f32.mrb[0].mxu0
  %v1340 = vadd.f32 0.0, %v1339
  %v1341 = vpop.f32.mrb[0].mxu0
  %v1342 = vpop.f32.mrb[0].mxu0
  %v1343 = vadd.f32 0.0, %v1342
  %v1344 = vpop.f32.mrb[0].mxu0
  %1345 = vmatprep.mubr.bf16.mxu0 0
  %1346 = vmatmul.mubr.bf16.gmra.mrb[0].mxu0 %v748
  %v1347 = vpop.f32.mrb[0].mxu0
  %v1348 = vadd.f32 0.0, %v1347
  %v1349 = vpop.f32.mrb[0].mxu0
  %v1350 = vpop.f32.mrb[0].mxu0
  %v1351 = vadd.f32 0.0, %v1350
  %v1352 = vpop.f32.mrb[0].mxu0
  %1353 = vmatprep.mubr.bf16.mxu0 0
  %1354 = vmatmul.mubr.bf16.gmra.mrb[0].mxu0 %v751
  %v1355 = vpop.f32.mrb[0].mxu0
  %v1356 = vadd.f32 0.0, %v1355
  %v1357 = vpop.f32.mrb[0].mxu0
  %v1358 = vpop.f32.mrb[0].mxu0
  %v1359 = vadd.f32 0.0, %v1358
  %v1360 = vpop.f32.mrb[0].mxu0
  %1361 = vmatprep.mubr.bf16.mxu0 0
  %1362 = vmatmul.mubr.bf16.gmra.mrb[0].mxu0 %v754
  %v1363 = vpop.f32.mrb[0].mxu0
  %v1364 = vadd.f32 0.0, %v1363
  %v1365 = vpop.f32.mrb[0].mxu0
  %v1366 = vpop.f32.mrb[0].mxu0
  %v1367 = vadd.f32 0.0, %v1366
  %v1368 = vpop.f32.mrb[0].mxu0
  %1369 = vmatprep.mubr.bf16.mxu0 0
  %1370 = vmatmul.mubr.bf16.gmra.mrb[0].mxu0 %v757
  %v1371 = vpop.f32.mrb[0].mxu0
  %v1372 = vadd.f32 0.0, %v1371
  %v1373 = vpop.f32.mrb[0].mxu0
  %v1374 = vpop.f32.mrb[0].mxu0
  %v1375 = vadd.f32 0.0, %v1374
  %v1376 = vpop.f32.mrb[0].mxu0
  %1377 = vmatprep.mubr.bf16.mxu0 0
  %1378 = vmatmul.mubr.bf16.gmra.mrb[0].mxu0 %v760
  %v1379 = vpop.f32.mrb[0].mxu0
  %v1380 = vadd.f32 0.0, %v1379
  %v1381 = vpop.f32.mrb[0].mxu0
  %v1382 = vpop.f32.mrb[0].mxu0
  %v1383 = vpop.f32.mrb[0].mxu0
  %1384 = vdwg.mxu0
  %v1386 = vlaneseq
  %v1387 = vshrl.u32 %v1386, 7
  %v1388 = vsub.s32 0, %v1387
  %v1389 = vrot.slane %v18, %v1388
  %v1391 = vadd.f32 %v1389, %v804
  %v1392 = vadd.f32 %v1389, %v807
  %v1393 = vadd.f32 %v1389, %v812
  %v1394 = vadd.f32 %v1389, %v815
  %v1395 = vadd.f32 %v1389, %v820
  %v1396 = vadd.f32 %v1389, %v823
  %v1397 = vadd.f32 %v1389, %v828
  %v1398 = vadd.f32 %v1389, %v831
  %v1399 = vadd.f32 %v1389, %v836
  %v1400 = vadd.f32 %v1389, %v839
  %v1401 = vadd.f32 %v1389, %v844
  %v1402 = vadd.f32 %v1389, %v847
  %v1403 = vadd.f32 %v1389, %v852
  %v1404 = vadd.f32 %v1389, %v855
  %v1405 = vadd.f32 %v1389, %v860
  %v1406 = vadd.f32 %v1389, %v863
  %v1407 = vadd.f32 %v1389, %v868
  %v1408 = vadd.f32 %v1389, %v871
  %v1409 = vadd.f32 %v1389, %v876
  %v1410 = vadd.f32 %v1389, %v879
  %v1411 = vadd.f32 %v1389, %v884
  %v1412 = vadd.f32 %v1389, %v887
  %v1413 = vadd.f32 %v1389, %v892
  %v1414 = vadd.f32 %v1389, %v895
  %v1415 = vadd.f32 %v1389, %v900
  %v1416 = vadd.f32 %v1389, %v903
  %v1417 = vadd.f32 %v1389, %v908
  %v1418 = vadd.f32 %v1389, %v911
  %v1419 = vadd.f32 %v1389, %v916
  %v1420 = vadd.f32 %v1389, %v919
  %v1421 = vadd.f32 %v1389, %v924
  %v1422 = vadd.f32 %v1389, %v927
  %v1423 = vadd.f32 %v1389, %v932
  %v1424 = vadd.f32 %v1389, %v935
  %v1425 = vadd.f32 %v1389, %v940
  %v1426 = vadd.f32 %v1389, %v943
  %v1427 = vadd.f32 %v1389, %v948
  %v1428 = vadd.f32 %v1389, %v951
  %v1429 = vadd.f32 %v1389, %v956
  %v1430 = vadd.f32 %v1389, %v959
  %v1431 = vadd.f32 %v1389, %v964
  %v1432 = vadd.f32 %v1389, %v967
  %v1433 = vadd.f32 %v1389, %v972
  %v1434 = vadd.f32 %v1389, %v975
  %v1435 = vadd.f32 %v1389, %v980
  %v1436 = vadd.f32 %v1389, %v983
  %v1437 = vadd.f32 %v1389, %v988
  %v1438 = vadd.f32 %v1389, %v991
  %v1439 = vadd.f32 %v1389, %v996
  %v1440 = vadd.f32 %v1389, %v999
  %v1441 = vadd.f32 %v1389, %v1004
  %v1442 = vadd.f32 %v1389, %v1007
  %v1443 = vadd.f32 %v1389, %v1012
  %v1444 = vadd.f32 %v1389, %v1015
  %v1445 = vadd.f32 %v1389, %v1020
  %v1446 = vadd.f32 %v1389, %v1023
  %v1447 = vadd.f32 %v1389, %v1028
  %v1448 = vadd.f32 %v1389, %v1031
  %v1449 = vadd.f32 %v1389, %v1036
  %v1450 = vadd.f32 %v1389, %v1039
  %v1451 = vadd.f32 %v1389, %v1044
  %v1452 = vadd.f32 %v1389, %v1047
  %v1453 = vadd.f32 %v1389, %v1052
  %v1454 = vadd.f32 %v1389, %v1055
  %v1455 = vadd.f32 %v1389, %v1060
  %v1456 = vadd.f32 %v1389, %v1063
  %v1457 = vadd.f32 %v1389, %v1068
  %v1458 = vadd.f32 %v1389, %v1071
  %v1459 = vadd.f32 %v1389, %v1076
  %v1460 = vadd.f32 %v1389, %v1079
  %v1461 = vadd.f32 %v1389, %v1084
  %v1462 = vadd.f32 %v1389, %v1087
  %v1463 = vadd.f32 %v1389, %v1092
  %v1464 = vadd.f32 %v1389, %v1095
  %v1465 = vadd.f32 %v1389, %v1100
  %v1466 = vadd.f32 %v1389, %v1103
  %v1467 = vadd.f32 %v1389, %v1108
  %v1468 = vadd.f32 %v1389, %v1111
  %v1469 = vadd.f32 %v1389, %v1116
  %v1470 = vadd.f32 %v1389, %v1119
  %v1471 = vadd.f32 %v1389, %v1124
  %v1472 = vadd.f32 %v1389, %v1127
  %v1473 = vadd.f32 %v1389, %v1132
  %v1474 = vadd.f32 %v1389, %v1135
  %v1475 = vadd.f32 %v1389, %v1140
  %v1476 = vadd.f32 %v1389, %v1143
  %v1477 = vadd.f32 %v1389, %v1148
  %v1478 = vadd.f32 %v1389, %v1151
  %v1479 = vadd.f32 %v1389, %v1156
  %v1480 = vadd.f32 %v1389, %v1159
  %v1481 = vadd.f32 %v1389, %v1164
  %v1482 = vadd.f32 %v1389, %v1167
  %v1483 = vadd.f32 %v1389, %v1172
  %v1484 = vadd.f32 %v1389, %v1175
  %v1485 = vadd.f32 %v1389, %v1180
  %v1486 = vadd.f32 %v1389, %v1183
  %v1487 = vadd.f32 %v1389, %v1188
  %v1488 = vadd.f32 %v1389, %v1191
  %v1489 = vadd.f32 %v1389, %v1196
  %v1490 = vadd.f32 %v1389, %v1199
  %v1491 = vadd.f32 %v1389, %v1204
  %v1492 = vadd.f32 %v1389, %v1207
  %v1493 = vadd.f32 %v1389, %v1212
  %v1494 = vadd.f32 %v1389, %v1215
  %v1495 = vadd.f32 %v1389, %v1220
  %v1496 = vadd.f32 %v1389, %v1223
  %v1497 = vadd.f32 %v1389, %v1228
  %v1498 = vadd.f32 %v1389, %v1231
  %v1499 = vadd.f32 %v1389, %v1236
  %v1500 = vadd.f32 %v1389, %v1239
  %v1501 = vadd.f32 %v1389, %v1244
  %v1502 = vadd.f32 %v1389, %v1247
  %v1503 = vadd.f32 %v1389, %v1252
  %v1504 = vadd.f32 %v1389, %v1255
  %v1505 = vadd.f32 %v1389, %v1260
  %v1506 = vadd.f32 %v1389, %v1263
  %v1507 = vadd.f32 %v1389, %v1268
  %v1508 = vadd.f32 %v1389, %v1271
  %v1509 = vadd.f32 %v1389, %v1276
  %v1510 = vadd.f32 %v1389, %v1279
  %v1511 = vadd.f32 %v1389, %v1284
  %v1512 = vadd.f32 %v1389, %v1287
  %v1513 = vadd.f32 %v1389, %v1292
  %v1514 = vadd.f32 %v1389, %v1295
  %v1515 = vadd.f32 %v1389, %v1300
  %v1516 = vadd.f32 %v1389, %v1303
  %v1517 = vadd.f32 %v1389, %v1308
  %v1518 = vadd.f32 %v1389, %v1311
  %v1519 = vadd.f32 %v1389, %v1316
  %v1520 = vadd.f32 %v1389, %v1319
  %v1521 = vadd.f32 %v1389, %v1324
  %v1522 = vadd.f32 %v1389, %v1327
  %v1523 = vadd.f32 %v1389, %v1332
  %v1524 = vadd.f32 %v1389, %v1335
  %v1525 = vadd.f32 %v1389, %v1340
  %v1526 = vadd.f32 %v1389, %v1343
  %v1527 = vadd.f32 %v1389, %v1348
  %v1528 = vadd.f32 %v1389, %v1351
  %v1529 = vadd.f32 %v1389, %v1356
  %v1530 = vadd.f32 %v1389, %v1359
  %v1531 = vadd.f32 %v1389, %v1364
  %v1532 = vadd.f32 %v1389, %v1367
  %v1533 = vadd.f32 %v1389, %v1372
  %v1534 = vadd.f32 %v1389, %v1375
  %v1535 = vadd.f32 %v1389, %v1380
  %v1536 = vlaneseq
  %v1537 = vand.u32 %v1536, 127
  %1538 = vmin.xlane.f32.xlu0 %v1391
  %v1539 = vpop.xlane.xlu0 %1538
  %1540 = vmin.xlane.f32.xlu0 %v1392
  %v1541 = vpop.xlane.xlu0 %1540
  %1542 = vmin.xlane.f32.xlu0 %v1393
  %v1543 = vpop.xlane.xlu0 %1542
  %1544 = vmin.xlane.f32.xlu0 %v1394
  %v1545 = vpop.xlane.xlu0 %1544
  %1546 = vmin.xlane.f32.xlu0 %v1395
  %v1547 = vpop.xlane.xlu0 %1546
  %1548 = vmin.xlane.f32.xlu0 %v1396
  %v1549 = vpop.xlane.xlu0 %1548
  %1550 = vmin.xlane.f32.xlu0 %v1397
  %v1551 = vpop.xlane.xlu0 %1550
  %1552 = vmin.xlane.f32.xlu0 %v1398
  %v1553 = vpop.xlane.xlu0 %1552
  %1554 = vmin.xlane.f32.xlu0 %v1399
  %v1555 = vpop.xlane.xlu0 %1554
  %1556 = vmin.xlane.f32.xlu0 %v1400
  %v1557 = vpop.xlane.xlu0 %1556
  %1558 = vmin.xlane.f32.xlu0 %v1401
  %v1559 = vpop.xlane.xlu0 %1558
  %1560 = vmin.xlane.f32.xlu0 %v1402
  %v1561 = vpop.xlane.xlu0 %1560
  %1562 = vmin.xlane.f32.xlu0 %v1403
  %v1563 = vpop.xlane.xlu0 %1562
  %1564 = vmin.xlane.f32.xlu0 %v1404
  %v1565 = vpop.xlane.xlu0 %1564
  %1566 = vmin.xlane.f32.xlu0 %v1405
  %v1567 = vpop.xlane.xlu0 %1566
  %1568 = vmin.xlane.f32.xlu0 %v1406
  %v1569 = vpop.xlane.xlu0 %1568
  %1570 = vmin.xlane.f32.xlu0 %v1407
  %v1571 = vpop.xlane.xlu0 %1570
  %1572 = vmin.xlane.f32.xlu0 %v1408
  %v1573 = vpop.xlane.xlu0 %1572
  %1574 = vmin.xlane.f32.xlu0 %v1409
  %v1575 = vpop.xlane.xlu0 %1574
  %1576 = vmin.xlane.f32.xlu0 %v1410
  %v1577 = vpop.xlane.xlu0 %1576
  %1578 = vmin.xlane.f32.xlu0 %v1411
  %v1579 = vpop.xlane.xlu0 %1578
  %1580 = vmin.xlane.f32.xlu0 %v1412
  %v1581 = vpop.xlane.xlu0 %1580
  %1582 = vmin.xlane.f32.xlu0 %v1413
  %v1583 = vpop.xlane.xlu0 %1582
  %1584 = vmin.xlane.f32.xlu0 %v1414
  %v1585 = vpop.xlane.xlu0 %1584
  %1586 = vmin.xlane.f32.xlu0 %v1415
  %v1587 = vpop.xlane.xlu0 %1586
  %1588 = vmin.xlane.f32.xlu0 %v1416
  %v1589 = vpop.xlane.xlu0 %1588
  %1590 = vmin.xlane.f32.xlu0 %v1417
  %v1591 = vpop.xlane.xlu0 %1590
  %1592 = vmin.xlane.f32.xlu0 %v1418
  %v1593 = vpop.xlane.xlu0 %1592
  %1594 = vmin.xlane.f32.xlu0 %v1419
  %v1595 = vpop.xlane.xlu0 %1594
  %1596 = vmin.xlane.f32.xlu0 %v1420
  %v1597 = vpop.xlane.xlu0 %1596
  %1598 = vmin.xlane.f32.xlu0 %v1421
  %v1599 = vpop.xlane.xlu0 %1598
  %1600 = vmin.xlane.f32.xlu0 %v1422
  %v1601 = vpop.xlane.xlu0 %1600
  %1602 = vmin.xlane.f32.xlu0 %v1423
  %v1603 = vpop.xlane.xlu0 %1602
  %1604 = vmin.xlane.f32.xlu0 %v1424
  %v1605 = vpop.xlane.xlu0 %1604
  %1606 = vmin.xlane.f32.xlu0 %v1425
  %v1607 = vpop.xlane.xlu0 %1606
  %1608 = vmin.xlane.f32.xlu0 %v1426
  %v1609 = vpop.xlane.xlu0 %1608
  %1610 = vmin.xlane.f32.xlu0 %v1427
  %v1611 = vpop.xlane.xlu0 %1610
  %1612 = vmin.xlane.f32.xlu0 %v1428
  %v1613 = vpop.xlane.xlu0 %1612
  %1614 = vmin.xlane.f32.xlu0 %v1429
  %v1615 = vpop.xlane.xlu0 %1614
  %1616 = vmin.xlane.f32.xlu0 %v1430
  %v1617 = vpop.xlane.xlu0 %1616
  %1618 = vmin.xlane.f32.xlu0 %v1431
  %v1619 = vpop.xlane.xlu0 %1618
  %1620 = vmin.xlane.f32.xlu0 %v1432
  %v1621 = vpop.xlane.xlu0 %1620
  %1622 = vmin.xlane.f32.xlu0 %v1433
  %v1623 = vpop.xlane.xlu0 %1622
  %1624 = vmin.xlane.f32.xlu0 %v1434
  %v1625 = vpop.xlane.xlu0 %1624
  %1626 = vmin.xlane.f32.xlu0 %v1435
  %v1627 = vpop.xlane.xlu0 %1626
  %1628 = vmin.xlane.f32.xlu0 %v1436
  %v1629 = vpop.xlane.xlu0 %1628
  %1630 = vmin.xlane.f32.xlu0 %v1437
  %v1631 = vpop.xlane.xlu0 %1630
  %1632 = vmin.xlane.f32.xlu0 %v1438
  %v1633 = vpop.xlane.xlu0 %1632
  %1634 = vmin.xlane.f32.xlu0 %v1439
  %v1635 = vpop.xlane.xlu0 %1634
  %1636 = vmin.xlane.f32.xlu0 %v1440
  %v1637 = vpop.xlane.xlu0 %1636
  %1638 = vmin.xlane.f32.xlu0 %v1441
  %v1639 = vpop.xlane.xlu0 %1638
  %1640 = vmin.xlane.f32.xlu0 %v1442
  %v1641 = vpop.xlane.xlu0 %1640
  %1642 = vmin.xlane.f32.xlu0 %v1443
  %v1643 = vpop.xlane.xlu0 %1642
  %1644 = vmin.xlane.f32.xlu0 %v1444
  %v1645 = vpop.xlane.xlu0 %1644
  %1646 = vmin.xlane.f32.xlu0 %v1445
  %v1647 = vpop.xlane.xlu0 %1646
  %1648 = vmin.xlane.f32.xlu0 %v1446
  %v1649 = vpop.xlane.xlu0 %1648
  %1650 = vmin.xlane.f32.xlu0 %v1447
  %v1651 = vpop.xlane.xlu0 %1650
  %1652 = vmin.xlane.f32.xlu0 %v1448
  %v1653 = vpop.xlane.xlu0 %1652
  %1654 = vmin.xlane.f32.xlu0 %v1449
  %v1655 = vpop.xlane.xlu0 %1654
  %1656 = vmin.xlane.f32.xlu0 %v1450
  %v1657 = vpop.xlane.xlu0 %1656
  %1658 = vmin.xlane.f32.xlu0 %v1451
  %v1659 = vpop.xlane.xlu0 %1658
  %1660 = vmin.xlane.f32.xlu0 %v1452
  %v1661 = vpop.xlane.xlu0 %1660
  %1662 = vmin.xlane.f32.xlu0 %v1453
  %v1663 = vpop.xlane.xlu0 %1662
  %1664 = vmin.xlane.f32.xlu0 %v1454
  %v1665 = vpop.xlane.xlu0 %1664
  %1666 = vmin.xlane.f32.xlu0 %v1455
  %v1667 = vpop.xlane.xlu0 %1666
  %1668 = vmin.xlane.f32.xlu0 %v1456
  %v1669 = vpop.xlane.xlu0 %1668
  %1670 = vmin.xlane.f32.xlu0 %v1457
  %v1671 = vpop.xlane.xlu0 %1670
  %1672 = vmin.xlane.f32.xlu0 %v1458
  %v1673 = vpop.xlane.xlu0 %1672
  %1674 = vmin.xlane.f32.xlu0 %v1459
  %v1675 = vpop.xlane.xlu0 %1674
  %1676 = vmin.xlane.f32.xlu0 %v1460
  %v1677 = vpop.xlane.xlu0 %1676
  %1678 = vmin.xlane.f32.xlu0 %v1461
  %v1679 = vpop.xlane.xlu0 %1678
  %1680 = vmin.xlane.f32.xlu0 %v1462
  %v1681 = vpop.xlane.xlu0 %1680
  %1682 = vmin.xlane.f32.xlu0 %v1463
  %v1683 = vpop.xlane.xlu0 %1682
  %1684 = vmin.xlane.f32.xlu0 %v1464
  %v1685 = vpop.xlane.xlu0 %1684
  %1686 = vmin.xlane.f32.xlu0 %v1465
  %v1687 = vpop.xlane.xlu0 %1686
  %1688 = vmin.xlane.f32.xlu0 %v1466
  %v1689 = vpop.xlane.xlu0 %1688
  %1690 = vmin.xlane.f32.xlu0 %v1467
  %v1691 = vpop.xlane.xlu0 %1690
  %1692 = vmin.xlane.f32.xlu0 %v1468
  %v1693 = vpop.xlane.xlu0 %1692
  %1694 = vmin.xlane.f32.xlu0 %v1469
  %v1695 = vpop.xlane.xlu0 %1694
  %1696 = vmin.xlane.f32.xlu0 %v1470
  %v1697 = vpop.xlane.xlu0 %1696
  %1698 = vmin.xlane.f32.xlu0 %v1471
  %v1699 = vpop.xlane.xlu0 %1698
  %1700 = vmin.xlane.f32.xlu0 %v1472
  %v1701 = vpop.xlane.xlu0 %1700
  %1702 = vmin.xlane.f32.xlu0 %v1473
  %v1703 = vpop.xlane.xlu0 %1702
  %1704 = vmin.xlane.f32.xlu0 %v1474
  %v1705 = vpop.xlane.xlu0 %1704
  %1706 = vmin.xlane.f32.xlu0 %v1475
  %v1707 = vpop.xlane.xlu0 %1706
  %1708 = vmin.xlane.f32.xlu0 %v1476
  %v1709 = vpop.xlane.xlu0 %1708
  %1710 = vmin.xlane.f32.xlu0 %v1477
  %v1711 = vpop.xlane.xlu0 %1710
  %1712 = vmin.xlane.f32.xlu0 %v1478
  %v1713 = vpop.xlane.xlu0 %1712
  %1714 = vmin.xlane.f32.xlu0 %v1479
  %v1715 = vpop.xlane.xlu0 %1714
  %1716 = vmin.xlane.f32.xlu0 %v1480
  %v1717 = vpop.xlane.xlu0 %1716
  %1718 = vmin.xlane.f32.xlu0 %v1481
  %v1719 = vpop.xlane.xlu0 %1718
  %1720 = vmin.xlane.f32.xlu0 %v1482
  %v1721 = vpop.xlane.xlu0 %1720
  %1722 = vmin.xlane.f32.xlu0 %v1483
  %v1723 = vpop.xlane.xlu0 %1722
  %1724 = vmin.xlane.f32.xlu0 %v1484
  %v1725 = vpop.xlane.xlu0 %1724
  %1726 = vmin.xlane.f32.xlu0 %v1485
  %v1727 = vpop.xlane.xlu0 %1726
  %1728 = vmin.xlane.f32.xlu0 %v1486
  %v1729 = vpop.xlane.xlu0 %1728
  %1730 = vmin.xlane.f32.xlu0 %v1487
  %v1731 = vpop.xlane.xlu0 %1730
  %1732 = vmin.xlane.f32.xlu0 %v1488
  %v1733 = vpop.xlane.xlu0 %1732
  %1734 = vmin.xlane.f32.xlu0 %v1489
  %v1735 = vpop.xlane.xlu0 %1734
  %1736 = vmin.xlane.f32.xlu0 %v1490
  %v1737 = vpop.xlane.xlu0 %1736
  %1738 = vmin.xlane.f32.xlu0 %v1491
  %v1739 = vpop.xlane.xlu0 %1738
  %1740 = vmin.xlane.f32.xlu0 %v1492
  %v1741 = vpop.xlane.xlu0 %1740
  %1742 = vmin.xlane.f32.xlu0 %v1493
  %v1743 = vpop.xlane.xlu0 %1742
  %1744 = vmin.xlane.f32.xlu0 %v1494
  %v1745 = vpop.xlane.xlu0 %1744
  %1746 = vmin.xlane.f32.xlu0 %v1495
  %v1747 = vpop.xlane.xlu0 %1746
  %1748 = vmin.xlane.f32.xlu0 %v1496
  %v1749 = vpop.xlane.xlu0 %1748
  %1750 = vmin.xlane.f32.xlu0 %v1497
  %v1751 = vpop.xlane.xlu0 %1750
  %1752 = vmin.xlane.f32.xlu0 %v1498
  %v1753 = vpop.xlane.xlu0 %1752
  %1754 = vmin.xlane.f32.xlu0 %v1499
  %v1755 = vpop.xlane.xlu0 %1754
  %1756 = vmin.xlane.f32.xlu0 %v1500
  %v1757 = vpop.xlane.xlu0 %1756
  %1758 = vmin.xlane.f32.xlu0 %v1501
  %v1759 = vpop.xlane.xlu0 %1758
  %1760 = vmin.xlane.f32.xlu0 %v1502
  %v1761 = vpop.xlane.xlu0 %1760
  %1762 = vmin.xlane.f32.xlu0 %v1503
  %v1763 = vpop.xlane.xlu0 %1762
  %1764 = vmin.xlane.f32.xlu0 %v1504
  %v1765 = vpop.xlane.xlu0 %1764
  %1766 = vmin.xlane.f32.xlu0 %v1505
  %v1767 = vpop.xlane.xlu0 %1766
  %1768 = vmin.xlane.f32.xlu0 %v1506
  %v1769 = vpop.xlane.xlu0 %1768
  %1770 = vmin.xlane.f32.xlu0 %v1507
  %v1771 = vpop.xlane.xlu0 %1770
  %1772 = vmin.xlane.f32.xlu0 %v1508
  %v1773 = vpop.xlane.xlu0 %1772
  %1774 = vmin.xlane.f32.xlu0 %v1509
  %v1775 = vpop.xlane.xlu0 %1774
  %1776 = vmin.xlane.f32.xlu0 %v1510
  %v1777 = vpop.xlane.xlu0 %1776
  %1778 = vmin.xlane.f32.xlu0 %v1511
  %v1779 = vpop.xlane.xlu0 %1778
  %1780 = vmin.xlane.f32.xlu0 %v1512
  %v1781 = vpop.xlane.xlu0 %1780
  %1782 = vmin.xlane.f32.xlu0 %v1513
  %v1783 = vpop.xlane.xlu0 %1782
  %1784 = vmin.xlane.f32.xlu0 %v1514
  %v1785 = vpop.xlane.xlu0 %1784
  %1786 = vmin.xlane.f32.xlu0 %v1515
  %v1787 = vpop.xlane.xlu0 %1786
  %1788 = vmin.xlane.f32.xlu0 %v1516
  %v1789 = vpop.xlane.xlu0 %1788
  %1790 = vmin.xlane.f32.xlu0 %v1517
  %v1791 = vpop.xlane.xlu0 %1790
  %1792 = vmin.xlane.f32.xlu0 %v1518
  %v1793 = vpop.xlane.xlu0 %1792
  %1794 = vmin.xlane.f32.xlu0 %v1519
  %v1795 = vpop.xlane.xlu0 %1794
  %1796 = vmin.xlane.f32.xlu0 %v1520
  %v1797 = vpop.xlane.xlu0 %1796
  %1798 = vmin.xlane.f32.xlu0 %v1521
  %v1799 = vpop.xlane.xlu0 %1798
  %1800 = vmin.xlane.f32.xlu0 %v1522
  %v1801 = vpop.xlane.xlu0 %1800
  %1802 = vmin.xlane.f32.xlu0 %v1523
  %v1803 = vpop.xlane.xlu0 %1802
  %1804 = vmin.xlane.f32.xlu0 %v1524
  %v1805 = vpop.xlane.xlu0 %1804
  %1806 = vmin.xlane.f32.xlu0 %v1525
  %v1807 = vpop.xlane.xlu0 %1806
  %1808 = vmin.xlane.f32.xlu0 %v1526
  %v1809 = vpop.xlane.xlu0 %1808
  %1810 = vmin.xlane.f32.xlu0 %v1527
  %v1811 = vpop.xlane.xlu0 %1810
  %1812 = vmin.xlane.f32.xlu0 %v1528
  %v1813 = vpop.xlane.xlu0 %1812
  %1814 = vmin.xlane.f32.xlu0 %v1529
  %v1815 = vpop.xlane.xlu0 %1814
  %1816 = vmin.xlane.f32.xlu0 %v1530
  %v1817 = vpop.xlane.xlu0 %1816
  %1818 = vmin.xlane.f32.xlu0 %v1531
  %v1819 = vpop.xlane.xlu0 %1818
  %1820 = vmin.xlane.f32.xlu0 %v1532
  %v1821 = vpop.xlane.xlu0 %1820
  %1822 = vmin.xlane.f32.xlu0 %v1533
  %v1823 = vpop.xlane.xlu0 %1822
  %1824 = vmin.xlane.f32.xlu0 %v1534
  %v1825 = vpop.xlane.xlu0 %1824
  %1826 = vmin.xlane.f32.xlu0 %v1535
  %v1827 = vpop.xlane.xlu0 %1826
  %vm1828 = vcmp.le.f32.partialorder %v1391, %v1539
  %vm1829 = vcmp.le.f32.partialorder %v1392, %v1541
  %vm1830 = vcmp.le.f32.partialorder %v1393, %v1543
  %vm1831 = vcmp.le.f32.partialorder %v1394, %v1545
  %vm1832 = vcmp.le.f32.partialorder %v1395, %v1547
  %vm1833 = vcmp.le.f32.partialorder %v1396, %v1549
  %vm1834 = vcmp.le.f32.partialorder %v1397, %v1551
  %vm1835 = vcmp.le.f32.partialorder %v1398, %v1553
  %vm1836 = vcmp.le.f32.partialorder %v1399, %v1555
  %vm1837 = vcmp.le.f32.partialorder %v1400, %v1557
  %vm1838 = vcmp.le.f32.partialorder %v1401, %v1559
  %vm1839 = vcmp.le.f32.partialorder %v1402, %v1561
  %vm1840 = vcmp.le.f32.partialorder %v1403, %v1563
  %vm1841 = vcmp.le.f32.partialorder %v1404, %v1565
  %vm1842 = vcmp.le.f32.partialorder %v1405, %v1567
  %vm1843 = vcmp.le.f32.partialorder %v1406, %v1569
  %vm1844 = vcmp.le.f32.partialorder %v1407, %v1571
  %vm1845 = vcmp.le.f32.partialorder %v1408, %v1573
  %vm1846 = vcmp.le.f32.partialorder %v1409, %v1575
  %vm1847 = vcmp.le.f32.partialorder %v1410, %v1577
  %vm1848 = vcmp.le.f32.partialorder %v1411, %v1579
  %vm1849 = vcmp.le.f32.partialorder %v1412, %v1581
  %vm1850 = vcmp.le.f32.partialorder %v1413, %v1583
  %vm1851 = vcmp.le.f32.partialorder %v1414, %v1585
  %vm1852 = vcmp.le.f32.partialorder %v1415, %v1587
  %vm1853 = vcmp.le.f32.partialorder %v1416, %v1589
  %vm1854 = vcmp.le.f32.partialorder %v1417, %v1591
  %vm1855 = vcmp.le.f32.partialorder %v1418, %v1593
  %vm1856 = vcmp.le.f32.partialorder %v1419, %v1595
  %vm1857 = vcmp.le.f32.partialorder %v1420, %v1597
  %vm1858 = vcmp.le.f32.partialorder %v1421, %v1599
  %vm1859 = vcmp.le.f32.partialorder %v1422, %v1601
  %vm1860 = vcmp.le.f32.partialorder %v1423, %v1603
  %vm1861 = vcmp.le.f32.partialorder %v1424, %v1605
  %vm1862 = vcmp.le.f32.partialorder %v1425, %v1607
  %vm1863 = vcmp.le.f32.partialorder %v1426, %v1609
  %vm1864 = vcmp.le.f32.partialorder %v1427, %v1611
  %vm1865 = vcmp.le.f32.partialorder %v1428, %v1613
  %vm1866 = vcmp.le.f32.partialorder %v1429, %v1615
  %vm1867 = vcmp.le.f32.partialorder %v1430, %v1617
  %vm1868 = vcmp.le.f32.partialorder %v1431, %v1619
  %vm1869 = vcmp.le.f32.partialorder %v1432, %v1621
  %vm1870 = vcmp.le.f32.partialorder %v1433, %v1623
  %vm1871 = vcmp.le.f32.partialorder %v1434, %v1625
  %vm1872 = vcmp.le.f32.partialorder %v1435, %v1627
  %vm1873 = vcmp.le.f32.partialorder %v1436, %v1629
  %vm1874 = vcmp.le.f32.partialorder %v1437, %v1631
  %vm1875 = vcmp.le.f32.partialorder %v1438, %v1633
  %vm1876 = vcmp.le.f32.partialorder %v1439, %v1635
  %vm1877 = vcmp.le.f32.partialorder %v1440, %v1637
  %vm1878 = vcmp.le.f32.partialorder %v1441, %v1639
  %vm1879 = vcmp.le.f32.partialorder %v1442, %v1641
  %vm1880 = vcmp.le.f32.partialorder %v1443, %v1643
  %vm1881 = vcmp.le.f32.partialorder %v1444, %v1645
  %vm1882 = vcmp.le.f32.partialorder %v1445, %v1647
  %vm1883 = vcmp.le.f32.partialorder %v1446, %v1649
  %vm1884 = vcmp.le.f32.partialorder %v1447, %v1651
  %vm1885 = vcmp.le.f32.partialorder %v1448, %v1653
  %vm1886 = vcmp.le.f32.partialorder %v1449, %v1655
  %vm1887 = vcmp.le.f32.partialorder %v1450, %v1657
  %vm1888 = vcmp.le.f32.partialorder %v1451, %v1659
  %vm1889 = vcmp.le.f32.partialorder %v1452, %v1661
  %vm1890 = vcmp.le.f32.partialorder %v1453, %v1663
  %vm1891 = vcmp.le.f32.partialorder %v1454, %v1665
  %vm1892 = vcmp.le.f32.partialorder %v1455, %v1667
  %vm1893 = vcmp.le.f32.partialorder %v1456, %v1669
  %vm1894 = vcmp.le.f32.partialorder %v1457, %v1671
  %vm1895 = vcmp.le.f32.partialorder %v1458, %v1673
  %vm1896 = vcmp.le.f32.partialorder %v1459, %v1675
  %vm1897 = vcmp.le.f32.partialorder %v1460, %v1677
  %vm1898 = vcmp.le.f32.partialorder %v1461, %v1679
  %vm1899 = vcmp.le.f32.partialorder %v1462, %v1681
  %vm1900 = vcmp.le.f32.partialorder %v1463, %v1683
  %vm1901 = vcmp.le.f32.partialorder %v1464, %v1685
  %vm1902 = vcmp.le.f32.partialorder %v1465, %v1687
  %vm1903 = vcmp.le.f32.partialorder %v1466, %v1689
  %vm1904 = vcmp.le.f32.partialorder %v1467, %v1691
  %vm1905 = vcmp.le.f32.partialorder %v1468, %v1693
  %vm1906 = vcmp.le.f32.partialorder %v1469, %v1695
  %vm1907 = vcmp.le.f32.partialorder %v1470, %v1697
  %vm1908 = vcmp.le.f32.partialorder %v1471, %v1699
  %vm1909 = vcmp.le.f32.partialorder %v1472, %v1701
  %vm1910 = vcmp.le.f32.partialorder %v1473, %v1703
  %vm1911 = vcmp.le.f32.partialorder %v1474, %v1705
  %vm1912 = vcmp.le.f32.partialorder %v1475, %v1707
  %vm1913 = vcmp.le.f32.partialorder %v1476, %v1709
  %vm1914 = vcmp.le.f32.partialorder %v1477, %v1711
  %vm1915 = vcmp.le.f32.partialorder %v1478, %v1713
  %vm1916 = vcmp.le.f32.partialorder %v1479, %v1715
  %vm1917 = vcmp.le.f32.partialorder %v1480, %v1717
  %vm1918 = vcmp.le.f32.partialorder %v1481, %v1719
  %vm1919 = vcmp.le.f32.partialorder %v1482, %v1721
  %vm1920 = vcmp.le.f32.partialorder %v1483, %v1723
  %vm1921 = vcmp.le.f32.partialorder %v1484, %v1725
  %vm1922 = vcmp.le.f32.partialorder %v1485, %v1727
  %vm1923 = vcmp.le.f32.partialorder %v1486, %v1729
  %vm1924 = vcmp.le.f32.partialorder %v1487, %v1731
  %vm1925 = vcmp.le.f32.partialorder %v1488, %v1733
  %vm1926 = vcmp.le.f32.partialorder %v1489, %v1735
  %vm1927 = vcmp.le.f32.partialorder %v1490, %v1737
  %vm1928 = vcmp.le.f32.partialorder %v1491, %v1739
  %vm1929 = vcmp.le.f32.partialorder %v1492, %v1741
  %vm1930 = vcmp.le.f32.partialorder %v1493, %v1743
  %vm1931 = vcmp.le.f32.partialorder %v1494, %v1745
  %vm1932 = vcmp.le.f32.partialorder %v1495, %v1747
  %vm1933 = vcmp.le.f32.partialorder %v1496, %v1749
  %vm1934 = vcmp.le.f32.partialorder %v1497, %v1751
  %vm1935 = vcmp.le.f32.partialorder %v1498, %v1753
  %vm1936 = vcmp.le.f32.partialorder %v1499, %v1755
  %vm1937 = vcmp.le.f32.partialorder %v1500, %v1757
  %vm1938 = vcmp.le.f32.partialorder %v1501, %v1759
  %vm1939 = vcmp.le.f32.partialorder %v1502, %v1761
  %vm1940 = vcmp.le.f32.partialorder %v1503, %v1763
  %vm1941 = vcmp.le.f32.partialorder %v1504, %v1765
  %vm1942 = vcmp.le.f32.partialorder %v1505, %v1767
  %vm1943 = vcmp.le.f32.partialorder %v1506, %v1769
  %vm1944 = vcmp.le.f32.partialorder %v1507, %v1771
  %vm1945 = vcmp.le.f32.partialorder %v1508, %v1773
  %vm1946 = vcmp.le.f32.partialorder %v1509, %v1775
  %vm1947 = vcmp.le.f32.partialorder %v1510, %v1777
  %vm1948 = vcmp.le.f32.partialorder %v1511, %v1779
  %vm1949 = vcmp.le.f32.partialorder %v1512, %v1781
  %vm1950 = vcmp.le.f32.partialorder %v1513, %v1783
  %vm1951 = vcmp.le.f32.partialorder %v1514, %v1785
  %vm1952 = vcmp.le.f32.partialorder %v1515, %v1787
  %vm1953 = vcmp.le.f32.partialorder %v1516, %v1789
  %vm1954 = vcmp.le.f32.partialorder %v1517, %v1791
  %vm1955 = vcmp.le.f32.partialorder %v1518, %v1793
  %vm1956 = vcmp.le.f32.partialorder %v1519, %v1795
  %vm1957 = vcmp.le.f32.partialorder %v1520, %v1797
  %vm1958 = vcmp.le.f32.partialorder %v1521, %v1799
  %vm1959 = vcmp.le.f32.partialorder %v1522, %v1801
  %vm1960 = vcmp.le.f32.partialorder %v1523, %v1803
  %vm1961 = vcmp.le.f32.partialorder %v1524, %v1805
  %vm1962 = vcmp.le.f32.partialorder %v1525, %v1807
  %vm1963 = vcmp.le.f32.partialorder %v1526, %v1809
  %vm1964 = vcmp.le.f32.partialorder %v1527, %v1811
  %vm1965 = vcmp.le.f32.partialorder %v1528, %v1813
  %vm1966 = vcmp.le.f32.partialorder %v1529, %v1815
  %vm1967 = vcmp.le.f32.partialorder %v1530, %v1817
  %vm1968 = vcmp.le.f32.partialorder %v1531, %v1819
  %vm1969 = vcmp.le.f32.partialorder %v1532, %v1821
  %vm1970 = vcmp.le.f32.partialorder %v1533, %v1823
  %vm1971 = vcmp.le.f32.partialorder %v1534, %v1825
  %vm1972 = vcmp.le.f32.partialorder %v1535, %v1827
  %v1973 = vsel %vm1828, %v1537, 128
  %v1974 = vsel %vm1829, %v1537, 128
  %v1975 = vsel %vm1830, %v1537, 128
  %v1976 = vsel %vm1831, %v1537, 128
  %v1977 = vsel %vm1832, %v1537, 128
  %v1978 = vsel %vm1833, %v1537, 128
  %v1979 = vsel %vm1834, %v1537, 128
  %v1980 = vsel %vm1835, %v1537, 128
  %v1981 = vsel %vm1836, %v1537, 128
  %v1982 = vsel %vm1837, %v1537, 128
  %v1983 = vsel %vm1838, %v1537, 128
  %v1984 = vsel %vm1839, %v1537, 128
  %v1985 = vsel %vm1840, %v1537, 128
  %v1986 = vsel %vm1841, %v1537, 128
  %v1987 = vsel %vm1842, %v1537, 128
  %v1988 = vsel %vm1843, %v1537, 128
  %v1989 = vsel %vm1844, %v1537, 128
  %v1990 = vsel %vm1845, %v1537, 128
  %v1991 = vsel %vm1846, %v1537, 128
  %v1992 = vsel %vm1847, %v1537, 128
  %v1993 = vsel %vm1848, %v1537, 128
  %v1994 = vsel %vm1849, %v1537, 128
  %v1995 = vsel %vm1850, %v1537, 128
  %v1996 = vsel %vm1851, %v1537, 128
  %v1997 = vsel %vm1852, %v1537, 128
  %v1998 = vsel %vm1853, %v1537, 128
  %v1999 = vsel %vm1854, %v1537, 128
  %v2000 = vsel %vm1855, %v1537, 128
  %v2001 = vsel %vm1856, %v1537, 128
  %v2002 = vsel %vm1857, %v1537, 128
  %v2003 = vsel %vm1858, %v1537, 128
  %v2004 = vsel %vm1859, %v1537, 128
  %v2005 = vsel %vm1860, %v1537, 128
  %v2006 = vsel %vm1861, %v1537, 128
  %v2007 = vsel %vm1862, %v1537, 128
  %v2008 = vsel %vm1863, %v1537, 128
  %v2009 = vsel %vm1864, %v1537, 128
  %v2010 = vsel %vm1865, %v1537, 128
  %v2011 = vsel %vm1866, %v1537, 128
  %v2012 = vsel %vm1867, %v1537, 128
  %v2013 = vsel %vm1868, %v1537, 128
  %v2014 = vsel %vm1869, %v1537, 128
  %v2015 = vsel %vm1870, %v1537, 128
  %v2016 = vsel %vm1871, %v1537, 128
  %v2017 = vsel %vm1872, %v1537, 128
  %v2018 = vsel %vm1873, %v1537, 128
  %v2019 = vsel %vm1874, %v1537, 128
  %v2020 = vsel %vm1875, %v1537, 128
  %v2021 = vsel %vm1876, %v1537, 128
  %v2022 = vsel %vm1877, %v1537, 128
  %v2023 = vsel %vm1878, %v1537, 128
  %v2024 = vsel %vm1879, %v1537, 128
  %v2025 = vsel %vm1880, %v1537, 128
  %v2026 = vsel %vm1881, %v1537, 128
  %v2027 = vsel %vm1882, %v1537, 128
  %v2028 = vsel %vm1883, %v1537, 128
  %v2029 = vsel %vm1884, %v1537, 128
  %v2030 = vsel %vm1885, %v1537, 128
  %v2031 = vsel %vm1886, %v1537, 128
  %v2032 = vsel %vm1887, %v1537, 128
  %v2033 = vsel %vm1888, %v1537, 128
  %v2034 = vsel %vm1889, %v1537, 128
  %v2035 = vsel %vm1890, %v1537, 128
  %v2036 = vsel %vm1891, %v1537, 128
  %v2037 = vsel %vm1892, %v1537, 128
  %v2038 = vsel %vm1893, %v1537, 128
  %v2039 = vsel %vm1894, %v1537, 128
  %v2040 = vsel %vm1895, %v1537, 128
  %v2041 = vsel %vm1896, %v1537, 128
  %v2042 = vsel %vm1897, %v1537, 128
  %v2043 = vsel %vm1898, %v1537, 128
  %v2044 = vsel %vm1899, %v1537, 128
  %v2045 = vsel %vm1900, %v1537, 128
  %v2046 = vsel %vm1901, %v1537, 128
  %v2047 = vsel %vm1902, %v1537, 128
  %v2048 = vsel %vm1903, %v1537, 128
  %v2049 = vsel %vm1904, %v1537, 128
  %v2050 = vsel %vm1905, %v1537, 128
  %v2051 = vsel %vm1906, %v1537, 128
  %v2052 = vsel %vm1907, %v1537, 128
  %v2053 = vsel %vm1908, %v1537, 128
  %v2054 = vsel %vm1909, %v1537, 128
  %v2055 = vsel %vm1910, %v1537, 128
  %v2056 = vsel %vm1911, %v1537, 128
  %v2057 = vsel %vm1912, %v1537, 128
  %v2058 = vsel %vm1913, %v1537, 128
  %v2059 = vsel %vm1914, %v1537, 128
  %v2060 = vsel %vm1915, %v1537, 128
  %v2061 = vsel %vm1916, %v1537, 128
  %v2062 = vsel %vm1917, %v1537, 128
  %v2063 = vsel %vm1918, %v1537, 128
  %v2064 = vsel %vm1919, %v1537, 128
  %v2065 = vsel %vm1920, %v1537, 128
  %v2066 = vsel %vm1921, %v1537, 128
  %v2067 = vsel %vm1922, %v1537, 128
  %v2068 = vsel %vm1923, %v1537, 128
  %v2069 = vsel %vm1924, %v1537, 128
  %v2070 = vsel %vm1925, %v1537, 128
  %v2071 = vsel %vm1926, %v1537, 128
  %v2072 = vsel %vm1927, %v1537, 128
  %v2073 = vsel %vm1928, %v1537, 128
  %v2074 = vsel %vm1929, %v1537, 128
  %v2075 = vsel %vm1930, %v1537, 128
  %v2076 = vsel %vm1931, %v1537, 128
  %v2077 = vsel %vm1932, %v1537, 128
  %v2078 = vsel %vm1933, %v1537, 128
  %v2079 = vsel %vm1934, %v1537, 128
  %v2080 = vsel %vm1935, %v1537, 128
  %v2081 = vsel %vm1936, %v1537, 128
  %v2082 = vsel %vm1937, %v1537, 128
  %v2083 = vsel %vm1938, %v1537, 128
  %v2084 = vsel %vm1939, %v1537, 128
  %v2085 = vsel %vm1940, %v1537, 128
  %v2086 = vsel %vm1941, %v1537, 128
  %v2087 = vsel %vm1942, %v1537, 128
  %v2088 = vsel %vm1943, %v1537, 128
  %v2089 = vsel %vm1944, %v1537, 128
  %v2090 = vsel %vm1945, %v1537, 128
  %v2091 = vsel %vm1946, %v1537, 128
  %v2092 = vsel %vm1947, %v1537, 128
  %v2093 = vsel %vm1948, %v1537, 128
  %v2094 = vsel %vm1949, %v1537, 128
  %v2095 = vsel %vm1950, %v1537, 128
  %v2096 = vsel %vm1951, %v1537, 128
  %v2097 = vsel %vm1952, %v1537, 128
  %v2098 = vsel %vm1953, %v1537, 128
  %v2099 = vsel %vm1954, %v1537, 128
  %v2100 = vsel %vm1955, %v1537, 128
  %v2101 = vsel %vm1956, %v1537, 128
  %v2102 = vsel %vm1957, %v1537, 128
  %v2103 = vsel %vm1958, %v1537, 128
  %v2104 = vsel %vm1959, %v1537, 128
  %v2105 = vsel %vm1960, %v1537, 128
  %v2106 = vsel %vm1961, %v1537, 128
  %v2107 = vsel %vm1962, %v1537, 128
  %v2108 = vsel %vm1963, %v1537, 128
  %v2109 = vsel %vm1964, %v1537, 128
  %v2110 = vsel %vm1965, %v1537, 128
  %v2111 = vsel %vm1966, %v1537, 128
  %v2112 = vsel %vm1967, %v1537, 128
  %v2113 = vsel %vm1968, %v1537, 128
  %v2114 = vsel %vm1969, %v1537, 128
  %v2115 = vsel %vm1970, %v1537, 128
  %v2116 = vsel %vm1971, %v1537, 128
  %v2117 = vsel %vm1972, %v1537, 128
  %v2118 = vand.u32 %v1973, 65535
  %v2119 = vshra.s32 %v1973, 16
  %v2120 = vcvt.s32.f32 %v2118
  %v2121 = vcvt.s32.f32 %v2119
  %2122 = vmin.xlane.f32.xlu0 %v2121
  %v2123 = vpop.xlane.xlu0 %2122
  %vm2124 = vcmp.eq.f32.partialorder %v2121, %v2123
  %v2125 = vsel %vm2124, %v2120, inf
  %2126 = vmin.xlane.f32.xlu0 %v2125
  %v2127 = vpop.xlane.xlu0 %2126
  %v2128 = vcvt.f32.s32 %v2127
  %v2129 = vcvt.f32.s32 %v2123
  %v2130 = vshll.u32 %v2129, 16
  %v2131 = vadd.s32 %v2130, %v2128
  %v2132 = vand.u32 %v1974, 65535
  %v2133 = vshra.s32 %v1974, 16
  %v2134 = vcvt.s32.f32 %v2132
  %v2135 = vcvt.s32.f32 %v2133
  %2136 = vmin.xlane.f32.xlu0 %v2135
  %v2137 = vpop.xlane.xlu0 %2136
  %vm2138 = vcmp.eq.f32.partialorder %v2135, %v2137
  %v2139 = vsel %vm2138, %v2134, inf
  %2140 = vmin.xlane.f32.xlu0 %v2139
  %v2141 = vpop.xlane.xlu0 %2140
  %v2142 = vcvt.f32.s32 %v2141
  %v2143 = vcvt.f32.s32 %v2137
  %v2144 = vshll.u32 %v2143, 16
  %v2145 = vadd.s32 %v2144, %v2142
  %v2146 = vand.u32 %v1975, 65535
  %v2147 = vshra.s32 %v1975, 16
  %v2148 = vcvt.s32.f32 %v2146
  %v2149 = vcvt.s32.f32 %v2147
  %2150 = vmin.xlane.f32.xlu0 %v2149
  %v2151 = vpop.xlane.xlu0 %2150
  %vm2152 = vcmp.eq.f32.partialorder %v2149, %v2151
  %v2153 = vsel %vm2152, %v2148, inf
  %2154 = vmin.xlane.f32.xlu0 %v2153
  %v2155 = vpop.xlane.xlu0 %2154
  %v2156 = vcvt.f32.s32 %v2155
  %v2157 = vcvt.f32.s32 %v2151
  %v2158 = vshll.u32 %v2157, 16
  %v2159 = vadd.s32 %v2158, %v2156
  %v2160 = vand.u32 %v1976, 65535
  %v2161 = vshra.s32 %v1976, 16
  %v2162 = vcvt.s32.f32 %v2160
  %v2163 = vcvt.s32.f32 %v2161
  %2164 = vmin.xlane.f32.xlu0 %v2163
  %v2165 = vpop.xlane.xlu0 %2164
  %vm2166 = vcmp.eq.f32.partialorder %v2163, %v2165
  %v2167 = vsel %vm2166, %v2162, inf
  %2168 = vmin.xlane.f32.xlu0 %v2167
  %v2169 = vpop.xlane.xlu0 %2168
  %v2170 = vcvt.f32.s32 %v2169
  %v2171 = vcvt.f32.s32 %v2165
  %v2172 = vshll.u32 %v2171, 16
  %v2173 = vadd.s32 %v2172, %v2170
  %v2174 = vand.u32 %v1977, 65535
  %v2175 = vshra.s32 %v1977, 16
  %v2176 = vcvt.s32.f32 %v2174
  %v2177 = vcvt.s32.f32 %v2175
  %2178 = vmin.xlane.f32.xlu0 %v2177
  %v2179 = vpop.xlane.xlu0 %2178
  %vm2180 = vcmp.eq.f32.partialorder %v2177, %v2179
  %v2181 = vsel %vm2180, %v2176, inf
  %2182 = vmin.xlane.f32.xlu0 %v2181
  %v2183 = vpop.xlane.xlu0 %2182
  %v2184 = vcvt.f32.s32 %v2183
  %v2185 = vcvt.f32.s32 %v2179
  %v2186 = vshll.u32 %v2185, 16
  %v2187 = vadd.s32 %v2186, %v2184
  %v2188 = vand.u32 %v1978, 65535
  %v2189 = vshra.s32 %v1978, 16
  %v2190 = vcvt.s32.f32 %v2188
  %v2191 = vcvt.s32.f32 %v2189
  %2192 = vmin.xlane.f32.xlu0 %v2191
  %v2193 = vpop.xlane.xlu0 %2192
  %vm2194 = vcmp.eq.f32.partialorder %v2191, %v2193
  %v2195 = vsel %vm2194, %v2190, inf
  %2196 = vmin.xlane.f32.xlu0 %v2195
  %v2197 = vpop.xlane.xlu0 %2196
  %v2198 = vcvt.f32.s32 %v2197
  %v2199 = vcvt.f32.s32 %v2193
  %v2200 = vshll.u32 %v2199, 16
  %v2201 = vadd.s32 %v2200, %v2198
  %v2202 = vand.u32 %v1979, 65535
  %v2203 = vshra.s32 %v1979, 16
  %v2204 = vcvt.s32.f32 %v2202
  %v2205 = vcvt.s32.f32 %v2203
  %2206 = vmin.xlane.f32.xlu0 %v2205
  %v2207 = vpop.xlane.xlu0 %2206
  %vm2208 = vcmp.eq.f32.partialorder %v2205, %v2207
  %v2209 = vsel %vm2208, %v2204, inf
  %2210 = vmin.xlane.f32.xlu0 %v2209
  %v2211 = vpop.xlane.xlu0 %2210
  %v2212 = vcvt.f32.s32 %v2211
  %v2213 = vcvt.f32.s32 %v2207
  %v2214 = vshll.u32 %v2213, 16
  %v2215 = vadd.s32 %v2214, %v2212
  %v2216 = vand.u32 %v1980, 65535
  %v2217 = vshra.s32 %v1980, 16
  %v2218 = vcvt.s32.f32 %v2216
  %v2219 = vcvt.s32.f32 %v2217
  %2220 = vmin.xlane.f32.xlu0 %v2219
  %v2221 = vpop.xlane.xlu0 %2220
  %vm2222 = vcmp.eq.f32.partialorder %v2219, %v2221
  %v2223 = vsel %vm2222, %v2218, inf
  %2224 = vmin.xlane.f32.xlu0 %v2223
  %v2225 = vpop.xlane.xlu0 %2224
  %v2226 = vcvt.f32.s32 %v2225
  %v2227 = vcvt.f32.s32 %v2221
  %v2228 = vshll.u32 %v2227, 16
  %v2229 = vadd.s32 %v2228, %v2226
  %v2230 = vand.u32 %v1981, 65535
  %v2231 = vshra.s32 %v1981, 16
  %v2232 = vcvt.s32.f32 %v2230
  %v2233 = vcvt.s32.f32 %v2231
  %2234 = vmin.xlane.f32.xlu0 %v2233
  %v2235 = vpop.xlane.xlu0 %2234
  %vm2236 = vcmp.eq.f32.partialorder %v2233, %v2235
  %v2237 = vsel %vm2236, %v2232, inf
  %2238 = vmin.xlane.f32.xlu0 %v2237
  %v2239 = vpop.xlane.xlu0 %2238
  %v2240 = vcvt.f32.s32 %v2239
  %v2241 = vcvt.f32.s32 %v2235
  %v2242 = vshll.u32 %v2241, 16
  %v2243 = vadd.s32 %v2242, %v2240
  %v2244 = vand.u32 %v1982, 65535
  %v2245 = vshra.s32 %v1982, 16
  %v2246 = vcvt.s32.f32 %v2244
  %v2247 = vcvt.s32.f32 %v2245
  %2248 = vmin.xlane.f32.xlu0 %v2247
  %v2249 = vpop.xlane.xlu0 %2248
  %vm2250 = vcmp.eq.f32.partialorder %v2247, %v2249
  %v2251 = vsel %vm2250, %v2246, inf
  %2252 = vmin.xlane.f32.xlu0 %v2251
  %v2253 = vpop.xlane.xlu0 %2252
  %v2254 = vcvt.f32.s32 %v2253
  %v2255 = vcvt.f32.s32 %v2249
  %v2256 = vshll.u32 %v2255, 16
  %v2257 = vadd.s32 %v2256, %v2254
  %v2258 = vand.u32 %v1983, 65535
  %v2259 = vshra.s32 %v1983, 16
  %v2260 = vcvt.s32.f32 %v2258
  %v2261 = vcvt.s32.f32 %v2259
  %2262 = vmin.xlane.f32.xlu0 %v2261
  %v2263 = vpop.xlane.xlu0 %2262
  %vm2264 = vcmp.eq.f32.partialorder %v2261, %v2263
  %v2265 = vsel %vm2264, %v2260, inf
  %2266 = vmin.xlane.f32.xlu0 %v2265
  %v2267 = vpop.xlane.xlu0 %2266
  %v2268 = vcvt.f32.s32 %v2267
  %v2269 = vcvt.f32.s32 %v2263
  %v2270 = vshll.u32 %v2269, 16
  %v2271 = vadd.s32 %v2270, %v2268
  %v2272 = vand.u32 %v1984, 65535
  %v2273 = vshra.s32 %v1984, 16
  %v2274 = vcvt.s32.f32 %v2272
  %v2275 = vcvt.s32.f32 %v2273
  %2276 = vmin.xlane.f32.xlu0 %v2275
  %v2277 = vpop.xlane.xlu0 %2276
  %vm2278 = vcmp.eq.f32.partialorder %v2275, %v2277
  %v2279 = vsel %vm2278, %v2274, inf
  %2280 = vmin.xlane.f32.xlu0 %v2279
  %v2281 = vpop.xlane.xlu0 %2280
  %v2282 = vcvt.f32.s32 %v2281
  %v2283 = vcvt.f32.s32 %v2277
  %v2284 = vshll.u32 %v2283, 16
  %v2285 = vadd.s32 %v2284, %v2282
  %v2286 = vand.u32 %v1985, 65535
  %v2287 = vshra.s32 %v1985, 16
  %v2288 = vcvt.s32.f32 %v2286
  %v2289 = vcvt.s32.f32 %v2287
  %2290 = vmin.xlane.f32.xlu0 %v2289
  %v2291 = vpop.xlane.xlu0 %2290
  %vm2292 = vcmp.eq.f32.partialorder %v2289, %v2291
  %v2293 = vsel %vm2292, %v2288, inf
  %2294 = vmin.xlane.f32.xlu0 %v2293
  %v2295 = vpop.xlane.xlu0 %2294
  %v2296 = vcvt.f32.s32 %v2295
  %v2297 = vcvt.f32.s32 %v2291
  %v2298 = vshll.u32 %v2297, 16
  %v2299 = vadd.s32 %v2298, %v2296
  %v2300 = vand.u32 %v1986, 65535
  %v2301 = vshra.s32 %v1986, 16
  %v2302 = vcvt.s32.f32 %v2300
  %v2303 = vcvt.s32.f32 %v2301
  %2304 = vmin.xlane.f32.xlu0 %v2303
  %v2305 = vpop.xlane.xlu0 %2304
  %vm2306 = vcmp.eq.f32.partialorder %v2303, %v2305
  %v2307 = vsel %vm2306, %v2302, inf
  %2308 = vmin.xlane.f32.xlu0 %v2307
  %v2309 = vpop.xlane.xlu0 %2308
  %v2310 = vcvt.f32.s32 %v2309
  %v2311 = vcvt.f32.s32 %v2305
  %v2312 = vshll.u32 %v2311, 16
  %v2313 = vadd.s32 %v2312, %v2310
  %v2314 = vand.u32 %v1987, 65535
  %v2315 = vshra.s32 %v1987, 16
  %v2316 = vcvt.s32.f32 %v2314
  %v2317 = vcvt.s32.f32 %v2315
  %2318 = vmin.xlane.f32.xlu0 %v2317
  %v2319 = vpop.xlane.xlu0 %2318
  %vm2320 = vcmp.eq.f32.partialorder %v2317, %v2319
  %v2321 = vsel %vm2320, %v2316, inf
  %2322 = vmin.xlane.f32.xlu0 %v2321
  %v2323 = vpop.xlane.xlu0 %2322
  %v2324 = vcvt.f32.s32 %v2323
  %v2325 = vcvt.f32.s32 %v2319
  %v2326 = vshll.u32 %v2325, 16
  %v2327 = vadd.s32 %v2326, %v2324
  %v2328 = vand.u32 %v1988, 65535
  %v2329 = vshra.s32 %v1988, 16
  %v2330 = vcvt.s32.f32 %v2328
  %v2331 = vcvt.s32.f32 %v2329
  %2332 = vmin.xlane.f32.xlu0 %v2331
  %v2333 = vpop.xlane.xlu0 %2332
  %vm2334 = vcmp.eq.f32.partialorder %v2331, %v2333
  %v2335 = vsel %vm2334, %v2330, inf
  %2336 = vmin.xlane.f32.xlu0 %v2335
  %v2337 = vpop.xlane.xlu0 %2336
  %v2338 = vcvt.f32.s32 %v2337
  %v2339 = vcvt.f32.s32 %v2333
  %v2340 = vshll.u32 %v2339, 16
  %v2341 = vadd.s32 %v2340, %v2338
  %v2342 = vand.u32 %v1989, 65535
  %v2343 = vshra.s32 %v1989, 16
  %v2344 = vcvt.s32.f32 %v2342
  %v2345 = vcvt.s32.f32 %v2343
  %2346 = vmin.xlane.f32.xlu0 %v2345
  %v2347 = vpop.xlane.xlu0 %2346
  %vm2348 = vcmp.eq.f32.partialorder %v2345, %v2347
  %v2349 = vsel %vm2348, %v2344, inf
  %2350 = vmin.xlane.f32.xlu0 %v2349
  %v2351 = vpop.xlane.xlu0 %2350
  %v2352 = vcvt.f32.s32 %v2351
  %v2353 = vcvt.f32.s32 %v2347
  %v2354 = vshll.u32 %v2353, 16
  %v2355 = vadd.s32 %v2354, %v2352
  %v2356 = vand.u32 %v1990, 65535
  %v2357 = vshra.s32 %v1990, 16
  %v2358 = vcvt.s32.f32 %v2356
  %v2359 = vcvt.s32.f32 %v2357
  %2360 = vmin.xlane.f32.xlu0 %v2359
  %v2361 = vpop.xlane.xlu0 %2360
  %vm2362 = vcmp.eq.f32.partialorder %v2359, %v2361
  %v2363 = vsel %vm2362, %v2358, inf
  %2364 = vmin.xlane.f32.xlu0 %v2363
  %v2365 = vpop.xlane.xlu0 %2364
  %v2366 = vcvt.f32.s32 %v2365
  %v2367 = vcvt.f32.s32 %v2361
  %v2368 = vshll.u32 %v2367, 16
  %v2369 = vadd.s32 %v2368, %v2366
  %v2370 = vand.u32 %v1991, 65535
  %v2371 = vshra.s32 %v1991, 16
  %v2372 = vcvt.s32.f32 %v2370
  %v2373 = vcvt.s32.f32 %v2371
  %2374 = vmin.xlane.f32.xlu0 %v2373
  %v2375 = vpop.xlane.xlu0 %2374
  %vm2376 = vcmp.eq.f32.partialorder %v2373, %v2375
  %v2377 = vsel %vm2376, %v2372, inf
  %2378 = vmin.xlane.f32.xlu0 %v2377
  %v2379 = vpop.xlane.xlu0 %2378
  %v2380 = vcvt.f32.s32 %v2379
  %v2381 = vcvt.f32.s32 %v2375
  %v2382 = vshll.u32 %v2381, 16
  %v2383 = vadd.s32 %v2382, %v2380
  %v2384 = vand.u32 %v1992, 65535
  %v2385 = vshra.s32 %v1992, 16
  %v2386 = vcvt.s32.f32 %v2384
  %v2387 = vcvt.s32.f32 %v2385
  %2388 = vmin.xlane.f32.xlu0 %v2387
  %v2389 = vpop.xlane.xlu0 %2388
  %vm2390 = vcmp.eq.f32.partialorder %v2387, %v2389
  %v2391 = vsel %vm2390, %v2386, inf
  %2392 = vmin.xlane.f32.xlu0 %v2391
  %v2393 = vpop.xlane.xlu0 %2392
  %v2394 = vcvt.f32.s32 %v2393
  %v2395 = vcvt.f32.s32 %v2389
  %v2396 = vshll.u32 %v2395, 16
  %v2397 = vadd.s32 %v2396, %v2394
  %v2398 = vand.u32 %v1993, 65535
  %v2399 = vshra.s32 %v1993, 16
  %v2400 = vcvt.s32.f32 %v2398
  %v2401 = vcvt.s32.f32 %v2399
  %2402 = vmin.xlane.f32.xlu0 %v2401
  %v2403 = vpop.xlane.xlu0 %2402
  %vm2404 = vcmp.eq.f32.partialorder %v2401, %v2403
  %v2405 = vsel %vm2404, %v2400, inf
  %2406 = vmin.xlane.f32.xlu0 %v2405
  %v2407 = vpop.xlane.xlu0 %2406
  %v2408 = vcvt.f32.s32 %v2407
  %v2409 = vcvt.f32.s32 %v2403
  %v2410 = vshll.u32 %v2409, 16
  %v2411 = vadd.s32 %v2410, %v2408
  %v2412 = vand.u32 %v1994, 65535
  %v2413 = vshra.s32 %v1994, 16
  %v2414 = vcvt.s32.f32 %v2412
  %v2415 = vcvt.s32.f32 %v2413
  %2416 = vmin.xlane.f32.xlu0 %v2415
  %v2417 = vpop.xlane.xlu0 %2416
  %vm2418 = vcmp.eq.f32.partialorder %v2415, %v2417
  %v2419 = vsel %vm2418, %v2414, inf
  %2420 = vmin.xlane.f32.xlu0 %v2419
  %v2421 = vpop.xlane.xlu0 %2420
  %v2422 = vcvt.f32.s32 %v2421
  %v2423 = vcvt.f32.s32 %v2417
  %v2424 = vshll.u32 %v2423, 16
  %v2425 = vadd.s32 %v2424, %v2422
  %v2426 = vand.u32 %v1995, 65535
  %v2427 = vshra.s32 %v1995, 16
  %v2428 = vcvt.s32.f32 %v2426
  %v2429 = vcvt.s32.f32 %v2427
  %2430 = vmin.xlane.f32.xlu0 %v2429
  %v2431 = vpop.xlane.xlu0 %2430
  %vm2432 = vcmp.eq.f32.partialorder %v2429, %v2431
  %v2433 = vsel %vm2432, %v2428, inf
  %2434 = vmin.xlane.f32.xlu0 %v2433
  %v2435 = vpop.xlane.xlu0 %2434
  %v2436 = vcvt.f32.s32 %v2435
  %v2437 = vcvt.f32.s32 %v2431
  %v2438 = vshll.u32 %v2437, 16
  %v2439 = vadd.s32 %v2438, %v2436
  %v2440 = vand.u32 %v1996, 65535
  %v2441 = vshra.s32 %v1996, 16
  %v2442 = vcvt.s32.f32 %v2440
  %v2443 = vcvt.s32.f32 %v2441
  %2444 = vmin.xlane.f32.xlu0 %v2443
  %v2445 = vpop.xlane.xlu0 %2444
  %vm2446 = vcmp.eq.f32.partialorder %v2443, %v2445
  %v2447 = vsel %vm2446, %v2442, inf
  %2448 = vmin.xlane.f32.xlu0 %v2447
  %v2449 = vpop.xlane.xlu0 %2448
  %v2450 = vcvt.f32.s32 %v2449
  %v2451 = vcvt.f32.s32 %v2445
  %v2452 = vshll.u32 %v2451, 16
  %v2453 = vadd.s32 %v2452, %v2450
  %v2454 = vand.u32 %v1997, 65535
  %v2455 = vshra.s32 %v1997, 16
  %v2456 = vcvt.s32.f32 %v2454
  %v2457 = vcvt.s32.f32 %v2455
  %2458 = vmin.xlane.f32.xlu0 %v2457
  %v2459 = vpop.xlane.xlu0 %2458
  %vm2460 = vcmp.eq.f32.partialorder %v2457, %v2459
  %v2461 = vsel %vm2460, %v2456, inf
  %2462 = vmin.xlane.f32.xlu0 %v2461
  %v2463 = vpop.xlane.xlu0 %2462
  %v2464 = vcvt.f32.s32 %v2463
  %v2465 = vcvt.f32.s32 %v2459
  %v2466 = vshll.u32 %v2465, 16
  %v2467 = vadd.s32 %v2466, %v2464
  %v2468 = vand.u32 %v1998, 65535
  %v2469 = vshra.s32 %v1998, 16
  %v2470 = vcvt.s32.f32 %v2468
  %v2471 = vcvt.s32.f32 %v2469
  %2472 = vmin.xlane.f32.xlu0 %v2471
  %v2473 = vpop.xlane.xlu0 %2472
  %vm2474 = vcmp.eq.f32.partialorder %v2471, %v2473
  %v2475 = vsel %vm2474, %v2470, inf
  %2476 = vmin.xlane.f32.xlu0 %v2475
  %v2477 = vpop.xlane.xlu0 %2476
  %v2478 = vcvt.f32.s32 %v2477
  %v2479 = vcvt.f32.s32 %v2473
  %v2480 = vshll.u32 %v2479, 16
  %v2481 = vadd.s32 %v2480, %v2478
  %v2482 = vand.u32 %v1999, 65535
  %v2483 = vshra.s32 %v1999, 16
  %v2484 = vcvt.s32.f32 %v2482
  %v2485 = vcvt.s32.f32 %v2483
  %2486 = vmin.xlane.f32.xlu0 %v2485
  %v2487 = vpop.xlane.xlu0 %2486
  %vm2488 = vcmp.eq.f32.partialorder %v2485, %v2487
  %v2489 = vsel %vm2488, %v2484, inf
  %2490 = vmin.xlane.f32.xlu0 %v2489
  %v2491 = vpop.xlane.xlu0 %2490
  %v2492 = vcvt.f32.s32 %v2491
  %v2493 = vcvt.f32.s32 %v2487
  %v2494 = vshll.u32 %v2493, 16
  %v2495 = vadd.s32 %v2494, %v2492
  %v2496 = vand.u32 %v2000, 65535
  %v2497 = vshra.s32 %v2000, 16
  %v2498 = vcvt.s32.f32 %v2496
  %v2499 = vcvt.s32.f32 %v2497
  %2500 = vmin.xlane.f32.xlu0 %v2499
  %v2501 = vpop.xlane.xlu0 %2500
  %vm2502 = vcmp.eq.f32.partialorder %v2499, %v2501
  %v2503 = vsel %vm2502, %v2498, inf
  %2504 = vmin.xlane.f32.xlu0 %v2503
  %v2505 = vpop.xlane.xlu0 %2504
  %v2506 = vcvt.f32.s32 %v2505
  %v2507 = vcvt.f32.s32 %v2501
  %v2508 = vshll.u32 %v2507, 16
  %v2509 = vadd.s32 %v2508, %v2506
  %v2510 = vand.u32 %v2001, 65535
  %v2511 = vshra.s32 %v2001, 16
  %v2512 = vcvt.s32.f32 %v2510
  %v2513 = vcvt.s32.f32 %v2511
  %2514 = vmin.xlane.f32.xlu0 %v2513
  %v2515 = vpop.xlane.xlu0 %2514
  %vm2516 = vcmp.eq.f32.partialorder %v2513, %v2515
  %v2517 = vsel %vm2516, %v2512, inf
  %2518 = vmin.xlane.f32.xlu0 %v2517
  %v2519 = vpop.xlane.xlu0 %2518
  %v2520 = vcvt.f32.s32 %v2519
  %v2521 = vcvt.f32.s32 %v2515
  %v2522 = vshll.u32 %v2521, 16
  %v2523 = vadd.s32 %v2522, %v2520
  %v2524 = vand.u32 %v2002, 65535
  %v2525 = vshra.s32 %v2002, 16
  %v2526 = vcvt.s32.f32 %v2524
  %v2527 = vcvt.s32.f32 %v2525
  %2528 = vmin.xlane.f32.xlu0 %v2527
  %v2529 = vpop.xlane.xlu0 %2528
  %vm2530 = vcmp.eq.f32.partialorder %v2527, %v2529
  %v2531 = vsel %vm2530, %v2526, inf
  %2532 = vmin.xlane.f32.xlu0 %v2531
  %v2533 = vpop.xlane.xlu0 %2532
  %v2534 = vcvt.f32.s32 %v2533
  %v2535 = vcvt.f32.s32 %v2529
  %v2536 = vshll.u32 %v2535, 16
  %v2537 = vadd.s32 %v2536, %v2534
  %v2538 = vand.u32 %v2003, 65535
  %v2539 = vshra.s32 %v2003, 16
  %v2540 = vcvt.s32.f32 %v2538
  %v2541 = vcvt.s32.f32 %v2539
  %2542 = vmin.xlane.f32.xlu0 %v2541
  %v2543 = vpop.xlane.xlu0 %2542
  %vm2544 = vcmp.eq.f32.partialorder %v2541, %v2543
  %v2545 = vsel %vm2544, %v2540, inf
  %2546 = vmin.xlane.f32.xlu0 %v2545
  %v2547 = vpop.xlane.xlu0 %2546
  %v2548 = vcvt.f32.s32 %v2547
  %v2549 = vcvt.f32.s32 %v2543
  %v2550 = vshll.u32 %v2549, 16
  %v2551 = vadd.s32 %v2550, %v2548
  %v2552 = vand.u32 %v2004, 65535
  %v2553 = vshra.s32 %v2004, 16
  %v2554 = vcvt.s32.f32 %v2552
  %v2555 = vcvt.s32.f32 %v2553
  %2556 = vmin.xlane.f32.xlu0 %v2555
  %v2557 = vpop.xlane.xlu0 %2556
  %vm2558 = vcmp.eq.f32.partialorder %v2555, %v2557
  %v2559 = vsel %vm2558, %v2554, inf
  %2560 = vmin.xlane.f32.xlu0 %v2559
  %v2561 = vpop.xlane.xlu0 %2560
  %v2562 = vcvt.f32.s32 %v2561
  %v2563 = vcvt.f32.s32 %v2557
  %v2564 = vshll.u32 %v2563, 16
  %v2565 = vadd.s32 %v2564, %v2562
  %v2566 = vand.u32 %v2005, 65535
  %v2567 = vshra.s32 %v2005, 16
  %v2568 = vcvt.s32.f32 %v2566
  %v2569 = vcvt.s32.f32 %v2567
  %2570 = vmin.xlane.f32.xlu0 %v2569
  %v2571 = vpop.xlane.xlu0 %2570
  %vm2572 = vcmp.eq.f32.partialorder %v2569, %v2571
  %v2573 = vsel %vm2572, %v2568, inf
  %2574 = vmin.xlane.f32.xlu0 %v2573
  %v2575 = vpop.xlane.xlu0 %2574
  %v2576 = vcvt.f32.s32 %v2575
  %v2577 = vcvt.f32.s32 %v2571
  %v2578 = vshll.u32 %v2577, 16
  %v2579 = vadd.s32 %v2578, %v2576
  %v2580 = vand.u32 %v2006, 65535
  %v2581 = vshra.s32 %v2006, 16
  %v2582 = vcvt.s32.f32 %v2580
  %v2583 = vcvt.s32.f32 %v2581
  %2584 = vmin.xlane.f32.xlu0 %v2583
  %v2585 = vpop.xlane.xlu0 %2584
  %vm2586 = vcmp.eq.f32.partialorder %v2583, %v2585
  %v2587 = vsel %vm2586, %v2582, inf
  %2588 = vmin.xlane.f32.xlu0 %v2587
  %v2589 = vpop.xlane.xlu0 %2588
  %v2590 = vcvt.f32.s32 %v2589
  %v2591 = vcvt.f32.s32 %v2585
  %v2592 = vshll.u32 %v2591, 16
  %v2593 = vadd.s32 %v2592, %v2590
  %v2594 = vand.u32 %v2007, 65535
  %v2595 = vshra.s32 %v2007, 16
  %v2596 = vcvt.s32.f32 %v2594
  %v2597 = vcvt.s32.f32 %v2595
  %2598 = vmin.xlane.f32.xlu0 %v2597
  %v2599 = vpop.xlane.xlu0 %2598
  %vm2600 = vcmp.eq.f32.partialorder %v2597, %v2599
  %v2601 = vsel %vm2600, %v2596, inf
  %2602 = vmin.xlane.f32.xlu0 %v2601
  %v2603 = vpop.xlane.xlu0 %2602
  %v2604 = vcvt.f32.s32 %v2603
  %v2605 = vcvt.f32.s32 %v2599
  %v2606 = vshll.u32 %v2605, 16
  %v2607 = vadd.s32 %v2606, %v2604
  %v2608 = vand.u32 %v2008, 65535
  %v2609 = vshra.s32 %v2008, 16
  %v2610 = vcvt.s32.f32 %v2608
  %v2611 = vcvt.s32.f32 %v2609
  %2612 = vmin.xlane.f32.xlu0 %v2611
  %v2613 = vpop.xlane.xlu0 %2612
  %vm2614 = vcmp.eq.f32.partialorder %v2611, %v2613
  %v2615 = vsel %vm2614, %v2610, inf
  %2616 = vmin.xlane.f32.xlu0 %v2615
  %v2617 = vpop.xlane.xlu0 %2616
  %v2618 = vcvt.f32.s32 %v2617
  %v2619 = vcvt.f32.s32 %v2613
  %v2620 = vshll.u32 %v2619, 16
  %v2621 = vadd.s32 %v2620, %v2618
  %v2622 = vand.u32 %v2009, 65535
  %v2623 = vshra.s32 %v2009, 16
  %v2624 = vcvt.s32.f32 %v2622
  %v2625 = vcvt.s32.f32 %v2623
  %2626 = vmin.xlane.f32.xlu0 %v2625
  %v2627 = vpop.xlane.xlu0 %2626
  %vm2628 = vcmp.eq.f32.partialorder %v2625, %v2627
  %v2629 = vsel %vm2628, %v2624, inf
  %2630 = vmin.xlane.f32.xlu0 %v2629
  %v2631 = vpop.xlane.xlu0 %2630
  %v2632 = vcvt.f32.s32 %v2631
  %v2633 = vcvt.f32.s32 %v2627
  %v2634 = vshll.u32 %v2633, 16
  %v2635 = vadd.s32 %v2634, %v2632
  %v2636 = vand.u32 %v2010, 65535
  %v2637 = vshra.s32 %v2010, 16
  %v2638 = vcvt.s32.f32 %v2636
  %v2639 = vcvt.s32.f32 %v2637
  %2640 = vmin.xlane.f32.xlu0 %v2639
  %v2641 = vpop.xlane.xlu0 %2640
  %vm2642 = vcmp.eq.f32.partialorder %v2639, %v2641
  %v2643 = vsel %vm2642, %v2638, inf
  %2644 = vmin.xlane.f32.xlu0 %v2643
  %v2645 = vpop.xlane.xlu0 %2644
  %v2646 = vcvt.f32.s32 %v2645
  %v2647 = vcvt.f32.s32 %v2641
  %v2648 = vshll.u32 %v2647, 16
  %v2649 = vadd.s32 %v2648, %v2646
  %v2650 = vand.u32 %v2011, 65535
  %v2651 = vshra.s32 %v2011, 16
  %v2652 = vcvt.s32.f32 %v2650
  %v2653 = vcvt.s32.f32 %v2651
  %2654 = vmin.xlane.f32.xlu0 %v2653
  %v2655 = vpop.xlane.xlu0 %2654
  %vm2656 = vcmp.eq.f32.partialorder %v2653, %v2655
  %v2657 = vsel %vm2656, %v2652, inf
  %2658 = vmin.xlane.f32.xlu0 %v2657
  %v2659 = vpop.xlane.xlu0 %2658
  %v2660 = vcvt.f32.s32 %v2659
  %v2661 = vcvt.f32.s32 %v2655
  %v2662 = vshll.u32 %v2661, 16
  %v2663 = vadd.s32 %v2662, %v2660
  %v2664 = vand.u32 %v2012, 65535
  %v2665 = vshra.s32 %v2012, 16
  %v2666 = vcvt.s32.f32 %v2664
  %v2667 = vcvt.s32.f32 %v2665
  %2668 = vmin.xlane.f32.xlu0 %v2667
  %v2669 = vpop.xlane.xlu0 %2668
  %vm2670 = vcmp.eq.f32.partialorder %v2667, %v2669
  %v2671 = vsel %vm2670, %v2666, inf
  %2672 = vmin.xlane.f32.xlu0 %v2671
  %v2673 = vpop.xlane.xlu0 %2672
  %v2674 = vcvt.f32.s32 %v2673
  %v2675 = vcvt.f32.s32 %v2669
  %v2676 = vshll.u32 %v2675, 16
  %v2677 = vadd.s32 %v2676, %v2674
  %v2678 = vand.u32 %v2013, 65535
  %v2679 = vshra.s32 %v2013, 16
  %v2680 = vcvt.s32.f32 %v2678
  %v2681 = vcvt.s32.f32 %v2679
  %2682 = vmin.xlane.f32.xlu0 %v2681
  %v2683 = vpop.xlane.xlu0 %2682
  %vm2684 = vcmp.eq.f32.partialorder %v2681, %v2683
  %v2685 = vsel %vm2684, %v2680, inf
  %2686 = vmin.xlane.f32.xlu0 %v2685
  %v2687 = vpop.xlane.xlu0 %2686
  %v2688 = vcvt.f32.s32 %v2687
  %v2689 = vcvt.f32.s32 %v2683
  %v2690 = vshll.u32 %v2689, 16
  %v2691 = vadd.s32 %v2690, %v2688
  %v2692 = vand.u32 %v2014, 65535
  %v2693 = vshra.s32 %v2014, 16
  %v2694 = vcvt.s32.f32 %v2692
  %v2695 = vcvt.s32.f32 %v2693
  %2696 = vmin.xlane.f32.xlu0 %v2695
  %v2697 = vpop.xlane.xlu0 %2696
  %vm2698 = vcmp.eq.f32.partialorder %v2695, %v2697
  %v2699 = vsel %vm2698, %v2694, inf
  %2700 = vmin.xlane.f32.xlu0 %v2699
  %v2701 = vpop.xlane.xlu0 %2700
  %v2702 = vcvt.f32.s32 %v2701
  %v2703 = vcvt.f32.s32 %v2697
  %v2704 = vshll.u32 %v2703, 16
  %v2705 = vadd.s32 %v2704, %v2702
  %v2706 = vand.u32 %v2015, 65535
  %v2707 = vshra.s32 %v2015, 16
  %v2708 = vcvt.s32.f32 %v2706
  %v2709 = vcvt.s32.f32 %v2707
  %2710 = vmin.xlane.f32.xlu0 %v2709
  %v2711 = vpop.xlane.xlu0 %2710
  %vm2712 = vcmp.eq.f32.partialorder %v2709, %v2711
  %v2713 = vsel %vm2712, %v2708, inf
  %2714 = vmin.xlane.f32.xlu0 %v2713
  %v2715 = vpop.xlane.xlu0 %2714
  %v2716 = vcvt.f32.s32 %v2715
  %v2717 = vcvt.f32.s32 %v2711
  %v2718 = vshll.u32 %v2717, 16
  %v2719 = vadd.s32 %v2718, %v2716
  %v2720 = vand.u32 %v2016, 65535
  %v2721 = vshra.s32 %v2016, 16
  %v2722 = vcvt.s32.f32 %v2720
  %v2723 = vcvt.s32.f32 %v2721
  %2724 = vmin.xlane.f32.xlu0 %v2723
  %v2725 = vpop.xlane.xlu0 %2724
  %vm2726 = vcmp.eq.f32.partialorder %v2723, %v2725
  %v2727 = vsel %vm2726, %v2722, inf
  %2728 = vmin.xlane.f32.xlu0 %v2727
  %v2729 = vpop.xlane.xlu0 %2728
  %v2730 = vcvt.f32.s32 %v2729
  %v2731 = vcvt.f32.s32 %v2725
  %v2732 = vshll.u32 %v2731, 16
  %v2733 = vadd.s32 %v2732, %v2730
  %v2734 = vand.u32 %v2017, 65535
  %v2735 = vshra.s32 %v2017, 16
  %v2736 = vcvt.s32.f32 %v2734
  %v2737 = vcvt.s32.f32 %v2735
  %2738 = vmin.xlane.f32.xlu0 %v2737
  %v2739 = vpop.xlane.xlu0 %2738
  %vm2740 = vcmp.eq.f32.partialorder %v2737, %v2739
  %v2741 = vsel %vm2740, %v2736, inf
  %2742 = vmin.xlane.f32.xlu0 %v2741
  %v2743 = vpop.xlane.xlu0 %2742
  %v2744 = vcvt.f32.s32 %v2743
  %v2745 = vcvt.f32.s32 %v2739
  %v2746 = vshll.u32 %v2745, 16
  %v2747 = vadd.s32 %v2746, %v2744
  %v2748 = vand.u32 %v2018, 65535
  %v2749 = vshra.s32 %v2018, 16
  %v2750 = vcvt.s32.f32 %v2748
  %v2751 = vcvt.s32.f32 %v2749
  %2752 = vmin.xlane.f32.xlu0 %v2751
  %v2753 = vpop.xlane.xlu0 %2752
  %vm2754 = vcmp.eq.f32.partialorder %v2751, %v2753
  %v2755 = vsel %vm2754, %v2750, inf
  %2756 = vmin.xlane.f32.xlu0 %v2755
  %v2757 = vpop.xlane.xlu0 %2756
  %v2758 = vcvt.f32.s32 %v2757
  %v2759 = vcvt.f32.s32 %v2753
  %v2760 = vshll.u32 %v2759, 16
  %v2761 = vadd.s32 %v2760, %v2758
  %v2762 = vand.u32 %v2019, 65535
  %v2763 = vshra.s32 %v2019, 16
  %v2764 = vcvt.s32.f32 %v2762
  %v2765 = vcvt.s32.f32 %v2763
  %2766 = vmin.xlane.f32.xlu0 %v2765
  %v2767 = vpop.xlane.xlu0 %2766
  %vm2768 = vcmp.eq.f32.partialorder %v2765, %v2767
  %v2769 = vsel %vm2768, %v2764, inf
  %2770 = vmin.xlane.f32.xlu0 %v2769
  %v2771 = vpop.xlane.xlu0 %2770
  %v2772 = vcvt.f32.s32 %v2771
  %v2773 = vcvt.f32.s32 %v2767
  %v2774 = vshll.u32 %v2773, 16
  %v2775 = vadd.s32 %v2774, %v2772
  %v2776 = vand.u32 %v2020, 65535
  %v2777 = vshra.s32 %v2020, 16
  %v2778 = vcvt.s32.f32 %v2776
  %v2779 = vcvt.s32.f32 %v2777
  %2780 = vmin.xlane.f32.xlu0 %v2779
  %v2781 = vpop.xlane.xlu0 %2780
  %vm2782 = vcmp.eq.f32.partialorder %v2779, %v2781
  %v2783 = vsel %vm2782, %v2778, inf
  %2784 = vmin.xlane.f32.xlu0 %v2783
  %v2785 = vpop.xlane.xlu0 %2784
  %v2786 = vcvt.f32.s32 %v2785
  %v2787 = vcvt.f32.s32 %v2781
  %v2788 = vshll.u32 %v2787, 16
  %v2789 = vadd.s32 %v2788, %v2786
  %v2790 = vand.u32 %v2021, 65535
  %v2791 = vshra.s32 %v2021, 16
  %v2792 = vcvt.s32.f32 %v2790
  %v2793 = vcvt.s32.f32 %v2791
  %2794 = vmin.xlane.f32.xlu0 %v2793
  %v2795 = vpop.xlane.xlu0 %2794
  %vm2796 = vcmp.eq.f32.partialorder %v2793, %v2795
  %v2797 = vsel %vm2796, %v2792, inf
  %2798 = vmin.xlane.f32.xlu0 %v2797
  %v2799 = vpop.xlane.xlu0 %2798
  %v2800 = vcvt.f32.s32 %v2799
  %v2801 = vcvt.f32.s32 %v2795
  %v2802 = vshll.u32 %v2801, 16
  %v2803 = vadd.s32 %v2802, %v2800
  %v2804 = vand.u32 %v2022, 65535
  %v2805 = vshra.s32 %v2022, 16
  %v2806 = vcvt.s32.f32 %v2804
  %v2807 = vcvt.s32.f32 %v2805
  %2808 = vmin.xlane.f32.xlu0 %v2807
  %v2809 = vpop.xlane.xlu0 %2808
  %vm2810 = vcmp.eq.f32.partialorder %v2807, %v2809
  %v2811 = vsel %vm2810, %v2806, inf
  %2812 = vmin.xlane.f32.xlu0 %v2811
  %v2813 = vpop.xlane.xlu0 %2812
  %v2814 = vcvt.f32.s32 %v2813
  %v2815 = vcvt.f32.s32 %v2809
  %v2816 = vshll.u32 %v2815, 16
  %v2817 = vadd.s32 %v2816, %v2814
  %v2818 = vand.u32 %v2023, 65535
  %v2819 = vshra.s32 %v2023, 16
  %v2820 = vcvt.s32.f32 %v2818
  %v2821 = vcvt.s32.f32 %v2819
  %2822 = vmin.xlane.f32.xlu0 %v2821
  %v2823 = vpop.xlane.xlu0 %2822
  %vm2824 = vcmp.eq.f32.partialorder %v2821, %v2823
  %v2825 = vsel %vm2824, %v2820, inf
  %2826 = vmin.xlane.f32.xlu0 %v2825
  %v2827 = vpop.xlane.xlu0 %2826
  %v2828 = vcvt.f32.s32 %v2827
  %v2829 = vcvt.f32.s32 %v2823
  %v2830 = vshll.u32 %v2829, 16
  %v2831 = vadd.s32 %v2830, %v2828
  %v2832 = vand.u32 %v2024, 65535
  %v2833 = vshra.s32 %v2024, 16
  %v2834 = vcvt.s32.f32 %v2832
  %v2835 = vcvt.s32.f32 %v2833
  %2836 = vmin.xlane.f32.xlu0 %v2835
  %v2837 = vpop.xlane.xlu0 %2836
  %vm2838 = vcmp.eq.f32.partialorder %v2835, %v2837
  %v2839 = vsel %vm2838, %v2834, inf
  %2840 = vmin.xlane.f32.xlu0 %v2839
  %v2841 = vpop.xlane.xlu0 %2840
  %v2842 = vcvt.f32.s32 %v2841
  %v2843 = vcvt.f32.s32 %v2837
  %v2844 = vshll.u32 %v2843, 16
  %v2845 = vadd.s32 %v2844, %v2842
  %v2846 = vand.u32 %v2025, 65535
  %v2847 = vshra.s32 %v2025, 16
  %v2848 = vcvt.s32.f32 %v2846
  %v2849 = vcvt.s32.f32 %v2847
  %2850 = vmin.xlane.f32.xlu0 %v2849
  %v2851 = vpop.xlane.xlu0 %2850
  %vm2852 = vcmp.eq.f32.partialorder %v2849, %v2851
  %v2853 = vsel %vm2852, %v2848, inf
  %2854 = vmin.xlane.f32.xlu0 %v2853
  %v2855 = vpop.xlane.xlu0 %2854
  %v2856 = vcvt.f32.s32 %v2855
  %v2857 = vcvt.f32.s32 %v2851
  %v2858 = vshll.u32 %v2857, 16
  %v2859 = vadd.s32 %v2858, %v2856
  %v2860 = vand.u32 %v2026, 65535
  %v2861 = vshra.s32 %v2026, 16
  %v2862 = vcvt.s32.f32 %v2860
  %v2863 = vcvt.s32.f32 %v2861
  %2864 = vmin.xlane.f32.xlu0 %v2863
  %v2865 = vpop.xlane.xlu0 %2864
  %vm2866 = vcmp.eq.f32.partialorder %v2863, %v2865
  %v2867 = vsel %vm2866, %v2862, inf
  %2868 = vmin.xlane.f32.xlu0 %v2867
  %v2869 = vpop.xlane.xlu0 %2868
  %v2870 = vcvt.f32.s32 %v2869
  %v2871 = vcvt.f32.s32 %v2865
  %v2872 = vshll.u32 %v2871, 16
  %v2873 = vadd.s32 %v2872, %v2870
  %v2874 = vand.u32 %v2027, 65535
  %v2875 = vshra.s32 %v2027, 16
  %v2876 = vcvt.s32.f32 %v2874
  %v2877 = vcvt.s32.f32 %v2875
  %2878 = vmin.xlane.f32.xlu0 %v2877
  %v2879 = vpop.xlane.xlu0 %2878
  %vm2880 = vcmp.eq.f32.partialorder %v2877, %v2879
  %v2881 = vsel %vm2880, %v2876, inf
  %2882 = vmin.xlane.f32.xlu0 %v2881
  %v2883 = vpop.xlane.xlu0 %2882
  %v2884 = vcvt.f32.s32 %v2883
  %v2885 = vcvt.f32.s32 %v2879
  %v2886 = vshll.u32 %v2885, 16
  %v2887 = vadd.s32 %v2886, %v2884
  %v2888 = vand.u32 %v2028, 65535
  %v2889 = vshra.s32 %v2028, 16
  %v2890 = vcvt.s32.f32 %v2888
  %v2891 = vcvt.s32.f32 %v2889
  %2892 = vmin.xlane.f32.xlu0 %v2891
  %v2893 = vpop.xlane.xlu0 %2892
  %vm2894 = vcmp.eq.f32.partialorder %v2891, %v2893
  %v2895 = vsel %vm2894, %v2890, inf
  %2896 = vmin.xlane.f32.xlu0 %v2895
  %v2897 = vpop.xlane.xlu0 %2896
  %v2898 = vcvt.f32.s32 %v2897
  %v2899 = vcvt.f32.s32 %v2893
  %v2900 = vshll.u32 %v2899, 16
  %v2901 = vadd.s32 %v2900, %v2898
  %v2902 = vand.u32 %v2029, 65535
  %v2903 = vshra.s32 %v2029, 16
  %v2904 = vcvt.s32.f32 %v2902
  %v2905 = vcvt.s32.f32 %v2903
  %2906 = vmin.xlane.f32.xlu0 %v2905
  %v2907 = vpop.xlane.xlu0 %2906
  %vm2908 = vcmp.eq.f32.partialorder %v2905, %v2907
  %v2909 = vsel %vm2908, %v2904, inf
  %2910 = vmin.xlane.f32.xlu0 %v2909
  %v2911 = vpop.xlane.xlu0 %2910
  %v2912 = vcvt.f32.s32 %v2911
  %v2913 = vcvt.f32.s32 %v2907
  %v2914 = vshll.u32 %v2913, 16
  %v2915 = vadd.s32 %v2914, %v2912
  %v2916 = vand.u32 %v2030, 65535
  %v2917 = vshra.s32 %v2030, 16
  %v2918 = vcvt.s32.f32 %v2916
  %v2919 = vcvt.s32.f32 %v2917
  %2920 = vmin.xlane.f32.xlu0 %v2919
  %v2921 = vpop.xlane.xlu0 %2920
  %vm2922 = vcmp.eq.f32.partialorder %v2919, %v2921
  %v2923 = vsel %vm2922, %v2918, inf
  %2924 = vmin.xlane.f32.xlu0 %v2923
  %v2925 = vpop.xlane.xlu0 %2924
  %v2926 = vcvt.f32.s32 %v2925
  %v2927 = vcvt.f32.s32 %v2921
  %v2928 = vshll.u32 %v2927, 16
  %v2929 = vadd.s32 %v2928, %v2926
  %v2930 = vand.u32 %v2031, 65535
  %v2931 = vshra.s32 %v2031, 16
  %v2932 = vcvt.s32.f32 %v2930
  %v2933 = vcvt.s32.f32 %v2931
  %2934 = vmin.xlane.f32.xlu0 %v2933
  %v2935 = vpop.xlane.xlu0 %2934
  %vm2936 = vcmp.eq.f32.partialorder %v2933, %v2935
  %v2937 = vsel %vm2936, %v2932, inf
  %2938 = vmin.xlane.f32.xlu0 %v2937
  %v2939 = vpop.xlane.xlu0 %2938
  %v2940 = vcvt.f32.s32 %v2939
  %v2941 = vcvt.f32.s32 %v2935
  %v2942 = vshll.u32 %v2941, 16
  %v2943 = vadd.s32 %v2942, %v2940
  %v2944 = vand.u32 %v2032, 65535
  %v2945 = vshra.s32 %v2032, 16
  %v2946 = vcvt.s32.f32 %v2944
  %v2947 = vcvt.s32.f32 %v2945
  %2948 = vmin.xlane.f32.xlu0 %v2947
  %v2949 = vpop.xlane.xlu0 %2948
  %vm2950 = vcmp.eq.f32.partialorder %v2947, %v2949
  %v2951 = vsel %vm2950, %v2946, inf
  %2952 = vmin.xlane.f32.xlu0 %v2951
  %v2953 = vpop.xlane.xlu0 %2952
  %v2954 = vcvt.f32.s32 %v2953
  %v2955 = vcvt.f32.s32 %v2949
  %v2956 = vshll.u32 %v2955, 16
  %v2957 = vadd.s32 %v2956, %v2954
  %v2958 = vand.u32 %v2033, 65535
  %v2959 = vshra.s32 %v2033, 16
  %v2960 = vcvt.s32.f32 %v2958
  %v2961 = vcvt.s32.f32 %v2959
  %2962 = vmin.xlane.f32.xlu0 %v2961
  %v2963 = vpop.xlane.xlu0 %2962
  %vm2964 = vcmp.eq.f32.partialorder %v2961, %v2963
  %v2965 = vsel %vm2964, %v2960, inf
  %2966 = vmin.xlane.f32.xlu0 %v2965
  %v2967 = vpop.xlane.xlu0 %2966
  %v2968 = vcvt.f32.s32 %v2967
  %v2969 = vcvt.f32.s32 %v2963
  %v2970 = vshll.u32 %v2969, 16
  %v2971 = vadd.s32 %v2970, %v2968
  %v2972 = vand.u32 %v2034, 65535
  %v2973 = vshra.s32 %v2034, 16
  %v2974 = vcvt.s32.f32 %v2972
  %v2975 = vcvt.s32.f32 %v2973
  %2976 = vmin.xlane.f32.xlu0 %v2975
  %v2977 = vpop.xlane.xlu0 %2976
  %vm2978 = vcmp.eq.f32.partialorder %v2975, %v2977
  %v2979 = vsel %vm2978, %v2974, inf
  %2980 = vmin.xlane.f32.xlu0 %v2979
  %v2981 = vpop.xlane.xlu0 %2980
  %v2982 = vcvt.f32.s32 %v2981
  %v2983 = vcvt.f32.s32 %v2977
  %v2984 = vshll.u32 %v2983, 16
  %v2985 = vadd.s32 %v2984, %v2982
  %v2986 = vand.u32 %v2035, 65535
  %v2987 = vshra.s32 %v2035, 16
  %v2988 = vcvt.s32.f32 %v2986
  %v2989 = vcvt.s32.f32 %v2987
  %2990 = vmin.xlane.f32.xlu0 %v2989
  %v2991 = vpop.xlane.xlu0 %2990
  %vm2992 = vcmp.eq.f32.partialorder %v2989, %v2991
  %v2993 = vsel %vm2992, %v2988, inf
  %2994 = vmin.xlane.f32.xlu0 %v2993
  %v2995 = vpop.xlane.xlu0 %2994
  %v2996 = vcvt.f32.s32 %v2995
  %v2997 = vcvt.f32.s32 %v2991
  %v2998 = vshll.u32 %v2997, 16
  %v2999 = vadd.s32 %v2998, %v2996
  %v3000 = vand.u32 %v2036, 65535
  %v3001 = vshra.s32 %v2036, 16
  %v3002 = vcvt.s32.f32 %v3000
  %v3003 = vcvt.s32.f32 %v3001
  %3004 = vmin.xlane.f32.xlu0 %v3003
  %v3005 = vpop.xlane.xlu0 %3004
  %vm3006 = vcmp.eq.f32.partialorder %v3003, %v3005
  %v3007 = vsel %vm3006, %v3002, inf
  %3008 = vmin.xlane.f32.xlu0 %v3007
  %v3009 = vpop.xlane.xlu0 %3008
  %v3010 = vcvt.f32.s32 %v3009
  %v3011 = vcvt.f32.s32 %v3005
  %v3012 = vshll.u32 %v3011, 16
  %v3013 = vadd.s32 %v3012, %v3010
  %v3014 = vand.u32 %v2037, 65535
  %v3015 = vshra.s32 %v2037, 16
  %v3016 = vcvt.s32.f32 %v3014
  %v3017 = vcvt.s32.f32 %v3015
  %3018 = vmin.xlane.f32.xlu0 %v3017
  %v3019 = vpop.xlane.xlu0 %3018
  %vm3020 = vcmp.eq.f32.partialorder %v3017, %v3019
  %v3021 = vsel %vm3020, %v3016, inf
  %3022 = vmin.xlane.f32.xlu0 %v3021
  %v3023 = vpop.xlane.xlu0 %3022
  %v3024 = vcvt.f32.s32 %v3023
  %v3025 = vcvt.f32.s32 %v3019
  %v3026 = vshll.u32 %v3025, 16
  %v3027 = vadd.s32 %v3026, %v3024
  %v3028 = vand.u32 %v2038, 65535
  %v3029 = vshra.s32 %v2038, 16
  %v3030 = vcvt.s32.f32 %v3028
  %v3031 = vcvt.s32.f32 %v3029
  %3032 = vmin.xlane.f32.xlu0 %v3031
  %v3033 = vpop.xlane.xlu0 %3032
  %vm3034 = vcmp.eq.f32.partialorder %v3031, %v3033
  %v3035 = vsel %vm3034, %v3030, inf
  %3036 = vmin.xlane.f32.xlu0 %v3035
  %v3037 = vpop.xlane.xlu0 %3036
  %v3038 = vcvt.f32.s32 %v3037
  %v3039 = vcvt.f32.s32 %v3033
  %v3040 = vshll.u32 %v3039, 16
  %v3041 = vadd.s32 %v3040, %v3038
  %v3042 = vand.u32 %v2039, 65535
  %v3043 = vshra.s32 %v2039, 16
  %v3044 = vcvt.s32.f32 %v3042
  %v3045 = vcvt.s32.f32 %v3043
  %3046 = vmin.xlane.f32.xlu0 %v3045
  %v3047 = vpop.xlane.xlu0 %3046
  %vm3048 = vcmp.eq.f32.partialorder %v3045, %v3047
  %v3049 = vsel %vm3048, %v3044, inf
  %3050 = vmin.xlane.f32.xlu0 %v3049
  %v3051 = vpop.xlane.xlu0 %3050
  %v3052 = vcvt.f32.s32 %v3051
  %v3053 = vcvt.f32.s32 %v3047
  %v3054 = vshll.u32 %v3053, 16
  %v3055 = vadd.s32 %v3054, %v3052
  %v3056 = vand.u32 %v2040, 65535
  %v3057 = vshra.s32 %v2040, 16
  %v3058 = vcvt.s32.f32 %v3056
  %v3059 = vcvt.s32.f32 %v3057
  %3060 = vmin.xlane.f32.xlu0 %v3059
  %v3061 = vpop.xlane.xlu0 %3060
  %vm3062 = vcmp.eq.f32.partialorder %v3059, %v3061
  %v3063 = vsel %vm3062, %v3058, inf
  %3064 = vmin.xlane.f32.xlu0 %v3063
  %v3065 = vpop.xlane.xlu0 %3064
  %v3066 = vcvt.f32.s32 %v3065
  %v3067 = vcvt.f32.s32 %v3061
  %v3068 = vshll.u32 %v3067, 16
  %v3069 = vadd.s32 %v3068, %v3066
  %v3070 = vand.u32 %v2041, 65535
  %v3071 = vshra.s32 %v2041, 16
  %v3072 = vcvt.s32.f32 %v3070
  %v3073 = vcvt.s32.f32 %v3071
  %3074 = vmin.xlane.f32.xlu0 %v3073
  %v3075 = vpop.xlane.xlu0 %3074
  %vm3076 = vcmp.eq.f32.partialorder %v3073, %v3075
  %v3077 = vsel %vm3076, %v3072, inf
  %3078 = vmin.xlane.f32.xlu0 %v3077
  %v3079 = vpop.xlane.xlu0 %3078
  %v3080 = vcvt.f32.s32 %v3079
  %v3081 = vcvt.f32.s32 %v3075
  %v3082 = vshll.u32 %v3081, 16
  %v3083 = vadd.s32 %v3082, %v3080
  %v3084 = vand.u32 %v2042, 65535
  %v3085 = vshra.s32 %v2042, 16
  %v3086 = vcvt.s32.f32 %v3084
  %v3087 = vcvt.s32.f32 %v3085
  %3088 = vmin.xlane.f32.xlu0 %v3087
  %v3089 = vpop.xlane.xlu0 %3088
  %vm3090 = vcmp.eq.f32.partialorder %v3087, %v3089
  %v3091 = vsel %vm3090, %v3086, inf
  %3092 = vmin.xlane.f32.xlu0 %v3091
  %v3093 = vpop.xlane.xlu0 %3092
  %v3094 = vcvt.f32.s32 %v3093
  %v3095 = vcvt.f32.s32 %v3089
  %v3096 = vshll.u32 %v3095, 16
  %v3097 = vadd.s32 %v3096, %v3094
  %v3098 = vand.u32 %v2043, 65535
  %v3099 = vshra.s32 %v2043, 16
  %v3100 = vcvt.s32.f32 %v3098
  %v3101 = vcvt.s32.f32 %v3099
  %3102 = vmin.xlane.f32.xlu0 %v3101
  %v3103 = vpop.xlane.xlu0 %3102
  %vm3104 = vcmp.eq.f32.partialorder %v3101, %v3103
  %v3105 = vsel %vm3104, %v3100, inf
  %3106 = vmin.xlane.f32.xlu0 %v3105
  %v3107 = vpop.xlane.xlu0 %3106
  %v3108 = vcvt.f32.s32 %v3107
  %v3109 = vcvt.f32.s32 %v3103
  %v3110 = vshll.u32 %v3109, 16
  %v3111 = vadd.s32 %v3110, %v3108
  %v3112 = vand.u32 %v2044, 65535
  %v3113 = vshra.s32 %v2044, 16
  %v3114 = vcvt.s32.f32 %v3112
  %v3115 = vcvt.s32.f32 %v3113
  %3116 = vmin.xlane.f32.xlu0 %v3115
  %v3117 = vpop.xlane.xlu0 %3116
  %vm3118 = vcmp.eq.f32.partialorder %v3115, %v3117
  %v3119 = vsel %vm3118, %v3114, inf
  %3120 = vmin.xlane.f32.xlu0 %v3119
  %v3121 = vpop.xlane.xlu0 %3120
  %v3122 = vcvt.f32.s32 %v3121
  %v3123 = vcvt.f32.s32 %v3117
  %v3124 = vshll.u32 %v3123, 16
  %v3125 = vadd.s32 %v3124, %v3122
  %v3126 = vand.u32 %v2045, 65535
  %v3127 = vshra.s32 %v2045, 16
  %v3128 = vcvt.s32.f32 %v3126
  %v3129 = vcvt.s32.f32 %v3127
  %3130 = vmin.xlane.f32.xlu0 %v3129
  %v3131 = vpop.xlane.xlu0 %3130
  %vm3132 = vcmp.eq.f32.partialorder %v3129, %v3131
  %v3133 = vsel %vm3132, %v3128, inf
  %3134 = vmin.xlane.f32.xlu0 %v3133
  %v3135 = vpop.xlane.xlu0 %3134
  %v3136 = vcvt.f32.s32 %v3135
  %v3137 = vcvt.f32.s32 %v3131
  %v3138 = vshll.u32 %v3137, 16
  %v3139 = vadd.s32 %v3138, %v3136
  %v3140 = vand.u32 %v2046, 65535
  %v3141 = vshra.s32 %v2046, 16
  %v3142 = vcvt.s32.f32 %v3140
  %v3143 = vcvt.s32.f32 %v3141
  %3144 = vmin.xlane.f32.xlu0 %v3143
  %v3145 = vpop.xlane.xlu0 %3144
  %vm3146 = vcmp.eq.f32.partialorder %v3143, %v3145
  %v3147 = vsel %vm3146, %v3142, inf
  %3148 = vmin.xlane.f32.xlu0 %v3147
  %v3149 = vpop.xlane.xlu0 %3148
  %v3150 = vcvt.f32.s32 %v3149
  %v3151 = vcvt.f32.s32 %v3145
  %v3152 = vshll.u32 %v3151, 16
  %v3153 = vadd.s32 %v3152, %v3150
  %v3154 = vand.u32 %v2047, 65535
  %v3155 = vshra.s32 %v2047, 16
  %v3156 = vcvt.s32.f32 %v3154
  %v3157 = vcvt.s32.f32 %v3155
  %3158 = vmin.xlane.f32.xlu0 %v3157
  %v3159 = vpop.xlane.xlu0 %3158
  %vm3160 = vcmp.eq.f32.partialorder %v3157, %v3159
  %v3161 = vsel %vm3160, %v3156, inf
  %3162 = vmin.xlane.f32.xlu0 %v3161
  %v3163 = vpop.xlane.xlu0 %3162
  %v3164 = vcvt.f32.s32 %v3163
  %v3165 = vcvt.f32.s32 %v3159
  %v3166 = vshll.u32 %v3165, 16
  %v3167 = vadd.s32 %v3166, %v3164
  %v3168 = vand.u32 %v2048, 65535
  %v3169 = vshra.s32 %v2048, 16
  %v3170 = vcvt.s32.f32 %v3168
  %v3171 = vcvt.s32.f32 %v3169
  %3172 = vmin.xlane.f32.xlu0 %v3171
  %v3173 = vpop.xlane.xlu0 %3172
  %vm3174 = vcmp.eq.f32.partialorder %v3171, %v3173
  %v3175 = vsel %vm3174, %v3170, inf
  %3176 = vmin.xlane.f32.xlu0 %v3175
  %v3177 = vpop.xlane.xlu0 %3176
  %v3178 = vcvt.f32.s32 %v3177
  %v3179 = vcvt.f32.s32 %v3173
  %v3180 = vshll.u32 %v3179, 16
  %v3181 = vadd.s32 %v3180, %v3178
  %v3182 = vand.u32 %v2049, 65535
  %v3183 = vshra.s32 %v2049, 16
  %v3184 = vcvt.s32.f32 %v3182
  %v3185 = vcvt.s32.f32 %v3183
  %3186 = vmin.xlane.f32.xlu0 %v3185
  %v3187 = vpop.xlane.xlu0 %3186
  %vm3188 = vcmp.eq.f32.partialorder %v3185, %v3187
  %v3189 = vsel %vm3188, %v3184, inf
  %3190 = vmin.xlane.f32.xlu0 %v3189
  %v3191 = vpop.xlane.xlu0 %3190
  %v3192 = vcvt.f32.s32 %v3191
  %v3193 = vcvt.f32.s32 %v3187
  %v3194 = vshll.u32 %v3193, 16
  %v3195 = vadd.s32 %v3194, %v3192
  %v3196 = vand.u32 %v2050, 65535
  %v3197 = vshra.s32 %v2050, 16
  %v3198 = vcvt.s32.f32 %v3196
  %v3199 = vcvt.s32.f32 %v3197
  %3200 = vmin.xlane.f32.xlu0 %v3199
  %v3201 = vpop.xlane.xlu0 %3200
  %vm3202 = vcmp.eq.f32.partialorder %v3199, %v3201
  %v3203 = vsel %vm3202, %v3198, inf
  %3204 = vmin.xlane.f32.xlu0 %v3203
  %v3205 = vpop.xlane.xlu0 %3204
  %v3206 = vcvt.f32.s32 %v3205
  %v3207 = vcvt.f32.s32 %v3201
  %v3208 = vshll.u32 %v3207, 16
  %v3209 = vadd.s32 %v3208, %v3206
  %v3210 = vand.u32 %v2051, 65535
  %v3211 = vshra.s32 %v2051, 16
  %v3212 = vcvt.s32.f32 %v3210
  %v3213 = vcvt.s32.f32 %v3211
  %3214 = vmin.xlane.f32.xlu0 %v3213
  %v3215 = vpop.xlane.xlu0 %3214
  %vm3216 = vcmp.eq.f32.partialorder %v3213, %v3215
  %v3217 = vsel %vm3216, %v3212, inf
  %3218 = vmin.xlane.f32.xlu0 %v3217
  %v3219 = vpop.xlane.xlu0 %3218
  %v3220 = vcvt.f32.s32 %v3219
  %v3221 = vcvt.f32.s32 %v3215
  %v3222 = vshll.u32 %v3221, 16
  %v3223 = vadd.s32 %v3222, %v3220
  %v3224 = vand.u32 %v2052, 65535
  %v3225 = vshra.s32 %v2052, 16
  %v3226 = vcvt.s32.f32 %v3224
  %v3227 = vcvt.s32.f32 %v3225
  %3228 = vmin.xlane.f32.xlu0 %v3227
  %v3229 = vpop.xlane.xlu0 %3228
  %vm3230 = vcmp.eq.f32.partialorder %v3227, %v3229
  %v3231 = vsel %vm3230, %v3226, inf
  %3232 = vmin.xlane.f32.xlu0 %v3231
  %v3233 = vpop.xlane.xlu0 %3232
  %v3234 = vcvt.f32.s32 %v3233
  %v3235 = vcvt.f32.s32 %v3229
  %v3236 = vshll.u32 %v3235, 16
  %v3237 = vadd.s32 %v3236, %v3234
  %v3238 = vand.u32 %v2053, 65535
  %v3239 = vshra.s32 %v2053, 16
  %v3240 = vcvt.s32.f32 %v3238
  %v3241 = vcvt.s32.f32 %v3239
  %3242 = vmin.xlane.f32.xlu0 %v3241
  %v3243 = vpop.xlane.xlu0 %3242
  %vm3244 = vcmp.eq.f32.partialorder %v3241, %v3243
  %v3245 = vsel %vm3244, %v3240, inf
  %3246 = vmin.xlane.f32.xlu0 %v3245
  %v3247 = vpop.xlane.xlu0 %3246
  %v3248 = vcvt.f32.s32 %v3247
  %v3249 = vcvt.f32.s32 %v3243
  %v3250 = vshll.u32 %v3249, 16
  %v3251 = vadd.s32 %v3250, %v3248
  %v3252 = vand.u32 %v2054, 65535
  %v3253 = vshra.s32 %v2054, 16
  %v3254 = vcvt.s32.f32 %v3252
  %v3255 = vcvt.s32.f32 %v3253
  %3256 = vmin.xlane.f32.xlu0 %v3255
  %v3257 = vpop.xlane.xlu0 %3256
  %vm3258 = vcmp.eq.f32.partialorder %v3255, %v3257
  %v3259 = vsel %vm3258, %v3254, inf
  %3260 = vmin.xlane.f32.xlu0 %v3259
  %v3261 = vpop.xlane.xlu0 %3260
  %v3262 = vcvt.f32.s32 %v3261
  %v3263 = vcvt.f32.s32 %v3257
  %v3264 = vshll.u32 %v3263, 16
  %v3265 = vadd.s32 %v3264, %v3262
  %v3266 = vand.u32 %v2055, 65535
  %v3267 = vshra.s32 %v2055, 16
  %v3268 = vcvt.s32.f32 %v3266
  %v3269 = vcvt.s32.f32 %v3267
  %3270 = vmin.xlane.f32.xlu0 %v3269
  %v3271 = vpop.xlane.xlu0 %3270
  %vm3272 = vcmp.eq.f32.partialorder %v3269, %v3271
  %v3273 = vsel %vm3272, %v3268, inf
  %3274 = vmin.xlane.f32.xlu0 %v3273
  %v3275 = vpop.xlane.xlu0 %3274
  %v3276 = vcvt.f32.s32 %v3275
  %v3277 = vcvt.f32.s32 %v3271
  %v3278 = vshll.u32 %v3277, 16
  %v3279 = vadd.s32 %v3278, %v3276
  %v3280 = vand.u32 %v2056, 65535
  %v3281 = vshra.s32 %v2056, 16
  %v3282 = vcvt.s32.f32 %v3280
  %v3283 = vcvt.s32.f32 %v3281
  %3284 = vmin.xlane.f32.xlu0 %v3283
  %v3285 = vpop.xlane.xlu0 %3284
  %vm3286 = vcmp.eq.f32.partialorder %v3283, %v3285
  %v3287 = vsel %vm3286, %v3282, inf
  %3288 = vmin.xlane.f32.xlu0 %v3287
  %v3289 = vpop.xlane.xlu0 %3288
  %v3290 = vcvt.f32.s32 %v3289
  %v3291 = vcvt.f32.s32 %v3285
  %v3292 = vshll.u32 %v3291, 16
  %v3293 = vadd.s32 %v3292, %v3290
  %v3294 = vand.u32 %v2057, 65535
  %v3295 = vshra.s32 %v2057, 16
  %v3296 = vcvt.s32.f32 %v3294
  %v3297 = vcvt.s32.f32 %v3295
  %3298 = vmin.xlane.f32.xlu0 %v3297
  %v3299 = vpop.xlane.xlu0 %3298
  %vm3300 = vcmp.eq.f32.partialorder %v3297, %v3299
  %v3301 = vsel %vm3300, %v3296, inf
  %3302 = vmin.xlane.f32.xlu0 %v3301
  %v3303 = vpop.xlane.xlu0 %3302
  %v3304 = vcvt.f32.s32 %v3303
  %v3305 = vcvt.f32.s32 %v3299
  %v3306 = vshll.u32 %v3305, 16
  %v3307 = vadd.s32 %v3306, %v3304
  %v3308 = vand.u32 %v2058, 65535
  %v3309 = vshra.s32 %v2058, 16
  %v3310 = vcvt.s32.f32 %v3308
  %v3311 = vcvt.s32.f32 %v3309
  %3312 = vmin.xlane.f32.xlu0 %v3311
  %v3313 = vpop.xlane.xlu0 %3312
  %vm3314 = vcmp.eq.f32.partialorder %v3311, %v3313
  %v3315 = vsel %vm3314, %v3310, inf
  %3316 = vmin.xlane.f32.xlu0 %v3315
  %v3317 = vpop.xlane.xlu0 %3316
  %v3318 = vcvt.f32.s32 %v3317
  %v3319 = vcvt.f32.s32 %v3313
  %v3320 = vshll.u32 %v3319, 16
  %v3321 = vadd.s32 %v3320, %v3318
  %v3322 = vand.u32 %v2059, 65535
  %v3323 = vshra.s32 %v2059, 16
  %v3324 = vcvt.s32.f32 %v3322
  %v3325 = vcvt.s32.f32 %v3323
  %3326 = vmin.xlane.f32.xlu0 %v3325
  %v3327 = vpop.xlane.xlu0 %3326
  %vm3328 = vcmp.eq.f32.partialorder %v3325, %v3327
  %v3329 = vsel %vm3328, %v3324, inf
  %3330 = vmin.xlane.f32.xlu0 %v3329
  %v3331 = vpop.xlane.xlu0 %3330
  %v3332 = vcvt.f32.s32 %v3331
  %v3333 = vcvt.f32.s32 %v3327
  %v3334 = vshll.u32 %v3333, 16
  %v3335 = vadd.s32 %v3334, %v3332
  %v3336 = vand.u32 %v2060, 65535
  %v3337 = vshra.s32 %v2060, 16
  %v3338 = vcvt.s32.f32 %v3336
  %v3339 = vcvt.s32.f32 %v3337
  %3340 = vmin.xlane.f32.xlu0 %v3339
  %v3341 = vpop.xlane.xlu0 %3340
  %vm3342 = vcmp.eq.f32.partialorder %v3339, %v3341
  %v3343 = vsel %vm3342, %v3338, inf
  %3344 = vmin.xlane.f32.xlu0 %v3343
  %v3345 = vpop.xlane.xlu0 %3344
  %v3346 = vcvt.f32.s32 %v3345
  %v3347 = vcvt.f32.s32 %v3341
  %v3348 = vshll.u32 %v3347, 16
  %v3349 = vadd.s32 %v3348, %v3346
  %v3350 = vand.u32 %v2061, 65535
  %v3351 = vshra.s32 %v2061, 16
  %v3352 = vcvt.s32.f32 %v3350
  %v3353 = vcvt.s32.f32 %v3351
  %3354 = vmin.xlane.f32.xlu0 %v3353
  %v3355 = vpop.xlane.xlu0 %3354
  %vm3356 = vcmp.eq.f32.partialorder %v3353, %v3355
  %v3357 = vsel %vm3356, %v3352, inf
  %3358 = vmin.xlane.f32.xlu0 %v3357
  %v3359 = vpop.xlane.xlu0 %3358
  %v3360 = vcvt.f32.s32 %v3359
  %v3361 = vcvt.f32.s32 %v3355
  %v3362 = vshll.u32 %v3361, 16
  %v3363 = vadd.s32 %v3362, %v3360
  %v3364 = vand.u32 %v2062, 65535
  %v3365 = vshra.s32 %v2062, 16
  %v3366 = vcvt.s32.f32 %v3364
  %v3367 = vcvt.s32.f32 %v3365
  %3368 = vmin.xlane.f32.xlu0 %v3367
  %v3369 = vpop.xlane.xlu0 %3368
  %vm3370 = vcmp.eq.f32.partialorder %v3367, %v3369
  %v3371 = vsel %vm3370, %v3366, inf
  %3372 = vmin.xlane.f32.xlu0 %v3371
  %v3373 = vpop.xlane.xlu0 %3372
  %v3374 = vcvt.f32.s32 %v3373
  %v3375 = vcvt.f32.s32 %v3369
  %v3376 = vshll.u32 %v3375, 16
  %v3377 = vadd.s32 %v3376, %v3374
  %v3378 = vand.u32 %v2063, 65535
  %v3379 = vshra.s32 %v2063, 16
  %v3380 = vcvt.s32.f32 %v3378
  %v3381 = vcvt.s32.f32 %v3379
  %3382 = vmin.xlane.f32.xlu0 %v3381
  %v3383 = vpop.xlane.xlu0 %3382
  %vm3384 = vcmp.eq.f32.partialorder %v3381, %v3383
  %v3385 = vsel %vm3384, %v3380, inf
  %3386 = vmin.xlane.f32.xlu0 %v3385
  %v3387 = vpop.xlane.xlu0 %3386
  %v3388 = vcvt.f32.s32 %v3387
  %v3389 = vcvt.f32.s32 %v3383
  %v3390 = vshll.u32 %v3389, 16
  %v3391 = vadd.s32 %v3390, %v3388
  %v3392 = vand.u32 %v2064, 65535
  %v3393 = vshra.s32 %v2064, 16
  %v3394 = vcvt.s32.f32 %v3392
  %v3395 = vcvt.s32.f32 %v3393
  %3396 = vmin.xlane.f32.xlu0 %v3395
  %v3397 = vpop.xlane.xlu0 %3396
  %vm3398 = vcmp.eq.f32.partialorder %v3395, %v3397
  %v3399 = vsel %vm3398, %v3394, inf
  %3400 = vmin.xlane.f32.xlu0 %v3399
  %v3401 = vpop.xlane.xlu0 %3400
  %v3402 = vcvt.f32.s32 %v3401
  %v3403 = vcvt.f32.s32 %v3397
  %v3404 = vshll.u32 %v3403, 16
  %v3405 = vadd.s32 %v3404, %v3402
  %v3406 = vand.u32 %v2065, 65535
  %v3407 = vshra.s32 %v2065, 16
  %v3408 = vcvt.s32.f32 %v3406
  %v3409 = vcvt.s32.f32 %v3407
  %3410 = vmin.xlane.f32.xlu0 %v3409
  %v3411 = vpop.xlane.xlu0 %3410
  %vm3412 = vcmp.eq.f32.partialorder %v3409, %v3411
  %v3413 = vsel %vm3412, %v3408, inf
  %3414 = vmin.xlane.f32.xlu0 %v3413
  %v3415 = vpop.xlane.xlu0 %3414
  %v3416 = vcvt.f32.s32 %v3415
  %v3417 = vcvt.f32.s32 %v3411
  %v3418 = vshll.u32 %v3417, 16
  %v3419 = vadd.s32 %v3418, %v3416
  %v3420 = vand.u32 %v2066, 65535
  %v3421 = vshra.s32 %v2066, 16
  %v3422 = vcvt.s32.f32 %v3420
  %v3423 = vcvt.s32.f32 %v3421
  %3424 = vmin.xlane.f32.xlu0 %v3423
  %v3425 = vpop.xlane.xlu0 %3424
  %vm3426 = vcmp.eq.f32.partialorder %v3423, %v3425
  %v3427 = vsel %vm3426, %v3422, inf
  %3428 = vmin.xlane.f32.xlu0 %v3427
  %v3429 = vpop.xlane.xlu0 %3428
  %v3430 = vcvt.f32.s32 %v3429
  %v3431 = vcvt.f32.s32 %v3425
  %v3432 = vshll.u32 %v3431, 16
  %v3433 = vadd.s32 %v3432, %v3430
  %v3434 = vand.u32 %v2067, 65535
  %v3435 = vshra.s32 %v2067, 16
  %v3436 = vcvt.s32.f32 %v3434
  %v3437 = vcvt.s32.f32 %v3435
  %3438 = vmin.xlane.f32.xlu0 %v3437
  %v3439 = vpop.xlane.xlu0 %3438
  %vm3440 = vcmp.eq.f32.partialorder %v3437, %v3439
  %v3441 = vsel %vm3440, %v3436, inf
  %3442 = vmin.xlane.f32.xlu0 %v3441
  %v3443 = vpop.xlane.xlu0 %3442
  %v3444 = vcvt.f32.s32 %v3443
  %v3445 = vcvt.f32.s32 %v3439
  %v3446 = vshll.u32 %v3445, 16
  %v3447 = vadd.s32 %v3446, %v3444
  %v3448 = vand.u32 %v2068, 65535
  %v3449 = vshra.s32 %v2068, 16
  %v3450 = vcvt.s32.f32 %v3448
  %v3451 = vcvt.s32.f32 %v3449
  %3452 = vmin.xlane.f32.xlu0 %v3451
  %v3453 = vpop.xlane.xlu0 %3452
  %vm3454 = vcmp.eq.f32.partialorder %v3451, %v3453
  %v3455 = vsel %vm3454, %v3450, inf
  %3456 = vmin.xlane.f32.xlu0 %v3455
  %v3457 = vpop.xlane.xlu0 %3456
  %v3458 = vcvt.f32.s32 %v3457
  %v3459 = vcvt.f32.s32 %v3453
  %v3460 = vshll.u32 %v3459, 16
  %v3461 = vadd.s32 %v3460, %v3458
  %v3462 = vand.u32 %v2069, 65535
  %v3463 = vshra.s32 %v2069, 16
  %v3464 = vcvt.s32.f32 %v3462
  %v3465 = vcvt.s32.f32 %v3463
  %3466 = vmin.xlane.f32.xlu0 %v3465
  %v3467 = vpop.xlane.xlu0 %3466
  %vm3468 = vcmp.eq.f32.partialorder %v3465, %v3467
  %v3469 = vsel %vm3468, %v3464, inf
  %3470 = vmin.xlane.f32.xlu0 %v3469
  %v3471 = vpop.xlane.xlu0 %3470
  %v3472 = vcvt.f32.s32 %v3471
  %v3473 = vcvt.f32.s32 %v3467
  %v3474 = vshll.u32 %v3473, 16
  %v3475 = vadd.s32 %v3474, %v3472
  %v3476 = vand.u32 %v2070, 65535
  %v3477 = vshra.s32 %v2070, 16
  %v3478 = vcvt.s32.f32 %v3476
  %v3479 = vcvt.s32.f32 %v3477
  %3480 = vmin.xlane.f32.xlu0 %v3479
  %v3481 = vpop.xlane.xlu0 %3480
  %vm3482 = vcmp.eq.f32.partialorder %v3479, %v3481
  %v3483 = vsel %vm3482, %v3478, inf
  %3484 = vmin.xlane.f32.xlu0 %v3483
  %v3485 = vpop.xlane.xlu0 %3484
  %v3486 = vcvt.f32.s32 %v3485
  %v3487 = vcvt.f32.s32 %v3481
  %v3488 = vshll.u32 %v3487, 16
  %v3489 = vadd.s32 %v3488, %v3486
  %v3490 = vand.u32 %v2071, 65535
  %v3491 = vshra.s32 %v2071, 16
  %v3492 = vcvt.s32.f32 %v3490
  %v3493 = vcvt.s32.f32 %v3491
  %3494 = vmin.xlane.f32.xlu0 %v3493
  %v3495 = vpop.xlane.xlu0 %3494
  %vm3496 = vcmp.eq.f32.partialorder %v3493, %v3495
  %v3497 = vsel %vm3496, %v3492, inf
  %3498 = vmin.xlane.f32.xlu0 %v3497
  %v3499 = vpop.xlane.xlu0 %3498
  %v3500 = vcvt.f32.s32 %v3499
  %v3501 = vcvt.f32.s32 %v3495
  %v3502 = vshll.u32 %v3501, 16
  %v3503 = vadd.s32 %v3502, %v3500
  %v3504 = vand.u32 %v2072, 65535
  %v3505 = vshra.s32 %v2072, 16
  %v3506 = vcvt.s32.f32 %v3504
  %v3507 = vcvt.s32.f32 %v3505
  %3508 = vmin.xlane.f32.xlu0 %v3507
  %v3509 = vpop.xlane.xlu0 %3508
  %vm3510 = vcmp.eq.f32.partialorder %v3507, %v3509
  %v3511 = vsel %vm3510, %v3506, inf
  %3512 = vmin.xlane.f32.xlu0 %v3511
  %v3513 = vpop.xlane.xlu0 %3512
  %v3514 = vcvt.f32.s32 %v3513
  %v3515 = vcvt.f32.s32 %v3509
  %v3516 = vshll.u32 %v3515, 16
  %v3517 = vadd.s32 %v3516, %v3514
  %v3518 = vand.u32 %v2073, 65535
  %v3519 = vshra.s32 %v2073, 16
  %v3520 = vcvt.s32.f32 %v3518
  %v3521 = vcvt.s32.f32 %v3519
  %3522 = vmin.xlane.f32.xlu0 %v3521
  %v3523 = vpop.xlane.xlu0 %3522
  %vm3524 = vcmp.eq.f32.partialorder %v3521, %v3523
  %v3525 = vsel %vm3524, %v3520, inf
  %3526 = vmin.xlane.f32.xlu0 %v3525
  %v3527 = vpop.xlane.xlu0 %3526
  %v3528 = vcvt.f32.s32 %v3527
  %v3529 = vcvt.f32.s32 %v3523
  %v3530 = vshll.u32 %v3529, 16
  %v3531 = vadd.s32 %v3530, %v3528
  %v3532 = vand.u32 %v2074, 65535
  %v3533 = vshra.s32 %v2074, 16
  %v3534 = vcvt.s32.f32 %v3532
  %v3535 = vcvt.s32.f32 %v3533
  %3536 = vmin.xlane.f32.xlu0 %v3535
  %v3537 = vpop.xlane.xlu0 %3536
  %vm3538 = vcmp.eq.f32.partialorder %v3535, %v3537
  %v3539 = vsel %vm3538, %v3534, inf
  %3540 = vmin.xlane.f32.xlu0 %v3539
  %v3541 = vpop.xlane.xlu0 %3540
  %v3542 = vcvt.f32.s32 %v3541
  %v3543 = vcvt.f32.s32 %v3537
  %v3544 = vshll.u32 %v3543, 16
  %v3545 = vadd.s32 %v3544, %v3542
  %v3546 = vand.u32 %v2075, 65535
  %v3547 = vshra.s32 %v2075, 16
  %v3548 = vcvt.s32.f32 %v3546
  %v3549 = vcvt.s32.f32 %v3547
  %3550 = vmin.xlane.f32.xlu0 %v3549
  %v3551 = vpop.xlane.xlu0 %3550
  %vm3552 = vcmp.eq.f32.partialorder %v3549, %v3551
  %v3553 = vsel %vm3552, %v3548, inf
  %3554 = vmin.xlane.f32.xlu0 %v3553
  %v3555 = vpop.xlane.xlu0 %3554
  %v3556 = vcvt.f32.s32 %v3555
  %v3557 = vcvt.f32.s32 %v3551
  %v3558 = vshll.u32 %v3557, 16
  %v3559 = vadd.s32 %v3558, %v3556
  %v3560 = vand.u32 %v2076, 65535
  %v3561 = vshra.s32 %v2076, 16
  %v3562 = vcvt.s32.f32 %v3560
  %v3563 = vcvt.s32.f32 %v3561
  %3564 = vmin.xlane.f32.xlu0 %v3563
  %v3565 = vpop.xlane.xlu0 %3564
  %vm3566 = vcmp.eq.f32.partialorder %v3563, %v3565
  %v3567 = vsel %vm3566, %v3562, inf
  %3568 = vmin.xlane.f32.xlu0 %v3567
  %v3569 = vpop.xlane.xlu0 %3568
  %v3570 = vcvt.f32.s32 %v3569
  %v3571 = vcvt.f32.s32 %v3565
  %v3572 = vshll.u32 %v3571, 16
  %v3573 = vadd.s32 %v3572, %v3570
  %v3574 = vand.u32 %v2077, 65535
  %v3575 = vshra.s32 %v2077, 16
  %v3576 = vcvt.s32.f32 %v3574
  %v3577 = vcvt.s32.f32 %v3575
  %3578 = vmin.xlane.f32.xlu0 %v3577
  %v3579 = vpop.xlane.xlu0 %3578
  %vm3580 = vcmp.eq.f32.partialorder %v3577, %v3579
  %v3581 = vsel %vm3580, %v3576, inf
  %3582 = vmin.xlane.f32.xlu0 %v3581
  %v3583 = vpop.xlane.xlu0 %3582
  %v3584 = vcvt.f32.s32 %v3583
  %v3585 = vcvt.f32.s32 %v3579
  %v3586 = vshll.u32 %v3585, 16
  %v3587 = vadd.s32 %v3586, %v3584
  %v3588 = vand.u32 %v2078, 65535
  %v3589 = vshra.s32 %v2078, 16
  %v3590 = vcvt.s32.f32 %v3588
  %v3591 = vcvt.s32.f32 %v3589
  %3592 = vmin.xlane.f32.xlu0 %v3591
  %v3593 = vpop.xlane.xlu0 %3592
  %vm3594 = vcmp.eq.f32.partialorder %v3591, %v3593
  %v3595 = vsel %vm3594, %v3590, inf
  %3596 = vmin.xlane.f32.xlu0 %v3595
  %v3597 = vpop.xlane.xlu0 %3596
  %v3598 = vcvt.f32.s32 %v3597
  %v3599 = vcvt.f32.s32 %v3593
  %v3600 = vshll.u32 %v3599, 16
  %v3601 = vadd.s32 %v3600, %v3598
  %v3602 = vand.u32 %v2079, 65535
  %v3603 = vshra.s32 %v2079, 16
  %v3604 = vcvt.s32.f32 %v3602
  %v3605 = vcvt.s32.f32 %v3603
  %3606 = vmin.xlane.f32.xlu0 %v3605
  %v3607 = vpop.xlane.xlu0 %3606
  %vm3608 = vcmp.eq.f32.partialorder %v3605, %v3607
  %v3609 = vsel %vm3608, %v3604, inf
  %3610 = vmin.xlane.f32.xlu0 %v3609
  %v3611 = vpop.xlane.xlu0 %3610
  %v3612 = vcvt.f32.s32 %v3611
  %v3613 = vcvt.f32.s32 %v3607
  %v3614 = vshll.u32 %v3613, 16
  %v3615 = vadd.s32 %v3614, %v3612
  %v3616 = vand.u32 %v2080, 65535
  %v3617 = vshra.s32 %v2080, 16
  %v3618 = vcvt.s32.f32 %v3616
  %v3619 = vcvt.s32.f32 %v3617
  %3620 = vmin.xlane.f32.xlu0 %v3619
  %v3621 = vpop.xlane.xlu0 %3620
  %vm3622 = vcmp.eq.f32.partialorder %v3619, %v3621
  %v3623 = vsel %vm3622, %v3618, inf
  %3624 = vmin.xlane.f32.xlu0 %v3623
  %v3625 = vpop.xlane.xlu0 %3624
  %v3626 = vcvt.f32.s32 %v3625
  %v3627 = vcvt.f32.s32 %v3621
  %v3628 = vshll.u32 %v3627, 16
  %v3629 = vadd.s32 %v3628, %v3626
  %v3630 = vand.u32 %v2081, 65535
  %v3631 = vshra.s32 %v2081, 16
  %v3632 = vcvt.s32.f32 %v3630
  %v3633 = vcvt.s32.f32 %v3631
  %3634 = vmin.xlane.f32.xlu0 %v3633
  %v3635 = vpop.xlane.xlu0 %3634
  %vm3636 = vcmp.eq.f32.partialorder %v3633, %v3635
  %v3637 = vsel %vm3636, %v3632, inf
  %3638 = vmin.xlane.f32.xlu0 %v3637
  %v3639 = vpop.xlane.xlu0 %3638
  %v3640 = vcvt.f32.s32 %v3639
  %v3641 = vcvt.f32.s32 %v3635
  %v3642 = vshll.u32 %v3641, 16
  %v3643 = vadd.s32 %v3642, %v3640
  %v3644 = vand.u32 %v2082, 65535
  %v3645 = vshra.s32 %v2082, 16
  %v3646 = vcvt.s32.f32 %v3644
  %v3647 = vcvt.s32.f32 %v3645
  %3648 = vmin.xlane.f32.xlu0 %v3647
  %v3649 = vpop.xlane.xlu0 %3648
  %vm3650 = vcmp.eq.f32.partialorder %v3647, %v3649
  %v3651 = vsel %vm3650, %v3646, inf
  %3652 = vmin.xlane.f32.xlu0 %v3651
  %v3653 = vpop.xlane.xlu0 %3652
  %v3654 = vcvt.f32.s32 %v3653
  %v3655 = vcvt.f32.s32 %v3649
  %v3656 = vshll.u32 %v3655, 16
  %v3657 = vadd.s32 %v3656, %v3654
  %v3658 = vand.u32 %v2083, 65535
  %v3659 = vshra.s32 %v2083, 16
  %v3660 = vcvt.s32.f32 %v3658
  %v3661 = vcvt.s32.f32 %v3659
  %3662 = vmin.xlane.f32.xlu0 %v3661
  %v3663 = vpop.xlane.xlu0 %3662
  %vm3664 = vcmp.eq.f32.partialorder %v3661, %v3663
  %v3665 = vsel %vm3664, %v3660, inf
  %3666 = vmin.xlane.f32.xlu0 %v3665
  %v3667 = vpop.xlane.xlu0 %3666
  %v3668 = vcvt.f32.s32 %v3667
  %v3669 = vcvt.f32.s32 %v3663
  %v3670 = vshll.u32 %v3669, 16
  %v3671 = vadd.s32 %v3670, %v3668
  %v3672 = vand.u32 %v2084, 65535
  %v3673 = vshra.s32 %v2084, 16
  %v3674 = vcvt.s32.f32 %v3672
  %v3675 = vcvt.s32.f32 %v3673
  %3676 = vmin.xlane.f32.xlu0 %v3675
  %v3677 = vpop.xlane.xlu0 %3676
  %vm3678 = vcmp.eq.f32.partialorder %v3675, %v3677
  %v3679 = vsel %vm3678, %v3674, inf
  %3680 = vmin.xlane.f32.xlu0 %v3679
  %v3681 = vpop.xlane.xlu0 %3680
  %v3682 = vcvt.f32.s32 %v3681
  %v3683 = vcvt.f32.s32 %v3677
  %v3684 = vshll.u32 %v3683, 16
  %v3685 = vadd.s32 %v3684, %v3682
  %v3686 = vand.u32 %v2085, 65535
  %v3687 = vshra.s32 %v2085, 16
  %v3688 = vcvt.s32.f32 %v3686
  %v3689 = vcvt.s32.f32 %v3687
  %3690 = vmin.xlane.f32.xlu0 %v3689
  %v3691 = vpop.xlane.xlu0 %3690
  %vm3692 = vcmp.eq.f32.partialorder %v3689, %v3691
  %v3693 = vsel %vm3692, %v3688, inf
  %3694 = vmin.xlane.f32.xlu0 %v3693
  %v3695 = vpop.xlane.xlu0 %3694
  %v3696 = vcvt.f32.s32 %v3695
  %v3697 = vcvt.f32.s32 %v3691
  %v3698 = vshll.u32 %v3697, 16
  %v3699 = vadd.s32 %v3698, %v3696
  %v3700 = vand.u32 %v2086, 65535
  %v3701 = vshra.s32 %v2086, 16
  %v3702 = vcvt.s32.f32 %v3700
  %v3703 = vcvt.s32.f32 %v3701
  %3704 = vmin.xlane.f32.xlu0 %v3703
  %v3705 = vpop.xlane.xlu0 %3704
  %vm3706 = vcmp.eq.f32.partialorder %v3703, %v3705
  %v3707 = vsel %vm3706, %v3702, inf
  %3708 = vmin.xlane.f32.xlu0 %v3707
  %v3709 = vpop.xlane.xlu0 %3708
  %v3710 = vcvt.f32.s32 %v3709
  %v3711 = vcvt.f32.s32 %v3705
  %v3712 = vshll.u32 %v3711, 16
  %v3713 = vadd.s32 %v3712, %v3710
  %v3714 = vand.u32 %v2087, 65535
  %v3715 = vshra.s32 %v2087, 16
  %v3716 = vcvt.s32.f32 %v3714
  %v3717 = vcvt.s32.f32 %v3715
  %3718 = vmin.xlane.f32.xlu0 %v3717
  %v3719 = vpop.xlane.xlu0 %3718
  %vm3720 = vcmp.eq.f32.partialorder %v3717, %v3719
  %v3721 = vsel %vm3720, %v3716, inf
  %3722 = vmin.xlane.f32.xlu0 %v3721
  %v3723 = vpop.xlane.xlu0 %3722
  %v3724 = vcvt.f32.s32 %v3723
  %v3725 = vcvt.f32.s32 %v3719
  %v3726 = vshll.u32 %v3725, 16
  %v3727 = vadd.s32 %v3726, %v3724
  %v3728 = vand.u32 %v2088, 65535
  %v3729 = vshra.s32 %v2088, 16
  %v3730 = vcvt.s32.f32 %v3728
  %v3731 = vcvt.s32.f32 %v3729
  %3732 = vmin.xlane.f32.xlu0 %v3731
  %v3733 = vpop.xlane.xlu0 %3732
  %vm3734 = vcmp.eq.f32.partialorder %v3731, %v3733
  %v3735 = vsel %vm3734, %v3730, inf
  %3736 = vmin.xlane.f32.xlu0 %v3735
  %v3737 = vpop.xlane.xlu0 %3736
  %v3738 = vcvt.f32.s32 %v3737
  %v3739 = vcvt.f32.s32 %v3733
  %v3740 = vshll.u32 %v3739, 16
  %v3741 = vadd.s32 %v3740, %v3738
  %v3742 = vand.u32 %v2089, 65535
  %v3743 = vshra.s32 %v2089, 16
  %v3744 = vcvt.s32.f32 %v3742
  %v3745 = vcvt.s32.f32 %v3743
  %3746 = vmin.xlane.f32.xlu0 %v3745
  %v3747 = vpop.xlane.xlu0 %3746
  %vm3748 = vcmp.eq.f32.partialorder %v3745, %v3747
  %v3749 = vsel %vm3748, %v3744, inf
  %3750 = vmin.xlane.f32.xlu0 %v3749
  %v3751 = vpop.xlane.xlu0 %3750
  %v3752 = vcvt.f32.s32 %v3751
  %v3753 = vcvt.f32.s32 %v3747
  %v3754 = vshll.u32 %v3753, 16
  %v3755 = vadd.s32 %v3754, %v3752
  %v3756 = vand.u32 %v2090, 65535
  %v3757 = vshra.s32 %v2090, 16
  %v3758 = vcvt.s32.f32 %v3756
  %v3759 = vcvt.s32.f32 %v3757
  %3760 = vmin.xlane.f32.xlu0 %v3759
  %v3761 = vpop.xlane.xlu0 %3760
  %vm3762 = vcmp.eq.f32.partialorder %v3759, %v3761
  %v3763 = vsel %vm3762, %v3758, inf
  %3764 = vmin.xlane.f32.xlu0 %v3763
  %v3765 = vpop.xlane.xlu0 %3764
  %v3766 = vcvt.f32.s32 %v3765
  %v3767 = vcvt.f32.s32 %v3761
  %v3768 = vshll.u32 %v3767, 16
  %v3769 = vadd.s32 %v3768, %v3766
  %v3770 = vand.u32 %v2091, 65535
  %v3771 = vshra.s32 %v2091, 16
  %v3772 = vcvt.s32.f32 %v3770
  %v3773 = vcvt.s32.f32 %v3771
  %3774 = vmin.xlane.f32.xlu0 %v3773
  %v3775 = vpop.xlane.xlu0 %3774
  %vm3776 = vcmp.eq.f32.partialorder %v3773, %v3775
  %v3777 = vsel %vm3776, %v3772, inf
  %3778 = vmin.xlane.f32.xlu0 %v3777
  %v3779 = vpop.xlane.xlu0 %3778
  %v3780 = vcvt.f32.s32 %v3779
  %v3781 = vcvt.f32.s32 %v3775
  %v3782 = vshll.u32 %v3781, 16
  %v3783 = vadd.s32 %v3782, %v3780
  %v3784 = vand.u32 %v2092, 65535
  %v3785 = vshra.s32 %v2092, 16
  %v3786 = vcvt.s32.f32 %v3784
  %v3787 = vcvt.s32.f32 %v3785
  %3788 = vmin.xlane.f32.xlu0 %v3787
  %v3789 = vpop.xlane.xlu0 %3788
  %vm3790 = vcmp.eq.f32.partialorder %v3787, %v3789
  %v3791 = vsel %vm3790, %v3786, inf
  %3792 = vmin.xlane.f32.xlu0 %v3791
  %v3793 = vpop.xlane.xlu0 %3792
  %v3794 = vcvt.f32.s32 %v3793
  %v3795 = vcvt.f32.s32 %v3789
  %v3796 = vshll.u32 %v3795, 16
  %v3797 = vadd.s32 %v3796, %v3794
  %v3798 = vand.u32 %v2093, 65535
  %v3799 = vshra.s32 %v2093, 16
  %v3800 = vcvt.s32.f32 %v3798
  %v3801 = vcvt.s32.f32 %v3799
  %3802 = vmin.xlane.f32.xlu0 %v3801
  %v3803 = vpop.xlane.xlu0 %3802
  %vm3804 = vcmp.eq.f32.partialorder %v3801, %v3803
  %v3805 = vsel %vm3804, %v3800, inf
  %3806 = vmin.xlane.f32.xlu0 %v3805
  %v3807 = vpop.xlane.xlu0 %3806
  %v3808 = vcvt.f32.s32 %v3807
  %v3809 = vcvt.f32.s32 %v3803
  %v3810 = vshll.u32 %v3809, 16
  %v3811 = vadd.s32 %v3810, %v3808
  %v3812 = vand.u32 %v2094, 65535
  %v3813 = vshra.s32 %v2094, 16
  %v3814 = vcvt.s32.f32 %v3812
  %v3815 = vcvt.s32.f32 %v3813
  %3816 = vmin.xlane.f32.xlu0 %v3815
  %v3817 = vpop.xlane.xlu0 %3816
  %vm3818 = vcmp.eq.f32.partialorder %v3815, %v3817
  %v3819 = vsel %vm3818, %v3814, inf
  %3820 = vmin.xlane.f32.xlu0 %v3819
  %v3821 = vpop.xlane.xlu0 %3820
  %v3822 = vcvt.f32.s32 %v3821
  %v3823 = vcvt.f32.s32 %v3817
  %v3824 = vshll.u32 %v3823, 16
  %v3825 = vadd.s32 %v3824, %v3822
  %v3826 = vand.u32 %v2095, 65535
  %v3827 = vshra.s32 %v2095, 16
  %v3828 = vcvt.s32.f32 %v3826
  %v3829 = vcvt.s32.f32 %v3827
  %3830 = vmin.xlane.f32.xlu0 %v3829
  %v3831 = vpop.xlane.xlu0 %3830
  %vm3832 = vcmp.eq.f32.partialorder %v3829, %v3831
  %v3833 = vsel %vm3832, %v3828, inf
  %3834 = vmin.xlane.f32.xlu0 %v3833
  %v3835 = vpop.xlane.xlu0 %3834
  %v3836 = vcvt.f32.s32 %v3835
  %v3837 = vcvt.f32.s32 %v3831
  %v3838 = vshll.u32 %v3837, 16
  %v3839 = vadd.s32 %v3838, %v3836
  %v3840 = vand.u32 %v2096, 65535
  %v3841 = vshra.s32 %v2096, 16
  %v3842 = vcvt.s32.f32 %v3840
  %v3843 = vcvt.s32.f32 %v3841
  %3844 = vmin.xlane.f32.xlu0 %v3843
  %v3845 = vpop.xlane.xlu0 %3844
  %vm3846 = vcmp.eq.f32.partialorder %v3843, %v3845
  %v3847 = vsel %vm3846, %v3842, inf
  %3848 = vmin.xlane.f32.xlu0 %v3847
  %v3849 = vpop.xlane.xlu0 %3848
  %v3850 = vcvt.f32.s32 %v3849
  %v3851 = vcvt.f32.s32 %v3845
  %v3852 = vshll.u32 %v3851, 16
  %v3853 = vadd.s32 %v3852, %v3850
  %v3854 = vand.u32 %v2097, 65535
  %v3855 = vshra.s32 %v2097, 16
  %v3856 = vcvt.s32.f32 %v3854
  %v3857 = vcvt.s32.f32 %v3855
  %3858 = vmin.xlane.f32.xlu0 %v3857
  %v3859 = vpop.xlane.xlu0 %3858
  %vm3860 = vcmp.eq.f32.partialorder %v3857, %v3859
  %v3861 = vsel %vm3860, %v3856, inf
  %3862 = vmin.xlane.f32.xlu0 %v3861
  %v3863 = vpop.xlane.xlu0 %3862
  %v3864 = vcvt.f32.s32 %v3863
  %v3865 = vcvt.f32.s32 %v3859
  %v3866 = vshll.u32 %v3865, 16
  %v3867 = vadd.s32 %v3866, %v3864
  %v3868 = vand.u32 %v2098, 65535
  %v3869 = vshra.s32 %v2098, 16
  %v3870 = vcvt.s32.f32 %v3868
  %v3871 = vcvt.s32.f32 %v3869
  %3872 = vmin.xlane.f32.xlu0 %v3871
  %v3873 = vpop.xlane.xlu0 %3872
  %vm3874 = vcmp.eq.f32.partialorder %v3871, %v3873
  %v3875 = vsel %vm3874, %v3870, inf
  %3876 = vmin.xlane.f32.xlu0 %v3875
  %v3877 = vpop.xlane.xlu0 %3876
  %v3878 = vcvt.f32.s32 %v3877
  %v3879 = vcvt.f32.s32 %v3873
  %v3880 = vshll.u32 %v3879, 16
  %v3881 = vadd.s32 %v3880, %v3878
  %v3882 = vand.u32 %v2099, 65535
  %v3883 = vshra.s32 %v2099, 16
  %v3884 = vcvt.s32.f32 %v3882
  %v3885 = vcvt.s32.f32 %v3883
  %3886 = vmin.xlane.f32.xlu0 %v3885
  %v3887 = vpop.xlane.xlu0 %3886
  %vm3888 = vcmp.eq.f32.partialorder %v3885, %v3887
  %v3889 = vsel %vm3888, %v3884, inf
  %3890 = vmin.xlane.f32.xlu0 %v3889
  %v3891 = vpop.xlane.xlu0 %3890
  %v3892 = vcvt.f32.s32 %v3891
  %v3893 = vcvt.f32.s32 %v3887
  %v3894 = vshll.u32 %v3893, 16
  %v3895 = vadd.s32 %v3894, %v3892
  %v3896 = vand.u32 %v2100, 65535
  %v3897 = vshra.s32 %v2100, 16
  %v3898 = vcvt.s32.f32 %v3896
  %v3899 = vcvt.s32.f32 %v3897
  %3900 = vmin.xlane.f32.xlu0 %v3899
  %v3901 = vpop.xlane.xlu0 %3900
  %vm3902 = vcmp.eq.f32.partialorder %v3899, %v3901
  %v3903 = vsel %vm3902, %v3898, inf
  %3904 = vmin.xlane.f32.xlu0 %v3903
  %v3905 = vpop.xlane.xlu0 %3904
  %v3906 = vcvt.f32.s32 %v3905
  %v3907 = vcvt.f32.s32 %v3901
  %v3908 = vshll.u32 %v3907, 16
  %v3909 = vadd.s32 %v3908, %v3906
  %v3910 = vand.u32 %v2101, 65535
  %v3911 = vshra.s32 %v2101, 16
  %v3912 = vcvt.s32.f32 %v3910
  %v3913 = vcvt.s32.f32 %v3911
  %3914 = vmin.xlane.f32.xlu0 %v3913
  %v3915 = vpop.xlane.xlu0 %3914
  %vm3916 = vcmp.eq.f32.partialorder %v3913, %v3915
  %v3917 = vsel %vm3916, %v3912, inf
  %3918 = vmin.xlane.f32.xlu0 %v3917
  %v3919 = vpop.xlane.xlu0 %3918
  %v3920 = vcvt.f32.s32 %v3919
  %v3921 = vcvt.f32.s32 %v3915
  %v3922 = vshll.u32 %v3921, 16
  %v3923 = vadd.s32 %v3922, %v3920
  %v3924 = vand.u32 %v2102, 65535
  %v3925 = vshra.s32 %v2102, 16
  %v3926 = vcvt.s32.f32 %v3924
  %v3927 = vcvt.s32.f32 %v3925
  %3928 = vmin.xlane.f32.xlu0 %v3927
  %v3929 = vpop.xlane.xlu0 %3928
  %vm3930 = vcmp.eq.f32.partialorder %v3927, %v3929
  %v3931 = vsel %vm3930, %v3926, inf
  %3932 = vmin.xlane.f32.xlu0 %v3931
  %v3933 = vpop.xlane.xlu0 %3932
  %v3934 = vcvt.f32.s32 %v3933
  %v3935 = vcvt.f32.s32 %v3929
  %v3936 = vshll.u32 %v3935, 16
  %v3937 = vadd.s32 %v3936, %v3934
  %v3938 = vand.u32 %v2103, 65535
  %v3939 = vshra.s32 %v2103, 16
  %v3940 = vcvt.s32.f32 %v3938
  %v3941 = vcvt.s32.f32 %v3939
  %3942 = vmin.xlane.f32.xlu0 %v3941
  %v3943 = vpop.xlane.xlu0 %3942
  %vm3944 = vcmp.eq.f32.partialorder %v3941, %v3943
  %v3945 = vsel %vm3944, %v3940, inf
  %3946 = vmin.xlane.f32.xlu0 %v3945
  %v3947 = vpop.xlane.xlu0 %3946
  %v3948 = vcvt.f32.s32 %v3947
  %v3949 = vcvt.f32.s32 %v3943
  %v3950 = vshll.u32 %v3949, 16
  %v3951 = vadd.s32 %v3950, %v3948
  %v3952 = vand.u32 %v2104, 65535
  %v3953 = vshra.s32 %v2104, 16
  %v3954 = vcvt.s32.f32 %v3952
  %v3955 = vcvt.s32.f32 %v3953
  %3956 = vmin.xlane.f32.xlu0 %v3955
  %v3957 = vpop.xlane.xlu0 %3956
  %vm3958 = vcmp.eq.f32.partialorder %v3955, %v3957
  %v3959 = vsel %vm3958, %v3954, inf
  %3960 = vmin.xlane.f32.xlu0 %v3959
  %v3961 = vpop.xlane.xlu0 %3960
  %v3962 = vcvt.f32.s32 %v3961
  %v3963 = vcvt.f32.s32 %v3957
  %v3964 = vshll.u32 %v3963, 16
  %v3965 = vadd.s32 %v3964, %v3962
  %v3966 = vand.u32 %v2105, 65535
  %v3967 = vshra.s32 %v2105, 16
  %v3968 = vcvt.s32.f32 %v3966
  %v3969 = vcvt.s32.f32 %v3967
  %3970 = vmin.xlane.f32.xlu0 %v3969
  %v3971 = vpop.xlane.xlu0 %3970
  %vm3972 = vcmp.eq.f32.partialorder %v3969, %v3971
  %v3973 = vsel %vm3972, %v3968, inf
  %3974 = vmin.xlane.f32.xlu0 %v3973
  %v3975 = vpop.xlane.xlu0 %3974
  %v3976 = vcvt.f32.s32 %v3975
  %v3977 = vcvt.f32.s32 %v3971
  %v3978 = vshll.u32 %v3977, 16
  %v3979 = vadd.s32 %v3978, %v3976
  %v3980 = vand.u32 %v2106, 65535
  %v3981 = vshra.s32 %v2106, 16
  %v3982 = vcvt.s32.f32 %v3980
  %v3983 = vcvt.s32.f32 %v3981
  %3984 = vmin.xlane.f32.xlu0 %v3983
  %v3985 = vpop.xlane.xlu0 %3984
  %vm3986 = vcmp.eq.f32.partialorder %v3983, %v3985
  %v3987 = vsel %vm3986, %v3982, inf
  %3988 = vmin.xlane.f32.xlu0 %v3987
  %v3989 = vpop.xlane.xlu0 %3988
  %v3990 = vcvt.f32.s32 %v3989
  %v3991 = vcvt.f32.s32 %v3985
  %v3992 = vshll.u32 %v3991, 16
  %v3993 = vadd.s32 %v3992, %v3990
  %v3994 = vand.u32 %v2107, 65535
  %v3995 = vshra.s32 %v2107, 16
  %v3996 = vcvt.s32.f32 %v3994
  %v3997 = vcvt.s32.f32 %v3995
  %3998 = vmin.xlane.f32.xlu0 %v3997
  %v3999 = vpop.xlane.xlu0 %3998
  %vm4000 = vcmp.eq.f32.partialorder %v3997, %v3999
  %v4001 = vsel %vm4000, %v3996, inf
  %4002 = vmin.xlane.f32.xlu0 %v4001
  %v4003 = vpop.xlane.xlu0 %4002
  %v4004 = vcvt.f32.s32 %v4003
  %v4005 = vcvt.f32.s32 %v3999
  %v4006 = vshll.u32 %v4005, 16
  %v4007 = vadd.s32 %v4006, %v4004
  %v4008 = vand.u32 %v2108, 65535
  %v4009 = vshra.s32 %v2108, 16
  %v4010 = vcvt.s32.f32 %v4008
  %v4011 = vcvt.s32.f32 %v4009
  %4012 = vmin.xlane.f32.xlu0 %v4011
  %v4013 = vpop.xlane.xlu0 %4012
  %vm4014 = vcmp.eq.f32.partialorder %v4011, %v4013
  %v4015 = vsel %vm4014, %v4010, inf
  %4016 = vmin.xlane.f32.xlu0 %v4015
  %v4017 = vpop.xlane.xlu0 %4016
  %v4018 = vcvt.f32.s32 %v4017
  %v4019 = vcvt.f32.s32 %v4013
  %v4020 = vshll.u32 %v4019, 16
  %v4021 = vadd.s32 %v4020, %v4018
  %v4022 = vand.u32 %v2109, 65535
  %v4023 = vshra.s32 %v2109, 16
  %v4024 = vcvt.s32.f32 %v4022
  %v4025 = vcvt.s32.f32 %v4023
  %4026 = vmin.xlane.f32.xlu0 %v4025
  %v4027 = vpop.xlane.xlu0 %4026
  %vm4028 = vcmp.eq.f32.partialorder %v4025, %v4027
  %v4029 = vsel %vm4028, %v4024, inf
  %4030 = vmin.xlane.f32.xlu0 %v4029
  %v4031 = vpop.xlane.xlu0 %4030
  %v4032 = vcvt.f32.s32 %v4031
  %v4033 = vcvt.f32.s32 %v4027
  %v4034 = vshll.u32 %v4033, 16
  %v4035 = vadd.s32 %v4034, %v4032
  %v4036 = vand.u32 %v2110, 65535
  %v4037 = vshra.s32 %v2110, 16
  %v4038 = vcvt.s32.f32 %v4036
  %v4039 = vcvt.s32.f32 %v4037
  %4040 = vmin.xlane.f32.xlu0 %v4039
  %v4041 = vpop.xlane.xlu0 %4040
  %vm4042 = vcmp.eq.f32.partialorder %v4039, %v4041
  %v4043 = vsel %vm4042, %v4038, inf
  %4044 = vmin.xlane.f32.xlu0 %v4043
  %v4045 = vpop.xlane.xlu0 %4044
  %v4046 = vcvt.f32.s32 %v4045
  %v4047 = vcvt.f32.s32 %v4041
  %v4048 = vshll.u32 %v4047, 16
  %v4049 = vadd.s32 %v4048, %v4046
  %v4050 = vand.u32 %v2111, 65535
  %v4051 = vshra.s32 %v2111, 16
  %v4052 = vcvt.s32.f32 %v4050
  %v4053 = vcvt.s32.f32 %v4051
  %4054 = vmin.xlane.f32.xlu0 %v4053
  %v4055 = vpop.xlane.xlu0 %4054
  %vm4056 = vcmp.eq.f32.partialorder %v4053, %v4055
  %v4057 = vsel %vm4056, %v4052, inf
  %4058 = vmin.xlane.f32.xlu0 %v4057
  %v4059 = vpop.xlane.xlu0 %4058
  %v4060 = vcvt.f32.s32 %v4059
  %v4061 = vcvt.f32.s32 %v4055
  %v4062 = vshll.u32 %v4061, 16
  %v4063 = vadd.s32 %v4062, %v4060
  %v4064 = vand.u32 %v2112, 65535
  %v4065 = vshra.s32 %v2112, 16
  %v4066 = vcvt.s32.f32 %v4064
  %v4067 = vcvt.s32.f32 %v4065
  %4068 = vmin.xlane.f32.xlu0 %v4067
  %v4069 = vpop.xlane.xlu0 %4068
  %vm4070 = vcmp.eq.f32.partialorder %v4067, %v4069
  %v4071 = vsel %vm4070, %v4066, inf
  %4072 = vmin.xlane.f32.xlu0 %v4071
  %v4073 = vpop.xlane.xlu0 %4072
  %v4074 = vcvt.f32.s32 %v4073
  %v4075 = vcvt.f32.s32 %v4069
  %v4076 = vshll.u32 %v4075, 16
  %v4077 = vadd.s32 %v4076, %v4074
  %v4078 = vand.u32 %v2113, 65535
  %v4079 = vshra.s32 %v2113, 16
  %v4080 = vcvt.s32.f32 %v4078
  %v4081 = vcvt.s32.f32 %v4079
  %4082 = vmin.xlane.f32.xlu0 %v4081
  %v4083 = vpop.xlane.xlu0 %4082
  %vm4084 = vcmp.eq.f32.partialorder %v4081, %v4083
  %v4085 = vsel %vm4084, %v4080, inf
  %4086 = vmin.xlane.f32.xlu0 %v4085
  %v4087 = vpop.xlane.xlu0 %4086
  %v4088 = vcvt.f32.s32 %v4087
  %v4089 = vcvt.f32.s32 %v4083
  %v4090 = vshll.u32 %v4089, 16
  %v4091 = vadd.s32 %v4090, %v4088
  %v4092 = vand.u32 %v2114, 65535
  %v4093 = vshra.s32 %v2114, 16
  %v4094 = vcvt.s32.f32 %v4092
  %v4095 = vcvt.s32.f32 %v4093
  %4096 = vmin.xlane.f32.xlu0 %v4095
  %v4097 = vpop.xlane.xlu0 %4096
  %vm4098 = vcmp.eq.f32.partialorder %v4095, %v4097
  %v4099 = vsel %vm4098, %v4094, inf
  %4100 = vmin.xlane.f32.xlu0 %v4099
  %v4101 = vpop.xlane.xlu0 %4100
  %v4102 = vcvt.f32.s32 %v4101
  %v4103 = vcvt.f32.s32 %v4097
  %v4104 = vshll.u32 %v4103, 16
  %v4105 = vadd.s32 %v4104, %v4102
  %v4106 = vand.u32 %v2115, 65535
  %v4107 = vshra.s32 %v2115, 16
  %v4108 = vcvt.s32.f32 %v4106
  %v4109 = vcvt.s32.f32 %v4107
  %4110 = vmin.xlane.f32.xlu0 %v4109
  %v4111 = vpop.xlane.xlu0 %4110
  %vm4112 = vcmp.eq.f32.partialorder %v4109, %v4111
  %v4113 = vsel %vm4112, %v4108, inf
  %4114 = vmin.xlane.f32.xlu0 %v4113
  %v4115 = vpop.xlane.xlu0 %4114
  %v4116 = vcvt.f32.s32 %v4115
  %v4117 = vcvt.f32.s32 %v4111
  %v4118 = vshll.u32 %v4117, 16
  %v4119 = vadd.s32 %v4118, %v4116
  %v4120 = vand.u32 %v2116, 65535
  %v4121 = vshra.s32 %v2116, 16
  %v4122 = vcvt.s32.f32 %v4120
  %v4123 = vcvt.s32.f32 %v4121
  %4124 = vmin.xlane.f32.xlu0 %v4123
  %v4125 = vpop.xlane.xlu0 %4124
  %vm4126 = vcmp.eq.f32.partialorder %v4123, %v4125
  %v4127 = vsel %vm4126, %v4122, inf
  %4128 = vmin.xlane.f32.xlu0 %v4127
  %v4129 = vpop.xlane.xlu0 %4128
  %v4130 = vcvt.f32.s32 %v4129
  %v4131 = vcvt.f32.s32 %v4125
  %v4132 = vshll.u32 %v4131, 16
  %v4133 = vadd.s32 %v4132, %v4130
  %v4134 = vand.u32 %v2117, 65535
  %v4135 = vshra.s32 %v2117, 16
  %v4136 = vcvt.s32.f32 %v4134
  %v4137 = vcvt.s32.f32 %v4135
  %4138 = vmin.xlane.f32.xlu0 %v4137
  %v4139 = vpop.xlane.xlu0 %4138
  %vm4140 = vcmp.eq.f32.partialorder %v4137, %v4139
  %v4141 = vsel %vm4140, %v4136, inf
  %4142 = vmin.xlane.f32.xlu0 %v4141
  %v4143 = vpop.xlane.xlu0 %4142
  %v4144 = vcvt.f32.s32 %v4143
  %v4145 = vcvt.f32.s32 %v4139
  %v4146 = vshll.u32 %v4145, 16
  %v4147 = vadd.s32 %v4146, %v4144
  %vm4148 = vcmp.eq.s32.totalorder %v1537, %v2131
  %vm4149 = vcmp.eq.s32.totalorder %v1537, %v2145
  %vm4150 = vcmp.eq.s32.totalorder %v1537, %v2159
  %vm4151 = vcmp.eq.s32.totalorder %v1537, %v2173
  %vm4152 = vcmp.eq.s32.totalorder %v1537, %v2187
  %vm4153 = vcmp.eq.s32.totalorder %v1537, %v2201
  %vm4154 = vcmp.eq.s32.totalorder %v1537, %v2215
  %vm4155 = vcmp.eq.s32.totalorder %v1537, %v2229
  %vm4156 = vcmp.eq.s32.totalorder %v1537, %v2243
  %vm4157 = vcmp.eq.s32.totalorder %v1537, %v2257
  %vm4158 = vcmp.eq.s32.totalorder %v1537, %v2271
  %vm4159 = vcmp.eq.s32.totalorder %v1537, %v2285
  %vm4160 = vcmp.eq.s32.totalorder %v1537, %v2299
  %vm4161 = vcmp.eq.s32.totalorder %v1537, %v2313
  %vm4162 = vcmp.eq.s32.totalorder %v1537, %v2327
  %vm4163 = vcmp.eq.s32.totalorder %v1537, %v2341
  %vm4164 = vcmp.eq.s32.totalorder %v1537, %v2355
  %vm4165 = vcmp.eq.s32.totalorder %v1537, %v2369
  %vm4166 = vcmp.eq.s32.totalorder %v1537, %v2383
  %vm4167 = vcmp.eq.s32.totalorder %v1537, %v2397
  %vm4168 = vcmp.eq.s32.totalorder %v1537, %v2411
  %vm4169 = vcmp.eq.s32.totalorder %v1537, %v2425
  %vm4170 = vcmp.eq.s32.totalorder %v1537, %v2439
  %vm4171 = vcmp.eq.s32.totalorder %v1537, %v2453
  %vm4172 = vcmp.eq.s32.totalorder %v1537, %v2467
  %vm4173 = vcmp.eq.s32.totalorder %v1537, %v2481
  %vm4174 = vcmp.eq.s32.totalorder %v1537, %v2495
  %vm4175 = vcmp.eq.s32.totalorder %v1537, %v2509
  %vm4176 = vcmp.eq.s32.totalorder %v1537, %v2523
  %vm4177 = vcmp.eq.s32.totalorder %v1537, %v2537
  %vm4178 = vcmp.eq.s32.totalorder %v1537, %v2551
  %vm4179 = vcmp.eq.s32.totalorder %v1537, %v2565
  %vm4180 = vcmp.eq.s32.totalorder %v1537, %v2579
  %vm4181 = vcmp.eq.s32.totalorder %v1537, %v2593
  %vm4182 = vcmp.eq.s32.totalorder %v1537, %v2607
  %vm4183 = vcmp.eq.s32.totalorder %v1537, %v2621
  %vm4184 = vcmp.eq.s32.totalorder %v1537, %v2635
  %vm4185 = vcmp.eq.s32.totalorder %v1537, %v2649
  %vm4186 = vcmp.eq.s32.totalorder %v1537, %v2663
  %vm4187 = vcmp.eq.s32.totalorder %v1537, %v2677
  %vm4188 = vcmp.eq.s32.totalorder %v1537, %v2691
  %vm4189 = vcmp.eq.s32.totalorder %v1537, %v2705
  %vm4190 = vcmp.eq.s32.totalorder %v1537, %v2719
  %vm4191 = vcmp.eq.s32.totalorder %v1537, %v2733
  %vm4192 = vcmp.eq.s32.totalorder %v1537, %v2747
  %vm4193 = vcmp.eq.s32.totalorder %v1537, %v2761
  %vm4194 = vcmp.eq.s32.totalorder %v1537, %v2775
  %vm4195 = vcmp.eq.s32.totalorder %v1537, %v2789
  %vm4196 = vcmp.eq.s32.totalorder %v1537, %v2803
  %vm4197 = vcmp.eq.s32.totalorder %v1537, %v2817
  %vm4198 = vcmp.eq.s32.totalorder %v1537, %v2831
  %vm4199 = vcmp.eq.s32.totalorder %v1537, %v2845
  %vm4200 = vcmp.eq.s32.totalorder %v1537, %v2859
  %vm4201 = vcmp.eq.s32.totalorder %v1537, %v2873
  %vm4202 = vcmp.eq.s32.totalorder %v1537, %v2887
  %vm4203 = vcmp.eq.s32.totalorder %v1537, %v2901
  %vm4204 = vcmp.eq.s32.totalorder %v1537, %v2915
  %vm4205 = vcmp.eq.s32.totalorder %v1537, %v2929
  %vm4206 = vcmp.eq.s32.totalorder %v1537, %v2943
  %vm4207 = vcmp.eq.s32.totalorder %v1537, %v2957
  %vm4208 = vcmp.eq.s32.totalorder %v1537, %v2971
  %vm4209 = vcmp.eq.s32.totalorder %v1537, %v2985
  %vm4210 = vcmp.eq.s32.totalorder %v1537, %v2999
  %vm4211 = vcmp.eq.s32.totalorder %v1537, %v3013
  %vm4212 = vcmp.eq.s32.totalorder %v1537, %v3027
  %vm4213 = vcmp.eq.s32.totalorder %v1537, %v3041
  %vm4214 = vcmp.eq.s32.totalorder %v1537, %v3055
  %vm4215 = vcmp.eq.s32.totalorder %v1537, %v3069
  %vm4216 = vcmp.eq.s32.totalorder %v1537, %v3083
  %vm4217 = vcmp.eq.s32.totalorder %v1537, %v3097
  %vm4218 = vcmp.eq.s32.totalorder %v1537, %v3111
  %vm4219 = vcmp.eq.s32.totalorder %v1537, %v3125
  %vm4220 = vcmp.eq.s32.totalorder %v1537, %v3139
  %vm4221 = vcmp.eq.s32.totalorder %v1537, %v3153
  %vm4222 = vcmp.eq.s32.totalorder %v1537, %v3167
  %vm4223 = vcmp.eq.s32.totalorder %v1537, %v3181
  %vm4224 = vcmp.eq.s32.totalorder %v1537, %v3195
  %vm4225 = vcmp.eq.s32.totalorder %v1537, %v3209
  %vm4226 = vcmp.eq.s32.totalorder %v1537, %v3223
  %vm4227 = vcmp.eq.s32.totalorder %v1537, %v3237
  %vm4228 = vcmp.eq.s32.totalorder %v1537, %v3251
  %vm4229 = vcmp.eq.s32.totalorder %v1537, %v3265
  %vm4230 = vcmp.eq.s32.totalorder %v1537, %v3279
  %vm4231 = vcmp.eq.s32.totalorder %v1537, %v3293
  %vm4232 = vcmp.eq.s32.totalorder %v1537, %v3307
  %vm4233 = vcmp.eq.s32.totalorder %v1537, %v3321
  %vm4234 = vcmp.eq.s32.totalorder %v1537, %v3335
  %vm4235 = vcmp.eq.s32.totalorder %v1537, %v3349
  %vm4236 = vcmp.eq.s32.totalorder %v1537, %v3363
  %vm4237 = vcmp.eq.s32.totalorder %v1537, %v3377
  %vm4238 = vcmp.eq.s32.totalorder %v1537, %v3391
  %vm4239 = vcmp.eq.s32.totalorder %v1537, %v3405
  %vm4240 = vcmp.eq.s32.totalorder %v1537, %v3419
  %vm4241 = vcmp.eq.s32.totalorder %v1537, %v3433
  %vm4242 = vcmp.eq.s32.totalorder %v1537, %v3447
  %vm4243 = vcmp.eq.s32.totalorder %v1537, %v3461
  %vm4244 = vcmp.eq.s32.totalorder %v1537, %v3475
  %vm4245 = vcmp.eq.s32.totalorder %v1537, %v3489
  %vm4246 = vcmp.eq.s32.totalorder %v1537, %v3503
  %vm4247 = vcmp.eq.s32.totalorder %v1537, %v3517
  %vm4248 = vcmp.eq.s32.totalorder %v1537, %v3531
  %vm4249 = vcmp.eq.s32.totalorder %v1537, %v3545
  %vm4250 = vcmp.eq.s32.totalorder %v1537, %v3559
  %vm4251 = vcmp.eq.s32.totalorder %v1537, %v3573
  %vm4252 = vcmp.eq.s32.totalorder %v1537, %v3587
  %vm4253 = vcmp.eq.s32.totalorder %v1537, %v3601
  %vm4254 = vcmp.eq.s32.totalorder %v1537, %v3615
  %vm4255 = vcmp.eq.s32.totalorder %v1537, %v3629
  %vm4256 = vcmp.eq.s32.totalorder %v1537, %v3643
  %vm4257 = vcmp.eq.s32.totalorder %v1537, %v3657
  %vm4258 = vcmp.eq.s32.totalorder %v1537, %v3671
  %vm4259 = vcmp.eq.s32.totalorder %v1537, %v3685
  %vm4260 = vcmp.eq.s32.totalorder %v1537, %v3699
  %vm4261 = vcmp.eq.s32.totalorder %v1537, %v3713
  %vm4262 = vcmp.eq.s32.totalorder %v1537, %v3727
  %vm4263 = vcmp.eq.s32.totalorder %v1537, %v3741
  %vm4264 = vcmp.eq.s32.totalorder %v1537, %v3755
  %vm4265 = vcmp.eq.s32.totalorder %v1537, %v3769
  %vm4266 = vcmp.eq.s32.totalorder %v1537, %v3783
  %vm4267 = vcmp.eq.s32.totalorder %v1537, %v3797
  %vm4268 = vcmp.eq.s32.totalorder %v1537, %v3811
  %vm4269 = vcmp.eq.s32.totalorder %v1537, %v3825
  %vm4270 = vcmp.eq.s32.totalorder %v1537, %v3839
  %vm4271 = vcmp.eq.s32.totalorder %v1537, %v3853
  %vm4272 = vcmp.eq.s32.totalorder %v1537, %v3867
  %vm4273 = vcmp.eq.s32.totalorder %v1537, %v3881
  %vm4274 = vcmp.eq.s32.totalorder %v1537, %v3895
  %vm4275 = vcmp.eq.s32.totalorder %v1537, %v3909
  %vm4276 = vcmp.eq.s32.totalorder %v1537, %v3923
  %vm4277 = vcmp.eq.s32.totalorder %v1537, %v3937
  %vm4278 = vcmp.eq.s32.totalorder %v1537, %v3951
  %vm4279 = vcmp.eq.s32.totalorder %v1537, %v3965
  %vm4280 = vcmp.eq.s32.totalorder %v1537, %v3979
  %vm4281 = vcmp.eq.s32.totalorder %v1537, %v3993
  %vm4282 = vcmp.eq.s32.totalorder %v1537, %v4007
  %vm4283 = vcmp.eq.s32.totalorder %v1537, %v4021
  %vm4284 = vcmp.eq.s32.totalorder %v1537, %v4035
  %vm4285 = vcmp.eq.s32.totalorder %v1537, %v4049
  %vm4286 = vcmp.eq.s32.totalorder %v1537, %v4063
  %vm4287 = vcmp.eq.s32.totalorder %v1537, %v4077
  %vm4288 = vcmp.eq.s32.totalorder %v1537, %v4091
  %vm4289 = vcmp.eq.s32.totalorder %v1537, %v4105
  %vm4290 = vcmp.eq.s32.totalorder %v1537, %v4119
  %vm4291 = vcmp.eq.s32.totalorder %v1537, %v4133
  %vm4292 = vcmp.eq.s32.totalorder %v1537, %v4147
  %v4293 = vsel %vm4148, 1, 0
  %v4294 = vsel %vm4149, 1, 0
  %v4295 = vsel %vm4150, 1, 0
  %v4296 = vsel %vm4151, 1, 0
  %v4297 = vsel %vm4152, 1, 0
  %v4298 = vsel %vm4153, 1, 0
  %v4299 = vsel %vm4154, 1, 0
  %v4300 = vsel %vm4155, 1, 0
  %v4301 = vsel %vm4156, 1, 0
  %v4302 = vsel %vm4157, 1, 0
  %v4303 = vsel %vm4158, 1, 0
  %v4304 = vsel %vm4159, 1, 0
  %v4305 = vsel %vm4160, 1, 0
  %v4306 = vsel %vm4161, 1, 0
  %v4307 = vsel %vm4162, 1, 0
  %v4308 = vsel %vm4163, 1, 0
  %v4309 = vsel %vm4164, 1, 0
  %v4310 = vsel %vm4165, 1, 0
  %v4311 = vsel %vm4166, 1, 0
  %v4312 = vsel %vm4167, 1, 0
  %v4313 = vsel %vm4168, 1, 0
  %v4314 = vsel %vm4169, 1, 0
  %v4315 = vsel %vm4170, 1, 0
  %v4316 = vsel %vm4171, 1, 0
  %v4317 = vsel %vm4172, 1, 0
  %v4318 = vsel %vm4173, 1, 0
  %v4319 = vsel %vm4174, 1, 0
  %v4320 = vsel %vm4175, 1, 0
  %v4321 = vsel %vm4176, 1, 0
  %v4322 = vsel %vm4177, 1, 0
  %v4323 = vsel %vm4178, 1, 0
  %v4324 = vsel %vm4179, 1, 0
  %v4325 = vsel %vm4180, 1, 0
  %v4326 = vsel %vm4181, 1, 0
  %v4327 = vsel %vm4182, 1, 0
  %v4328 = vsel %vm4183, 1, 0
  %v4329 = vsel %vm4184, 1, 0
  %v4330 = vsel %vm4185, 1, 0
  %v4331 = vsel %vm4186, 1, 0
  %v4332 = vsel %vm4187, 1, 0
  %v4333 = vsel %vm4188, 1, 0
  %v4334 = vsel %vm4189, 1, 0
  %v4335 = vsel %vm4190, 1, 0
  %v4336 = vsel %vm4191, 1, 0
  %v4337 = vsel %vm4192, 1, 0
  %v4338 = vsel %vm4193, 1, 0
  %v4339 = vsel %vm4194, 1, 0
  %v4340 = vsel %vm4195, 1, 0
  %v4341 = vsel %vm4196, 1, 0
  %v4342 = vsel %vm4197, 1, 0
  %v4343 = vsel %vm4198, 1, 0
  %v4344 = vsel %vm4199, 1, 0
  %v4345 = vsel %vm4200, 1, 0
  %v4346 = vsel %vm4201, 1, 0
  %v4347 = vsel %vm4202, 1, 0
  %v4348 = vsel %vm4203, 1, 0
  %v4349 = vsel %vm4204, 1, 0
  %v4350 = vsel %vm4205, 1, 0
  %v4351 = vsel %vm4206, 1, 0
  %v4352 = vsel %vm4207, 1, 0
  %v4353 = vsel %vm4208, 1, 0
  %v4354 = vsel %vm4209, 1, 0
  %v4355 = vsel %vm4210, 1, 0
  %v4356 = vsel %vm4211, 1, 0
  %v4357 = vsel %vm4212, 1, 0
  %v4358 = vsel %vm4213, 1, 0
  %v4359 = vsel %vm4214, 1, 0
  %v4360 = vsel %vm4215, 1, 0
  %v4361 = vsel %vm4216, 1, 0
  %v4362 = vsel %vm4217, 1, 0
  %v4363 = vsel %vm4218, 1, 0
  %v4364 = vsel %vm4219, 1, 0
  %v4365 = vsel %vm4220, 1, 0
  %v4366 = vsel %vm4221, 1, 0
  %v4367 = vsel %vm4222, 1, 0
  %v4368 = vsel %vm4223, 1, 0
  %v4369 = vsel %vm4224, 1, 0
  %v4370 = vsel %vm4225, 1, 0
  %v4371 = vsel %vm4226, 1, 0
  %v4372 = vsel %vm4227, 1, 0
  %v4373 = vsel %vm4228, 1, 0
  %v4374 = vsel %vm4229, 1, 0
  %v4375 = vsel %vm4230, 1, 0
  %v4376 = vsel %vm4231, 1, 0
  %v4377 = vsel %vm4232, 1, 0
  %v4378 = vsel %vm4233, 1, 0
  %v4379 = vsel %vm4234, 1, 0
  %v4380 = vsel %vm4235, 1, 0
  %v4381 = vsel %vm4236, 1, 0
  %v4382 = vsel %vm4237, 1, 0
  %v4383 = vsel %vm4238, 1, 0
  %v4384 = vsel %vm4239, 1, 0
  %v4385 = vsel %vm4240, 1, 0
  %v4386 = vsel %vm4241, 1, 0
  %v4387 = vsel %vm4242, 1, 0
  %v4388 = vsel %vm4243, 1, 0
  %v4389 = vsel %vm4244, 1, 0
  %v4390 = vsel %vm4245, 1, 0
  %v4391 = vsel %vm4246, 1, 0
  %v4392 = vsel %vm4247, 1, 0
  %v4393 = vsel %vm4248, 1, 0
  %v4394 = vsel %vm4249, 1, 0
  %v4395 = vsel %vm4250, 1, 0
  %v4396 = vsel %vm4251, 1, 0
  %v4397 = vsel %vm4252, 1, 0
  %v4398 = vsel %vm4253, 1, 0
  %v4399 = vsel %vm4254, 1, 0
  %v4400 = vsel %vm4255, 1, 0
  %v4401 = vsel %vm4256, 1, 0
  %v4402 = vsel %vm4257, 1, 0
  %v4403 = vsel %vm4258, 1, 0
  %v4404 = vsel %vm4259, 1, 0
  %v4405 = vsel %vm4260, 1, 0
  %v4406 = vsel %vm4261, 1, 0
  %v4407 = vsel %vm4262, 1, 0
  %v4408 = vsel %vm4263, 1, 0
  %v4409 = vsel %vm4264, 1, 0
  %v4410 = vsel %vm4265, 1, 0
  %v4411 = vsel %vm4266, 1, 0
  %v4412 = vsel %vm4267, 1, 0
  %v4413 = vsel %vm4268, 1, 0
  %v4414 = vsel %vm4269, 1, 0
  %v4415 = vsel %vm4270, 1, 0
  %v4416 = vsel %vm4271, 1, 0
  %v4417 = vsel %vm4272, 1, 0
  %v4418 = vsel %vm4273, 1, 0
  %v4419 = vsel %vm4274, 1, 0
  %v4420 = vsel %vm4275, 1, 0
  %v4421 = vsel %vm4276, 1, 0
  %v4422 = vsel %vm4277, 1, 0
  %v4423 = vsel %vm4278, 1, 0
  %v4424 = vsel %vm4279, 1, 0
  %v4425 = vsel %vm4280, 1, 0
  %v4426 = vsel %vm4281, 1, 0
  %v4427 = vsel %vm4282, 1, 0
  %v4428 = vsel %vm4283, 1, 0
  %v4429 = vsel %vm4284, 1, 0
  %v4430 = vsel %vm4285, 1, 0
  %v4431 = vsel %vm4286, 1, 0
  %v4432 = vsel %vm4287, 1, 0
  %v4433 = vsel %vm4288, 1, 0
  %v4434 = vsel %vm4289, 1, 0
  %v4435 = vsel %vm4290, 1, 0
  %v4436 = vsel %vm4291, 1, 0
  %v4437 = vsel %vm4292, 1, 0
  %v4438 = vcvt.s32.f32 %v4293
  %v4439 = vcvt.s32.f32 %v4294
  %v4440 = vcvt.s32.f32 %v4295
  %v4441 = vcvt.s32.f32 %v4296
  %v4442 = vcvt.s32.f32 %v4297
  %v4443 = vcvt.s32.f32 %v4298
  %v4444 = vcvt.s32.f32 %v4299
  %v4445 = vcvt.s32.f32 %v4300
  %v4446 = vcvt.s32.f32 %v4301
  %v4447 = vcvt.s32.f32 %v4302
  %v4448 = vcvt.s32.f32 %v4303
  %v4449 = vcvt.s32.f32 %v4304
  %v4450 = vcvt.s32.f32 %v4305
  %v4451 = vcvt.s32.f32 %v4306
  %v4452 = vcvt.s32.f32 %v4307
  %v4453 = vcvt.s32.f32 %v4308
  %v4454 = vcvt.s32.f32 %v4309
  %v4455 = vcvt.s32.f32 %v4310
  %v4456 = vcvt.s32.f32 %v4311
  %v4457 = vcvt.s32.f32 %v4312
  %v4458 = vcvt.s32.f32 %v4313
  %v4459 = vcvt.s32.f32 %v4314
  %v4460 = vcvt.s32.f32 %v4315
  %v4461 = vcvt.s32.f32 %v4316
  %v4462 = vcvt.s32.f32 %v4317
  %v4463 = vcvt.s32.f32 %v4318
  %v4464 = vcvt.s32.f32 %v4319
  %v4465 = vcvt.s32.f32 %v4320
  %v4466 = vcvt.s32.f32 %v4321
  %v4467 = vcvt.s32.f32 %v4322
  %v4468 = vcvt.s32.f32 %v4323
  %v4469 = vcvt.s32.f32 %v4324
  %v4470 = vcvt.s32.f32 %v4325
  %v4471 = vcvt.s32.f32 %v4326
  %v4472 = vcvt.s32.f32 %v4327
  %v4473 = vcvt.s32.f32 %v4328
  %v4474 = vcvt.s32.f32 %v4329
  %v4475 = vcvt.s32.f32 %v4330
  %v4476 = vcvt.s32.f32 %v4331
  %v4477 = vcvt.s32.f32 %v4332
  %v4478 = vcvt.s32.f32 %v4333
  %v4479 = vcvt.s32.f32 %v4334
  %v4480 = vcvt.s32.f32 %v4335
  %v4481 = vcvt.s32.f32 %v4336
  %v4482 = vcvt.s32.f32 %v4337
  %v4483 = vcvt.s32.f32 %v4338
  %v4484 = vcvt.s32.f32 %v4339
  %v4485 = vcvt.s32.f32 %v4340
  %v4486 = vcvt.s32.f32 %v4341
  %v4487 = vcvt.s32.f32 %v4342
  %v4488 = vcvt.s32.f32 %v4343
  %v4489 = vcvt.s32.f32 %v4344
  %v4490 = vcvt.s32.f32 %v4345
  %v4491 = vcvt.s32.f32 %v4346
  %v4492 = vcvt.s32.f32 %v4347
  %v4493 = vcvt.s32.f32 %v4348
  %v4494 = vcvt.s32.f32 %v4349
  %v4495 = vcvt.s32.f32 %v4350
  %v4496 = vcvt.s32.f32 %v4351
  %v4497 = vcvt.s32.f32 %v4352
  %v4498 = vcvt.s32.f32 %v4353
  %v4499 = vcvt.s32.f32 %v4354
  %v4500 = vcvt.s32.f32 %v4355
  %v4501 = vcvt.s32.f32 %v4356
  %v4502 = vcvt.s32.f32 %v4357
  %v4503 = vcvt.s32.f32 %v4358
  %v4504 = vcvt.s32.f32 %v4359
  %v4505 = vcvt.s32.f32 %v4360
  %v4506 = vcvt.s32.f32 %v4361
  %v4507 = vcvt.s32.f32 %v4362
  %v4508 = vcvt.s32.f32 %v4363
  %v4509 = vcvt.s32.f32 %v4364
  %v4510 = vcvt.s32.f32 %v4365
  %v4511 = vcvt.s32.f32 %v4366
  %v4512 = vcvt.s32.f32 %v4367
  %v4513 = vcvt.s32.f32 %v4368
  %v4514 = vcvt.s32.f32 %v4369
  %v4515 = vcvt.s32.f32 %v4370
  %v4516 = vcvt.s32.f32 %v4371
  %v4517 = vcvt.s32.f32 %v4372
  %v4518 = vcvt.s32.f32 %v4373
  %v4519 = vcvt.s32.f32 %v4374
  %v4520 = vcvt.s32.f32 %v4375
  %v4521 = vcvt.s32.f32 %v4376
  %v4522 = vcvt.s32.f32 %v4377
  %v4523 = vcvt.s32.f32 %v4378
  %v4524 = vcvt.s32.f32 %v4379
  %v4525 = vcvt.s32.f32 %v4380
  %v4526 = vcvt.s32.f32 %v4381
  %v4527 = vcvt.s32.f32 %v4382
  %v4528 = vcvt.s32.f32 %v4383
  %v4529 = vcvt.s32.f32 %v4384
  %v4530 = vcvt.s32.f32 %v4385
  %v4531 = vcvt.s32.f32 %v4386
  %v4532 = vcvt.s32.f32 %v4387
  %v4533 = vcvt.s32.f32 %v4388
  %v4534 = vcvt.s32.f32 %v4389
  %v4535 = vcvt.s32.f32 %v4390
  %v4536 = vcvt.s32.f32 %v4391
  %v4537 = vcvt.s32.f32 %v4392
  %v4538 = vcvt.s32.f32 %v4393
  %v4539 = vcvt.s32.f32 %v4394
  %v4540 = vcvt.s32.f32 %v4395
  %v4541 = vcvt.s32.f32 %v4396
  %v4542 = vcvt.s32.f32 %v4397
  %v4543 = vcvt.s32.f32 %v4398
  %v4544 = vcvt.s32.f32 %v4399
  %v4545 = vcvt.s32.f32 %v4400
  %v4546 = vcvt.s32.f32 %v4401
  %v4547 = vcvt.s32.f32 %v4402
  %v4548 = vcvt.s32.f32 %v4403
  %v4549 = vcvt.s32.f32 %v4404
  %v4550 = vcvt.s32.f32 %v4405
  %v4551 = vcvt.s32.f32 %v4406
  %v4552 = vcvt.s32.f32 %v4407
  %v4553 = vcvt.s32.f32 %v4408
  %v4554 = vcvt.s32.f32 %v4409
  %v4555 = vcvt.s32.f32 %v4410
  %v4556 = vcvt.s32.f32 %v4411
  %v4557 = vcvt.s32.f32 %v4412
  %v4558 = vcvt.s32.f32 %v4413
  %v4559 = vcvt.s32.f32 %v4414
  %v4560 = vcvt.s32.f32 %v4415
  %v4561 = vcvt.s32.f32 %v4416
  %v4562 = vcvt.s32.f32 %v4417
  %v4563 = vcvt.s32.f32 %v4418
  %v4564 = vcvt.s32.f32 %v4419
  %v4565 = vcvt.s32.f32 %v4420
  %v4566 = vcvt.s32.f32 %v4421
  %v4567 = vcvt.s32.f32 %v4422
  %v4568 = vcvt.s32.f32 %v4423
  %v4569 = vcvt.s32.f32 %v4424
  %v4570 = vcvt.s32.f32 %v4425
  %v4571 = vcvt.s32.f32 %v4426
  %v4572 = vcvt.s32.f32 %v4427
  %v4573 = vcvt.s32.f32 %v4428
  %v4574 = vcvt.s32.f32 %v4429
  %v4575 = vcvt.s32.f32 %v4430
  %v4576 = vcvt.s32.f32 %v4431
  %v4577 = vcvt.s32.f32 %v4432
  %v4578 = vcvt.s32.f32 %v4433
  %v4579 = vcvt.s32.f32 %v4434
  %v4580 = vcvt.s32.f32 %v4435
  %v4581 = vcvt.s32.f32 %v4436
  %v4582 = vcvt.s32.f32 %v4437
  %v4583 = vld [vmem:[%s3] sm:$0xff]
  %v4584 = vld [vmem:[%s3 + $0x8] sm:$0xff]
  %v4585 = vld [vmem:[%s3 + $0x10] sm:$0xff]
  %v4586 = vld [vmem:[%s3 + $0x18] sm:$0xff]
  %v4587 = vld [vmem:[%s3 + $0x20] sm:$0xff]
  %v4588 = vld [vmem:[%s3 + $0x28] sm:$0xff]
  %v4589 = vld [vmem:[%s3 + $0x30] sm:$0xff]
  %v4590 = vld [vmem:[%s3 + $0x38] sm:$0xff]
  %v4591 = vld [vmem:[%s3 + $0x40] sm:$0xff]
  %v4592 = vld [vmem:[%s3 + $0x48] sm:$0xff]
  %v4593 = vld [vmem:[%s3 + $0x50] sm:$0xff]
  %v4594 = vld [vmem:[%s3 + $0x58] sm:$0xff]
  %v4595 = vld [vmem:[%s3 + $0x60] sm:$0xff]
  %v4596 = vld [vmem:[%s3 + $0x68] sm:$0xff]
  %v4597 = vld [vmem:[%s3 + $0x70] sm:$0xff]
  %v4598 = vld [vmem:[%s3 + $0x78] sm:$0xff]
  %4599 = vmatprep.subr.mxu0 0.0
  %v4600 = vand.u32 %v4583, 4294901760
  %4601 = vmatpush1.msra.mxu0 %v4600
  %4602 = vmatprep.subr.mxu0 0.0
  %v4603 = vand.u32 %v4584, 4294901760
  %4604 = vmatpush1.msra.mxu0 %v4603
  %4605 = vmatprep.subr.mxu0 0.0
  %v4606 = vand.u32 %v4585, 4294901760
  %4607 = vmatpush1.msra.mxu0 %v4606
  %4608 = vmatprep.subr.mxu0 0.0
  %v4609 = vand.u32 %v4586, 4294901760
  %4610 = vmatpush1.msra.mxu0 %v4609
  %4611 = vmatprep.subr.mxu0 0.0
  %v4612 = vand.u32 %v4587, 4294901760
  %4613 = vmatpush1.msra.mxu0 %v4612
  %4614 = vmatprep.subr.mxu0 0.0
  %v4615 = vand.u32 %v4588, 4294901760
  %4616 = vmatpush1.msra.mxu0 %v4615
  %4617 = vmatprep.subr.mxu0 0.0
  %v4618 = vand.u32 %v4589, 4294901760
  %4619 = vmatpush1.msra.mxu0 %v4618
  %4620 = vmatprep.subr.mxu0 0.0
  %v4621 = vand.u32 %v4590, 4294901760
  %4622 = vmatpush1.msra.mxu0 %v4621
  %4623 = vmatprep.subr.mxu0 0.0
  %v4624 = vand.u32 %v4591, 4294901760
  %4625 = vmatpush1.msra.mxu0 %v4624
  %4626 = vmatprep.subr.mxu0 0.0
  %v4627 = vand.u32 %v4592, 4294901760
  %4628 = vmatpush1.msra.mxu0 %v4627
  %4629 = vmatprep.subr.mxu0 0.0
  %v4630 = vand.u32 %v4593, 4294901760
  %4631 = vmatpush1.msra.mxu0 %v4630
  %4632 = vmatprep.subr.mxu0 0.0
  %v4633 = vand.u32 %v4594, 4294901760
  %4634 = vmatpush1.msra.mxu0 %v4633
  %4635 = vmatprep.subr.mxu0 0.0
  %v4636 = vand.u32 %v4595, 4294901760
  %4637 = vmatpush1.msra.mxu0 %v4636
  %4638 = vmatprep.subr.mxu0 0.0
  %v4639 = vand.u32 %v4596, 4294901760
  %4640 = vmatpush1.msra.mxu0 %v4639
  %4641 = vmatprep.subr.mxu0 0.0
  %v4642 = vand.u32 %v4597, 4294901760
  %4643 = vmatpush1.msra.mxu0 %v4642
  %4644 = vmatprep.subr.mxu0 0.0
  %v4645 = vand.u32 %v4598, 4294901760
  %4646 = vmatpush1.msra.mxu0 %v4645
  %4647 = vmatprep.subr.mxu0 0.0
  %4648 = vmatpush1.msra.mxu0 0.0
  %4649 = vmatprep.subr.mxu0 0.0
  %4650 = vmatpush1.msra.mxu0 0.0
  %4651 = vmatprep.subr.mxu0 0.0
  %4652 = vmatpush1.msra.mxu0 0.0
  %4653 = vmatprep.subr.mxu0 0.0
  %4654 = vmatpush1.msra.mxu0 0.0
  %4655 = vmatprep.subr.mxu0 0.0
  %4656 = vmatpush1.msra.mxu0 0.0
  %4657 = vmatprep.subr.mxu0 0.0
  %4658 = vmatpush1.msra.mxu0 0.0
  %4659 = vmatprep.subr.mxu0 0.0
  %4660 = vmatpush1.msra.mxu0 0.0
  %4661 = vmatprep.subr.mxu0 0.0
  %4662 = vmatpush1.msra.mxu0 0.0
  %4663 = vmatprep.subr.mxu0 0.0
  %4664 = vmatpush1.msra.mxu0 0.0
  %4665 = vmatprep.subr.mxu0 0.0
  %4666 = vmatpush1.msra.mxu0 0.0
  %4667 = vmatprep.subr.mxu0 0.0
  %4668 = vmatpush1.msra.mxu0 0.0
  %4669 = vmatprep.subr.mxu0 0.0
  %4670 = vmatpush1.msra.mxu0 0.0
  %4671 = vmatprep.subr.mxu0 0.0
  %4672 = vmatpush1.msra.mxu0 0.0
  %4673 = vmatprep.subr.mxu0 0.0
  %4674 = vmatpush1.msra.mxu0 0.0
  %4675 = vmatprep.subr.mxu0 0.0
  %4676 = vmatpush1.msra.mxu0 0.0
  %4677 = vmatprep.subr.mxu0 0.0
  %4678 = vmatpush1.msra.mxu0 0.0
  %4679 = vmatprep.mubr.f32.mxu0 0.0
  %v4680 = vand.u32 %v4438, 4294901760
  %v4681 = vsub.f32 %v4438, %v4680
  %v4682 = vand.u32 %v4681, 4294901760
  %v4683 = vsub.f32 %v4681, %v4682
  %v4684 = vand.u32 %v4683, 4294901760
  %4685 = vmatmul.mubr.f32.gmra.mrb[0].mxu0 %v4684
  %v4686 = vpop.f32.mrb[0].mxu0
  %v4687 = vadd.f32 0.0, %v4686
  %v4688 = vpop.f32.mrb[0].mxu0
  %4689 = vmatprep.mubr.f32.mxu0 0.0
  %v4690 = vand.u32 %v4439, 4294901760
  %v4691 = vsub.f32 %v4439, %v4690
  %v4692 = vand.u32 %v4691, 4294901760
  %v4693 = vsub.f32 %v4691, %v4692
  %v4694 = vand.u32 %v4693, 4294901760
  %4695 = vmatmul.mubr.f32.gmra.mrb[0].mxu0 %v4694
  %v4696 = vpop.f32.mrb[0].mxu0
  %v4697 = vadd.f32 0.0, %v4696
  %v4698 = vpop.f32.mrb[0].mxu0
  %4699 = vmatprep.mubr.f32.mxu0 0.0
  %v4700 = vand.u32 %v4440, 4294901760
  %v4701 = vsub.f32 %v4440, %v4700
  %v4702 = vand.u32 %v4701, 4294901760
  %v4703 = vsub.f32 %v4701, %v4702
  %v4704 = vand.u32 %v4703, 4294901760
  %4705 = vmatmul.mubr.f32.gmra.mrb[0].mxu0 %v4704
  %v4706 = vpop.f32.mrb[0].mxu0
  %v4707 = vadd.f32 0.0, %v4706
  %v4708 = vpop.f32.mrb[0].mxu0
  %4709 = vmatprep.mubr.f32.mxu0 0.0
  %v4710 = vand.u32 %v4441, 4294901760
  %v4711 = vsub.f32 %v4441, %v4710
  %v4712 = vand.u32 %v4711, 4294901760
  %v4713 = vsub.f32 %v4711, %v4712
  %v4714 = vand.u32 %v4713, 4294901760
  %4715 = vmatmul.mubr.f32.gmra.mrb[0].mxu0 %v4714
  %v4716 = vpop.f32.mrb[0].mxu0
  %v4717 = vadd.f32 0.0, %v4716
  %v4718 = vpop.f32.mrb[0].mxu0
  %4719 = vmatprep.mubr.f32.mxu0 0.0
  %v4720 = vand.u32 %v4442, 4294901760
  %v4721 = vsub.f32 %v4442, %v4720
  %v4722 = vand.u32 %v4721, 4294901760
  %v4723 = vsub.f32 %v4721, %v4722
  %v4724 = vand.u32 %v4723, 4294901760
  %4725 = vmatmul.mubr.f32.gmra.mrb[0].mxu0 %v4724
  %v4726 = vpop.f32.mrb[0].mxu0
  %v4727 = vadd.f32 0.0, %v4726
  %v4728 = vpop.f32.mrb[0].mxu0
  %4729 = vmatprep.mubr.f32.mxu0 0.0
  %v4730 = vand.u32 %v4443, 4294901760
  %v4731 = vsub.f32 %v4443, %v4730
  %v4732 = vand.u32 %v4731, 4294901760
  %v4733 = vsub.f32 %v4731, %v4732
  %v4734 = vand.u32 %v4733, 4294901760
  %4735 = vmatmul.mubr.f32.gmra.mrb[0].mxu0 %v4734
  %v4736 = vpop.f32.mrb[0].mxu0
  %v4737 = vadd.f32 0.0, %v4736
  %v4738 = vpop.f32.mrb[0].mxu0
  %4739 = vmatprep.mubr.f32.mxu0 0.0
  %v4740 = vand.u32 %v4444, 4294901760
  %v4741 = vsub.f32 %v4444, %v4740
  %v4742 = vand.u32 %v4741, 4294901760
  %v4743 = vsub.f32 %v4741, %v4742
  %v4744 = vand.u32 %v4743, 4294901760
  %4745 = vmatmul.mubr.f32.gmra.mrb[0].mxu0 %v4744
  %v4746 = vpop.f32.mrb[0].mxu0
  %v4747 = vadd.f32 0.0, %v4746
  %v4748 = vpop.f32.mrb[0].mxu0
  %4749 = vmatprep.mubr.f32.mxu0 0.0
  %v4750 = vand.u32 %v4445, 4294901760
  %v4751 = vsub.f32 %v4445, %v4750
  %v4752 = vand.u32 %v4751, 4294901760
  %v4753 = vsub.f32 %v4751, %v4752
  %v4754 = vand.u32 %v4753, 4294901760
  %4755 = vmatmul.mubr.f32.gmra.mrb[0].mxu0 %v4754
  %v4756 = vpop.f32.mrb[0].mxu0
  %v4757 = vadd.f32 0.0, %v4756
  %v4758 = vpop.f32.mrb[0].mxu0
  %4759 = vmatprep.mubr.f32.mxu0 0.0
  %v4760 = vand.u32 %v4446, 4294901760
  %v4761 = vsub.f32 %v4446, %v4760
  %v4762 = vand.u32 %v4761, 4294901760
  %v4763 = vsub.f32 %v4761, %v4762
  %v4764 = vand.u32 %v4763, 4294901760
  %4765 = vmatmul.mubr.f32.gmra.mrb[0].mxu0 %v4764
  %v4766 = vpop.f32.mrb[0].mxu0
  %v4767 = vadd.f32 0.0, %v4766
  %v4768 = vpop.f32.mrb[0].mxu0
  %4769 = vmatprep.mubr.f32.mxu0 0.0
  %v4770 = vand.u32 %v4447, 4294901760
  %v4771 = vsub.f32 %v4447, %v4770
  %v4772 = vand.u32 %v4771, 4294901760
  %v4773 = vsub.f32 %v4771, %v4772
  %v4774 = vand.u32 %v4773, 4294901760
  %4775 = vmatmul.mubr.f32.gmra.mrb[0].mxu0 %v4774
  %v4776 = vpop.f32.mrb[0].mxu0
  %v4777 = vadd.f32 0.0, %v4776
  %v4778 = vpop.f32.mrb[0].mxu0
  %4779 = vmatprep.mubr.f32.mxu0 0.0
  %v4780 = vand.u32 %v4448, 4294901760
  %v4781 = vsub.f32 %v4448, %v4780
  %v4782 = vand.u32 %v4781, 4294901760
  %v4783 = vsub.f32 %v4781, %v4782
  %v4784 = vand.u32 %v4783, 4294901760
  %4785 = vmatmul.mubr.f32.gmra.mrb[0].mxu0 %v4784
  %v4786 = vpop.f32.mrb[0].mxu0
  %v4787 = vadd.f32 0.0, %v4786
  %v4788 = vpop.f32.mrb[0].mxu0
  %4789 = vmatprep.mubr.f32.mxu0 0.0
  %v4790 = vand.u32 %v4449, 4294901760
  %v4791 = vsub.f32 %v4449, %v4790
  %v4792 = vand.u32 %v4791, 4294901760
  %v4793 = vsub.f32 %v4791, %v4792
  %v4794 = vand.u32 %v4793, 4294901760
  %4795 = vmatmul.mubr.f32.gmra.mrb[0].mxu0 %v4794
  %v4796 = vpop.f32.mrb[0].mxu0
  %v4797 = vadd.f32 0.0, %v4796
  %v4798 = vpop.f32.mrb[0].mxu0
  %4799 = vmatprep.mubr.f32.mxu0 0.0
  %v4800 = vand.u32 %v4450, 4294901760
  %v4801 = vsub.f32 %v4450, %v4800
  %v4802 = vand.u32 %v4801, 4294901760
  %v4803 = vsub.f32 %v4801, %v4802
  %v4804 = vand.u32 %v4803, 4294901760
  %4805 = vmatmul.mubr.f32.gmra.mrb[0].mxu0 %v4804
  %v4806 = vpop.f32.mrb[0].mxu0
  %v4807 = vadd.f32 0.0, %v4806
  %v4808 = vpop.f32.mrb[0].mxu0
  %4809 = vmatprep.mubr.f32.mxu0 0.0
  %v4810 = vand.u32 %v4451, 4294901760
  %v4811 = vsub.f32 %v4451, %v4810
  %v4812 = vand.u32 %v4811, 4294901760
  %v4813 = vsub.f32 %v4811, %v4812
  %v4814 = vand.u32 %v4813, 4294901760
  %4815 = vmatmul.mubr.f32.gmra.mrb[0].mxu0 %v4814
  %v4816 = vpop.f32.mrb[0].mxu0
  %v4817 = vadd.f32 0.0, %v4816
  %v4818 = vpop.f32.mrb[0].mxu0
  %4819 = vmatprep.mubr.f32.mxu0 0.0
  %v4820 = vand.u32 %v4452, 4294901760
  %v4821 = vsub.f32 %v4452, %v4820
  %v4822 = vand.u32 %v4821, 4294901760
  %v4823 = vsub.f32 %v4821, %v4822
  %v4824 = vand.u32 %v4823, 4294901760
  %4825 = vmatmul.mubr.f32.gmra.mrb[0].mxu0 %v4824
  %v4826 = vpop.f32.mrb[0].mxu0
  %v4827 = vadd.f32 0.0, %v4826
  %v4828 = vpop.f32.mrb[0].mxu0
  %4829 = vmatprep.mubr.f32.mxu0 0.0
  %v4830 = vand.u32 %v4453, 4294901760
  %v4831 = vsub.f32 %v4453, %v4830
  %v4832 = vand.u32 %v4831, 4294901760
  %v4833 = vsub.f32 %v4831, %v4832
  %v4834 = vand.u32 %v4833, 4294901760
  %4835 = vmatmul.mubr.f32.gmra.mrb[0].mxu0 %v4834
  %v4836 = vpop.f32.mrb[0].mxu0
  %v4837 = vadd.f32 0.0, %v4836
  %v4838 = vpop.f32.mrb[0].mxu0
  %4839 = vmatprep.mubr.f32.mxu0 0.0
  %v4840 = vand.u32 %v4454, 4294901760
  %v4841 = vsub.f32 %v4454, %v4840
  %v4842 = vand.u32 %v4841, 4294901760
  %v4843 = vsub.f32 %v4841, %v4842
  %v4844 = vand.u32 %v4843, 4294901760
  %4845 = vmatmul.mubr.f32.gmra.mrb[0].mxu0 %v4844
  %v4846 = vpop.f32.mrb[0].mxu0
  %v4847 = vadd.f32 0.0, %v4846
  %v4848 = vpop.f32.mrb[0].mxu0
  %4849 = vmatprep.mubr.f32.mxu0 0.0
  %v4850 = vand.u32 %v4455, 4294901760
  %v4851 = vsub.f32 %v4455, %v4850
  %v4852 = vand.u32 %v4851, 4294901760
  %v4853 = vsub.f32 %v4851, %v4852
  %v4854 = vand.u32 %v4853, 4294901760
  %4855 = vmatmul.mubr.f32.gmra.mrb[0].mxu0 %v4854
  %v4856 = vpop.f32.mrb[0].mxu0
  %v4857 = vadd.f32 0.0, %v4856
  %v4858 = vpop.f32.mrb[0].mxu0
  %4859 = vmatprep.mubr.f32.mxu0 0.0
  %v4860 = vand.u32 %v4456, 4294901760
  %v4861 = vsub.f32 %v4456, %v4860
  %v4862 = vand.u32 %v4861, 4294901760
  %v4863 = vsub.f32 %v4861, %v4862
  %v4864 = vand.u32 %v4863, 4294901760
  %4865 = vmatmul.mubr.f32.gmra.mrb[0].mxu0 %v4864
  %v4866 = vpop.f32.mrb[0].mxu0
  %v4867 = vadd.f32 0.0, %v4866
  %v4868 = vpop.f32.mrb[0].mxu0
  %4869 = vmatprep.mubr.f32.mxu0 0.0
  %v4870 = vand.u32 %v4457, 4294901760
  %v4871 = vsub.f32 %v4457, %v4870
  %v4872 = vand.u32 %v4871, 4294901760
  %v4873 = vsub.f32 %v4871, %v4872
  %v4874 = vand.u32 %v4873, 4294901760
  %4875 = vmatmul.mubr.f32.gmra.mrb[0].mxu0 %v4874
  %v4876 = vpop.f32.mrb[0].mxu0
  %v4877 = vadd.f32 0.0, %v4876
  %v4878 = vpop.f32.mrb[0].mxu0
  %4879 = vmatprep.mubr.f32.mxu0 0.0
  %v4880 = vand.u32 %v4458, 4294901760
  %v4881 = vsub.f32 %v4458, %v4880
  %v4882 = vand.u32 %v4881, 4294901760
  %v4883 = vsub.f32 %v4881, %v4882
  %v4884 = vand.u32 %v4883, 4294901760
  %4885 = vmatmul.mubr.f32.gmra.mrb[0].mxu0 %v4884
  %v4886 = vpop.f32.mrb[0].mxu0
  %v4887 = vadd.f32 0.0, %v4886
  %v4888 = vpop.f32.mrb[0].mxu0
  %4889 = vmatprep.mubr.f32.mxu0 0.0
  %v4890 = vand.u32 %v4459, 4294901760
  %v4891 = vsub.f32 %v4459, %v4890
  %v4892 = vand.u32 %v4891, 4294901760
  %v4893 = vsub.f32 %v4891, %v4892
  %v4894 = vand.u32 %v4893, 4294901760
  %4895 = vmatmul.mubr.f32.gmra.mrb[0].mxu0 %v4894
  %v4896 = vpop.f32.mrb[0].mxu0
  %v4897 = vadd.f32 0.0, %v4896
  %v4898 = vpop.f32.mrb[0].mxu0
  %4899 = vmatprep.mubr.f32.mxu0 0.0
  %v4900 = vand.u32 %v4460, 4294901760
  %v4901 = vsub.f32 %v4460, %v4900
  %v4902 = vand.u32 %v4901, 4294901760
  %v4903 = vsub.f32 %v4901, %v4902
  %v4904 = vand.u32 %v4903, 4294901760
  %4905 = vmatmul.mubr.f32.gmra.mrb[0].mxu0 %v4904
  %v4906 = vpop.f32.mrb[0].mxu0
  %v4907 = vadd.f32 0.0, %v4906
  %v4908 = vpop.f32.mrb[0].mxu0
  %4909 = vmatprep.mubr.f32.mxu0 0.0
  %v4910 = vand.u32 %v4461, 4294901760
  %v4911 = vsub.f32 %v4461, %v4910
  %v4912 = vand.u32 %v4911, 4294901760
  %v4913 = vsub.f32 %v4911, %v4912
  %v4914 = vand.u32 %v4913, 4294901760
  %4915 = vmatmul.mubr.f32.gmra.mrb[0].mxu0 %v4914
  %v4916 = vpop.f32.mrb[0].mxu0
  %v4917 = vadd.f32 0.0, %v4916
  %v4918 = vpop.f32.mrb[0].mxu0
  %4919 = vmatprep.mubr.f32.mxu0 0.0
  %v4920 = vand.u32 %v4462, 4294901760
  %v4921 = vsub.f32 %v4462, %v4920
  %v4922 = vand.u32 %v4921, 4294901760
  %v4923 = vsub.f32 %v4921, %v4922
  %v4924 = vand.u32 %v4923, 4294901760
  %4925 = vmatmul.mubr.f32.gmra.mrb[0].mxu0 %v4924
  %v4926 = vpop.f32.mrb[0].mxu0
  %v4927 = vadd.f32 0.0, %v4926
  %v4928 = vpop.f32.mrb[0].mxu0
  %4929 = vmatprep.mubr.f32.mxu0 0.0
  %v4930 = vand.u32 %v4463, 4294901760
  %v4931 = vsub.f32 %v4463, %v4930
  %v4932 = vand.u32 %v4931, 4294901760
  %v4933 = vsub.f32 %v4931, %v4932
  %v4934 = vand.u32 %v4933, 4294901760
  %4935 = vmatmul.mubr.f32.gmra.mrb[0].mxu0 %v4934
  %v4936 = vpop.f32.mrb[0].mxu0
  %v4937 = vadd.f32 0.0, %v4936
  %v4938 = vpop.f32.mrb[0].mxu0
  %4939 = vmatprep.mubr.f32.mxu0 0.0
  %v4940 = vand.u32 %v4464, 4294901760
  %v4941 = vsub.f32 %v4464, %v4940
  %v4942 = vand.u32 %v4941, 4294901760
  %v4943 = vsub.f32 %v4941, %v4942
  %v4944 = vand.u32 %v4943, 4294901760
  %4945 = vmatmul.mubr.f32.gmra.mrb[0].mxu0 %v4944
  %v4946 = vpop.f32.mrb[0].mxu0
  %v4947 = vadd.f32 0.0, %v4946
  %v4948 = vpop.f32.mrb[0].mxu0
  %4949 = vmatprep.mubr.f32.mxu0 0.0
  %v4950 = vand.u32 %v4465, 4294901760
  %v4951 = vsub.f32 %v4465, %v4950
  %v4952 = vand.u32 %v4951, 4294901760
  %v4953 = vsub.f32 %v4951, %v4952
  %v4954 = vand.u32 %v4953, 4294901760
  %4955 = vmatmul.mubr.f32.gmra.mrb[0].mxu0 %v4954
  %v4956 = vpop.f32.mrb[0].mxu0
  %v4957 = vadd.f32 0.0, %v4956
  %v4958 = vpop.f32.mrb[0].mxu0
  %4959 = vmatprep.mubr.f32.mxu0 0.0
  %v4960 = vand.u32 %v4466, 4294901760
  %v4961 = vsub.f32 %v4466, %v4960
  %v4962 = vand.u32 %v4961, 4294901760
  %v4963 = vsub.f32 %v4961, %v4962
  %v4964 = vand.u32 %v4963, 4294901760
  %4965 = vmatmul.mubr.f32.gmra.mrb[0].mxu0 %v4964
  %v4966 = vpop.f32.mrb[0].mxu0
  %v4967 = vadd.f32 0.0, %v4966
  %v4968 = vpop.f32.mrb[0].mxu0
  %4969 = vmatprep.mubr.f32.mxu0 0.0
  %v4970 = vand.u32 %v4467, 4294901760
  %v4971 = vsub.f32 %v4467, %v4970
  %v4972 = vand.u32 %v4971, 4294901760
  %v4973 = vsub.f32 %v4971, %v4972
  %v4974 = vand.u32 %v4973, 4294901760
  %4975 = vmatmul.mubr.f32.gmra.mrb[0].mxu0 %v4974
  %v4976 = vpop.f32.mrb[0].mxu0
  %v4977 = vadd.f32 0.0, %v4976
  %v4978 = vpop.f32.mrb[0].mxu0
  %4979 = vmatprep.mubr.f32.mxu0 0.0
  %v4980 = vand.u32 %v4468, 4294901760
  %v4981 = vsub.f32 %v4468, %v4980
  %v4982 = vand.u32 %v4981, 4294901760
  %v4983 = vsub.f32 %v4981, %v4982
  %v4984 = vand.u32 %v4983, 4294901760
  %4985 = vmatmul.mubr.f32.gmra.mrb[0].mxu0 %v4984
  %v4986 = vpop.f32.mrb[0].mxu0
  %v4987 = vadd.f32 0.0, %v4986
  %v4988 = vpop.f32.mrb[0].mxu0
  %4989 = vmatprep.mubr.f32.mxu0 0.0
  %v4990 = vand.u32 %v4469, 4294901760
  %v4991 = vsub.f32 %v4469, %v4990
  %v4992 = vand.u32 %v4991, 4294901760
  %v4993 = vsub.f32 %v4991, %v4992
  %v4994 = vand.u32 %v4993, 4294901760
  %4995 = vmatmul.mubr.f32.gmra.mrb[0].mxu0 %v4994
  %v4996 = vpop.f32.mrb[0].mxu0
  %v4997 = vadd.f32 0.0, %v4996
  %v4998 = vpop.f32.mrb[0].mxu0
  %4999 = vmatprep.mubr.f32.mxu0 0.0
  %v5000 = vand.u32 %v4470, 4294901760
  %v5001 = vsub.f32 %v4470, %v5000
  %v5002 = vand.u32 %v5001, 4294901760
  %v5003 = vsub.f32 %v5001, %v5002
  %v5004 = vand.u32 %v5003, 4294901760
  %5005 = vmatmul.mubr.f32.gmra.mrb[0].mxu0 %v5004
  %v5006 = vpop.f32.mrb[0].mxu0
  %v5007 = vadd.f32 0.0, %v5006
  %v5008 = vpop.f32.mrb[0].mxu0
  %5009 = vmatprep.mubr.f32.mxu0 0.0
  %v5010 = vand.u32 %v4471, 4294901760
  %v5011 = vsub.f32 %v4471, %v5010
  %v5012 = vand.u32 %v5011, 4294901760
  %v5013 = vsub.f32 %v5011, %v5012
  %v5014 = vand.u32 %v5013, 4294901760
  %5015 = vmatmul.mubr.f32.gmra.mrb[0].mxu0 %v5014
  %v5016 = vpop.f32.mrb[0].mxu0
  %v5017 = vadd.f32 0.0, %v5016
  %v5018 = vpop.f32.mrb[0].mxu0
  %5019 = vmatprep.mubr.f32.mxu0 0.0
  %v5020 = vand.u32 %v4472, 4294901760
  %v5021 = vsub.f32 %v4472, %v5020
  %v5022 = vand.u32 %v5021, 4294901760
  %v5023 = vsub.f32 %v5021, %v5022
  %v5024 = vand.u32 %v5023, 4294901760
  %5025 = vmatmul.mubr.f32.gmra.mrb[0].mxu0 %v5024
  %v5026 = vpop.f32.mrb[0].mxu0
  %v5027 = vadd.f32 0.0, %v5026
  %v5028 = vpop.f32.mrb[0].mxu0
  %5029 = vmatprep.mubr.f32.mxu0 0.0
  %v5030 = vand.u32 %v4473, 4294901760
  %v5031 = vsub.f32 %v4473, %v5030
  %v5032 = vand.u32 %v5031, 4294901760
  %v5033 = vsub.f32 %v5031, %v5032
  %v5034 = vand.u32 %v5033, 4294901760
  %5035 = vmatmul.mubr.f32.gmra.mrb[0].mxu0 %v5034
  %v5036 = vpop.f32.mrb[0].mxu0
  %v5037 = vadd.f32 0.0, %v5036
  %v5038 = vpop.f32.mrb[0].mxu0
  %5039 = vmatprep.mubr.f32.mxu0 0.0
  %v5040 = vand.u32 %v4474, 4294901760
  %v5041 = vsub.f32 %v4474, %v5040
  %v5042 = vand.u32 %v5041, 4294901760
  %v5043 = vsub.f32 %v5041, %v5042
  %v5044 = vand.u32 %v5043, 4294901760
  %5045 = vmatmul.mubr.f32.gmra.mrb[0].mxu0 %v5044
  %v5046 = vpop.f32.mrb[0].mxu0
  %v5047 = vadd.f32 0.0, %v5046
  %v5048 = vpop.f32.mrb[0].mxu0
  %5049 = vmatprep.mubr.f32.mxu0 0.0
  %v5050 = vand.u32 %v4475, 4294901760
  %v5051 = vsub.f32 %v4475, %v5050
  %v5052 = vand.u32 %v5051, 4294901760
  %v5053 = vsub.f32 %v5051, %v5052
  %v5054 = vand.u32 %v5053, 4294901760
  %5055 = vmatmul.mubr.f32.gmra.mrb[0].mxu0 %v5054
  %v5056 = vpop.f32.mrb[0].mxu0
  %v5057 = vadd.f32 0.0, %v5056
  %v5058 = vpop.f32.mrb[0].mxu0
  %5059 = vmatprep.mubr.f32.mxu0 0.0
  %v5060 = vand.u32 %v4476, 4294901760
  %v5061 = vsub.f32 %v4476, %v5060
  %v5062 = vand.u32 %v5061, 4294901760
  %v5063 = vsub.f32 %v5061, %v5062
  %v5064 = vand.u32 %v5063, 4294901760
  %5065 = vmatmul.mubr.f32.gmra.mrb[0].mxu0 %v5064
  %v5066 = vpop.f32.mrb[0].mxu0
  %v5067 = vadd.f32 0.0, %v5066
  %v5068 = vpop.f32.mrb[0].mxu0
  %5069 = vmatprep.mubr.f32.mxu0 0.0
  %v5070 = vand.u32 %v4477, 4294901760
  %v5071 = vsub.f32 %v4477, %v5070
  %v5072 = vand.u32 %v5071, 4294901760
  %v5073 = vsub.f32 %v5071, %v5072
  %v5074 = vand.u32 %v5073, 4294901760
  %5075 = vmatmul.mubr.f32.gmra.mrb[0].mxu0 %v5074
  %v5076 = vpop.f32.mrb[0].mxu0
  %v5077 = vadd.f32 0.0, %v5076
  %v5078 = vpop.f32.mrb[0].mxu0
  %5079 = vmatprep.mubr.f32.mxu0 0.0
  %v5080 = vand.u32 %v4478, 4294901760
  %v5081 = vsub.f32 %v4478, %v5080
  %v5082 = vand.u32 %v5081, 4294901760
  %v5083 = vsub.f32 %v5081, %v5082
  %v5084 = vand.u32 %v5083, 4294901760
  %5085 = vmatmul.mubr.f32.gmra.mrb[0].mxu0 %v5084
  %v5086 = vpop.f32.mrb[0].mxu0
  %v5087 = vadd.f32 0.0, %v5086
  %v5088 = vpop.f32.mrb[0].mxu0
  %5089 = vmatprep.mubr.f32.mxu0 0.0
  %v5090 = vand.u32 %v4479, 4294901760
  %v5091 = vsub.f32 %v4479, %v5090
  %v5092 = vand.u32 %v5091, 4294901760
  %v5093 = vsub.f32 %v5091, %v5092
  %v5094 = vand.u32 %v5093, 4294901760
  %5095 = vmatmul.mubr.f32.gmra.mrb[0].mxu0 %v5094
  %v5096 = vpop.f32.mrb[0].mxu0
  %v5097 = vadd.f32 0.0, %v5096
  %v5098 = vpop.f32.mrb[0].mxu0
  %5099 = vmatprep.mubr.f32.mxu0 0.0
  %v5100 = vand.u32 %v4480, 4294901760
  %v5101 = vsub.f32 %v4480, %v5100
  %v5102 = vand.u32 %v5101, 4294901760
  %v5103 = vsub.f32 %v5101, %v5102
  %v5104 = vand.u32 %v5103, 4294901760
  %5105 = vmatmul.mubr.f32.gmra.mrb[0].mxu0 %v5104
  %v5106 = vpop.f32.mrb[0].mxu0
  %v5107 = vadd.f32 0.0, %v5106
  %v5108 = vpop.f32.mrb[0].mxu0
  %5109 = vmatprep.mubr.f32.mxu0 0.0
  %v5110 = vand.u32 %v4481, 4294901760
  %v5111 = vsub.f32 %v4481, %v5110
  %v5112 = vand.u32 %v5111, 4294901760
  %v5113 = vsub.f32 %v5111, %v5112
  %v5114 = vand.u32 %v5113, 4294901760
  %5115 = vmatmul.mubr.f32.gmra.mrb[0].mxu0 %v5114
  %v5116 = vpop.f32.mrb[0].mxu0
  %v5117 = vadd.f32 0.0, %v5116
  %v5118 = vpop.f32.mrb[0].mxu0
  %5119 = vmatprep.mubr.f32.mxu0 0.0
  %v5120 = vand.u32 %v4482, 4294901760
  %v5121 = vsub.f32 %v4482, %v5120
  %v5122 = vand.u32 %v5121, 4294901760
  %v5123 = vsub.f32 %v5121, %v5122
  %v5124 = vand.u32 %v5123, 4294901760
  %5125 = vmatmul.mubr.f32.gmra.mrb[0].mxu0 %v5124
  %v5126 = vpop.f32.mrb[0].mxu0
  %v5127 = vadd.f32 0.0, %v5126
  %v5128 = vpop.f32.mrb[0].mxu0
  %5129 = vmatprep.mubr.f32.mxu0 0.0
  %v5130 = vand.u32 %v4483, 4294901760
  %v5131 = vsub.f32 %v4483, %v5130
  %v5132 = vand.u32 %v5131, 4294901760
  %v5133 = vsub.f32 %v5131, %v5132
  %v5134 = vand.u32 %v5133, 4294901760
  %5135 = vmatmul.mubr.f32.gmra.mrb[0].mxu0 %v5134
  %v5136 = vpop.f32.mrb[0].mxu0
  %v5137 = vadd.f32 0.0, %v5136
  %v5138 = vpop.f32.mrb[0].mxu0
  %5139 = vmatprep.mubr.f32.mxu0 0.0
  %v5140 = vand.u32 %v4484, 4294901760
  %v5141 = vsub.f32 %v4484, %v5140
  %v5142 = vand.u32 %v5141, 4294901760
  %v5143 = vsub.f32 %v5141, %v5142
  %v5144 = vand.u32 %v5143, 4294901760
  %5145 = vmatmul.mubr.f32.gmra.mrb[0].mxu0 %v5144
  %v5146 = vpop.f32.mrb[0].mxu0
  %v5147 = vadd.f32 0.0, %v5146
  %v5148 = vpop.f32.mrb[0].mxu0
  %5149 = vmatprep.mubr.f32.mxu0 0.0
  %v5150 = vand.u32 %v4485, 4294901760
  %v5151 = vsub.f32 %v4485, %v5150
  %v5152 = vand.u32 %v5151, 4294901760
  %v5153 = vsub.f32 %v5151, %v5152
  %v5154 = vand.u32 %v5153, 4294901760
  %5155 = vmatmul.mubr.f32.gmra.mrb[0].mxu0 %v5154
  %v5156 = vpop.f32.mrb[0].mxu0
  %v5157 = vadd.f32 0.0, %v5156
  %v5158 = vpop.f32.mrb[0].mxu0
  %5159 = vmatprep.mubr.f32.mxu0 0.0
  %v5160 = vand.u32 %v4486, 4294901760
  %v5161 = vsub.f32 %v4486, %v5160
  %v5162 = vand.u32 %v5161, 4294901760
  %v5163 = vsub.f32 %v5161, %v5162
  %v5164 = vand.u32 %v5163, 4294901760
  %5165 = vmatmul.mubr.f32.gmra.mrb[0].mxu0 %v5164
  %v5166 = vpop.f32.mrb[0].mxu0
  %v5167 = vadd.f32 0.0, %v5166
  %v5168 = vpop.f32.mrb[0].mxu0
  %5169 = vmatprep.mubr.f32.mxu0 0.0
  %v5170 = vand.u32 %v4487, 4294901760
  %v5171 = vsub.f32 %v4487, %v5170
  %v5172 = vand.u32 %v5171, 4294901760
  %v5173 = vsub.f32 %v5171, %v5172
  %v5174 = vand.u32 %v5173, 4294901760
  %5175 = vmatmul.mubr.f32.gmra.mrb[0].mxu0 %v5174
  %v5176 = vpop.f32.mrb[0].mxu0
  %v5177 = vadd.f32 0.0, %v5176
  %v5178 = vpop.f32.mrb[0].mxu0
  %5179 = vmatprep.mubr.f32.mxu0 0.0
  %v5180 = vand.u32 %v4488, 4294901760
  %v5181 = vsub.f32 %v4488, %v5180
  %v5182 = vand.u32 %v5181, 4294901760
  %v5183 = vsub.f32 %v5181, %v5182
  %v5184 = vand.u32 %v5183, 4294901760
  %5185 = vmatmul.mubr.f32.gmra.mrb[0].mxu0 %v5184
  %v5186 = vpop.f32.mrb[0].mxu0
  %v5187 = vadd.f32 0.0, %v5186
  %v5188 = vpop.f32.mrb[0].mxu0
  %5189 = vmatprep.mubr.f32.mxu0 0.0
  %v5190 = vand.u32 %v4489, 4294901760
  %v5191 = vsub.f32 %v4489, %v5190
  %v5192 = vand.u32 %v5191, 4294901760
  %v5193 = vsub.f32 %v5191, %v5192
  %v5194 = vand.u32 %v5193, 4294901760
  %5195 = vmatmul.mubr.f32.gmra.mrb[0].mxu0 %v5194
  %v5196 = vpop.f32.mrb[0].mxu0
  %v5197 = vadd.f32 0.0, %v5196
  %v5198 = vpop.f32.mrb[0].mxu0
  %5199 = vmatprep.mubr.f32.mxu0 0.0
  %v5200 = vand.u32 %v4490, 4294901760
  %v5201 = vsub.f32 %v4490, %v5200
  %v5202 = vand.u32 %v5201, 4294901760
  %v5203 = vsub.f32 %v5201, %v5202
  %v5204 = vand.u32 %v5203, 4294901760
  %5205 = vmatmul.mubr.f32.gmra.mrb[0].mxu0 %v5204
  %v5206 = vpop.f32.mrb[0].mxu0
  %v5207 = vadd.f32 0.0, %v5206
  %v5208 = vpop.f32.mrb[0].mxu0
  %5209 = vmatprep.mubr.f32.mxu0 0.0
  %v5210 = vand.u32 %v4491, 4294901760
  %v5211 = vsub.f32 %v4491, %v5210
  %v5212 = vand.u32 %v5211, 4294901760
  %v5213 = vsub.f32 %v5211, %v5212
  %v5214 = vand.u32 %v5213, 4294901760
  %5215 = vmatmul.mubr.f32.gmra.mrb[0].mxu0 %v5214
  %v5216 = vpop.f32.mrb[0].mxu0
  %v5217 = vadd.f32 0.0, %v5216
  %v5218 = vpop.f32.mrb[0].mxu0
  %5219 = vmatprep.mubr.f32.mxu0 0.0
  %v5220 = vand.u32 %v4492, 4294901760
  %v5221 = vsub.f32 %v4492, %v5220
  %v5222 = vand.u32 %v5221, 4294901760
  %v5223 = vsub.f32 %v5221, %v5222
  %v5224 = vand.u32 %v5223, 4294901760
  %5225 = vmatmul.mubr.f32.gmra.mrb[0].mxu0 %v5224
  %v5226 = vpop.f32.mrb[0].mxu0
  %v5227 = vadd.f32 0.0, %v5226
  %v5228 = vpop.f32.mrb[0].mxu0
  %5229 = vmatprep.mubr.f32.mxu0 0.0
  %v5230 = vand.u32 %v4493, 4294901760
  %v5231 = vsub.f32 %v4493, %v5230
  %v5232 = vand.u32 %v5231, 4294901760
  %v5233 = vsub.f32 %v5231, %v5232
  %v5234 = vand.u32 %v5233, 4294901760
  %5235 = vmatmul.mubr.f32.gmra.mrb[0].mxu0 %v5234
  %v5236 = vpop.f32.mrb[0].mxu0
  %v5237 = vadd.f32 0.0, %v5236
  %v5238 = vpop.f32.mrb[0].mxu0
  %5239 = vmatprep.mubr.f32.mxu0 0.0
  %v5240 = vand.u32 %v4494, 4294901760
  %v5241 = vsub.f32 %v4494, %v5240
  %v5242 = vand.u32 %v5241, 4294901760
  %v5243 = vsub.f32 %v5241, %v5242
  %v5244 = vand.u32 %v5243, 4294901760
  %5245 = vmatmul.mubr.f32.gmra.mrb[0].mxu0 %v5244
  %v5246 = vpop.f32.mrb[0].mxu0
  %v5247 = vadd.f32 0.0, %v5246
  %v5248 = vpop.f32.mrb[0].mxu0
  %5249 = vmatprep.mubr.f32.mxu0 0.0
  %v5250 = vand.u32 %v4495, 4294901760
  %v5251 = vsub.f32 %v4495, %v5250
  %v5252 = vand.u32 %v5251, 4294901760
  %v5253 = vsub.f32 %v5251, %v5252
  %v5254 = vand.u32 %v5253, 4294901760
  %5255 = vmatmul.mubr.f32.gmra.mrb[0].mxu0 %v5254
  %v5256 = vpop.f32.mrb[0].mxu0
  %v5257 = vadd.f32 0.0, %v5256
  %v5258 = vpop.f32.mrb[0].mxu0
  %5259 = vmatprep.mubr.f32.mxu0 0.0
  %v5260 = vand.u32 %v4496, 4294901760
  %v5261 = vsub.f32 %v4496, %v5260
  %v5262 = vand.u32 %v5261, 4294901760
  %v5263 = vsub.f32 %v5261, %v5262
  %v5264 = vand.u32 %v5263, 4294901760
  %5265 = vmatmul.mubr.f32.gmra.mrb[0].mxu0 %v5264
  %v5266 = vpop.f32.mrb[0].mxu0
  %v5267 = vadd.f32 0.0, %v5266
  %v5268 = vpop.f32.mrb[0].mxu0
  %5269 = vmatprep.mubr.f32.mxu0 0.0
  %v5270 = vand.u32 %v4497, 4294901760
  %v5271 = vsub.f32 %v4497, %v5270
  %v5272 = vand.u32 %v5271, 4294901760
  %v5273 = vsub.f32 %v5271, %v5272
  %v5274 = vand.u32 %v5273, 4294901760
  %5275 = vmatmul.mubr.f32.gmra.mrb[0].mxu0 %v5274
  %v5276 = vpop.f32.mrb[0].mxu0
  %v5277 = vadd.f32 0.0, %v5276
  %v5278 = vpop.f32.mrb[0].mxu0
  %5279 = vmatprep.mubr.f32.mxu0 0.0
  %v5280 = vand.u32 %v4498, 4294901760
  %v5281 = vsub.f32 %v4498, %v5280
  %v5282 = vand.u32 %v5281, 4294901760
  %v5283 = vsub.f32 %v5281, %v5282
  %v5284 = vand.u32 %v5283, 4294901760
  %5285 = vmatmul.mubr.f32.gmra.mrb[0].mxu0 %v5284
  %v5286 = vpop.f32.mrb[0].mxu0
  %v5287 = vadd.f32 0.0, %v5286
  %v5288 = vpop.f32.mrb[0].mxu0
  %5289 = vmatprep.mubr.f32.mxu0 0.0
  %v5290 = vand.u32 %v4499, 4294901760
  %v5291 = vsub.f32 %v4499, %v5290
  %v5292 = vand.u32 %v5291, 4294901760
  %v5293 = vsub.f32 %v5291, %v5292
  %v5294 = vand.u32 %v5293, 4294901760
  %5295 = vmatmul.mubr.f32.gmra.mrb[0].mxu0 %v5294
  %v5296 = vpop.f32.mrb[0].mxu0
  %v5297 = vadd.f32 0.0, %v5296
  %v5298 = vpop.f32.mrb[0].mxu0
  %5299 = vmatprep.mubr.f32.mxu0 0.0
  %v5300 = vand.u32 %v4500, 4294901760
  %v5301 = vsub.f32 %v4500, %v5300
  %v5302 = vand.u32 %v5301, 4294901760
  %v5303 = vsub.f32 %v5301, %v5302
  %v5304 = vand.u32 %v5303, 4294901760
  %5305 = vmatmul.mubr.f32.gmra.mrb[0].mxu0 %v5304
  %v5306 = vpop.f32.mrb[0].mxu0
  %v5307 = vadd.f32 0.0, %v5306
  %v5308 = vpop.f32.mrb[0].mxu0
  %5309 = vmatprep.mubr.f32.mxu0 0.0
  %v5310 = vand.u32 %v4501, 4294901760
  %v5311 = vsub.f32 %v4501, %v5310
  %v5312 = vand.u32 %v5311, 4294901760
  %v5313 = vsub.f32 %v5311, %v5312
  %v5314 = vand.u32 %v5313, 4294901760
  %5315 = vmatmul.mubr.f32.gmra.mrb[0].mxu0 %v5314
  %v5316 = vpop.f32.mrb[0].mxu0
  %v5317 = vadd.f32 0.0, %v5316
  %v5318 = vpop.f32.mrb[0].mxu0
  %5319 = vmatprep.mubr.f32.mxu0 0.0
  %v5320 = vand.u32 %v4502, 4294901760
  %v5321 = vsub.f32 %v4502, %v5320
  %v5322 = vand.u32 %v5321, 4294901760
  %v5323 = vsub.f32 %v5321, %v5322
  %v5324 = vand.u32 %v5323, 4294901760
  %5325 = vmatmul.mubr.f32.gmra.mrb[0].mxu0 %v5324
  %v5326 = vpop.f32.mrb[0].mxu0
  %v5327 = vadd.f32 0.0, %v5326
  %v5328 = vpop.f32.mrb[0].mxu0
  %5329 = vmatprep.mubr.f32.mxu0 0.0
  %v5330 = vand.u32 %v4503, 4294901760
  %v5331 = vsub.f32 %v4503, %v5330
  %v5332 = vand.u32 %v5331, 4294901760
  %v5333 = vsub.f32 %v5331, %v5332
  %v5334 = vand.u32 %v5333, 4294901760
  %5335 = vmatmul.mubr.f32.gmra.mrb[0].mxu0 %v5334
  %v5336 = vpop.f32.mrb[0].mxu0
  %v5337 = vadd.f32 0.0, %v5336
  %v5338 = vpop.f32.mrb[0].mxu0
  %5339 = vmatprep.mubr.f32.mxu0 0.0
  %v5340 = vand.u32 %v4504, 4294901760
  %v5341 = vsub.f32 %v4504, %v5340
  %v5342 = vand.u32 %v5341, 4294901760
  %v5343 = vsub.f32 %v5341, %v5342
  %v5344 = vand.u32 %v5343, 4294901760
  %5345 = vmatmul.mubr.f32.gmra.mrb[0].mxu0 %v5344
  %v5346 = vpop.f32.mrb[0].mxu0
  %v5347 = vadd.f32 0.0, %v5346
  %v5348 = vpop.f32.mrb[0].mxu0
  %5349 = vmatprep.mubr.f32.mxu0 0.0
  %v5350 = vand.u32 %v4505, 4294901760
  %v5351 = vsub.f32 %v4505, %v5350
  %v5352 = vand.u32 %v5351, 4294901760
  %v5353 = vsub.f32 %v5351, %v5352
  %v5354 = vand.u32 %v5353, 4294901760
  %5355 = vmatmul.mubr.f32.gmra.mrb[0].mxu0 %v5354
  %v5356 = vpop.f32.mrb[0].mxu0
  %v5357 = vadd.f32 0.0, %v5356
  %v5358 = vpop.f32.mrb[0].mxu0
  %5359 = vmatprep.mubr.f32.mxu0 0.0
  %v5360 = vand.u32 %v4506, 4294901760
  %v5361 = vsub.f32 %v4506, %v5360
  %v5362 = vand.u32 %v5361, 4294901760
  %v5363 = vsub.f32 %v5361, %v5362
  %v5364 = vand.u32 %v5363, 4294901760
  %5365 = vmatmul.mubr.f32.gmra.mrb[0].mxu0 %v5364
  %v5366 = vpop.f32.mrb[0].mxu0
  %v5367 = vadd.f32 0.0, %v5366
  %v5368 = vpop.f32.mrb[0].mxu0
  %5369 = vmatprep.mubr.f32.mxu0 0.0
  %v5370 = vand.u32 %v4507, 4294901760
  %v5371 = vsub.f32 %v4507, %v5370
  %v5372 = vand.u32 %v5371, 4294901760
  %v5373 = vsub.f32 %v5371, %v5372
  %v5374 = vand.u32 %v5373, 4294901760
  %5375 = vmatmul.mubr.f32.gmra.mrb[0].mxu0 %v5374
  %v5376 = vpop.f32.mrb[0].mxu0
  %v5377 = vadd.f32 0.0, %v5376
  %v5378 = vpop.f32.mrb[0].mxu0
  %5379 = vmatprep.mubr.f32.mxu0 0.0
  %v5380 = vand.u32 %v4508, 4294901760
  %v5381 = vsub.f32 %v4508, %v5380
  %v5382 = vand.u32 %v5381, 4294901760
  %v5383 = vsub.f32 %v5381, %v5382
  %v5384 = vand.u32 %v5383, 4294901760
  %5385 = vmatmul.mubr.f32.gmra.mrb[0].mxu0 %v5384
  %v5386 = vpop.f32.mrb[0].mxu0
  %v5387 = vadd.f32 0.0, %v5386
  %v5388 = vpop.f32.mrb[0].mxu0
  %5389 = vmatprep.mubr.f32.mxu0 0.0
  %v5390 = vand.u32 %v4509, 4294901760
  %v5391 = vsub.f32 %v4509, %v5390
  %v5392 = vand.u32 %v5391, 4294901760
  %v5393 = vsub.f32 %v5391, %v5392
  %v5394 = vand.u32 %v5393, 4294901760
  %5395 = vmatmul.mubr.f32.gmra.mrb[0].mxu0 %v5394
  %v5396 = vpop.f32.mrb[0].mxu0
  %v5397 = vadd.f32 0.0, %v5396
  %v5398 = vpop.f32.mrb[0].mxu0
  %5399 = vmatprep.mubr.f32.mxu0 0.0
  %v5400 = vand.u32 %v4510, 4294901760
  %v5401 = vsub.f32 %v4510, %v5400
  %v5402 = vand.u32 %v5401, 4294901760
  %v5403 = vsub.f32 %v5401, %v5402
  %v5404 = vand.u32 %v5403, 4294901760
  %5405 = vmatmul.mubr.f32.gmra.mrb[0].mxu0 %v5404
  %v5406 = vpop.f32.mrb[0].mxu0
  %v5407 = vadd.f32 0.0, %v5406
  %v5408 = vpop.f32.mrb[0].mxu0
  %5409 = vmatprep.mubr.f32.mxu0 0.0
  %v5410 = vand.u32 %v4511, 4294901760
  %v5411 = vsub.f32 %v4511, %v5410
  %v5412 = vand.u32 %v5411, 4294901760
  %v5413 = vsub.f32 %v5411, %v5412
  %v5414 = vand.u32 %v5413, 4294901760
  %5415 = vmatmul.mubr.f32.gmra.mrb[0].mxu0 %v5414
  %v5416 = vpop.f32.mrb[0].mxu0
  %v5417 = vadd.f32 0.0, %v5416
  %v5418 = vpop.f32.mrb[0].mxu0
  %5419 = vmatprep.mubr.f32.mxu0 0.0
  %v5420 = vand.u32 %v4512, 4294901760
  %v5421 = vsub.f32 %v4512, %v5420
  %v5422 = vand.u32 %v5421, 4294901760
  %v5423 = vsub.f32 %v5421, %v5422
  %v5424 = vand.u32 %v5423, 4294901760
  %5425 = vmatmul.mubr.f32.gmra.mrb[0].mxu0 %v5424
  %v5426 = vpop.f32.mrb[0].mxu0
  %v5427 = vadd.f32 0.0, %v5426
  %v5428 = vpop.f32.mrb[0].mxu0
  %5429 = vmatprep.mubr.f32.mxu0 0.0
  %v5430 = vand.u32 %v4513, 4294901760
  %v5431 = vsub.f32 %v4513, %v5430
  %v5432 = vand.u32 %v5431, 4294901760
  %v5433 = vsub.f32 %v5431, %v5432
  %v5434 = vand.u32 %v5433, 4294901760
  %5435 = vmatmul.mubr.f32.gmra.mrb[0].mxu0 %v5434
  %v5436 = vpop.f32.mrb[0].mxu0
  %v5437 = vadd.f32 0.0, %v5436
  %v5438 = vpop.f32.mrb[0].mxu0
  %5439 = vmatprep.mubr.f32.mxu0 0.0
  %v5440 = vand.u32 %v4514, 4294901760
  %v5441 = vsub.f32 %v4514, %v5440
  %v5442 = vand.u32 %v5441, 4294901760
  %v5443 = vsub.f32 %v5441, %v5442
  %v5444 = vand.u32 %v5443, 4294901760
  %5445 = vmatmul.mubr.f32.gmra.mrb[0].mxu0 %v5444
  %v5446 = vpop.f32.mrb[0].mxu0
  %v5447 = vadd.f32 0.0, %v5446
  %v5448 = vpop.f32.mrb[0].mxu0
  %5449 = vmatprep.mubr.f32.mxu0 0.0
  %v5450 = vand.u32 %v4515, 4294901760
  %v5451 = vsub.f32 %v4515, %v5450
  %v5452 = vand.u32 %v5451, 4294901760
  %v5453 = vsub.f32 %v5451, %v5452
  %v5454 = vand.u32 %v5453, 4294901760
  %5455 = vmatmul.mubr.f32.gmra.mrb[0].mxu0 %v5454
  %v5456 = vpop.f32.mrb[0].mxu0
  %v5457 = vadd.f32 0.0, %v5456
  %v5458 = vpop.f32.mrb[0].mxu0
  %5459 = vmatprep.mubr.f32.mxu0 0.0
  %v5460 = vand.u32 %v4516, 4294901760
  %v5461 = vsub.f32 %v4516, %v5460
  %v5462 = vand.u32 %v5461, 4294901760
  %v5463 = vsub.f32 %v5461, %v5462
  %v5464 = vand.u32 %v5463, 4294901760
  %5465 = vmatmul.mubr.f32.gmra.mrb[0].mxu0 %v5464
  %v5466 = vpop.f32.mrb[0].mxu0
  %v5467 = vadd.f32 0.0, %v5466
  %v5468 = vpop.f32.mrb[0].mxu0
  %5469 = vmatprep.mubr.f32.mxu0 0.0
  %v5470 = vand.u32 %v4517, 4294901760
  %v5471 = vsub.f32 %v4517, %v5470
  %v5472 = vand.u32 %v5471, 4294901760
  %v5473 = vsub.f32 %v5471, %v5472
  %v5474 = vand.u32 %v5473, 4294901760
  %5475 = vmatmul.mubr.f32.gmra.mrb[0].mxu0 %v5474
  %v5476 = vpop.f32.mrb[0].mxu0
  %v5477 = vadd.f32 0.0, %v5476
  %v5478 = vpop.f32.mrb[0].mxu0
  %5479 = vmatprep.mubr.f32.mxu0 0.0
  %v5480 = vand.u32 %v4518, 4294901760
  %v5481 = vsub.f32 %v4518, %v5480
  %v5482 = vand.u32 %v5481, 4294901760
  %v5483 = vsub.f32 %v5481, %v5482
  %v5484 = vand.u32 %v5483, 4294901760
  %5485 = vmatmul.mubr.f32.gmra.mrb[0].mxu0 %v5484
  %v5486 = vpop.f32.mrb[0].mxu0
  %v5487 = vadd.f32 0.0, %v5486
  %v5488 = vpop.f32.mrb[0].mxu0
  %5489 = vmatprep.mubr.f32.mxu0 0.0
  %v5490 = vand.u32 %v4519, 4294901760
  %v5491 = vsub.f32 %v4519, %v5490
  %v5492 = vand.u32 %v5491, 4294901760
  %v5493 = vsub.f32 %v5491, %v5492
  %v5494 = vand.u32 %v5493, 4294901760
  %5495 = vmatmul.mubr.f32.gmra.mrb[0].mxu0 %v5494
  %v5496 = vpop.f32.mrb[0].mxu0
  %v5497 = vadd.f32 0.0, %v5496
  %v5498 = vpop.f32.mrb[0].mxu0
  %5499 = vmatprep.mubr.f32.mxu0 0.0
  %v5500 = vand.u32 %v4520, 4294901760
  %v5501 = vsub.f32 %v4520, %v5500
  %v5502 = vand.u32 %v5501, 4294901760
  %v5503 = vsub.f32 %v5501, %v5502
  %v5504 = vand.u32 %v5503, 4294901760
  %5505 = vmatmul.mubr.f32.gmra.mrb[0].mxu0 %v5504
  %v5506 = vpop.f32.mrb[0].mxu0
  %v5507 = vadd.f32 0.0, %v5506
  %v5508 = vpop.f32.mrb[0].mxu0
  %5509 = vmatprep.mubr.f32.mxu0 0.0
  %v5510 = vand.u32 %v4521, 4294901760
  %v5511 = vsub.f32 %v4521, %v5510
  %v5512 = vand.u32 %v5511, 4294901760
  %v5513 = vsub.f32 %v5511, %v5512
  %v5514 = vand.u32 %v5513, 4294901760
  %5515 = vmatmul.mubr.f32.gmra.mrb[0].mxu0 %v5514
  %v5516 = vpop.f32.mrb[0].mxu0
  %v5517 = vadd.f32 0.0, %v5516
  %v5518 = vpop.f32.mrb[0].mxu0
  %5519 = vmatprep.mubr.f32.mxu0 0.0
  %v5520 = vand.u32 %v4522, 4294901760
  %v5521 = vsub.f32 %v4522, %v5520
  %v5522 = vand.u32 %v5521, 4294901760
  %v5523 = vsub.f32 %v5521, %v5522
  %v5524 = vand.u32 %v5523, 4294901760
  %5525 = vmatmul.mubr.f32.gmra.mrb[0].mxu0 %v5524
  %v5526 = vpop.f32.mrb[0].mxu0
  %v5527 = vadd.f32 0.0, %v5526
  %v5528 = vpop.f32.mrb[0].mxu0
  %5529 = vmatprep.mubr.f32.mxu0 0.0
  %v5530 = vand.u32 %v4523, 4294901760
  %v5531 = vsub.f32 %v4523, %v5530
  %v5532 = vand.u32 %v5531, 4294901760
  %v5533 = vsub.f32 %v5531, %v5532
  %v5534 = vand.u32 %v5533, 4294901760
  %5535 = vmatmul.mubr.f32.gmra.mrb[0].mxu0 %v5534
  %v5536 = vpop.f32.mrb[0].mxu0
  %v5537 = vadd.f32 0.0, %v5536
  %v5538 = vpop.f32.mrb[0].mxu0
  %5539 = vmatprep.mubr.f32.mxu0 0.0
  %v5540 = vand.u32 %v4524, 4294901760
  %v5541 = vsub.f32 %v4524, %v5540
  %v5542 = vand.u32 %v5541, 4294901760
  %v5543 = vsub.f32 %v5541, %v5542
  %v5544 = vand.u32 %v5543, 4294901760
  %5545 = vmatmul.mubr.f32.gmra.mrb[0].mxu0 %v5544
  %v5546 = vpop.f32.mrb[0].mxu0
  %v5547 = vadd.f32 0.0, %v5546
  %v5548 = vpop.f32.mrb[0].mxu0
  %5549 = vmatprep.mubr.f32.mxu0 0.0
  %v5550 = vand.u32 %v4525, 4294901760
  %v5551 = vsub.f32 %v4525, %v5550
  %v5552 = vand.u32 %v5551, 4294901760
  %v5553 = vsub.f32 %v5551, %v5552
  %v5554 = vand.u32 %v5553, 4294901760
  %5555 = vmatmul.mubr.f32.gmra.mrb[0].mxu0 %v5554
  %v5556 = vpop.f32.mrb[0].mxu0
  %v5557 = vadd.f32 0.0, %v5556
  %v5558 = vpop.f32.mrb[0].mxu0
  %5559 = vmatprep.mubr.f32.mxu0 0.0
  %v5560 = vand.u32 %v4526, 4294901760
  %v5561 = vsub.f32 %v4526, %v5560
  %v5562 = vand.u32 %v5561, 4294901760
  %v5563 = vsub.f32 %v5561, %v5562
  %v5564 = vand.u32 %v5563, 4294901760
  %5565 = vmatmul.mubr.f32.gmra.mrb[0].mxu0 %v5564
  %v5566 = vpop.f32.mrb[0].mxu0
  %v5567 = vadd.f32 0.0, %v5566
  %v5568 = vpop.f32.mrb[0].mxu0
  %5569 = vmatprep.mubr.f32.mxu0 0.0
  %v5570 = vand.u32 %v4527, 4294901760
  %v5571 = vsub.f32 %v4527, %v5570
  %v5572 = vand.u32 %v5571, 4294901760
  %v5573 = vsub.f32 %v5571, %v5572
  %v5574 = vand.u32 %v5573, 4294901760
  %5575 = vmatmul.mubr.f32.gmra.mrb[0].mxu0 %v5574
  %v5576 = vpop.f32.mrb[0].mxu0
  %v5577 = vadd.f32 0.0, %v5576
  %v5578 = vpop.f32.mrb[0].mxu0
  %5579 = vmatprep.mubr.f32.mxu0 0.0
  %v5580 = vand.u32 %v4528, 4294901760
  %v5581 = vsub.f32 %v4528, %v5580
  %v5582 = vand.u32 %v5581, 4294901760
  %v5583 = vsub.f32 %v5581, %v5582
  %v5584 = vand.u32 %v5583, 4294901760
  %5585 = vmatmul.mubr.f32.gmra.mrb[0].mxu0 %v5584
  %v5586 = vpop.f32.mrb[0].mxu0
  %v5587 = vadd.f32 0.0, %v5586
  %v5588 = vpop.f32.mrb[0].mxu0
  %5589 = vmatprep.mubr.f32.mxu0 0.0
  %v5590 = vand.u32 %v4529, 4294901760
  %v5591 = vsub.f32 %v4529, %v5590
  %v5592 = vand.u32 %v5591, 4294901760
  %v5593 = vsub.f32 %v5591, %v5592
  %v5594 = vand.u32 %v5593, 4294901760
  %5595 = vmatmul.mubr.f32.gmra.mrb[0].mxu0 %v5594
  %v5596 = vpop.f32.mrb[0].mxu0
  %v5597 = vadd.f32 0.0, %v5596
  %v5598 = vpop.f32.mrb[0].mxu0
  %5599 = vmatprep.mubr.f32.mxu0 0.0
  %v5600 = vand.u32 %v4530, 4294901760
  %v5601 = vsub.f32 %v4530, %v5600
  %v5602 = vand.u32 %v5601, 4294901760
  %v5603 = vsub.f32 %v5601, %v5602
  %v5604 = vand.u32 %v5603, 4294901760
  %5605 = vmatmul.mubr.f32.gmra.mrb[0].mxu0 %v5604
  %v5606 = vpop.f32.mrb[0].mxu0
  %v5607 = vadd.f32 0.0, %v5606
  %v5608 = vpop.f32.mrb[0].mxu0
  %5609 = vmatprep.mubr.f32.mxu0 0.0
  %v5610 = vand.u32 %v4531, 4294901760
  %v5611 = vsub.f32 %v4531, %v5610
  %v5612 = vand.u32 %v5611, 4294901760
  %v5613 = vsub.f32 %v5611, %v5612
  %v5614 = vand.u32 %v5613, 4294901760
  %5615 = vmatmul.mubr.f32.gmra.mrb[0].mxu0 %v5614
  %v5616 = vpop.f32.mrb[0].mxu0
  %v5617 = vadd.f32 0.0, %v5616
  %v5618 = vpop.f32.mrb[0].mxu0
  %5619 = vmatprep.mubr.f32.mxu0 0.0
  %v5620 = vand.u32 %v4532, 4294901760
  %v5621 = vsub.f32 %v4532, %v5620
  %v5622 = vand.u32 %v5621, 4294901760
  %v5623 = vsub.f32 %v5621, %v5622
  %v5624 = vand.u32 %v5623, 4294901760
  %5625 = vmatmul.mubr.f32.gmra.mrb[0].mxu0 %v5624
  %v5626 = vpop.f32.mrb[0].mxu0
  %v5627 = vadd.f32 0.0, %v5626
  %v5628 = vpop.f32.mrb[0].mxu0
  %5629 = vmatprep.mubr.f32.mxu0 0.0
  %v5630 = vand.u32 %v4533, 4294901760
  %v5631 = vsub.f32 %v4533, %v5630
  %v5632 = vand.u32 %v5631, 4294901760
  %v5633 = vsub.f32 %v5631, %v5632
  %v5634 = vand.u32 %v5633, 4294901760
  %5635 = vmatmul.mubr.f32.gmra.mrb[0].mxu0 %v5634
  %v5636 = vpop.f32.mrb[0].mxu0
  %v5637 = vadd.f32 0.0, %v5636
  %v5638 = vpop.f32.mrb[0].mxu0
  %5639 = vmatprep.mubr.f32.mxu0 0.0
  %v5640 = vand.u32 %v4534, 4294901760
  %v5641 = vsub.f32 %v4534, %v5640
  %v5642 = vand.u32 %v5641, 4294901760
  %v5643 = vsub.f32 %v5641, %v5642
  %v5644 = vand.u32 %v5643, 4294901760
  %5645 = vmatmul.mubr.f32.gmra.mrb[0].mxu0 %v5644
  %v5646 = vpop.f32.mrb[0].mxu0
  %v5647 = vadd.f32 0.0, %v5646
  %v5648 = vpop.f32.mrb[0].mxu0
  %5649 = vmatprep.mubr.f32.mxu0 0.0
  %v5650 = vand.u32 %v4535, 4294901760
  %v5651 = vsub.f32 %v4535, %v5650
  %v5652 = vand.u32 %v5651, 4294901760
  %v5653 = vsub.f32 %v5651, %v5652
  %v5654 = vand.u32 %v5653, 4294901760
  %5655 = vmatmul.mubr.f32.gmra.mrb[0].mxu0 %v5654
  %v5656 = vpop.f32.mrb[0].mxu0
  %v5657 = vadd.f32 0.0, %v5656
  %v5658 = vpop.f32.mrb[0].mxu0
  %5659 = vmatprep.mubr.f32.mxu0 0.0
  %v5660 = vand.u32 %v4536, 4294901760
  %v5661 = vsub.f32 %v4536, %v5660
  %v5662 = vand.u32 %v5661, 4294901760
  %v5663 = vsub.f32 %v5661, %v5662
  %v5664 = vand.u32 %v5663, 4294901760
  %5665 = vmatmul.mubr.f32.gmra.mrb[0].mxu0 %v5664
  %v5666 = vpop.f32.mrb[0].mxu0
  %v5667 = vadd.f32 0.0, %v5666
  %v5668 = vpop.f32.mrb[0].mxu0
  %5669 = vmatprep.mubr.f32.mxu0 0.0
  %v5670 = vand.u32 %v4537, 4294901760
  %v5671 = vsub.f32 %v4537, %v5670
  %v5672 = vand.u32 %v5671, 4294901760
  %v5673 = vsub.f32 %v5671, %v5672
  %v5674 = vand.u32 %v5673, 4294901760
  %5675 = vmatmul.mubr.f32.gmra.mrb[0].mxu0 %v5674
  %v5676 = vpop.f32.mrb[0].mxu0
  %v5677 = vadd.f32 0.0, %v5676
  %v5678 = vpop.f32.mrb[0].mxu0
  %5679 = vmatprep.mubr.f32.mxu0 0.0
  %v5680 = vand.u32 %v4538, 4294901760
  %v5681 = vsub.f32 %v4538, %v5680
  %v5682 = vand.u32 %v5681, 4294901760
  %v5683 = vsub.f32 %v5681, %v5682
  %v5684 = vand.u32 %v5683, 4294901760
  %5685 = vmatmul.mubr.f32.gmra.mrb[0].mxu0 %v5684
  %v5686 = vpop.f32.mrb[0].mxu0
  %v5687 = vadd.f32 0.0, %v5686
  %v5688 = vpop.f32.mrb[0].mxu0
  %5689 = vmatprep.mubr.f32.mxu0 0.0
  %v5690 = vand.u32 %v4539, 4294901760
  %v5691 = vsub.f32 %v4539, %v5690
  %v5692 = vand.u32 %v5691, 4294901760
  %v5693 = vsub.f32 %v5691, %v5692
  %v5694 = vand.u32 %v5693, 4294901760
  %5695 = vmatmul.mubr.f32.gmra.mrb[0].mxu0 %v5694
  %v5696 = vpop.f32.mrb[0].mxu0
  %v5697 = vadd.f32 0.0, %v5696
  %v5698 = vpop.f32.mrb[0].mxu0
  %5699 = vmatprep.mubr.f32.mxu0 0.0
  %v5700 = vand.u32 %v4540, 4294901760
  %v5701 = vsub.f32 %v4540, %v5700
  %v5702 = vand.u32 %v5701, 4294901760
  %v5703 = vsub.f32 %v5701, %v5702
  %v5704 = vand.u32 %v5703, 4294901760
  %5705 = vmatmul.mubr.f32.gmra.mrb[0].mxu0 %v5704
  %v5706 = vpop.f32.mrb[0].mxu0
  %v5707 = vadd.f32 0.0, %v5706
  %v5708 = vpop.f32.mrb[0].mxu0
  %5709 = vmatprep.mubr.f32.mxu0 0.0
  %v5710 = vand.u32 %v4541, 4294901760
  %v5711 = vsub.f32 %v4541, %v5710
  %v5712 = vand.u32 %v5711, 4294901760
  %v5713 = vsub.f32 %v5711, %v5712
  %v5714 = vand.u32 %v5713, 4294901760
  %5715 = vmatmul.mubr.f32.gmra.mrb[0].mxu0 %v5714
  %v5716 = vpop.f32.mrb[0].mxu0
  %v5717 = vadd.f32 0.0, %v5716
  %v5718 = vpop.f32.mrb[0].mxu0
  %5719 = vmatprep.mubr.f32.mxu0 0.0
  %v5720 = vand.u32 %v4542, 4294901760
  %v5721 = vsub.f32 %v4542, %v5720
  %v5722 = vand.u32 %v5721, 4294901760
  %v5723 = vsub.f32 %v5721, %v5722
  %v5724 = vand.u32 %v5723, 4294901760
  %5725 = vmatmul.mubr.f32.gmra.mrb[0].mxu0 %v5724
  %v5726 = vpop.f32.mrb[0].mxu0
  %v5727 = vadd.f32 0.0, %v5726
  %v5728 = vpop.f32.mrb[0].mxu0
  %5729 = vmatprep.mubr.f32.mxu0 0.0
  %v5730 = vand.u32 %v4543, 4294901760
  %v5731 = vsub.f32 %v4543, %v5730
  %v5732 = vand.u32 %v5731, 4294901760
  %v5733 = vsub.f32 %v5731, %v5732
  %v5734 = vand.u32 %v5733, 4294901760
  %5735 = vmatmul.mubr.f32.gmra.mrb[0].mxu0 %v5734
  %v5736 = vpop.f32.mrb[0].mxu0
  %v5737 = vadd.f32 0.0, %v5736
  %v5738 = vpop.f32.mrb[0].mxu0
  %5739 = vmatprep.mubr.f32.mxu0 0.0
  %v5740 = vand.u32 %v4544, 4294901760
  %v5741 = vsub.f32 %v4544, %v5740
  %v5742 = vand.u32 %v5741, 4294901760
  %v5743 = vsub.f32 %v5741, %v5742
  %v5744 = vand.u32 %v5743, 4294901760
  %5745 = vmatmul.mubr.f32.gmra.mrb[0].mxu0 %v5744
  %v5746 = vpop.f32.mrb[0].mxu0
  %v5747 = vadd.f32 0.0, %v5746
  %v5748 = vpop.f32.mrb[0].mxu0
  %5749 = vmatprep.mubr.f32.mxu0 0.0
  %v5750 = vand.u32 %v4545, 4294901760
  %v5751 = vsub.f32 %v4545, %v5750
  %v5752 = vand.u32 %v5751, 4294901760
  %v5753 = vsub.f32 %v5751, %v5752
  %v5754 = vand.u32 %v5753, 4294901760
  %5755 = vmatmul.mubr.f32.gmra.mrb[0].mxu0 %v5754
  %v5756 = vpop.f32.mrb[0].mxu0
  %v5757 = vadd.f32 0.0, %v5756
  %v5758 = vpop.f32.mrb[0].mxu0
  %5759 = vmatprep.mubr.f32.mxu0 0.0
  %v5760 = vand.u32 %v4546, 4294901760
  %v5761 = vsub.f32 %v4546, %v5760
  %v5762 = vand.u32 %v5761, 4294901760
  %v5763 = vsub.f32 %v5761, %v5762
  %v5764 = vand.u32 %v5763, 4294901760
  %5765 = vmatmul.mubr.f32.gmra.mrb[0].mxu0 %v5764
  %v5766 = vpop.f32.mrb[0].mxu0
  %v5767 = vadd.f32 0.0, %v5766
  %v5768 = vpop.f32.mrb[0].mxu0
  %5769 = vmatprep.mubr.f32.mxu0 0.0
  %v5770 = vand.u32 %v4547, 4294901760
  %v5771 = vsub.f32 %v4547, %v5770
  %v5772 = vand.u32 %v5771, 4294901760
  %v5773 = vsub.f32 %v5771, %v5772
  %v5774 = vand.u32 %v5773, 4294901760
  %5775 = vmatmul.mubr.f32.gmra.mrb[0].mxu0 %v5774
  %v5776 = vpop.f32.mrb[0].mxu0
  %v5777 = vadd.f32 0.0, %v5776
  %v5778 = vpop.f32.mrb[0].mxu0
  %5779 = vmatprep.mubr.f32.mxu0 0.0
  %v5780 = vand.u32 %v4548, 4294901760
  %v5781 = vsub.f32 %v4548, %v5780
  %v5782 = vand.u32 %v5781, 4294901760
  %v5783 = vsub.f32 %v5781, %v5782
  %v5784 = vand.u32 %v5783, 4294901760
  %5785 = vmatmul.mubr.f32.gmra.mrb[0].mxu0 %v5784
  %v5786 = vpop.f32.mrb[0].mxu0
  %v5787 = vadd.f32 0.0, %v5786
  %v5788 = vpop.f32.mrb[0].mxu0
  %5789 = vmatprep.mubr.f32.mxu0 0.0
  %v5790 = vand.u32 %v4549, 4294901760
  %v5791 = vsub.f32 %v4549, %v5790
  %v5792 = vand.u32 %v5791, 4294901760
  %v5793 = vsub.f32 %v5791, %v5792
  %v5794 = vand.u32 %v5793, 4294901760
  %5795 = vmatmul.mubr.f32.gmra.mrb[0].mxu0 %v5794
  %v5796 = vpop.f32.mrb[0].mxu0
  %v5797 = vadd.f32 0.0, %v5796
  %v5798 = vpop.f32.mrb[0].mxu0
  %5799 = vmatprep.mubr.f32.mxu0 0.0
  %v5800 = vand.u32 %v4550, 4294901760
  %v5801 = vsub.f32 %v4550, %v5800
  %v5802 = vand.u32 %v5801, 4294901760
  %v5803 = vsub.f32 %v5801, %v5802
  %v5804 = vand.u32 %v5803, 4294901760
  %5805 = vmatmul.mubr.f32.gmra.mrb[0].mxu0 %v5804
  %v5806 = vpop.f32.mrb[0].mxu0
  %v5807 = vadd.f32 0.0, %v5806
  %v5808 = vpop.f32.mrb[0].mxu0
  %5809 = vmatprep.mubr.f32.mxu0 0.0
  %v5810 = vand.u32 %v4551, 4294901760
  %v5811 = vsub.f32 %v4551, %v5810
  %v5812 = vand.u32 %v5811, 4294901760
  %v5813 = vsub.f32 %v5811, %v5812
  %v5814 = vand.u32 %v5813, 4294901760
  %5815 = vmatmul.mubr.f32.gmra.mrb[0].mxu0 %v5814
  %v5816 = vpop.f32.mrb[0].mxu0
  %v5817 = vadd.f32 0.0, %v5816
  %v5818 = vpop.f32.mrb[0].mxu0
  %5819 = vmatprep.mubr.f32.mxu0 0.0
  %v5820 = vand.u32 %v4552, 4294901760
  %v5821 = vsub.f32 %v4552, %v5820
  %v5822 = vand.u32 %v5821, 4294901760
  %v5823 = vsub.f32 %v5821, %v5822
  %v5824 = vand.u32 %v5823, 4294901760
  %5825 = vmatmul.mubr.f32.gmra.mrb[0].mxu0 %v5824
  %v5826 = vpop.f32.mrb[0].mxu0
  %v5827 = vadd.f32 0.0, %v5826
  %v5828 = vpop.f32.mrb[0].mxu0
  %5829 = vmatprep.mubr.f32.mxu0 0.0
  %v5830 = vand.u32 %v4553, 4294901760
  %v5831 = vsub.f32 %v4553, %v5830
  %v5832 = vand.u32 %v5831, 4294901760
  %v5833 = vsub.f32 %v5831, %v5832
  %v5834 = vand.u32 %v5833, 4294901760
  %5835 = vmatmul.mubr.f32.gmra.mrb[0].mxu0 %v5834
  %v5836 = vpop.f32.mrb[0].mxu0
  %v5837 = vadd.f32 0.0, %v5836
  %v5838 = vpop.f32.mrb[0].mxu0
  %5839 = vmatprep.mubr.f32.mxu0 0.0
  %v5840 = vand.u32 %v4554, 4294901760
  %v5841 = vsub.f32 %v4554, %v5840
  %v5842 = vand.u32 %v5841, 4294901760
  %v5843 = vsub.f32 %v5841, %v5842
  %v5844 = vand.u32 %v5843, 4294901760
  %5845 = vmatmul.mubr.f32.gmra.mrb[0].mxu0 %v5844
  %v5846 = vpop.f32.mrb[0].mxu0
  %v5847 = vadd.f32 0.0, %v5846
  %v5848 = vpop.f32.mrb[0].mxu0
  %5849 = vmatprep.mubr.f32.mxu0 0.0
  %v5850 = vand.u32 %v4555, 4294901760
  %v5851 = vsub.f32 %v4555, %v5850
  %v5852 = vand.u32 %v5851, 4294901760
  %v5853 = vsub.f32 %v5851, %v5852
  %v5854 = vand.u32 %v5853, 4294901760
  %5855 = vmatmul.mubr.f32.gmra.mrb[0].mxu0 %v5854
  %v5856 = vpop.f32.mrb[0].mxu0
  %v5857 = vadd.f32 0.0, %v5856
  %v5858 = vpop.f32.mrb[0].mxu0
  %5859 = vmatprep.mubr.f32.mxu0 0.0
  %v5860 = vand.u32 %v4556, 4294901760
  %v5861 = vsub.f32 %v4556, %v5860
  %v5862 = vand.u32 %v5861, 4294901760
  %v5863 = vsub.f32 %v5861, %v5862
  %v5864 = vand.u32 %v5863, 4294901760
  %5865 = vmatmul.mubr.f32.gmra.mrb[0].mxu0 %v5864
  %v5866 = vpop.f32.mrb[0].mxu0
  %v5867 = vadd.f32 0.0, %v5866
  %v5868 = vpop.f32.mrb[0].mxu0
  %5869 = vmatprep.mubr.f32.mxu0 0.0
  %v5870 = vand.u32 %v4557, 4294901760
  %v5871 = vsub.f32 %v4557, %v5870
  %v5872 = vand.u32 %v5871, 4294901760
  %v5873 = vsub.f32 %v5871, %v5872
  %v5874 = vand.u32 %v5873, 4294901760
  %5875 = vmatmul.mubr.f32.gmra.mrb[0].mxu0 %v5874
  %v5876 = vpop.f32.mrb[0].mxu0
  %v5877 = vadd.f32 0.0, %v5876
  %v5878 = vpop.f32.mrb[0].mxu0
  %5879 = vmatprep.mubr.f32.mxu0 0.0
  %v5880 = vand.u32 %v4558, 4294901760
  %v5881 = vsub.f32 %v4558, %v5880
  %v5882 = vand.u32 %v5881, 4294901760
  %v5883 = vsub.f32 %v5881, %v5882
  %v5884 = vand.u32 %v5883, 4294901760
  %5885 = vmatmul.mubr.f32.gmra.mrb[0].mxu0 %v5884
  %v5886 = vpop.f32.mrb[0].mxu0
  %v5887 = vadd.f32 0.0, %v5886
  %v5888 = vpop.f32.mrb[0].mxu0
  %5889 = vmatprep.mubr.f32.mxu0 0.0
  %v5890 = vand.u32 %v4559, 4294901760
  %v5891 = vsub.f32 %v4559, %v5890
  %v5892 = vand.u32 %v5891, 4294901760
  %v5893 = vsub.f32 %v5891, %v5892
  %v5894 = vand.u32 %v5893, 4294901760
  %5895 = vmatmul.mubr.f32.gmra.mrb[0].mxu0 %v5894
  %v5896 = vpop.f32.mrb[0].mxu0
  %v5897 = vadd.f32 0.0, %v5896
  %v5898 = vpop.f32.mrb[0].mxu0
  %5899 = vmatprep.mubr.f32.mxu0 0.0
  %v5900 = vand.u32 %v4560, 4294901760
  %v5901 = vsub.f32 %v4560, %v5900
  %v5902 = vand.u32 %v5901, 4294901760
  %v5903 = vsub.f32 %v5901, %v5902
  %v5904 = vand.u32 %v5903, 4294901760
  %5905 = vmatmul.mubr.f32.gmra.mrb[0].mxu0 %v5904
  %v5906 = vpop.f32.mrb[0].mxu0
  %v5907 = vadd.f32 0.0, %v5906
  %v5908 = vpop.f32.mrb[0].mxu0
  %5909 = vmatprep.mubr.f32.mxu0 0.0
  %v5910 = vand.u32 %v4561, 4294901760
  %v5911 = vsub.f32 %v4561, %v5910
  %v5912 = vand.u32 %v5911, 4294901760
  %v5913 = vsub.f32 %v5911, %v5912
  %v5914 = vand.u32 %v5913, 4294901760
  %5915 = vmatmul.mubr.f32.gmra.mrb[0].mxu0 %v5914
  %v5916 = vpop.f32.mrb[0].mxu0
  %v5917 = vadd.f32 0.0, %v5916
  %v5918 = vpop.f32.mrb[0].mxu0
  %5919 = vmatprep.mubr.f32.mxu0 0.0
  %v5920 = vand.u32 %v4562, 4294901760
  %v5921 = vsub.f32 %v4562, %v5920
  %v5922 = vand.u32 %v5921, 4294901760
  %v5923 = vsub.f32 %v5921, %v5922
  %v5924 = vand.u32 %v5923, 4294901760
  %5925 = vmatmul.mubr.f32.gmra.mrb[0].mxu0 %v5924
  %v5926 = vpop.f32.mrb[0].mxu0
  %v5927 = vadd.f32 0.0, %v5926
  %v5928 = vpop.f32.mrb[0].mxu0
  %5929 = vmatprep.mubr.f32.mxu0 0.0
  %v5930 = vand.u32 %v4563, 4294901760
  %v5931 = vsub.f32 %v4563, %v5930
  %v5932 = vand.u32 %v5931, 4294901760
  %v5933 = vsub.f32 %v5931, %v5932
  %v5934 = vand.u32 %v5933, 4294901760
  %5935 = vmatmul.mubr.f32.gmra.mrb[0].mxu0 %v5934
  %v5936 = vpop.f32.mrb[0].mxu0
  %v5937 = vadd.f32 0.0, %v5936
  %v5938 = vpop.f32.mrb[0].mxu0
  %5939 = vmatprep.mubr.f32.mxu0 0.0
  %v5940 = vand.u32 %v4564, 4294901760
  %v5941 = vsub.f32 %v4564, %v5940
  %v5942 = vand.u32 %v5941, 4294901760
  %v5943 = vsub.f32 %v5941, %v5942
  %v5944 = vand.u32 %v5943, 4294901760
  %5945 = vmatmul.mubr.f32.gmra.mrb[0].mxu0 %v5944
  %v5946 = vpop.f32.mrb[0].mxu0
  %v5947 = vadd.f32 0.0, %v5946
  %v5948 = vpop.f32.mrb[0].mxu0
  %5949 = vmatprep.mubr.f32.mxu0 0.0
  %v5950 = vand.u32 %v4565, 4294901760
  %v5951 = vsub.f32 %v4565, %v5950
  %v5952 = vand.u32 %v5951, 4294901760
  %v5953 = vsub.f32 %v5951, %v5952
  %v5954 = vand.u32 %v5953, 4294901760
  %5955 = vmatmul.mubr.f32.gmra.mrb[0].mxu0 %v5954
  %v5956 = vpop.f32.mrb[0].mxu0
  %v5957 = vadd.f32 0.0, %v5956
  %v5958 = vpop.f32.mrb[0].mxu0
  %5959 = vmatprep.mubr.f32.mxu0 0.0
  %v5960 = vand.u32 %v4566, 4294901760
  %v5961 = vsub.f32 %v4566, %v5960
  %v5962 = vand.u32 %v5961, 4294901760
  %v5963 = vsub.f32 %v5961, %v5962
  %v5964 = vand.u32 %v5963, 4294901760
  %5965 = vmatmul.mubr.f32.gmra.mrb[0].mxu0 %v5964
  %v5966 = vpop.f32.mrb[0].mxu0
  %v5967 = vadd.f32 0.0, %v5966
  %v5968 = vpop.f32.mrb[0].mxu0
  %5969 = vmatprep.mubr.f32.mxu0 0.0
  %v5970 = vand.u32 %v4567, 4294901760
  %v5971 = vsub.f32 %v4567, %v5970
  %v5972 = vand.u32 %v5971, 4294901760
  %v5973 = vsub.f32 %v5971, %v5972
  %v5974 = vand.u32 %v5973, 4294901760
  %5975 = vmatmul.mubr.f32.gmra.mrb[0].mxu0 %v5974
  %v5976 = vpop.f32.mrb[0].mxu0
  %v5977 = vadd.f32 0.0, %v5976
  %v5978 = vpop.f32.mrb[0].mxu0
  %5979 = vmatprep.mubr.f32.mxu0 0.0
  %v5980 = vand.u32 %v4568, 4294901760
  %v5981 = vsub.f32 %v4568, %v5980
  %v5982 = vand.u32 %v5981, 4294901760
  %v5983 = vsub.f32 %v5981, %v5982
  %v5984 = vand.u32 %v5983, 4294901760
  %5985 = vmatmul.mubr.f32.gmra.mrb[0].mxu0 %v5984
  %v5986 = vpop.f32.mrb[0].mxu0
  %v5987 = vadd.f32 0.0, %v5986
  %v5988 = vpop.f32.mrb[0].mxu0
  %5989 = vmatprep.mubr.f32.mxu0 0.0
  %v5990 = vand.u32 %v4569, 4294901760
  %v5991 = vsub.f32 %v4569, %v5990
  %v5992 = vand.u32 %v5991, 4294901760
  %v5993 = vsub.f32 %v5991, %v5992
  %v5994 = vand.u32 %v5993, 4294901760
  %5995 = vmatmul.mubr.f32.gmra.mrb[0].mxu0 %v5994
  %v5996 = vpop.f32.mrb[0].mxu0
  %v5997 = vadd.f32 0.0, %v5996
  %v5998 = vpop.f32.mrb[0].mxu0
  %5999 = vmatprep.mubr.f32.mxu0 0.0
  %v6000 = vand.u32 %v4570, 4294901760
  %v6001 = vsub.f32 %v4570, %v6000
  %v6002 = vand.u32 %v6001, 4294901760
  %v6003 = vsub.f32 %v6001, %v6002
  %v6004 = vand.u32 %v6003, 4294901760
  %6005 = vmatmul.mubr.f32.gmra.mrb[0].mxu0 %v6004
  %v6006 = vpop.f32.mrb[0].mxu0
  %v6007 = vadd.f32 0.0, %v6006
  %v6008 = vpop.f32.mrb[0].mxu0
  %6009 = vmatprep.mubr.f32.mxu0 0.0
  %v6010 = vand.u32 %v4571, 4294901760
  %v6011 = vsub.f32 %v4571, %v6010
  %v6012 = vand.u32 %v6011, 4294901760
  %v6013 = vsub.f32 %v6011, %v6012
  %v6014 = vand.u32 %v6013, 4294901760
  %6015 = vmatmul.mubr.f32.gmra.mrb[0].mxu0 %v6014
  %v6016 = vpop.f32.mrb[0].mxu0
  %v6017 = vadd.f32 0.0, %v6016
  %v6018 = vpop.f32.mrb[0].mxu0
  %6019 = vmatprep.mubr.f32.mxu0 0.0
  %v6020 = vand.u32 %v4572, 4294901760
  %v6021 = vsub.f32 %v4572, %v6020
  %v6022 = vand.u32 %v6021, 4294901760
  %v6023 = vsub.f32 %v6021, %v6022
  %v6024 = vand.u32 %v6023, 4294901760
  %6025 = vmatmul.mubr.f32.gmra.mrb[0].mxu0 %v6024
  %v6026 = vpop.f32.mrb[0].mxu0
  %v6027 = vadd.f32 0.0, %v6026
  %v6028 = vpop.f32.mrb[0].mxu0
  %6029 = vmatprep.mubr.f32.mxu0 0.0
  %v6030 = vand.u32 %v4573, 4294901760
  %v6031 = vsub.f32 %v4573, %v6030
  %v6032 = vand.u32 %v6031, 4294901760
  %v6033 = vsub.f32 %v6031, %v6032
  %v6034 = vand.u32 %v6033, 4294901760
  %6035 = vmatmul.mubr.f32.gmra.mrb[0].mxu0 %v6034
  %v6036 = vpop.f32.mrb[0].mxu0
  %v6037 = vadd.f32 0.0, %v6036
  %v6038 = vpop.f32.mrb[0].mxu0
  %6039 = vmatprep.mubr.f32.mxu0 0.0
  %v6040 = vand.u32 %v4574, 4294901760
  %v6041 = vsub.f32 %v4574, %v6040
  %v6042 = vand.u32 %v6041, 4294901760
  %v6043 = vsub.f32 %v6041, %v6042
  %v6044 = vand.u32 %v6043, 4294901760
  %6045 = vmatmul.mubr.f32.gmra.mrb[0].mxu0 %v6044
  %v6046 = vpop.f32.mrb[0].mxu0
  %v6047 = vadd.f32 0.0, %v6046
  %v6048 = vpop.f32.mrb[0].mxu0
  %6049 = vmatprep.mubr.f32.mxu0 0.0
  %v6050 = vand.u32 %v4575, 4294901760
  %v6051 = vsub.f32 %v4575, %v6050
  %v6052 = vand.u32 %v6051, 4294901760
  %v6053 = vsub.f32 %v6051, %v6052
  %v6054 = vand.u32 %v6053, 4294901760
  %6055 = vmatmul.mubr.f32.gmra.mrb[0].mxu0 %v6054
  %v6056 = vpop.f32.mrb[0].mxu0
  %v6057 = vadd.f32 0.0, %v6056
  %v6058 = vpop.f32.mrb[0].mxu0
  %6059 = vmatprep.mubr.f32.mxu0 0.0
  %v6060 = vand.u32 %v4576, 4294901760
  %v6061 = vsub.f32 %v4576, %v6060
  %v6062 = vand.u32 %v6061, 4294901760
  %v6063 = vsub.f32 %v6061, %v6062
  %v6064 = vand.u32 %v6063, 4294901760
  %6065 = vmatmul.mubr.f32.gmra.mrb[0].mxu0 %v6064
  %v6066 = vpop.f32.mrb[0].mxu0
  %v6067 = vadd.f32 0.0, %v6066
  %v6068 = vpop.f32.mrb[0].mxu0
  %6069 = vmatprep.mubr.f32.mxu0 0.0
  %v6070 = vand.u32 %v4577, 4294901760
  %v6071 = vsub.f32 %v4577, %v6070
  %v6072 = vand.u32 %v6071, 4294901760
  %v6073 = vsub.f32 %v6071, %v6072
  %v6074 = vand.u32 %v6073, 4294901760
  %6075 = vmatmul.mubr.f32.gmra.mrb[0].mxu0 %v6074
  %v6076 = vpop.f32.mrb[0].mxu0
  %v6077 = vadd.f32 0.0, %v6076
  %v6078 = vpop.f32.mrb[0].mxu0
  %6079 = vmatprep.mubr.f32.mxu0 0.0
  %v6080 = vand.u32 %v4578, 4294901760
  %v6081 = vsub.f32 %v4578, %v6080
  %v6082 = vand.u32 %v6081, 4294901760
  %v6083 = vsub.f32 %v6081, %v6082
  %v6084 = vand.u32 %v6083, 4294901760
  %6085 = vmatmul.mubr.f32.gmra.mrb[0].mxu0 %v6084
  %v6086 = vpop.f32.mrb[0].mxu0
  %v6087 = vadd.f32 0.0, %v6086
  %v6088 = vpop.f32.mrb[0].mxu0
  %6089 = vmatprep.mubr.f32.mxu0 0.0
  %v6090 = vand.u32 %v4579, 4294901760
  %v6091 = vsub.f32 %v4579, %v6090
  %v6092 = vand.u32 %v6091, 4294901760
  %v6093 = vsub.f32 %v6091, %v6092
  %v6094 = vand.u32 %v6093, 4294901760
  %6095 = vmatmul.mubr.f32.gmra.mrb[0].mxu0 %v6094
  %v6096 = vpop.f32.mrb[0].mxu0
  %v6097 = vadd.f32 0.0, %v6096
  %v6098 = vpop.f32.mrb[0].mxu0
  %6099 = vmatprep.mubr.f32.mxu0 0.0
  %v6100 = vand.u32 %v4580, 4294901760
  %v6101 = vsub.f32 %v4580, %v6100
  %v6102 = vand.u32 %v6101, 4294901760
  %v6103 = vsub.f32 %v6101, %v6102
  %v6104 = vand.u32 %v6103, 4294901760
  %6105 = vmatmul.mubr.f32.gmra.mrb[0].mxu0 %v6104
  %v6106 = vpop.f32.mrb[0].mxu0
  %v6107 = vadd.f32 0.0, %v6106
  %v6108 = vpop.f32.mrb[0].mxu0
  %6109 = vmatprep.mubr.f32.mxu0 0.0
  %v6110 = vand.u32 %v4581, 4294901760
  %v6111 = vsub.f32 %v4581, %v6110
  %v6112 = vand.u32 %v6111, 4294901760
  %v6113 = vsub.f32 %v6111, %v6112
  %v6114 = vand.u32 %v6113, 4294901760
  %6115 = vmatmul.mubr.f32.gmra.mrb[0].mxu0 %v6114
  %v6116 = vpop.f32.mrb[0].mxu0
  %v6117 = vadd.f32 0.0, %v6116
  %v6118 = vpop.f32.mrb[0].mxu0
  %6119 = vmatprep.mubr.f32.mxu0 0.0
  %v6120 = vand.u32 %v4582, 4294901760
  %v6121 = vsub.f32 %v4582, %v6120
  %v6122 = vand.u32 %v6121, 4294901760
  %v6123 = vsub.f32 %v6121, %v6122
  %v6124 = vand.u32 %v6123, 4294901760
  %6125 = vmatmul.mubr.f32.gmra.mrb[0].mxu0 %v6124
  %v6126 = vpop.f32.mrb[0].mxu0
  %v6127 = vadd.f32 0.0, %v6126
  %v6128 = vpop.f32.mrb[0].mxu0
  %6129 = vdwg.mxu0
  %6130 = vmatprep.subr.mxu0 0.0
  %v6131 = vand.u32 %v4583, 4294901760
  %v6132 = vsub.f32 %v4583, %v6131
  %v6133 = vand.u32 %v6132, 4294901760
  %v6134 = vsub.f32 %v6132, %v6133
  %v6135 = vand.u32 %v6134, 4294901760
  %6136 = vmatpush1.msra.mxu0 %v6135
  %6137 = vmatprep.subr.mxu0 0.0
  %v6138 = vand.u32 %v4584, 4294901760
  %v6139 = vsub.f32 %v4584, %v6138
  %v6140 = vand.u32 %v6139, 4294901760
  %v6141 = vsub.f32 %v6139, %v6140
  %v6142 = vand.u32 %v6141, 4294901760
  %6143 = vmatpush1.msra.mxu0 %v6142
  %6144 = vmatprep.subr.mxu0 0.0
  %v6145 = vand.u32 %v4585, 4294901760
  %v6146 = vsub.f32 %v4585, %v6145
  %v6147 = vand.u32 %v6146, 4294901760
  %v6148 = vsub.f32 %v6146, %v6147
  %v6149 = vand.u32 %v6148, 4294901760
  %6150 = vmatpush1.msra.mxu0 %v6149
  %6151 = vmatprep.subr.mxu0 0.0
  %v6152 = vand.u32 %v4586, 4294901760
  %v6153 = vsub.f32 %v4586, %v6152
  %v6154 = vand.u32 %v6153, 4294901760
  %v6155 = vsub.f32 %v6153, %v6154
  %v6156 = vand.u32 %v6155, 4294901760
  %6157 = vmatpush1.msra.mxu0 %v6156
  %6158 = vmatprep.subr.mxu0 0.0
  %v6159 = vand.u32 %v4587, 4294901760
  %v6160 = vsub.f32 %v4587, %v6159
  %v6161 = vand.u32 %v6160, 4294901760
  %v6162 = vsub.f32 %v6160, %v6161
  %v6163 = vand.u32 %v6162, 4294901760
  %6164 = vmatpush1.msra.mxu0 %v6163
  %6165 = vmatprep.subr.mxu0 0.0
  %v6166 = vand.u32 %v4588, 4294901760
  %v6167 = vsub.f32 %v4588, %v6166
  %v6168 = vand.u32 %v6167, 4294901760
  %v6169 = vsub.f32 %v6167, %v6168
  %v6170 = vand.u32 %v6169, 4294901760
  %6171 = vmatpush1.msra.mxu0 %v6170
  %6172 = vmatprep.subr.mxu0 0.0
  %v6173 = vand.u32 %v4589, 4294901760
  %v6174 = vsub.f32 %v4589, %v6173
  %v6175 = vand.u32 %v6174, 4294901760
  %v6176 = vsub.f32 %v6174, %v6175
  %v6177 = vand.u32 %v6176, 4294901760
  %6178 = vmatpush1.msra.mxu0 %v6177
  %6179 = vmatprep.subr.mxu0 0.0
  %v6180 = vand.u32 %v4590, 4294901760
  %v6181 = vsub.f32 %v4590, %v6180
  %v6182 = vand.u32 %v6181, 4294901760
  %v6183 = vsub.f32 %v6181, %v6182
  %v6184 = vand.u32 %v6183, 4294901760
  %6185 = vmatpush1.msra.mxu0 %v6184
  %6186 = vmatprep.subr.mxu0 0.0
  %v6187 = vand.u32 %v4591, 4294901760
  %v6188 = vsub.f32 %v4591, %v6187
  %v6189 = vand.u32 %v6188, 4294901760
  %v6190 = vsub.f32 %v6188, %v6189
  %v6191 = vand.u32 %v6190, 4294901760
  %6192 = vmatpush1.msra.mxu0 %v6191
  %6193 = vmatprep.subr.mxu0 0.0
  %v6194 = vand.u32 %v4592, 4294901760
  %v6195 = vsub.f32 %v4592, %v6194
  %v6196 = vand.u32 %v6195, 4294901760
  %v6197 = vsub.f32 %v6195, %v6196
  %v6198 = vand.u32 %v6197, 4294901760
  %6199 = vmatpush1.msra.mxu0 %v6198
  %6200 = vmatprep.subr.mxu0 0.0
  %v6201 = vand.u32 %v4593, 4294901760
  %v6202 = vsub.f32 %v4593, %v6201
  %v6203 = vand.u32 %v6202, 4294901760
  %v6204 = vsub.f32 %v6202, %v6203
  %v6205 = vand.u32 %v6204, 4294901760
  %6206 = vmatpush1.msra.mxu0 %v6205
  %6207 = vmatprep.subr.mxu0 0.0
  %v6208 = vand.u32 %v4594, 4294901760
  %v6209 = vsub.f32 %v4594, %v6208
  %v6210 = vand.u32 %v6209, 4294901760
  %v6211 = vsub.f32 %v6209, %v6210
  %v6212 = vand.u32 %v6211, 4294901760
  %6213 = vmatpush1.msra.mxu0 %v6212
  %6214 = vmatprep.subr.mxu0 0.0
  %v6215 = vand.u32 %v4595, 4294901760
  %v6216 = vsub.f32 %v4595, %v6215
  %v6217 = vand.u32 %v6216, 4294901760
  %v6218 = vsub.f32 %v6216, %v6217
  %v6219 = vand.u32 %v6218, 4294901760
  %6220 = vmatpush1.msra.mxu0 %v6219
  %6221 = vmatprep.subr.mxu0 0.0
  %v6222 = vand.u32 %v4596, 4294901760
  %v6223 = vsub.f32 %v4596, %v6222
  %v6224 = vand.u32 %v6223, 4294901760
  %v6225 = vsub.f32 %v6223, %v6224
  %v6226 = vand.u32 %v6225, 4294901760
  %6227 = vmatpush1.msra.mxu0 %v6226
  %6228 = vmatprep.subr.mxu0 0.0
  %v6229 = vand.u32 %v4597, 4294901760
  %v6230 = vsub.f32 %v4597, %v6229
  %v6231 = vand.u32 %v6230, 4294901760
  %v6232 = vsub.f32 %v6230, %v6231
  %v6233 = vand.u32 %v6232, 4294901760
  %6234 = vmatpush1.msra.mxu0 %v6233
  %6235 = vmatprep.subr.mxu0 0.0
  %v6236 = vand.u32 %v4598, 4294901760
  %v6237 = vsub.f32 %v4598, %v6236
  %v6238 = vand.u32 %v6237, 4294901760
  %v6239 = vsub.f32 %v6237, %v6238
  %v6240 = vand.u32 %v6239, 4294901760
  %6241 = vmatpush1.msra.mxu0 %v6240
  %6242 = vmatprep.subr.mxu0 0.0
  %6243 = vmatpush1.msra.mxu0 0.0
  %6244 = vmatprep.subr.mxu0 0.0
  %6245 = vmatpush1.msra.mxu0 0.0
  %6246 = vmatprep.subr.mxu0 0.0
  %6247 = vmatpush1.msra.mxu0 0.0
  %6248 = vmatprep.subr.mxu0 0.0
  %6249 = vmatpush1.msra.mxu0 0.0
  %6250 = vmatprep.subr.mxu0 0.0
  %6251 = vmatpush1.msra.mxu0 0.0
  %6252 = vmatprep.subr.mxu0 0.0
  %6253 = vmatpush1.msra.mxu0 0.0
  %6254 = vmatprep.subr.mxu0 0.0
  %6255 = vmatpush1.msra.mxu0 0.0
  %6256 = vmatprep.subr.mxu0 0.0
  %6257 = vmatpush1.msra.mxu0 0.0
  %6258 = vmatprep.subr.mxu0 0.0
  %6259 = vmatpush1.msra.mxu0 0.0
  %6260 = vmatprep.subr.mxu0 0.0
  %6261 = vmatpush1.msra.mxu0 0.0
  %6262 = vmatprep.subr.mxu0 0.0
  %6263 = vmatpush1.msra.mxu0 0.0
  %6264 = vmatprep.subr.mxu0 0.0
  %6265 = vmatpush1.msra.mxu0 0.0
  %6266 = vmatprep.subr.mxu0 0.0
  %6267 = vmatpush1.msra.mxu0 0.0
  %6268 = vmatprep.subr.mxu0 0.0
  %6269 = vmatpush1.msra.mxu0 0.0
  %6270 = vmatprep.subr.mxu0 0.0
  %6271 = vmatpush1.msra.mxu0 0.0
  %6272 = vmatprep.subr.mxu0 0.0
  %6273 = vmatpush1.msra.mxu0 0.0
  %6274 = vmatprep.mubr.f32.mxu0 0.0
  %v6275 = vand.u32 %v4438, 4294901760
  %6276 = vmatmul.mubr.f32.gmra.mrb[0].mxu0 %v6275
  %v6277 = vpop.f32.mrb[0].mxu0
  %v6278 = vadd.f32 %v4687, %v6277
  %v6279 = vpop.f32.mrb[0].mxu0
  %6280 = vmatprep.mubr.f32.mxu0 0.0
  %v6281 = vand.u32 %v4439, 4294901760
  %6282 = vmatmul.mubr.f32.gmra.mrb[0].mxu0 %v6281
  %v6283 = vpop.f32.mrb[0].mxu0
  %v6284 = vadd.f32 %v4697, %v6283
  %v6285 = vpop.f32.mrb[0].mxu0
  %6286 = vmatprep.mubr.f32.mxu0 0.0
  %v6287 = vand.u32 %v4440, 4294901760
  %6288 = vmatmul.mubr.f32.gmra.mrb[0].mxu0 %v6287
  %v6289 = vpop.f32.mrb[0].mxu0
  %v6290 = vadd.f32 %v4707, %v6289
  %v6291 = vpop.f32.mrb[0].mxu0
  %6292 = vmatprep.mubr.f32.mxu0 0.0
  %v6293 = vand.u32 %v4441, 4294901760
  %6294 = vmatmul.mubr.f32.gmra.mrb[0].mxu0 %v6293
  %v6295 = vpop.f32.mrb[0].mxu0
  %v6296 = vadd.f32 %v4717, %v6295
  %v6297 = vpop.f32.mrb[0].mxu0
  %6298 = vmatprep.mubr.f32.mxu0 0.0
  %v6299 = vand.u32 %v4442, 4294901760
  %6300 = vmatmul.mubr.f32.gmra.mrb[0].mxu0 %v6299
  %v6301 = vpop.f32.mrb[0].mxu0
  %v6302 = vadd.f32 %v4727, %v6301
  %v6303 = vpop.f32.mrb[0].mxu0
  %6304 = vmatprep.mubr.f32.mxu0 0.0
  %v6305 = vand.u32 %v4443, 4294901760
  %6306 = vmatmul.mubr.f32.gmra.mrb[0].mxu0 %v6305
  %v6307 = vpop.f32.mrb[0].mxu0
  %v6308 = vadd.f32 %v4737, %v6307
  %v6309 = vpop.f32.mrb[0].mxu0
  %6310 = vmatprep.mubr.f32.mxu0 0.0
  %v6311 = vand.u32 %v4444, 4294901760
  %6312 = vmatmul.mubr.f32.gmra.mrb[0].mxu0 %v6311
  %v6313 = vpop.f32.mrb[0].mxu0
  %v6314 = vadd.f32 %v4747, %v6313
  %v6315 = vpop.f32.mrb[0].mxu0
  %6316 = vmatprep.mubr.f32.mxu0 0.0
  %v6317 = vand.u32 %v4445, 4294901760
  %6318 = vmatmul.mubr.f32.gmra.mrb[0].mxu0 %v6317
  %v6319 = vpop.f32.mrb[0].mxu0
  %v6320 = vadd.f32 %v4757, %v6319
  %v6321 = vpop.f32.mrb[0].mxu0
  %6322 = vmatprep.mubr.f32.mxu0 0.0
  %v6323 = vand.u32 %v4446, 4294901760
  %6324 = vmatmul.mubr.f32.gmra.mrb[0].mxu0 %v6323
  %v6325 = vpop.f32.mrb[0].mxu0
  %v6326 = vadd.f32 %v4767, %v6325
  %v6327 = vpop.f32.mrb[0].mxu0
  %6328 = vmatprep.mubr.f32.mxu0 0.0
  %v6329 = vand.u32 %v4447, 4294901760
  %6330 = vmatmul.mubr.f32.gmra.mrb[0].mxu0 %v6329
  %v6331 = vpop.f32.mrb[0].mxu0
  %v6332 = vadd.f32 %v4777, %v6331
  %v6333 = vpop.f32.mrb[0].mxu0
  %6334 = vmatprep.mubr.f32.mxu0 0.0
  %v6335 = vand.u32 %v4448, 4294901760
  %6336 = vmatmul.mubr.f32.gmra.mrb[0].mxu0 %v6335
  %v6337 = vpop.f32.mrb[0].mxu0
  %v6338 = vadd.f32 %v4787, %v6337
  %v6339 = vpop.f32.mrb[0].mxu0
  %6340 = vmatprep.mubr.f32.mxu0 0.0
  %v6341 = vand.u32 %v4449, 4294901760
  %6342 = vmatmul.mubr.f32.gmra.mrb[0].mxu0 %v6341
  %v6343 = vpop.f32.mrb[0].mxu0
  %v6344 = vadd.f32 %v4797, %v6343
  %v6345 = vpop.f32.mrb[0].mxu0
  %6346 = vmatprep.mubr.f32.mxu0 0.0
  %v6347 = vand.u32 %v4450, 4294901760
  %6348 = vmatmul.mubr.f32.gmra.mrb[0].mxu0 %v6347
  %v6349 = vpop.f32.mrb[0].mxu0
  %v6350 = vadd.f32 %v4807, %v6349
  %v6351 = vpop.f32.mrb[0].mxu0
  %6352 = vmatprep.mubr.f32.mxu0 0.0
  %v6353 = vand.u32 %v4451, 4294901760
  %6354 = vmatmul.mubr.f32.gmra.mrb[0].mxu0 %v6353
  %v6355 = vpop.f32.mrb[0].mxu0
  %v6356 = vadd.f32 %v4817, %v6355
  %v6357 = vpop.f32.mrb[0].mxu0
  %6358 = vmatprep.mubr.f32.mxu0 0.0
  %v6359 = vand.u32 %v4452, 4294901760
  %6360 = vmatmul.mubr.f32.gmra.mrb[0].mxu0 %v6359
  %v6361 = vpop.f32.mrb[0].mxu0
  %v6362 = vadd.f32 %v4827, %v6361
  %v6363 = vpop.f32.mrb[0].mxu0
  %6364 = vmatprep.mubr.f32.mxu0 0.0
  %v6365 = vand.u32 %v4453, 4294901760
  %6366 = vmatmul.mubr.f32.gmra.mrb[0].mxu0 %v6365
  %v6367 = vpop.f32.mrb[0].mxu0
  %v6368 = vadd.f32 %v4837, %v6367
  %v6369 = vpop.f32.mrb[0].mxu0
  %6370 = vmatprep.mubr.f32.mxu0 0.0
  %v6371 = vand.u32 %v4454, 4294901760
  %6372 = vmatmul.mubr.f32.gmra.mrb[0].mxu0 %v6371
  %v6373 = vpop.f32.mrb[0].mxu0
  %v6374 = vadd.f32 %v4847, %v6373
  %v6375 = vpop.f32.mrb[0].mxu0
  %6376 = vmatprep.mubr.f32.mxu0 0.0
  %v6377 = vand.u32 %v4455, 4294901760
  %6378 = vmatmul.mubr.f32.gmra.mrb[0].mxu0 %v6377
  %v6379 = vpop.f32.mrb[0].mxu0
  %v6380 = vadd.f32 %v4857, %v6379
  %v6381 = vpop.f32.mrb[0].mxu0
  %6382 = vmatprep.mubr.f32.mxu0 0.0
  %v6383 = vand.u32 %v4456, 4294901760
  %6384 = vmatmul.mubr.f32.gmra.mrb[0].mxu0 %v6383
  %v6385 = vpop.f32.mrb[0].mxu0
  %v6386 = vadd.f32 %v4867, %v6385
  %v6387 = vpop.f32.mrb[0].mxu0
  %6388 = vmatprep.mubr.f32.mxu0 0.0
  %v6389 = vand.u32 %v4457, 4294901760
  %6390 = vmatmul.mubr.f32.gmra.mrb[0].mxu0 %v6389
  %v6391 = vpop.f32.mrb[0].mxu0
  %v6392 = vadd.f32 %v4877, %v6391
  %v6393 = vpop.f32.mrb[0].mxu0
  %6394 = vmatprep.mubr.f32.mxu0 0.0
  %v6395 = vand.u32 %v4458, 4294901760
  %6396 = vmatmul.mubr.f32.gmra.mrb[0].mxu0 %v6395
  %v6397 = vpop.f32.mrb[0].mxu0
  %v6398 = vadd.f32 %v4887, %v6397
  %v6399 = vpop.f32.mrb[0].mxu0
  %6400 = vmatprep.mubr.f32.mxu0 0.0
  %v6401 = vand.u32 %v4459, 4294901760
  %6402 = vmatmul.mubr.f32.gmra.mrb[0].mxu0 %v6401
  %v6403 = vpop.f32.mrb[0].mxu0
  %v6404 = vadd.f32 %v4897, %v6403
  %v6405 = vpop.f32.mrb[0].mxu0
  %6406 = vmatprep.mubr.f32.mxu0 0.0
  %v6407 = vand.u32 %v4460, 4294901760
  %6408 = vmatmul.mubr.f32.gmra.mrb[0].mxu0 %v6407
  %v6409 = vpop.f32.mrb[0].mxu0
  %v6410 = vadd.f32 %v4907, %v6409
  %v6411 = vpop.f32.mrb[0].mxu0
  %6412 = vmatprep.mubr.f32.mxu0 0.0
  %v6413 = vand.u32 %v4461, 4294901760
  %6414 = vmatmul.mubr.f32.gmra.mrb[0].mxu0 %v6413
  %v6415 = vpop.f32.mrb[0].mxu0
  %v6416 = vadd.f32 %v4917, %v6415
  %v6417 = vpop.f32.mrb[0].mxu0
  %6418 = vmatprep.mubr.f32.mxu0 0.0
  %v6419 = vand.u32 %v4462, 4294901760
  %6420 = vmatmul.mubr.f32.gmra.mrb[0].mxu0 %v6419
  %v6421 = vpop.f32.mrb[0].mxu0
  %v6422 = vadd.f32 %v4927, %v6421
  %v6423 = vpop.f32.mrb[0].mxu0
  %6424 = vmatprep.mubr.f32.mxu0 0.0
  %v6425 = vand.u32 %v4463, 4294901760
  %6426 = vmatmul.mubr.f32.gmra.mrb[0].mxu0 %v6425
  %v6427 = vpop.f32.mrb[0].mxu0
  %v6428 = vadd.f32 %v4937, %v6427
  %v6429 = vpop.f32.mrb[0].mxu0
  %6430 = vmatprep.mubr.f32.mxu0 0.0
  %v6431 = vand.u32 %v4464, 4294901760
  %6432 = vmatmul.mubr.f32.gmra.mrb[0].mxu0 %v6431
  %v6433 = vpop.f32.mrb[0].mxu0
  %v6434 = vadd.f32 %v4947, %v6433
  %v6435 = vpop.f32.mrb[0].mxu0
  %6436 = vmatprep.mubr.f32.mxu0 0.0
  %v6437 = vand.u32 %v4465, 4294901760
  %6438 = vmatmul.mubr.f32.gmra.mrb[0].mxu0 %v6437
  %v6439 = vpop.f32.mrb[0].mxu0
  %v6440 = vadd.f32 %v4957, %v6439
  %v6441 = vpop.f32.mrb[0].mxu0
  %6442 = vmatprep.mubr.f32.mxu0 0.0
  %v6443 = vand.u32 %v4466, 4294901760
  %6444 = vmatmul.mubr.f32.gmra.mrb[0].mxu0 %v6443
  %v6445 = vpop.f32.mrb[0].mxu0
  %v6446 = vadd.f32 %v4967, %v6445
  %v6447 = vpop.f32.mrb[0].mxu0
  %6448 = vmatprep.mubr.f32.mxu0 0.0
  %v6449 = vand.u32 %v4467, 4294901760
  %6450 = vmatmul.mubr.f32.gmra.mrb[0].mxu0 %v6449
  %v6451 = vpop.f32.mrb[0].mxu0
  %v6452 = vadd.f32 %v4977, %v6451
  %v6453 = vpop.f32.mrb[0].mxu0
  %6454 = vmatprep.mubr.f32.mxu0 0.0
  %v6455 = vand.u32 %v4468, 4294901760
  %6456 = vmatmul.mubr.f32.gmra.mrb[0].mxu0 %v6455
  %v6457 = vpop.f32.mrb[0].mxu0
  %v6458 = vadd.f32 %v4987, %v6457
  %v6459 = vpop.f32.mrb[0].mxu0
  %6460 = vmatprep.mubr.f32.mxu0 0.0
  %v6461 = vand.u32 %v4469, 4294901760
  %6462 = vmatmul.mubr.f32.gmra.mrb[0].mxu0 %v6461
  %v6463 = vpop.f32.mrb[0].mxu0
  %v6464 = vadd.f32 %v4997, %v6463
  %v6465 = vpop.f32.mrb[0].mxu0
  %6466 = vmatprep.mubr.f32.mxu0 0.0
  %v6467 = vand.u32 %v4470, 4294901760
  %6468 = vmatmul.mubr.f32.gmra.mrb[0].mxu0 %v6467
  %v6469 = vpop.f32.mrb[0].mxu0
  %v6470 = vadd.f32 %v5007, %v6469
  %v6471 = vpop.f32.mrb[0].mxu0
  %6472 = vmatprep.mubr.f32.mxu0 0.0
  %v6473 = vand.u32 %v4471, 4294901760
  %6474 = vmatmul.mubr.f32.gmra.mrb[0].mxu0 %v6473
  %v6475 = vpop.f32.mrb[0].mxu0
  %v6476 = vadd.f32 %v5017, %v6475
  %v6477 = vpop.f32.mrb[0].mxu0
  %6478 = vmatprep.mubr.f32.mxu0 0.0
  %v6479 = vand.u32 %v4472, 4294901760
  %6480 = vmatmul.mubr.f32.gmra.mrb[0].mxu0 %v6479
  %v6481 = vpop.f32.mrb[0].mxu0
  %v6482 = vadd.f32 %v5027, %v6481
  %v6483 = vpop.f32.mrb[0].mxu0
  %6484 = vmatprep.mubr.f32.mxu0 0.0
  %v6485 = vand.u32 %v4473, 4294901760
  %6486 = vmatmul.mubr.f32.gmra.mrb[0].mxu0 %v6485
  %v6487 = vpop.f32.mrb[0].mxu0
  %v6488 = vadd.f32 %v5037, %v6487
  %v6489 = vpop.f32.mrb[0].mxu0
  %6490 = vmatprep.mubr.f32.mxu0 0.0
  %v6491 = vand.u32 %v4474, 4294901760
  %6492 = vmatmul.mubr.f32.gmra.mrb[0].mxu0 %v6491
  %v6493 = vpop.f32.mrb[0].mxu0
  %v6494 = vadd.f32 %v5047, %v6493
  %v6495 = vpop.f32.mrb[0].mxu0
  %6496 = vmatprep.mubr.f32.mxu0 0.0
  %v6497 = vand.u32 %v4475, 4294901760
  %6498 = vmatmul.mubr.f32.gmra.mrb[0].mxu0 %v6497
  %v6499 = vpop.f32.mrb[0].mxu0
  %v6500 = vadd.f32 %v5057, %v6499
  %v6501 = vpop.f32.mrb[0].mxu0
  %6502 = vmatprep.mubr.f32.mxu0 0.0
  %v6503 = vand.u32 %v4476, 4294901760
  %6504 = vmatmul.mubr.f32.gmra.mrb[0].mxu0 %v6503
  %v6505 = vpop.f32.mrb[0].mxu0
  %v6506 = vadd.f32 %v5067, %v6505
  %v6507 = vpop.f32.mrb[0].mxu0
  %6508 = vmatprep.mubr.f32.mxu0 0.0
  %v6509 = vand.u32 %v4477, 4294901760
  %6510 = vmatmul.mubr.f32.gmra.mrb[0].mxu0 %v6509
  %v6511 = vpop.f32.mrb[0].mxu0
  %v6512 = vadd.f32 %v5077, %v6511
  %v6513 = vpop.f32.mrb[0].mxu0
  %6514 = vmatprep.mubr.f32.mxu0 0.0
  %v6515 = vand.u32 %v4478, 4294901760
  %6516 = vmatmul.mubr.f32.gmra.mrb[0].mxu0 %v6515
  %v6517 = vpop.f32.mrb[0].mxu0
  %v6518 = vadd.f32 %v5087, %v6517
  %v6519 = vpop.f32.mrb[0].mxu0
  %6520 = vmatprep.mubr.f32.mxu0 0.0
  %v6521 = vand.u32 %v4479, 4294901760
  %6522 = vmatmul.mubr.f32.gmra.mrb[0].mxu0 %v6521
  %v6523 = vpop.f32.mrb[0].mxu0
  %v6524 = vadd.f32 %v5097, %v6523
  %v6525 = vpop.f32.mrb[0].mxu0
  %6526 = vmatprep.mubr.f32.mxu0 0.0
  %v6527 = vand.u32 %v4480, 4294901760
  %6528 = vmatmul.mubr.f32.gmra.mrb[0].mxu0 %v6527
  %v6529 = vpop.f32.mrb[0].mxu0
  %v6530 = vadd.f32 %v5107, %v6529
  %v6531 = vpop.f32.mrb[0].mxu0
  %6532 = vmatprep.mubr.f32.mxu0 0.0
  %v6533 = vand.u32 %v4481, 4294901760
  %6534 = vmatmul.mubr.f32.gmra.mrb[0].mxu0 %v6533
  %v6535 = vpop.f32.mrb[0].mxu0
  %v6536 = vadd.f32 %v5117, %v6535
  %v6537 = vpop.f32.mrb[0].mxu0
  %6538 = vmatprep.mubr.f32.mxu0 0.0
  %v6539 = vand.u32 %v4482, 4294901760
  %6540 = vmatmul.mubr.f32.gmra.mrb[0].mxu0 %v6539
  %v6541 = vpop.f32.mrb[0].mxu0
  %v6542 = vadd.f32 %v5127, %v6541
  %v6543 = vpop.f32.mrb[0].mxu0
  %6544 = vmatprep.mubr.f32.mxu0 0.0
  %v6545 = vand.u32 %v4483, 4294901760
  %6546 = vmatmul.mubr.f32.gmra.mrb[0].mxu0 %v6545
  %v6547 = vpop.f32.mrb[0].mxu0
  %v6548 = vadd.f32 %v5137, %v6547
  %v6549 = vpop.f32.mrb[0].mxu0
  %6550 = vmatprep.mubr.f32.mxu0 0.0
  %v6551 = vand.u32 %v4484, 4294901760
  %6552 = vmatmul.mubr.f32.gmra.mrb[0].mxu0 %v6551
  %v6553 = vpop.f32.mrb[0].mxu0
  %v6554 = vadd.f32 %v5147, %v6553
  %v6555 = vpop.f32.mrb[0].mxu0
  %6556 = vmatprep.mubr.f32.mxu0 0.0
  %v6557 = vand.u32 %v4485, 4294901760
  %6558 = vmatmul.mubr.f32.gmra.mrb[0].mxu0 %v6557
  %v6559 = vpop.f32.mrb[0].mxu0
  %v6560 = vadd.f32 %v5157, %v6559
  %v6561 = vpop.f32.mrb[0].mxu0
  %6562 = vmatprep.mubr.f32.mxu0 0.0
  %v6563 = vand.u32 %v4486, 4294901760
  %6564 = vmatmul.mubr.f32.gmra.mrb[0].mxu0 %v6563
  %v6565 = vpop.f32.mrb[0].mxu0
  %v6566 = vadd.f32 %v5167, %v6565
  %v6567 = vpop.f32.mrb[0].mxu0
  %6568 = vmatprep.mubr.f32.mxu0 0.0
  %v6569 = vand.u32 %v4487, 4294901760
  %6570 = vmatmul.mubr.f32.gmra.mrb[0].mxu0 %v6569
  %v6571 = vpop.f32.mrb[0].mxu0
  %v6572 = vadd.f32 %v5177, %v6571
  %v6573 = vpop.f32.mrb[0].mxu0
  %6574 = vmatprep.mubr.f32.mxu0 0.0
  %v6575 = vand.u32 %v4488, 4294901760
  %6576 = vmatmul.mubr.f32.gmra.mrb[0].mxu0 %v6575
  %v6577 = vpop.f32.mrb[0].mxu0
  %v6578 = vadd.f32 %v5187, %v6577
  %v6579 = vpop.f32.mrb[0].mxu0
  %6580 = vmatprep.mubr.f32.mxu0 0.0
  %v6581 = vand.u32 %v4489, 4294901760
  %6582 = vmatmul.mubr.f32.gmra.mrb[0].mxu0 %v6581
  %v6583 = vpop.f32.mrb[0].mxu0
  %v6584 = vadd.f32 %v5197, %v6583
  %v6585 = vpop.f32.mrb[0].mxu0
  %6586 = vmatprep.mubr.f32.mxu0 0.0
  %v6587 = vand.u32 %v4490, 4294901760
  %6588 = vmatmul.mubr.f32.gmra.mrb[0].mxu0 %v6587
  %v6589 = vpop.f32.mrb[0].mxu0
  %v6590 = vadd.f32 %v5207, %v6589
  %v6591 = vpop.f32.mrb[0].mxu0
  %6592 = vmatprep.mubr.f32.mxu0 0.0
  %v6593 = vand.u32 %v4491, 4294901760
  %6594 = vmatmul.mubr.f32.gmra.mrb[0].mxu0 %v6593
  %v6595 = vpop.f32.mrb[0].mxu0
  %v6596 = vadd.f32 %v5217, %v6595
  %v6597 = vpop.f32.mrb[0].mxu0
  %6598 = vmatprep.mubr.f32.mxu0 0.0
  %v6599 = vand.u32 %v4492, 4294901760
  %6600 = vmatmul.mubr.f32.gmra.mrb[0].mxu0 %v6599
  %v6601 = vpop.f32.mrb[0].mxu0
  %v6602 = vadd.f32 %v5227, %v6601
  %v6603 = vpop.f32.mrb[0].mxu0
  %6604 = vmatprep.mubr.f32.mxu0 0.0
  %v6605 = vand.u32 %v4493, 4294901760
  %6606 = vmatmul.mubr.f32.gmra.mrb[0].mxu0 %v6605
  %v6607 = vpop.f32.mrb[0].mxu0
  %v6608 = vadd.f32 %v5237, %v6607
  %v6609 = vpop.f32.mrb[0].mxu0
  %6610 = vmatprep.mubr.f32.mxu0 0.0
  %v6611 = vand.u32 %v4494, 4294901760
  %6612 = vmatmul.mubr.f32.gmra.mrb[0].mxu0 %v6611
  %v6613 = vpop.f32.mrb[0].mxu0
  %v6614 = vadd.f32 %v5247, %v6613
  %v6615 = vpop.f32.mrb[0].mxu0
  %6616 = vmatprep.mubr.f32.mxu0 0.0
  %v6617 = vand.u32 %v4495, 4294901760
  %6618 = vmatmul.mubr.f32.gmra.mrb[0].mxu0 %v6617
  %v6619 = vpop.f32.mrb[0].mxu0
  %v6620 = vadd.f32 %v5257, %v6619
  %v6621 = vpop.f32.mrb[0].mxu0
  %6622 = vmatprep.mubr.f32.mxu0 0.0
  %v6623 = vand.u32 %v4496, 4294901760
  %6624 = vmatmul.mubr.f32.gmra.mrb[0].mxu0 %v6623
  %v6625 = vpop.f32.mrb[0].mxu0
  %v6626 = vadd.f32 %v5267, %v6625
  %v6627 = vpop.f32.mrb[0].mxu0
  %6628 = vmatprep.mubr.f32.mxu0 0.0
  %v6629 = vand.u32 %v4497, 4294901760
  %6630 = vmatmul.mubr.f32.gmra.mrb[0].mxu0 %v6629
  %v6631 = vpop.f32.mrb[0].mxu0
  %v6632 = vadd.f32 %v5277, %v6631
  %v6633 = vpop.f32.mrb[0].mxu0
  %6634 = vmatprep.mubr.f32.mxu0 0.0
  %v6635 = vand.u32 %v4498, 4294901760
  %6636 = vmatmul.mubr.f32.gmra.mrb[0].mxu0 %v6635
  %v6637 = vpop.f32.mrb[0].mxu0
  %v6638 = vadd.f32 %v5287, %v6637
  %v6639 = vpop.f32.mrb[0].mxu0
  %6640 = vmatprep.mubr.f32.mxu0 0.0
  %v6641 = vand.u32 %v4499, 4294901760
  %6642 = vmatmul.mubr.f32.gmra.mrb[0].mxu0 %v6641
  %v6643 = vpop.f32.mrb[0].mxu0
  %v6644 = vadd.f32 %v5297, %v6643
  %v6645 = vpop.f32.mrb[0].mxu0
  %6646 = vmatprep.mubr.f32.mxu0 0.0
  %v6647 = vand.u32 %v4500, 4294901760
  %6648 = vmatmul.mubr.f32.gmra.mrb[0].mxu0 %v6647
  %v6649 = vpop.f32.mrb[0].mxu0
  %v6650 = vadd.f32 %v5307, %v6649
  %v6651 = vpop.f32.mrb[0].mxu0
  %6652 = vmatprep.mubr.f32.mxu0 0.0
  %v6653 = vand.u32 %v4501, 4294901760
  %6654 = vmatmul.mubr.f32.gmra.mrb[0].mxu0 %v6653
  %v6655 = vpop.f32.mrb[0].mxu0
  %v6656 = vadd.f32 %v5317, %v6655
  %v6657 = vpop.f32.mrb[0].mxu0
  %6658 = vmatprep.mubr.f32.mxu0 0.0
  %v6659 = vand.u32 %v4502, 4294901760
  %6660 = vmatmul.mubr.f32.gmra.mrb[0].mxu0 %v6659
  %v6661 = vpop.f32.mrb[0].mxu0
  %v6662 = vadd.f32 %v5327, %v6661
  %v6663 = vpop.f32.mrb[0].mxu0
  %6664 = vmatprep.mubr.f32.mxu0 0.0
  %v6665 = vand.u32 %v4503, 4294901760
  %6666 = vmatmul.mubr.f32.gmra.mrb[0].mxu0 %v6665
  %v6667 = vpop.f32.mrb[0].mxu0
  %v6668 = vadd.f32 %v5337, %v6667
  %v6669 = vpop.f32.mrb[0].mxu0
  %6670 = vmatprep.mubr.f32.mxu0 0.0
  %v6671 = vand.u32 %v4504, 4294901760
  %6672 = vmatmul.mubr.f32.gmra.mrb[0].mxu0 %v6671
  %v6673 = vpop.f32.mrb[0].mxu0
  %v6674 = vadd.f32 %v5347, %v6673
  %v6675 = vpop.f32.mrb[0].mxu0
  %6676 = vmatprep.mubr.f32.mxu0 0.0
  %v6677 = vand.u32 %v4505, 4294901760
  %6678 = vmatmul.mubr.f32.gmra.mrb[0].mxu0 %v6677
  %v6679 = vpop.f32.mrb[0].mxu0
  %v6680 = vadd.f32 %v5357, %v6679
  %v6681 = vpop.f32.mrb[0].mxu0
  %6682 = vmatprep.mubr.f32.mxu0 0.0
  %v6683 = vand.u32 %v4506, 4294901760
  %6684 = vmatmul.mubr.f32.gmra.mrb[0].mxu0 %v6683
  %v6685 = vpop.f32.mrb[0].mxu0
  %v6686 = vadd.f32 %v5367, %v6685
  %v6687 = vpop.f32.mrb[0].mxu0
  %6688 = vmatprep.mubr.f32.mxu0 0.0
  %v6689 = vand.u32 %v4507, 4294901760
  %6690 = vmatmul.mubr.f32.gmra.mrb[0].mxu0 %v6689
  %v6691 = vpop.f32.mrb[0].mxu0
  %v6692 = vadd.f32 %v5377, %v6691
  %v6693 = vpop.f32.mrb[0].mxu0
  %6694 = vmatprep.mubr.f32.mxu0 0.0
  %v6695 = vand.u32 %v4508, 4294901760
  %6696 = vmatmul.mubr.f32.gmra.mrb[0].mxu0 %v6695
  %v6697 = vpop.f32.mrb[0].mxu0
  %v6698 = vadd.f32 %v5387, %v6697
  %v6699 = vpop.f32.mrb[0].mxu0
  %6700 = vmatprep.mubr.f32.mxu0 0.0
  %v6701 = vand.u32 %v4509, 4294901760
  %6702 = vmatmul.mubr.f32.gmra.mrb[0].mxu0 %v6701
  %v6703 = vpop.f32.mrb[0].mxu0
  %v6704 = vadd.f32 %v5397, %v6703
  %v6705 = vpop.f32.mrb[0].mxu0
  %6706 = vmatprep.mubr.f32.mxu0 0.0
  %v6707 = vand.u32 %v4510, 4294901760
  %6708 = vmatmul.mubr.f32.gmra.mrb[0].mxu0 %v6707
  %v6709 = vpop.f32.mrb[0].mxu0
  %v6710 = vadd.f32 %v5407, %v6709
  %v6711 = vpop.f32.mrb[0].mxu0
  %6712 = vmatprep.mubr.f32.mxu0 0.0
  %v6713 = vand.u32 %v4511, 4294901760
  %6714 = vmatmul.mubr.f32.gmra.mrb[0].mxu0 %v6713
  %v6715 = vpop.f32.mrb[0].mxu0
  %v6716 = vadd.f32 %v5417, %v6715
  %v6717 = vpop.f32.mrb[0].mxu0
  %6718 = vmatprep.mubr.f32.mxu0 0.0
  %v6719 = vand.u32 %v4512, 4294901760
  %6720 = vmatmul.mubr.f32.gmra.mrb[0].mxu0 %v6719
  %v6721 = vpop.f32.mrb[0].mxu0
  %v6722 = vadd.f32 %v5427, %v6721
  %v6723 = vpop.f32.mrb[0].mxu0
  %6724 = vmatprep.mubr.f32.mxu0 0.0
  %v6725 = vand.u32 %v4513, 4294901760
  %6726 = vmatmul.mubr.f32.gmra.mrb[0].mxu0 %v6725
  %v6727 = vpop.f32.mrb[0].mxu0
  %v6728 = vadd.f32 %v5437, %v6727
  %v6729 = vpop.f32.mrb[0].mxu0
  %6730 = vmatprep.mubr.f32.mxu0 0.0
  %v6731 = vand.u32 %v4514, 4294901760
  %6732 = vmatmul.mubr.f32.gmra.mrb[0].mxu0 %v6731
  %v6733 = vpop.f32.mrb[0].mxu0
  %v6734 = vadd.f32 %v5447, %v6733
  %v6735 = vpop.f32.mrb[0].mxu0
  %6736 = vmatprep.mubr.f32.mxu0 0.0
  %v6737 = vand.u32 %v4515, 4294901760
  %6738 = vmatmul.mubr.f32.gmra.mrb[0].mxu0 %v6737
  %v6739 = vpop.f32.mrb[0].mxu0
  %v6740 = vadd.f32 %v5457, %v6739
  %v6741 = vpop.f32.mrb[0].mxu0
  %6742 = vmatprep.mubr.f32.mxu0 0.0
  %v6743 = vand.u32 %v4516, 4294901760
  %6744 = vmatmul.mubr.f32.gmra.mrb[0].mxu0 %v6743
  %v6745 = vpop.f32.mrb[0].mxu0
  %v6746 = vadd.f32 %v5467, %v6745
  %v6747 = vpop.f32.mrb[0].mxu0
  %6748 = vmatprep.mubr.f32.mxu0 0.0
  %v6749 = vand.u32 %v4517, 4294901760
  %6750 = vmatmul.mubr.f32.gmra.mrb[0].mxu0 %v6749
  %v6751 = vpop.f32.mrb[0].mxu0
  %v6752 = vadd.f32 %v5477, %v6751
  %v6753 = vpop.f32.mrb[0].mxu0
  %6754 = vmatprep.mubr.f32.mxu0 0.0
  %v6755 = vand.u32 %v4518, 4294901760
  %6756 = vmatmul.mubr.f32.gmra.mrb[0].mxu0 %v6755
  %v6757 = vpop.f32.mrb[0].mxu0
  %v6758 = vadd.f32 %v5487, %v6757
  %v6759 = vpop.f32.mrb[0].mxu0
  %6760 = vmatprep.mubr.f32.mxu0 0.0
  %v6761 = vand.u32 %v4519, 4294901760
  %6762 = vmatmul.mubr.f32.gmra.mrb[0].mxu0 %v6761
  %v6763 = vpop.f32.mrb[0].mxu0
  %v6764 = vadd.f32 %v5497, %v6763
  %v6765 = vpop.f32.mrb[0].mxu0
  %6766 = vmatprep.mubr.f32.mxu0 0.0
  %v6767 = vand.u32 %v4520, 4294901760
  %6768 = vmatmul.mubr.f32.gmra.mrb[0].mxu0 %v6767
  %v6769 = vpop.f32.mrb[0].mxu0
  %v6770 = vadd.f32 %v5507, %v6769
  %v6771 = vpop.f32.mrb[0].mxu0
  %6772 = vmatprep.mubr.f32.mxu0 0.0
  %v6773 = vand.u32 %v4521, 4294901760
  %6774 = vmatmul.mubr.f32.gmra.mrb[0].mxu0 %v6773
  %v6775 = vpop.f32.mrb[0].mxu0
  %v6776 = vadd.f32 %v5517, %v6775
  %v6777 = vpop.f32.mrb[0].mxu0
  %6778 = vmatprep.mubr.f32.mxu0 0.0
  %v6779 = vand.u32 %v4522, 4294901760
  %6780 = vmatmul.mubr.f32.gmra.mrb[0].mxu0 %v6779
  %v6781 = vpop.f32.mrb[0].mxu0
  %v6782 = vadd.f32 %v5527, %v6781
  %v6783 = vpop.f32.mrb[0].mxu0
  %6784 = vmatprep.mubr.f32.mxu0 0.0
  %v6785 = vand.u32 %v4523, 4294901760
  %6786 = vmatmul.mubr.f32.gmra.mrb[0].mxu0 %v6785
  %v6787 = vpop.f32.mrb[0].mxu0
  %v6788 = vadd.f32 %v5537, %v6787
  %v6789 = vpop.f32.mrb[0].mxu0
  %6790 = vmatprep.mubr.f32.mxu0 0.0
  %v6791 = vand.u32 %v4524, 4294901760
  %6792 = vmatmul.mubr.f32.gmra.mrb[0].mxu0 %v6791
  %v6793 = vpop.f32.mrb[0].mxu0
  %v6794 = vadd.f32 %v5547, %v6793
  %v6795 = vpop.f32.mrb[0].mxu0
  %6796 = vmatprep.mubr.f32.mxu0 0.0
  %v6797 = vand.u32 %v4525, 4294901760
  %6798 = vmatmul.mubr.f32.gmra.mrb[0].mxu0 %v6797
  %v6799 = vpop.f32.mrb[0].mxu0
  %v6800 = vadd.f32 %v5557, %v6799
  %v6801 = vpop.f32.mrb[0].mxu0
  %6802 = vmatprep.mubr.f32.mxu0 0.0
  %v6803 = vand.u32 %v4526, 4294901760
  %6804 = vmatmul.mubr.f32.gmra.mrb[0].mxu0 %v6803
  %v6805 = vpop.f32.mrb[0].mxu0
  %v6806 = vadd.f32 %v5567, %v6805
  %v6807 = vpop.f32.mrb[0].mxu0
  %6808 = vmatprep.mubr.f32.mxu0 0.0
  %v6809 = vand.u32 %v4527, 4294901760
  %6810 = vmatmul.mubr.f32.gmra.mrb[0].mxu0 %v6809
  %v6811 = vpop.f32.mrb[0].mxu0
  %v6812 = vadd.f32 %v5577, %v6811
  %v6813 = vpop.f32.mrb[0].mxu0
  %6814 = vmatprep.mubr.f32.mxu0 0.0
  %v6815 = vand.u32 %v4528, 4294901760
  %6816 = vmatmul.mubr.f32.gmra.mrb[0].mxu0 %v6815
  %v6817 = vpop.f32.mrb[0].mxu0
  %v6818 = vadd.f32 %v5587, %v6817
  %v6819 = vpop.f32.mrb[0].mxu0
  %6820 = vmatprep.mubr.f32.mxu0 0.0
  %v6821 = vand.u32 %v4529, 4294901760
  %6822 = vmatmul.mubr.f32.gmra.mrb[0].mxu0 %v6821
  %v6823 = vpop.f32.mrb[0].mxu0
  %v6824 = vadd.f32 %v5597, %v6823
  %v6825 = vpop.f32.mrb[0].mxu0
  %6826 = vmatprep.mubr.f32.mxu0 0.0
  %v6827 = vand.u32 %v4530, 4294901760
  %6828 = vmatmul.mubr.f32.gmra.mrb[0].mxu0 %v6827
  %v6829 = vpop.f32.mrb[0].mxu0
  %v6830 = vadd.f32 %v5607, %v6829
  %v6831 = vpop.f32.mrb[0].mxu0
  %6832 = vmatprep.mubr.f32.mxu0 0.0
  %v6833 = vand.u32 %v4531, 4294901760
  %6834 = vmatmul.mubr.f32.gmra.mrb[0].mxu0 %v6833
  %v6835 = vpop.f32.mrb[0].mxu0
  %v6836 = vadd.f32 %v5617, %v6835
  %v6837 = vpop.f32.mrb[0].mxu0
  %6838 = vmatprep.mubr.f32.mxu0 0.0
  %v6839 = vand.u32 %v4532, 4294901760
  %6840 = vmatmul.mubr.f32.gmra.mrb[0].mxu0 %v6839
  %v6841 = vpop.f32.mrb[0].mxu0
  %v6842 = vadd.f32 %v5627, %v6841
  %v6843 = vpop.f32.mrb[0].mxu0
  %6844 = vmatprep.mubr.f32.mxu0 0.0
  %v6845 = vand.u32 %v4533, 4294901760
  %6846 = vmatmul.mubr.f32.gmra.mrb[0].mxu0 %v6845
  %v6847 = vpop.f32.mrb[0].mxu0
  %v6848 = vadd.f32 %v5637, %v6847
  %v6849 = vpop.f32.mrb[0].mxu0
  %6850 = vmatprep.mubr.f32.mxu0 0.0
  %v6851 = vand.u32 %v4534, 4294901760
  %6852 = vmatmul.mubr.f32.gmra.mrb[0].mxu0 %v6851
  %v6853 = vpop.f32.mrb[0].mxu0
  %v6854 = vadd.f32 %v5647, %v6853
  %v6855 = vpop.f32.mrb[0].mxu0
  %6856 = vmatprep.mubr.f32.mxu0 0.0
  %v6857 = vand.u32 %v4535, 4294901760
  %6858 = vmatmul.mubr.f32.gmra.mrb[0].mxu0 %v6857
  %v6859 = vpop.f32.mrb[0].mxu0
  %v6860 = vadd.f32 %v5657, %v6859
  %v6861 = vpop.f32.mrb[0].mxu0
  %6862 = vmatprep.mubr.f32.mxu0 0.0
  %v6863 = vand.u32 %v4536, 4294901760
  %6864 = vmatmul.mubr.f32.gmra.mrb[0].mxu0 %v6863
  %v6865 = vpop.f32.mrb[0].mxu0
  %v6866 = vadd.f32 %v5667, %v6865
  %v6867 = vpop.f32.mrb[0].mxu0
  %6868 = vmatprep.mubr.f32.mxu0 0.0
  %v6869 = vand.u32 %v4537, 4294901760
  %6870 = vmatmul.mubr.f32.gmra.mrb[0].mxu0 %v6869
  %v6871 = vpop.f32.mrb[0].mxu0
  %v6872 = vadd.f32 %v5677, %v6871
  %v6873 = vpop.f32.mrb[0].mxu0
  %6874 = vmatprep.mubr.f32.mxu0 0.0
  %v6875 = vand.u32 %v4538, 4294901760
  %6876 = vmatmul.mubr.f32.gmra.mrb[0].mxu0 %v6875
  %v6877 = vpop.f32.mrb[0].mxu0
  %v6878 = vadd.f32 %v5687, %v6877
  %v6879 = vpop.f32.mrb[0].mxu0
  %6880 = vmatprep.mubr.f32.mxu0 0.0
  %v6881 = vand.u32 %v4539, 4294901760
  %6882 = vmatmul.mubr.f32.gmra.mrb[0].mxu0 %v6881
  %v6883 = vpop.f32.mrb[0].mxu0
  %v6884 = vadd.f32 %v5697, %v6883
  %v6885 = vpop.f32.mrb[0].mxu0
  %6886 = vmatprep.mubr.f32.mxu0 0.0
  %v6887 = vand.u32 %v4540, 4294901760
  %6888 = vmatmul.mubr.f32.gmra.mrb[0].mxu0 %v6887
  %v6889 = vpop.f32.mrb[0].mxu0
  %v6890 = vadd.f32 %v5707, %v6889
  %v6891 = vpop.f32.mrb[0].mxu0
  %6892 = vmatprep.mubr.f32.mxu0 0.0
  %v6893 = vand.u32 %v4541, 4294901760
  %6894 = vmatmul.mubr.f32.gmra.mrb[0].mxu0 %v6893
  %v6895 = vpop.f32.mrb[0].mxu0
  %v6896 = vadd.f32 %v5717, %v6895
  %v6897 = vpop.f32.mrb[0].mxu0
  %6898 = vmatprep.mubr.f32.mxu0 0.0
  %v6899 = vand.u32 %v4542, 4294901760
  %6900 = vmatmul.mubr.f32.gmra.mrb[0].mxu0 %v6899
  %v6901 = vpop.f32.mrb[0].mxu0
  %v6902 = vadd.f32 %v5727, %v6901
  %v6903 = vpop.f32.mrb[0].mxu0
  %6904 = vmatprep.mubr.f32.mxu0 0.0
  %v6905 = vand.u32 %v4543, 4294901760
  %6906 = vmatmul.mubr.f32.gmra.mrb[0].mxu0 %v6905
  %v6907 = vpop.f32.mrb[0].mxu0
  %v6908 = vadd.f32 %v5737, %v6907
  %v6909 = vpop.f32.mrb[0].mxu0
  %6910 = vmatprep.mubr.f32.mxu0 0.0
  %v6911 = vand.u32 %v4544, 4294901760
  %6912 = vmatmul.mubr.f32.gmra.mrb[0].mxu0 %v6911
  %v6913 = vpop.f32.mrb[0].mxu0
  %v6914 = vadd.f32 %v5747, %v6913
  %v6915 = vpop.f32.mrb[0].mxu0
  %6916 = vmatprep.mubr.f32.mxu0 0.0
  %v6917 = vand.u32 %v4545, 4294901760
  %6918 = vmatmul.mubr.f32.gmra.mrb[0].mxu0 %v6917
  %v6919 = vpop.f32.mrb[0].mxu0
  %v6920 = vadd.f32 %v5757, %v6919
  %v6921 = vpop.f32.mrb[0].mxu0
  %6922 = vmatprep.mubr.f32.mxu0 0.0
  %v6923 = vand.u32 %v4546, 4294901760
  %6924 = vmatmul.mubr.f32.gmra.mrb[0].mxu0 %v6923
  %v6925 = vpop.f32.mrb[0].mxu0
  %v6926 = vadd.f32 %v5767, %v6925
  %v6927 = vpop.f32.mrb[0].mxu0
  %6928 = vmatprep.mubr.f32.mxu0 0.0
  %v6929 = vand.u32 %v4547, 4294901760
  %6930 = vmatmul.mubr.f32.gmra.mrb[0].mxu0 %v6929
  %v6931 = vpop.f32.mrb[0].mxu0
  %v6932 = vadd.f32 %v5777, %v6931
  %v6933 = vpop.f32.mrb[0].mxu0
  %6934 = vmatprep.mubr.f32.mxu0 0.0
  %v6935 = vand.u32 %v4548, 4294901760
  %6936 = vmatmul.mubr.f32.gmra.mrb[0].mxu0 %v6935
  %v6937 = vpop.f32.mrb[0].mxu0
  %v6938 = vadd.f32 %v5787, %v6937
  %v6939 = vpop.f32.mrb[0].mxu0
  %6940 = vmatprep.mubr.f32.mxu0 0.0
  %v6941 = vand.u32 %v4549, 4294901760
  %6942 = vmatmul.mubr.f32.gmra.mrb[0].mxu0 %v6941
  %v6943 = vpop.f32.mrb[0].mxu0
  %v6944 = vadd.f32 %v5797, %v6943
  %v6945 = vpop.f32.mrb[0].mxu0
  %6946 = vmatprep.mubr.f32.mxu0 0.0
  %v6947 = vand.u32 %v4550, 4294901760
  %6948 = vmatmul.mubr.f32.gmra.mrb[0].mxu0 %v6947
  %v6949 = vpop.f32.mrb[0].mxu0
  %v6950 = vadd.f32 %v5807, %v6949
  %v6951 = vpop.f32.mrb[0].mxu0
  %6952 = vmatprep.mubr.f32.mxu0 0.0
  %v6953 = vand.u32 %v4551, 4294901760
  %6954 = vmatmul.mubr.f32.gmra.mrb[0].mxu0 %v6953
  %v6955 = vpop.f32.mrb[0].mxu0
  %v6956 = vadd.f32 %v5817, %v6955
  %v6957 = vpop.f32.mrb[0].mxu0
  %6958 = vmatprep.mubr.f32.mxu0 0.0
  %v6959 = vand.u32 %v4552, 4294901760
  %6960 = vmatmul.mubr.f32.gmra.mrb[0].mxu0 %v6959
  %v6961 = vpop.f32.mrb[0].mxu0
  %v6962 = vadd.f32 %v5827, %v6961
  %v6963 = vpop.f32.mrb[0].mxu0
  %6964 = vmatprep.mubr.f32.mxu0 0.0
  %v6965 = vand.u32 %v4553, 4294901760
  %6966 = vmatmul.mubr.f32.gmra.mrb[0].mxu0 %v6965
  %v6967 = vpop.f32.mrb[0].mxu0
  %v6968 = vadd.f32 %v5837, %v6967
  %v6969 = vpop.f32.mrb[0].mxu0
  %6970 = vmatprep.mubr.f32.mxu0 0.0
  %v6971 = vand.u32 %v4554, 4294901760
  %6972 = vmatmul.mubr.f32.gmra.mrb[0].mxu0 %v6971
  %v6973 = vpop.f32.mrb[0].mxu0
  %v6974 = vadd.f32 %v5847, %v6973
  %v6975 = vpop.f32.mrb[0].mxu0
  %6976 = vmatprep.mubr.f32.mxu0 0.0
  %v6977 = vand.u32 %v4555, 4294901760
  %6978 = vmatmul.mubr.f32.gmra.mrb[0].mxu0 %v6977
  %v6979 = vpop.f32.mrb[0].mxu0
  %v6980 = vadd.f32 %v5857, %v6979
  %v6981 = vpop.f32.mrb[0].mxu0
  %6982 = vmatprep.mubr.f32.mxu0 0.0
  %v6983 = vand.u32 %v4556, 4294901760
  %6984 = vmatmul.mubr.f32.gmra.mrb[0].mxu0 %v6983
  %v6985 = vpop.f32.mrb[0].mxu0
  %v6986 = vadd.f32 %v5867, %v6985
  %v6987 = vpop.f32.mrb[0].mxu0
  %6988 = vmatprep.mubr.f32.mxu0 0.0
  %v6989 = vand.u32 %v4557, 4294901760
  %6990 = vmatmul.mubr.f32.gmra.mrb[0].mxu0 %v6989
  %v6991 = vpop.f32.mrb[0].mxu0
  %v6992 = vadd.f32 %v5877, %v6991
  %v6993 = vpop.f32.mrb[0].mxu0
  %6994 = vmatprep.mubr.f32.mxu0 0.0
  %v6995 = vand.u32 %v4558, 4294901760
  %6996 = vmatmul.mubr.f32.gmra.mrb[0].mxu0 %v6995
  %v6997 = vpop.f32.mrb[0].mxu0
  %v6998 = vadd.f32 %v5887, %v6997
  %v6999 = vpop.f32.mrb[0].mxu0
  %7000 = vmatprep.mubr.f32.mxu0 0.0
  %v7001 = vand.u32 %v4559, 4294901760
  %7002 = vmatmul.mubr.f32.gmra.mrb[0].mxu0 %v7001
  %v7003 = vpop.f32.mrb[0].mxu0
  %v7004 = vadd.f32 %v5897, %v7003
  %v7005 = vpop.f32.mrb[0].mxu0
  %7006 = vmatprep.mubr.f32.mxu0 0.0
  %v7007 = vand.u32 %v4560, 4294901760
  %7008 = vmatmul.mubr.f32.gmra.mrb[0].mxu0 %v7007
  %v7009 = vpop.f32.mrb[0].mxu0
  %v7010 = vadd.f32 %v5907, %v7009
  %v7011 = vpop.f32.mrb[0].mxu0
  %7012 = vmatprep.mubr.f32.mxu0 0.0
  %v7013 = vand.u32 %v4561, 4294901760
  %7014 = vmatmul.mubr.f32.gmra.mrb[0].mxu0 %v7013
  %v7015 = vpop.f32.mrb[0].mxu0
  %v7016 = vadd.f32 %v5917, %v7015
  %v7017 = vpop.f32.mrb[0].mxu0
  %7018 = vmatprep.mubr.f32.mxu0 0.0
  %v7019 = vand.u32 %v4562, 4294901760
  %7020 = vmatmul.mubr.f32.gmra.mrb[0].mxu0 %v7019
  %v7021 = vpop.f32.mrb[0].mxu0
  %v7022 = vadd.f32 %v5927, %v7021
  %v7023 = vpop.f32.mrb[0].mxu0
  %7024 = vmatprep.mubr.f32.mxu0 0.0
  %v7025 = vand.u32 %v4563, 4294901760
  %7026 = vmatmul.mubr.f32.gmra.mrb[0].mxu0 %v7025
  %v7027 = vpop.f32.mrb[0].mxu0
  %v7028 = vadd.f32 %v5937, %v7027
  %v7029 = vpop.f32.mrb[0].mxu0
  %7030 = vmatprep.mubr.f32.mxu0 0.0
  %v7031 = vand.u32 %v4564, 4294901760
  %7032 = vmatmul.mubr.f32.gmra.mrb[0].mxu0 %v7031
  %v7033 = vpop.f32.mrb[0].mxu0
  %v7034 = vadd.f32 %v5947, %v7033
  %v7035 = vpop.f32.mrb[0].mxu0
  %7036 = vmatprep.mubr.f32.mxu0 0.0
  %v7037 = vand.u32 %v4565, 4294901760
  %7038 = vmatmul.mubr.f32.gmra.mrb[0].mxu0 %v7037
  %v7039 = vpop.f32.mrb[0].mxu0
  %v7040 = vadd.f32 %v5957, %v7039
  %v7041 = vpop.f32.mrb[0].mxu0
  %7042 = vmatprep.mubr.f32.mxu0 0.0
  %v7043 = vand.u32 %v4566, 4294901760
  %7044 = vmatmul.mubr.f32.gmra.mrb[0].mxu0 %v7043
  %v7045 = vpop.f32.mrb[0].mxu0
  %v7046 = vadd.f32 %v5967, %v7045
  %v7047 = vpop.f32.mrb[0].mxu0
  %7048 = vmatprep.mubr.f32.mxu0 0.0
  %v7049 = vand.u32 %v4567, 4294901760
  %7050 = vmatmul.mubr.f32.gmra.mrb[0].mxu0 %v7049
  %v7051 = vpop.f32.mrb[0].mxu0
  %v7052 = vadd.f32 %v5977, %v7051
  %v7053 = vpop.f32.mrb[0].mxu0
  %7054 = vmatprep.mubr.f32.mxu0 0.0
  %v7055 = vand.u32 %v4568, 4294901760
  %7056 = vmatmul.mubr.f32.gmra.mrb[0].mxu0 %v7055
  %v7057 = vpop.f32.mrb[0].mxu0
  %v7058 = vadd.f32 %v5987, %v7057
  %v7059 = vpop.f32.mrb[0].mxu0
  %7060 = vmatprep.mubr.f32.mxu0 0.0
  %v7061 = vand.u32 %v4569, 4294901760
  %7062 = vmatmul.mubr.f32.gmra.mrb[0].mxu0 %v7061
  %v7063 = vpop.f32.mrb[0].mxu0
  %v7064 = vadd.f32 %v5997, %v7063
  %v7065 = vpop.f32.mrb[0].mxu0
  %7066 = vmatprep.mubr.f32.mxu0 0.0
  %v7067 = vand.u32 %v4570, 4294901760
  %7068 = vmatmul.mubr.f32.gmra.mrb[0].mxu0 %v7067
  %v7069 = vpop.f32.mrb[0].mxu0
  %v7070 = vadd.f32 %v6007, %v7069
  %v7071 = vpop.f32.mrb[0].mxu0
  %7072 = vmatprep.mubr.f32.mxu0 0.0
  %v7073 = vand.u32 %v4571, 4294901760
  %7074 = vmatmul.mubr.f32.gmra.mrb[0].mxu0 %v7073
  %v7075 = vpop.f32.mrb[0].mxu0
  %v7076 = vadd.f32 %v6017, %v7075
  %v7077 = vpop.f32.mrb[0].mxu0
  %7078 = vmatprep.mubr.f32.mxu0 0.0
  %v7079 = vand.u32 %v4572, 4294901760
  %7080 = vmatmul.mubr.f32.gmra.mrb[0].mxu0 %v7079
  %v7081 = vpop.f32.mrb[0].mxu0
  %v7082 = vadd.f32 %v6027, %v7081
  %v7083 = vpop.f32.mrb[0].mxu0
  %7084 = vmatprep.mubr.f32.mxu0 0.0
  %v7085 = vand.u32 %v4573, 4294901760
  %7086 = vmatmul.mubr.f32.gmra.mrb[0].mxu0 %v7085
  %v7087 = vpop.f32.mrb[0].mxu0
  %v7088 = vadd.f32 %v6037, %v7087
  %v7089 = vpop.f32.mrb[0].mxu0
  %7090 = vmatprep.mubr.f32.mxu0 0.0
  %v7091 = vand.u32 %v4574, 4294901760
  %7092 = vmatmul.mubr.f32.gmra.mrb[0].mxu0 %v7091
  %v7093 = vpop.f32.mrb[0].mxu0
  %v7094 = vadd.f32 %v6047, %v7093
  %v7095 = vpop.f32.mrb[0].mxu0
  %7096 = vmatprep.mubr.f32.mxu0 0.0
  %v7097 = vand.u32 %v4575, 4294901760
  %7098 = vmatmul.mubr.f32.gmra.mrb[0].mxu0 %v7097
  %v7099 = vpop.f32.mrb[0].mxu0
  %v7100 = vadd.f32 %v6057, %v7099
  %v7101 = vpop.f32.mrb[0].mxu0
  %7102 = vmatprep.mubr.f32.mxu0 0.0
  %v7103 = vand.u32 %v4576, 4294901760
  %7104 = vmatmul.mubr.f32.gmra.mrb[0].mxu0 %v7103
  %v7105 = vpop.f32.mrb[0].mxu0
  %v7106 = vadd.f32 %v6067, %v7105
  %v7107 = vpop.f32.mrb[0].mxu0
  %7108 = vmatprep.mubr.f32.mxu0 0.0
  %v7109 = vand.u32 %v4577, 4294901760
  %7110 = vmatmul.mubr.f32.gmra.mrb[0].mxu0 %v7109
  %v7111 = vpop.f32.mrb[0].mxu0
  %v7112 = vadd.f32 %v6077, %v7111
  %v7113 = vpop.f32.mrb[0].mxu0
  %7114 = vmatprep.mubr.f32.mxu0 0.0
  %v7115 = vand.u32 %v4578, 4294901760
  %7116 = vmatmul.mubr.f32.gmra.mrb[0].mxu0 %v7115
  %v7117 = vpop.f32.mrb[0].mxu0
  %v7118 = vadd.f32 %v6087, %v7117
  %v7119 = vpop.f32.mrb[0].mxu0
  %7120 = vmatprep.mubr.f32.mxu0 0.0
  %v7121 = vand.u32 %v4579, 4294901760
  %7122 = vmatmul.mubr.f32.gmra.mrb[0].mxu0 %v7121
  %v7123 = vpop.f32.mrb[0].mxu0
  %v7124 = vadd.f32 %v6097, %v7123
  %v7125 = vpop.f32.mrb[0].mxu0
  %7126 = vmatprep.mubr.f32.mxu0 0.0
  %v7127 = vand.u32 %v4580, 4294901760
  %7128 = vmatmul.mubr.f32.gmra.mrb[0].mxu0 %v7127
  %v7129 = vpop.f32.mrb[0].mxu0
  %v7130 = vadd.f32 %v6107, %v7129
  %v7131 = vpop.f32.mrb[0].mxu0
  %7132 = vmatprep.mubr.f32.mxu0 0.0
  %v7133 = vand.u32 %v4581, 4294901760
  %7134 = vmatmul.mubr.f32.gmra.mrb[0].mxu0 %v7133
  %v7135 = vpop.f32.mrb[0].mxu0
  %v7136 = vadd.f32 %v6117, %v7135
  %v7137 = vpop.f32.mrb[0].mxu0
  %7138 = vmatprep.mubr.f32.mxu0 0.0
  %v7139 = vand.u32 %v4582, 4294901760
  %7140 = vmatmul.mubr.f32.gmra.mrb[0].mxu0 %v7139
  %v7141 = vpop.f32.mrb[0].mxu0
  %v7142 = vadd.f32 %v6127, %v7141
  %v7143 = vpop.f32.mrb[0].mxu0
  %7144 = vdwg.mxu0
  %7145 = vmatprep.subr.mxu0 0.0
  %v7146 = vand.u32 %v4583, 4294901760
  %v7147 = vsub.f32 %v4583, %v7146
  %7148 = vmatpush1.msra.mxu0 %v7147
  %7149 = vmatprep.subr.mxu0 0.0
  %v7150 = vand.u32 %v4584, 4294901760
  %v7151 = vsub.f32 %v4584, %v7150
  %7152 = vmatpush1.msra.mxu0 %v7151
  %7153 = vmatprep.subr.mxu0 0.0
  %v7154 = vand.u32 %v4585, 4294901760
  %v7155 = vsub.f32 %v4585, %v7154
  %7156 = vmatpush1.msra.mxu0 %v7155
  %7157 = vmatprep.subr.mxu0 0.0
  %v7158 = vand.u32 %v4586, 4294901760
  %v7159 = vsub.f32 %v4586, %v7158
  %7160 = vmatpush1.msra.mxu0 %v7159
  %7161 = vmatprep.subr.mxu0 0.0
  %v7162 = vand.u32 %v4587, 4294901760
  %v7163 = vsub.f32 %v4587, %v7162
  %7164 = vmatpush1.msra.mxu0 %v7163
  %7165 = vmatprep.subr.mxu0 0.0
  %v7166 = vand.u32 %v4588, 4294901760
  %v7167 = vsub.f32 %v4588, %v7166
  %7168 = vmatpush1.msra.mxu0 %v7167
  %7169 = vmatprep.subr.mxu0 0.0
  %v7170 = vand.u32 %v4589, 4294901760
  %v7171 = vsub.f32 %v4589, %v7170
  %7172 = vmatpush1.msra.mxu0 %v7171
  %7173 = vmatprep.subr.mxu0 0.0
  %v7174 = vand.u32 %v4590, 4294901760
  %v7175 = vsub.f32 %v4590, %v7174
  %7176 = vmatpush1.msra.mxu0 %v7175
  %7177 = vmatprep.subr.mxu0 0.0
  %v7178 = vand.u32 %v4591, 4294901760
  %v7179 = vsub.f32 %v4591, %v7178
  %7180 = vmatpush1.msra.mxu0 %v7179
  %7181 = vmatprep.subr.mxu0 0.0
  %v7182 = vand.u32 %v4592, 4294901760
  %v7183 = vsub.f32 %v4592, %v7182
  %7184 = vmatpush1.msra.mxu0 %v7183
  %7185 = vmatprep.subr.mxu0 0.0
  %v7186 = vand.u32 %v4593, 4294901760
  %v7187 = vsub.f32 %v4593, %v7186
  %7188 = vmatpush1.msra.mxu0 %v7187
  %7189 = vmatprep.subr.mxu0 0.0
  %v7190 = vand.u32 %v4594, 4294901760
  %v7191 = vsub.f32 %v4594, %v7190
  %7192 = vmatpush1.msra.mxu0 %v7191
  %7193 = vmatprep.subr.mxu0 0.0
  %v7194 = vand.u32 %v4595, 4294901760
  %v7195 = vsub.f32 %v4595, %v7194
  %7196 = vmatpush1.msra.mxu0 %v7195
  %7197 = vmatprep.subr.mxu0 0.0
  %v7198 = vand.u32 %v4596, 4294901760
  %v7199 = vsub.f32 %v4596, %v7198
  %7200 = vmatpush1.msra.mxu0 %v7199
  %7201 = vmatprep.subr.mxu0 0.0
  %v7202 = vand.u32 %v4597, 4294901760
  %v7203 = vsub.f32 %v4597, %v7202
  %7204 = vmatpush1.msra.mxu0 %v7203
  %7205 = vmatprep.subr.mxu0 0.0
  %v7206 = vand.u32 %v4598, 4294901760
  %v7207 = vsub.f32 %v4598, %v7206
  %7208 = vmatpush1.msra.mxu0 %v7207
  %7209 = vmatprep.subr.mxu0 0.0
  %7210 = vmatpush1.msra.mxu0 0.0
  %7211 = vmatprep.subr.mxu0 0.0
  %7212 = vmatpush1.msra.mxu0 0.0
  %7213 = vmatprep.subr.mxu0 0.0
  %7214 = vmatpush1.msra.mxu0 0.0
  %7215 = vmatprep.subr.mxu0 0.0
  %7216 = vmatpush1.msra.mxu0 0.0
  %7217 = vmatprep.subr.mxu0 0.0
  %7218 = vmatpush1.msra.mxu0 0.0
  %7219 = vmatprep.subr.mxu0 0.0
  %7220 = vmatpush1.msra.mxu0 0.0
  %7221 = vmatprep.subr.mxu0 0.0
  %7222 = vmatpush1.msra.mxu0 0.0
  %7223 = vmatprep.subr.mxu0 0.0
  %7224 = vmatpush1.msra.mxu0 0.0
  %7225 = vmatprep.subr.mxu0 0.0
  %7226 = vmatpush1.msra.mxu0 0.0
  %7227 = vmatprep.subr.mxu0 0.0
  %7228 = vmatpush1.msra.mxu0 0.0
  %7229 = vmatprep.subr.mxu0 0.0
  %7230 = vmatpush1.msra.mxu0 0.0
  %7231 = vmatprep.subr.mxu0 0.0
  %7232 = vmatpush1.msra.mxu0 0.0
  %7233 = vmatprep.subr.mxu0 0.0
  %7234 = vmatpush1.msra.mxu0 0.0
  %7235 = vmatprep.subr.mxu0 0.0
  %7236 = vmatpush1.msra.mxu0 0.0
  %7237 = vmatprep.subr.mxu0 0.0
  %7238 = vmatpush1.msra.mxu0 0.0
  %7239 = vmatprep.subr.mxu0 0.0
  %7240 = vmatpush1.msra.mxu0 0.0
  %7241 = vmatprep.mubr.f32.mxu0 0.0
  %v7242 = vand.u32 %v4438, 4294901760
  %v7243 = vsub.f32 %v4438, %v7242
  %7244 = vmatmul.mubr.f32.gmra.mrb[0].mxu0 %v7243
  %v7245 = vpop.f32.mrb[0].mxu0
  %v7246 = vadd.f32 %v6278, %v7245
  %v7247 = vpop.f32.mrb[0].mxu0
  %7248 = vmatprep.mubr.f32.mxu0 0.0
  %v7249 = vand.u32 %v4439, 4294901760
  %v7250 = vsub.f32 %v4439, %v7249
  %7251 = vmatmul.mubr.f32.gmra.mrb[0].mxu0 %v7250
  %v7252 = vpop.f32.mrb[0].mxu0
  %v7253 = vadd.f32 %v6284, %v7252
  %v7254 = vpop.f32.mrb[0].mxu0
  %7255 = vmatprep.mubr.f32.mxu0 0.0
  %v7256 = vand.u32 %v4440, 4294901760
  %v7257 = vsub.f32 %v4440, %v7256
  %7258 = vmatmul.mubr.f32.gmra.mrb[0].mxu0 %v7257
  %v7259 = vpop.f32.mrb[0].mxu0
  %v7260 = vadd.f32 %v6290, %v7259
  %v7261 = vpop.f32.mrb[0].mxu0
  %7262 = vmatprep.mubr.f32.mxu0 0.0
  %v7263 = vand.u32 %v4441, 4294901760
  %v7264 = vsub.f32 %v4441, %v7263
  %7265 = vmatmul.mubr.f32.gmra.mrb[0].mxu0 %v7264
  %v7266 = vpop.f32.mrb[0].mxu0
  %v7267 = vadd.f32 %v6296, %v7266
  %v7268 = vpop.f32.mrb[0].mxu0
  %7269 = vmatprep.mubr.f32.mxu0 0.0
  %v7270 = vand.u32 %v4442, 4294901760
  %v7271 = vsub.f32 %v4442, %v7270
  %7272 = vmatmul.mubr.f32.gmra.mrb[0].mxu0 %v7271
  %v7273 = vpop.f32.mrb[0].mxu0
  %v7274 = vadd.f32 %v6302, %v7273
  %v7275 = vpop.f32.mrb[0].mxu0
  %7276 = vmatprep.mubr.f32.mxu0 0.0
  %v7277 = vand.u32 %v4443, 4294901760
  %v7278 = vsub.f32 %v4443, %v7277
  %7279 = vmatmul.mubr.f32.gmra.mrb[0].mxu0 %v7278
  %v7280 = vpop.f32.mrb[0].mxu0
  %v7281 = vadd.f32 %v6308, %v7280
  %v7282 = vpop.f32.mrb[0].mxu0
  %7283 = vmatprep.mubr.f32.mxu0 0.0
  %v7284 = vand.u32 %v4444, 4294901760
  %v7285 = vsub.f32 %v4444, %v7284
  %7286 = vmatmul.mubr.f32.gmra.mrb[0].mxu0 %v7285
  %v7287 = vpop.f32.mrb[0].mxu0
  %v7288 = vadd.f32 %v6314, %v7287
  %v7289 = vpop.f32.mrb[0].mxu0
  %7290 = vmatprep.mubr.f32.mxu0 0.0
  %v7291 = vand.u32 %v4445, 4294901760
  %v7292 = vsub.f32 %v4445, %v7291
  %7293 = vmatmul.mubr.f32.gmra.mrb[0].mxu0 %v7292
  %v7294 = vpop.f32.mrb[0].mxu0
  %v7295 = vadd.f32 %v6320, %v7294
  %v7296 = vpop.f32.mrb[0].mxu0
  %7297 = vmatprep.mubr.f32.mxu0 0.0
  %v7298 = vand.u32 %v4446, 4294901760
  %v7299 = vsub.f32 %v4446, %v7298
  %7300 = vmatmul.mubr.f32.gmra.mrb[0].mxu0 %v7299
  %v7301 = vpop.f32.mrb[0].mxu0
  %v7302 = vadd.f32 %v6326, %v7301
  %v7303 = vpop.f32.mrb[0].mxu0
  %7304 = vmatprep.mubr.f32.mxu0 0.0
  %v7305 = vand.u32 %v4447, 4294901760
  %v7306 = vsub.f32 %v4447, %v7305
  %7307 = vmatmul.mubr.f32.gmra.mrb[0].mxu0 %v7306
  %v7308 = vpop.f32.mrb[0].mxu0
  %v7309 = vadd.f32 %v6332, %v7308
  %v7310 = vpop.f32.mrb[0].mxu0
  %7311 = vmatprep.mubr.f32.mxu0 0.0
  %v7312 = vand.u32 %v4448, 4294901760
  %v7313 = vsub.f32 %v4448, %v7312
  %7314 = vmatmul.mubr.f32.gmra.mrb[0].mxu0 %v7313
  %v7315 = vpop.f32.mrb[0].mxu0
  %v7316 = vadd.f32 %v6338, %v7315
  %v7317 = vpop.f32.mrb[0].mxu0
  %7318 = vmatprep.mubr.f32.mxu0 0.0
  %v7319 = vand.u32 %v4449, 4294901760
  %v7320 = vsub.f32 %v4449, %v7319
  %7321 = vmatmul.mubr.f32.gmra.mrb[0].mxu0 %v7320
  %v7322 = vpop.f32.mrb[0].mxu0
  %v7323 = vadd.f32 %v6344, %v7322
  %v7324 = vpop.f32.mrb[0].mxu0
  %7325 = vmatprep.mubr.f32.mxu0 0.0
  %v7326 = vand.u32 %v4450, 4294901760
  %v7327 = vsub.f32 %v4450, %v7326
  %7328 = vmatmul.mubr.f32.gmra.mrb[0].mxu0 %v7327
  %v7329 = vpop.f32.mrb[0].mxu0
  %v7330 = vadd.f32 %v6350, %v7329
  %v7331 = vpop.f32.mrb[0].mxu0
  %7332 = vmatprep.mubr.f32.mxu0 0.0
  %v7333 = vand.u32 %v4451, 4294901760
  %v7334 = vsub.f32 %v4451, %v7333
  %7335 = vmatmul.mubr.f32.gmra.mrb[0].mxu0 %v7334
  %v7336 = vpop.f32.mrb[0].mxu0
  %v7337 = vadd.f32 %v6356, %v7336
  %v7338 = vpop.f32.mrb[0].mxu0
  %7339 = vmatprep.mubr.f32.mxu0 0.0
  %v7340 = vand.u32 %v4452, 4294901760
  %v7341 = vsub.f32 %v4452, %v7340
  %7342 = vmatmul.mubr.f32.gmra.mrb[0].mxu0 %v7341
  %v7343 = vpop.f32.mrb[0].mxu0
  %v7344 = vadd.f32 %v6362, %v7343
  %v7345 = vpop.f32.mrb[0].mxu0
  %7346 = vmatprep.mubr.f32.mxu0 0.0
  %v7347 = vand.u32 %v4453, 4294901760
  %v7348 = vsub.f32 %v4453, %v7347
  %7349 = vmatmul.mubr.f32.gmra.mrb[0].mxu0 %v7348
  %v7350 = vpop.f32.mrb[0].mxu0
  %v7351 = vadd.f32 %v6368, %v7350
  %v7352 = vpop.f32.mrb[0].mxu0
  %7353 = vmatprep.mubr.f32.mxu0 0.0
  %v7354 = vand.u32 %v4454, 4294901760
  %v7355 = vsub.f32 %v4454, %v7354
  %7356 = vmatmul.mubr.f32.gmra.mrb[0].mxu0 %v7355
  %v7357 = vpop.f32.mrb[0].mxu0
  %v7358 = vadd.f32 %v6374, %v7357
  %v7359 = vpop.f32.mrb[0].mxu0
  %7360 = vmatprep.mubr.f32.mxu0 0.0
  %v7361 = vand.u32 %v4455, 4294901760
  %v7362 = vsub.f32 %v4455, %v7361
  %7363 = vmatmul.mubr.f32.gmra.mrb[0].mxu0 %v7362
  %v7364 = vpop.f32.mrb[0].mxu0
  %v7365 = vadd.f32 %v6380, %v7364
  %v7366 = vpop.f32.mrb[0].mxu0
  %7367 = vmatprep.mubr.f32.mxu0 0.0
  %v7368 = vand.u32 %v4456, 4294901760
  %v7369 = vsub.f32 %v4456, %v7368
  %7370 = vmatmul.mubr.f32.gmra.mrb[0].mxu0 %v7369
  %v7371 = vpop.f32.mrb[0].mxu0
  %v7372 = vadd.f32 %v6386, %v7371
  %v7373 = vpop.f32.mrb[0].mxu0
  %7374 = vmatprep.mubr.f32.mxu0 0.0
  %v7375 = vand.u32 %v4457, 4294901760
  %v7376 = vsub.f32 %v4457, %v7375
  %7377 = vmatmul.mubr.f32.gmra.mrb[0].mxu0 %v7376
  %v7378 = vpop.f32.mrb[0].mxu0
  %v7379 = vadd.f32 %v6392, %v7378
  %v7380 = vpop.f32.mrb[0].mxu0
  %7381 = vmatprep.mubr.f32.mxu0 0.0
  %v7382 = vand.u32 %v4458, 4294901760
  %v7383 = vsub.f32 %v4458, %v7382
  %7384 = vmatmul.mubr.f32.gmra.mrb[0].mxu0 %v7383
  %v7385 = vpop.f32.mrb[0].mxu0
  %v7386 = vadd.f32 %v6398, %v7385
  %v7387 = vpop.f32.mrb[0].mxu0
  %7388 = vmatprep.mubr.f32.mxu0 0.0
  %v7389 = vand.u32 %v4459, 4294901760
  %v7390 = vsub.f32 %v4459, %v7389
  %7391 = vmatmul.mubr.f32.gmra.mrb[0].mxu0 %v7390
  %v7392 = vpop.f32.mrb[0].mxu0
  %v7393 = vadd.f32 %v6404, %v7392
  %v7394 = vpop.f32.mrb[0].mxu0
  %7395 = vmatprep.mubr.f32.mxu0 0.0
  %v7396 = vand.u32 %v4460, 4294901760
  %v7397 = vsub.f32 %v4460, %v7396
  %7398 = vmatmul.mubr.f32.gmra.mrb[0].mxu0 %v7397
  %v7399 = vpop.f32.mrb[0].mxu0
  %v7400 = vadd.f32 %v6410, %v7399
  %v7401 = vpop.f32.mrb[0].mxu0
  %7402 = vmatprep.mubr.f32.mxu0 0.0
  %v7403 = vand.u32 %v4461, 4294901760
  %v7404 = vsub.f32 %v4461, %v7403
  %7405 = vmatmul.mubr.f32.gmra.mrb[0].mxu0 %v7404
  %v7406 = vpop.f32.mrb[0].mxu0
  %v7407 = vadd.f32 %v6416, %v7406
  %v7408 = vpop.f32.mrb[0].mxu0
  %7409 = vmatprep.mubr.f32.mxu0 0.0
  %v7410 = vand.u32 %v4462, 4294901760
  %v7411 = vsub.f32 %v4462, %v7410
  %7412 = vmatmul.mubr.f32.gmra.mrb[0].mxu0 %v7411
  %v7413 = vpop.f32.mrb[0].mxu0
  %v7414 = vadd.f32 %v6422, %v7413
  %v7415 = vpop.f32.mrb[0].mxu0
  %7416 = vmatprep.mubr.f32.mxu0 0.0
  %v7417 = vand.u32 %v4463, 4294901760
  %v7418 = vsub.f32 %v4463, %v7417
  %7419 = vmatmul.mubr.f32.gmra.mrb[0].mxu0 %v7418
  %v7420 = vpop.f32.mrb[0].mxu0
  %v7421 = vadd.f32 %v6428, %v7420
  %v7422 = vpop.f32.mrb[0].mxu0
  %7423 = vmatprep.mubr.f32.mxu0 0.0
  %v7424 = vand.u32 %v4464, 4294901760
  %v7425 = vsub.f32 %v4464, %v7424
  %7426 = vmatmul.mubr.f32.gmra.mrb[0].mxu0 %v7425
  %v7427 = vpop.f32.mrb[0].mxu0
  %v7428 = vadd.f32 %v6434, %v7427
  %v7429 = vpop.f32.mrb[0].mxu0
  %7430 = vmatprep.mubr.f32.mxu0 0.0
  %v7431 = vand.u32 %v4465, 4294901760
  %v7432 = vsub.f32 %v4465, %v7431
  %7433 = vmatmul.mubr.f32.gmra.mrb[0].mxu0 %v7432
  %v7434 = vpop.f32.mrb[0].mxu0
  %v7435 = vadd.f32 %v6440, %v7434
  %v7436 = vpop.f32.mrb[0].mxu0
  %7437 = vmatprep.mubr.f32.mxu0 0.0
  %v7438 = vand.u32 %v4466, 4294901760
  %v7439 = vsub.f32 %v4466, %v7438
  %7440 = vmatmul.mubr.f32.gmra.mrb[0].mxu0 %v7439
  %v7441 = vpop.f32.mrb[0].mxu0
  %v7442 = vadd.f32 %v6446, %v7441
  %v7443 = vpop.f32.mrb[0].mxu0
  %7444 = vmatprep.mubr.f32.mxu0 0.0
  %v7445 = vand.u32 %v4467, 4294901760
  %v7446 = vsub.f32 %v4467, %v7445
  %7447 = vmatmul.mubr.f32.gmra.mrb[0].mxu0 %v7446
  %v7448 = vpop.f32.mrb[0].mxu0
  %v7449 = vadd.f32 %v6452, %v7448
  %v7450 = vpop.f32.mrb[0].mxu0
  %7451 = vmatprep.mubr.f32.mxu0 0.0
  %v7452 = vand.u32 %v4468, 4294901760
  %v7453 = vsub.f32 %v4468, %v7452
  %7454 = vmatmul.mubr.f32.gmra.mrb[0].mxu0 %v7453
  %v7455 = vpop.f32.mrb[0].mxu0
  %v7456 = vadd.f32 %v6458, %v7455
  %v7457 = vpop.f32.mrb[0].mxu0
  %7458 = vmatprep.mubr.f32.mxu0 0.0
  %v7459 = vand.u32 %v4469, 4294901760
  %v7460 = vsub.f32 %v4469, %v7459
  %7461 = vmatmul.mubr.f32.gmra.mrb[0].mxu0 %v7460
  %v7462 = vpop.f32.mrb[0].mxu0
  %v7463 = vadd.f32 %v6464, %v7462
  %v7464 = vpop.f32.mrb[0].mxu0
  %7465 = vmatprep.mubr.f32.mxu0 0.0
  %v7466 = vand.u32 %v4470, 4294901760
  %v7467 = vsub.f32 %v4470, %v7466
  %7468 = vmatmul.mubr.f32.gmra.mrb[0].mxu0 %v7467
  %v7469 = vpop.f32.mrb[0].mxu0
  %v7470 = vadd.f32 %v6470, %v7469
  %v7471 = vpop.f32.mrb[0].mxu0
  %7472 = vmatprep.mubr.f32.mxu0 0.0
  %v7473 = vand.u32 %v4471, 4294901760
  %v7474 = vsub.f32 %v4471, %v7473
  %7475 = vmatmul.mubr.f32.gmra.mrb[0].mxu0 %v7474
  %v7476 = vpop.f32.mrb[0].mxu0
  %v7477 = vadd.f32 %v6476, %v7476
  %v7478 = vpop.f32.mrb[0].mxu0
  %7479 = vmatprep.mubr.f32.mxu0 0.0
  %v7480 = vand.u32 %v4472, 4294901760
  %v7481 = vsub.f32 %v4472, %v7480
  %7482 = vmatmul.mubr.f32.gmra.mrb[0].mxu0 %v7481
  %v7483 = vpop.f32.mrb[0].mxu0
  %v7484 = vadd.f32 %v6482, %v7483
  %v7485 = vpop.f32.mrb[0].mxu0
  %7486 = vmatprep.mubr.f32.mxu0 0.0
  %v7487 = vand.u32 %v4473, 4294901760
  %v7488 = vsub.f32 %v4473, %v7487
  %7489 = vmatmul.mubr.f32.gmra.mrb[0].mxu0 %v7488
  %v7490 = vpop.f32.mrb[0].mxu0
  %v7491 = vadd.f32 %v6488, %v7490
  %v7492 = vpop.f32.mrb[0].mxu0
  %7493 = vmatprep.mubr.f32.mxu0 0.0
  %v7494 = vand.u32 %v4474, 4294901760
  %v7495 = vsub.f32 %v4474, %v7494
  %7496 = vmatmul.mubr.f32.gmra.mrb[0].mxu0 %v7495
  %v7497 = vpop.f32.mrb[0].mxu0
  %v7498 = vadd.f32 %v6494, %v7497
  %v7499 = vpop.f32.mrb[0].mxu0
  %7500 = vmatprep.mubr.f32.mxu0 0.0
  %v7501 = vand.u32 %v4475, 4294901760
  %v7502 = vsub.f32 %v4475, %v7501
  %7503 = vmatmul.mubr.f32.gmra.mrb[0].mxu0 %v7502
  %v7504 = vpop.f32.mrb[0].mxu0
  %v7505 = vadd.f32 %v6500, %v7504
  %v7506 = vpop.f32.mrb[0].mxu0
  %7507 = vmatprep.mubr.f32.mxu0 0.0
  %v7508 = vand.u32 %v4476, 4294901760
  %v7509 = vsub.f32 %v4476, %v7508
  %7510 = vmatmul.mubr.f32.gmra.mrb[0].mxu0 %v7509
  %v7511 = vpop.f32.mrb[0].mxu0
  %v7512 = vadd.f32 %v6506, %v7511
  %v7513 = vpop.f32.mrb[0].mxu0
  %7514 = vmatprep.mubr.f32.mxu0 0.0
  %v7515 = vand.u32 %v4477, 4294901760
  %v7516 = vsub.f32 %v4477, %v7515
  %7517 = vmatmul.mubr.f32.gmra.mrb[0].mxu0 %v7516
  %v7518 = vpop.f32.mrb[0].mxu0
  %v7519 = vadd.f32 %v6512, %v7518
  %v7520 = vpop.f32.mrb[0].mxu0
  %7521 = vmatprep.mubr.f32.mxu0 0.0
  %v7522 = vand.u32 %v4478, 4294901760
  %v7523 = vsub.f32 %v4478, %v7522
  %7524 = vmatmul.mubr.f32.gmra.mrb[0].mxu0 %v7523
  %v7525 = vpop.f32.mrb[0].mxu0
  %v7526 = vadd.f32 %v6518, %v7525
  %v7527 = vpop.f32.mrb[0].mxu0
  %7528 = vmatprep.mubr.f32.mxu0 0.0
  %v7529 = vand.u32 %v4479, 4294901760
  %v7530 = vsub.f32 %v4479, %v7529
  %7531 = vmatmul.mubr.f32.gmra.mrb[0].mxu0 %v7530
  %v7532 = vpop.f32.mrb[0].mxu0
  %v7533 = vadd.f32 %v6524, %v7532
  %v7534 = vpop.f32.mrb[0].mxu0
  %7535 = vmatprep.mubr.f32.mxu0 0.0
  %v7536 = vand.u32 %v4480, 4294901760
  %v7537 = vsub.f32 %v4480, %v7536
  %7538 = vmatmul.mubr.f32.gmra.mrb[0].mxu0 %v7537
  %v7539 = vpop.f32.mrb[0].mxu0
  %v7540 = vadd.f32 %v6530, %v7539
  %v7541 = vpop.f32.mrb[0].mxu0
  %7542 = vmatprep.mubr.f32.mxu0 0.0
  %v7543 = vand.u32 %v4481, 4294901760
  %v7544 = vsub.f32 %v4481, %v7543
  %7545 = vmatmul.mubr.f32.gmra.mrb[0].mxu0 %v7544
  %v7546 = vpop.f32.mrb[0].mxu0
  %v7547 = vadd.f32 %v6536, %v7546
  %v7548 = vpop.f32.mrb[0].mxu0
  %7549 = vmatprep.mubr.f32.mxu0 0.0
  %v7550 = vand.u32 %v4482, 4294901760
  %v7551 = vsub.f32 %v4482, %v7550
  %7552 = vmatmul.mubr.f32.gmra.mrb[0].mxu0 %v7551
  %v7553 = vpop.f32.mrb[0].mxu0
  %v7554 = vadd.f32 %v6542, %v7553
  %v7555 = vpop.f32.mrb[0].mxu0
  %7556 = vmatprep.mubr.f32.mxu0 0.0
  %v7557 = vand.u32 %v4483, 4294901760
  %v7558 = vsub.f32 %v4483, %v7557
  %7559 = vmatmul.mubr.f32.gmra.mrb[0].mxu0 %v7558
  %v7560 = vpop.f32.mrb[0].mxu0
  %v7561 = vadd.f32 %v6548, %v7560
  %v7562 = vpop.f32.mrb[0].mxu0
  %7563 = vmatprep.mubr.f32.mxu0 0.0
  %v7564 = vand.u32 %v4484, 4294901760
  %v7565 = vsub.f32 %v4484, %v7564
  %7566 = vmatmul.mubr.f32.gmra.mrb[0].mxu0 %v7565
  %v7567 = vpop.f32.mrb[0].mxu0
  %v7568 = vadd.f32 %v6554, %v7567
  %v7569 = vpop.f32.mrb[0].mxu0
  %7570 = vmatprep.mubr.f32.mxu0 0.0
  %v7571 = vand.u32 %v4485, 4294901760
  %v7572 = vsub.f32 %v4485, %v7571
  %7573 = vmatmul.mubr.f32.gmra.mrb[0].mxu0 %v7572
  %v7574 = vpop.f32.mrb[0].mxu0
  %v7575 = vadd.f32 %v6560, %v7574
  %v7576 = vpop.f32.mrb[0].mxu0
  %7577 = vmatprep.mubr.f32.mxu0 0.0
  %v7578 = vand.u32 %v4486, 4294901760
  %v7579 = vsub.f32 %v4486, %v7578
  %7580 = vmatmul.mubr.f32.gmra.mrb[0].mxu0 %v7579
  %v7581 = vpop.f32.mrb[0].mxu0
  %v7582 = vadd.f32 %v6566, %v7581
  %v7583 = vpop.f32.mrb[0].mxu0
  %7584 = vmatprep.mubr.f32.mxu0 0.0
  %v7585 = vand.u32 %v4487, 4294901760
  %v7586 = vsub.f32 %v4487, %v7585
  %7587 = vmatmul.mubr.f32.gmra.mrb[0].mxu0 %v7586
  %v7588 = vpop.f32.mrb[0].mxu0
  %v7589 = vadd.f32 %v6572, %v7588
  %v7590 = vpop.f32.mrb[0].mxu0
  %7591 = vmatprep.mubr.f32.mxu0 0.0
  %v7592 = vand.u32 %v4488, 4294901760
  %v7593 = vsub.f32 %v4488, %v7592
  %7594 = vmatmul.mubr.f32.gmra.mrb[0].mxu0 %v7593
  %v7595 = vpop.f32.mrb[0].mxu0
  %v7596 = vadd.f32 %v6578, %v7595
  %v7597 = vpop.f32.mrb[0].mxu0
  %7598 = vmatprep.mubr.f32.mxu0 0.0
  %v7599 = vand.u32 %v4489, 4294901760
  %v7600 = vsub.f32 %v4489, %v7599
  %7601 = vmatmul.mubr.f32.gmra.mrb[0].mxu0 %v7600
  %v7602 = vpop.f32.mrb[0].mxu0
  %v7603 = vadd.f32 %v6584, %v7602
  %v7604 = vpop.f32.mrb[0].mxu0
  %7605 = vmatprep.mubr.f32.mxu0 0.0
  %v7606 = vand.u32 %v4490, 4294901760
  %v7607 = vsub.f32 %v4490, %v7606
  %7608 = vmatmul.mubr.f32.gmra.mrb[0].mxu0 %v7607
  %v7609 = vpop.f32.mrb[0].mxu0
  %v7610 = vadd.f32 %v6590, %v7609
  %v7611 = vpop.f32.mrb[0].mxu0
  %7612 = vmatprep.mubr.f32.mxu0 0.0
  %v7613 = vand.u32 %v4491, 4294901760
  %v7614 = vsub.f32 %v4491, %v7613
  %7615 = vmatmul.mubr.f32.gmra.mrb[0].mxu0 %v7614
  %v7616 = vpop.f32.mrb[0].mxu0
  %v7617 = vadd.f32 %v6596, %v7616
  %v7618 = vpop.f32.mrb[0].mxu0
  %7619 = vmatprep.mubr.f32.mxu0 0.0
  %v7620 = vand.u32 %v4492, 4294901760
  %v7621 = vsub.f32 %v4492, %v7620
  %7622 = vmatmul.mubr.f32.gmra.mrb[0].mxu0 %v7621
  %v7623 = vpop.f32.mrb[0].mxu0
  %v7624 = vadd.f32 %v6602, %v7623
  %v7625 = vpop.f32.mrb[0].mxu0
  %7626 = vmatprep.mubr.f32.mxu0 0.0
  %v7627 = vand.u32 %v4493, 4294901760
  %v7628 = vsub.f32 %v4493, %v7627
  %7629 = vmatmul.mubr.f32.gmra.mrb[0].mxu0 %v7628
  %v7630 = vpop.f32.mrb[0].mxu0
  %v7631 = vadd.f32 %v6608, %v7630
  %v7632 = vpop.f32.mrb[0].mxu0
  %7633 = vmatprep.mubr.f32.mxu0 0.0
  %v7634 = vand.u32 %v4494, 4294901760
  %v7635 = vsub.f32 %v4494, %v7634
  %7636 = vmatmul.mubr.f32.gmra.mrb[0].mxu0 %v7635
  %v7637 = vpop.f32.mrb[0].mxu0
  %v7638 = vadd.f32 %v6614, %v7637
  %v7639 = vpop.f32.mrb[0].mxu0
  %7640 = vmatprep.mubr.f32.mxu0 0.0
  %v7641 = vand.u32 %v4495, 4294901760
  %v7642 = vsub.f32 %v4495, %v7641
  %7643 = vmatmul.mubr.f32.gmra.mrb[0].mxu0 %v7642
  %v7644 = vpop.f32.mrb[0].mxu0
  %v7645 = vadd.f32 %v6620, %v7644
  %v7646 = vpop.f32.mrb[0].mxu0
  %7647 = vmatprep.mubr.f32.mxu0 0.0
  %v7648 = vand.u32 %v4496, 4294901760
  %v7649 = vsub.f32 %v4496, %v7648
  %7650 = vmatmul.mubr.f32.gmra.mrb[0].mxu0 %v7649
  %v7651 = vpop.f32.mrb[0].mxu0
  %v7652 = vadd.f32 %v6626, %v7651
  %v7653 = vpop.f32.mrb[0].mxu0
  %7654 = vmatprep.mubr.f32.mxu0 0.0
  %v7655 = vand.u32 %v4497, 4294901760
  %v7656 = vsub.f32 %v4497, %v7655
  %7657 = vmatmul.mubr.f32.gmra.mrb[0].mxu0 %v7656
  %v7658 = vpop.f32.mrb[0].mxu0
  %v7659 = vadd.f32 %v6632, %v7658
  %v7660 = vpop.f32.mrb[0].mxu0
  %7661 = vmatprep.mubr.f32.mxu0 0.0
  %v7662 = vand.u32 %v4498, 4294901760
  %v7663 = vsub.f32 %v4498, %v7662
  %7664 = vmatmul.mubr.f32.gmra.mrb[0].mxu0 %v7663
  %v7665 = vpop.f32.mrb[0].mxu0
  %v7666 = vadd.f32 %v6638, %v7665
  %v7667 = vpop.f32.mrb[0].mxu0
  %7668 = vmatprep.mubr.f32.mxu0 0.0
  %v7669 = vand.u32 %v4499, 4294901760
  %v7670 = vsub.f32 %v4499, %v7669
  %7671 = vmatmul.mubr.f32.gmra.mrb[0].mxu0 %v7670
  %v7672 = vpop.f32.mrb[0].mxu0
  %v7673 = vadd.f32 %v6644, %v7672
  %v7674 = vpop.f32.mrb[0].mxu0
  %7675 = vmatprep.mubr.f32.mxu0 0.0
  %v7676 = vand.u32 %v4500, 4294901760
  %v7677 = vsub.f32 %v4500, %v7676
  %7678 = vmatmul.mubr.f32.gmra.mrb[0].mxu0 %v7677
  %v7679 = vpop.f32.mrb[0].mxu0
  %v7680 = vadd.f32 %v6650, %v7679
  %v7681 = vpop.f32.mrb[0].mxu0
  %7682 = vmatprep.mubr.f32.mxu0 0.0
  %v7683 = vand.u32 %v4501, 4294901760
  %v7684 = vsub.f32 %v4501, %v7683
  %7685 = vmatmul.mubr.f32.gmra.mrb[0].mxu0 %v7684
  %v7686 = vpop.f32.mrb[0].mxu0
  %v7687 = vadd.f32 %v6656, %v7686
  %v7688 = vpop.f32.mrb[0].mxu0
  %7689 = vmatprep.mubr.f32.mxu0 0.0
  %v7690 = vand.u32 %v4502, 4294901760
  %v7691 = vsub.f32 %v4502, %v7690
  %7692 = vmatmul.mubr.f32.gmra.mrb[0].mxu0 %v7691
  %v7693 = vpop.f32.mrb[0].mxu0
  %v7694 = vadd.f32 %v6662, %v7693
  %v7695 = vpop.f32.mrb[0].mxu0
  %7696 = vmatprep.mubr.f32.mxu0 0.0
  %v7697 = vand.u32 %v4503, 4294901760
  %v7698 = vsub.f32 %v4503, %v7697
  %7699 = vmatmul.mubr.f32.gmra.mrb[0].mxu0 %v7698
  %v7700 = vpop.f32.mrb[0].mxu0
  %v7701 = vadd.f32 %v6668, %v7700
  %v7702 = vpop.f32.mrb[0].mxu0
  %7703 = vmatprep.mubr.f32.mxu0 0.0
  %v7704 = vand.u32 %v4504, 4294901760
  %v7705 = vsub.f32 %v4504, %v7704
  %7706 = vmatmul.mubr.f32.gmra.mrb[0].mxu0 %v7705
  %v7707 = vpop.f32.mrb[0].mxu0
  %v7708 = vadd.f32 %v6674, %v7707
  %v7709 = vpop.f32.mrb[0].mxu0
  %7710 = vmatprep.mubr.f32.mxu0 0.0
  %v7711 = vand.u32 %v4505, 4294901760
  %v7712 = vsub.f32 %v4505, %v7711
  %7713 = vmatmul.mubr.f32.gmra.mrb[0].mxu0 %v7712
  %v7714 = vpop.f32.mrb[0].mxu0
  %v7715 = vadd.f32 %v6680, %v7714
  %v7716 = vpop.f32.mrb[0].mxu0
  %7717 = vmatprep.mubr.f32.mxu0 0.0
  %v7718 = vand.u32 %v4506, 4294901760
  %v7719 = vsub.f32 %v4506, %v7718
  %7720 = vmatmul.mubr.f32.gmra.mrb[0].mxu0 %v7719
  %v7721 = vpop.f32.mrb[0].mxu0
  %v7722 = vadd.f32 %v6686, %v7721
  %v7723 = vpop.f32.mrb[0].mxu0
  %7724 = vmatprep.mubr.f32.mxu0 0.0
  %v7725 = vand.u32 %v4507, 4294901760
  %v7726 = vsub.f32 %v4507, %v7725
  %7727 = vmatmul.mubr.f32.gmra.mrb[0].mxu0 %v7726
  %v7728 = vpop.f32.mrb[0].mxu0
  %v7729 = vadd.f32 %v6692, %v7728
  %v7730 = vpop.f32.mrb[0].mxu0
  %7731 = vmatprep.mubr.f32.mxu0 0.0
  %v7732 = vand.u32 %v4508, 4294901760
  %v7733 = vsub.f32 %v4508, %v7732
  %7734 = vmatmul.mubr.f32.gmra.mrb[0].mxu0 %v7733
  %v7735 = vpop.f32.mrb[0].mxu0
  %v7736 = vadd.f32 %v6698, %v7735
  %v7737 = vpop.f32.mrb[0].mxu0
  %7738 = vmatprep.mubr.f32.mxu0 0.0
  %v7739 = vand.u32 %v4509, 4294901760
  %v7740 = vsub.f32 %v4509, %v7739
  %7741 = vmatmul.mubr.f32.gmra.mrb[0].mxu0 %v7740
  %v7742 = vpop.f32.mrb[0].mxu0
  %v7743 = vadd.f32 %v6704, %v7742
  %v7744 = vpop.f32.mrb[0].mxu0
  %7745 = vmatprep.mubr.f32.mxu0 0.0
  %v7746 = vand.u32 %v4510, 4294901760
  %v7747 = vsub.f32 %v4510, %v7746
  %7748 = vmatmul.mubr.f32.gmra.mrb[0].mxu0 %v7747
  %v7749 = vpop.f32.mrb[0].mxu0
  %v7750 = vadd.f32 %v6710, %v7749
  %v7751 = vpop.f32.mrb[0].mxu0
  %7752 = vmatprep.mubr.f32.mxu0 0.0
  %v7753 = vand.u32 %v4511, 4294901760
  %v7754 = vsub.f32 %v4511, %v7753
  %7755 = vmatmul.mubr.f32.gmra.mrb[0].mxu0 %v7754
  %v7756 = vpop.f32.mrb[0].mxu0
  %v7757 = vadd.f32 %v6716, %v7756
  %v7758 = vpop.f32.mrb[0].mxu0
  %7759 = vmatprep.mubr.f32.mxu0 0.0
  %v7760 = vand.u32 %v4512, 4294901760
  %v7761 = vsub.f32 %v4512, %v7760
  %7762 = vmatmul.mubr.f32.gmra.mrb[0].mxu0 %v7761
  %v7763 = vpop.f32.mrb[0].mxu0
  %v7764 = vadd.f32 %v6722, %v7763
  %v7765 = vpop.f32.mrb[0].mxu0
  %7766 = vmatprep.mubr.f32.mxu0 0.0
  %v7767 = vand.u32 %v4513, 4294901760
  %v7768 = vsub.f32 %v4513, %v7767
  %7769 = vmatmul.mubr.f32.gmra.mrb[0].mxu0 %v7768
  %v7770 = vpop.f32.mrb[0].mxu0
  %v7771 = vadd.f32 %v6728, %v7770
  %v7772 = vpop.f32.mrb[0].mxu0
  %7773 = vmatprep.mubr.f32.mxu0 0.0
  %v7774 = vand.u32 %v4514, 4294901760
  %v7775 = vsub.f32 %v4514, %v7774
  %7776 = vmatmul.mubr.f32.gmra.mrb[0].mxu0 %v7775
  %v7777 = vpop.f32.mrb[0].mxu0
  %v7778 = vadd.f32 %v6734, %v7777
  %v7779 = vpop.f32.mrb[0].mxu0
  %7780 = vmatprep.mubr.f32.mxu0 0.0
  %v7781 = vand.u32 %v4515, 4294901760
  %v7782 = vsub.f32 %v4515, %v7781
  %7783 = vmatmul.mubr.f32.gmra.mrb[0].mxu0 %v7782
  %v7784 = vpop.f32.mrb[0].mxu0
  %v7785 = vadd.f32 %v6740, %v7784
  %v7786 = vpop.f32.mrb[0].mxu0
  %7787 = vmatprep.mubr.f32.mxu0 0.0
  %v7788 = vand.u32 %v4516, 4294901760
  %v7789 = vsub.f32 %v4516, %v7788
  %7790 = vmatmul.mubr.f32.gmra.mrb[0].mxu0 %v7789
  %v7791 = vpop.f32.mrb[0].mxu0
  %v7792 = vadd.f32 %v6746, %v7791
  %v7793 = vpop.f32.mrb[0].mxu0
  %7794 = vmatprep.mubr.f32.mxu0 0.0
  %v7795 = vand.u32 %v4517, 4294901760
  %v7796 = vsub.f32 %v4517, %v7795
  %7797 = vmatmul.mubr.f32.gmra.mrb[0].mxu0 %v7796
  %v7798 = vpop.f32.mrb[0].mxu0
  %v7799 = vadd.f32 %v6752, %v7798
  %v7800 = vpop.f32.mrb[0].mxu0
  %7801 = vmatprep.mubr.f32.mxu0 0.0
  %v7802 = vand.u32 %v4518, 4294901760
  %v7803 = vsub.f32 %v4518, %v7802
  %7804 = vmatmul.mubr.f32.gmra.mrb[0].mxu0 %v7803
  %v7805 = vpop.f32.mrb[0].mxu0
  %v7806 = vadd.f32 %v6758, %v7805
  %v7807 = vpop.f32.mrb[0].mxu0
  %7808 = vmatprep.mubr.f32.mxu0 0.0
  %v7809 = vand.u32 %v4519, 4294901760
  %v7810 = vsub.f32 %v4519, %v7809
  %7811 = vmatmul.mubr.f32.gmra.mrb[0].mxu0 %v7810
  %v7812 = vpop.f32.mrb[0].mxu0
  %v7813 = vadd.f32 %v6764, %v7812
  %v7814 = vpop.f32.mrb[0].mxu0
  %7815 = vmatprep.mubr.f32.mxu0 0.0
  %v7816 = vand.u32 %v4520, 4294901760
  %v7817 = vsub.f32 %v4520, %v7816
  %7818 = vmatmul.mubr.f32.gmra.mrb[0].mxu0 %v7817
  %v7819 = vpop.f32.mrb[0].mxu0
  %v7820 = vadd.f32 %v6770, %v7819
  %v7821 = vpop.f32.mrb[0].mxu0
  %7822 = vmatprep.mubr.f32.mxu0 0.0
  %v7823 = vand.u32 %v4521, 4294901760
  %v7824 = vsub.f32 %v4521, %v7823
  %7825 = vmatmul.mubr.f32.gmra.mrb[0].mxu0 %v7824
  %v7826 = vpop.f32.mrb[0].mxu0
  %v7827 = vadd.f32 %v6776, %v7826
  %v7828 = vpop.f32.mrb[0].mxu0
  %7829 = vmatprep.mubr.f32.mxu0 0.0
  %v7830 = vand.u32 %v4522, 4294901760
  %v7831 = vsub.f32 %v4522, %v7830
  %7832 = vmatmul.mubr.f32.gmra.mrb[0].mxu0 %v7831
  %v7833 = vpop.f32.mrb[0].mxu0
  %v7834 = vadd.f32 %v6782, %v7833
  %v7835 = vpop.f32.mrb[0].mxu0
  %7836 = vmatprep.mubr.f32.mxu0 0.0
  %v7837 = vand.u32 %v4523, 4294901760
  %v7838 = vsub.f32 %v4523, %v7837
  %7839 = vmatmul.mubr.f32.gmra.mrb[0].mxu0 %v7838
  %v7840 = vpop.f32.mrb[0].mxu0
  %v7841 = vadd.f32 %v6788, %v7840
  %v7842 = vpop.f32.mrb[0].mxu0
  %7843 = vmatprep.mubr.f32.mxu0 0.0
  %v7844 = vand.u32 %v4524, 4294901760
  %v7845 = vsub.f32 %v4524, %v7844
  %7846 = vmatmul.mubr.f32.gmra.mrb[0].mxu0 %v7845
  %v7847 = vpop.f32.mrb[0].mxu0
  %v7848 = vadd.f32 %v6794, %v7847
  %v7849 = vpop.f32.mrb[0].mxu0
  %7850 = vmatprep.mubr.f32.mxu0 0.0
  %v7851 = vand.u32 %v4525, 4294901760
  %v7852 = vsub.f32 %v4525, %v7851
  %7853 = vmatmul.mubr.f32.gmra.mrb[0].mxu0 %v7852
  %v7854 = vpop.f32.mrb[0].mxu0
  %v7855 = vadd.f32 %v6800, %v7854
  %v7856 = vpop.f32.mrb[0].mxu0
  %7857 = vmatprep.mubr.f32.mxu0 0.0
  %v7858 = vand.u32 %v4526, 4294901760
  %v7859 = vsub.f32 %v4526, %v7858
  %7860 = vmatmul.mubr.f32.gmra.mrb[0].mxu0 %v7859
  %v7861 = vpop.f32.mrb[0].mxu0
  %v7862 = vadd.f32 %v6806, %v7861
  %v7863 = vpop.f32.mrb[0].mxu0
  %7864 = vmatprep.mubr.f32.mxu0 0.0
  %v7865 = vand.u32 %v4527, 4294901760
  %v7866 = vsub.f32 %v4527, %v7865
  %7867 = vmatmul.mubr.f32.gmra.mrb[0].mxu0 %v7866
  %v7868 = vpop.f32.mrb[0].mxu0
  %v7869 = vadd.f32 %v6812, %v7868
  %v7870 = vpop.f32.mrb[0].mxu0
  %7871 = vmatprep.mubr.f32.mxu0 0.0
  %v7872 = vand.u32 %v4528, 4294901760
  %v7873 = vsub.f32 %v4528, %v7872
  %7874 = vmatmul.mubr.f32.gmra.mrb[0].mxu0 %v7873
  %v7875 = vpop.f32.mrb[0].mxu0
  %v7876 = vadd.f32 %v6818, %v7875
  %v7877 = vpop.f32.mrb[0].mxu0
  %7878 = vmatprep.mubr.f32.mxu0 0.0
  %v7879 = vand.u32 %v4529, 4294901760
  %v7880 = vsub.f32 %v4529, %v7879
  %7881 = vmatmul.mubr.f32.gmra.mrb[0].mxu0 %v7880
  %v7882 = vpop.f32.mrb[0].mxu0
  %v7883 = vadd.f32 %v6824, %v7882
  %v7884 = vpop.f32.mrb[0].mxu0
  %7885 = vmatprep.mubr.f32.mxu0 0.0
  %v7886 = vand.u32 %v4530, 4294901760
  %v7887 = vsub.f32 %v4530, %v7886
  %7888 = vmatmul.mubr.f32.gmra.mrb[0].mxu0 %v7887
  %v7889 = vpop.f32.mrb[0].mxu0
  %v7890 = vadd.f32 %v6830, %v7889
  %v7891 = vpop.f32.mrb[0].mxu0
  %7892 = vmatprep.mubr.f32.mxu0 0.0
  %v7893 = vand.u32 %v4531, 4294901760
  %v7894 = vsub.f32 %v4531, %v7893
  %7895 = vmatmul.mubr.f32.gmra.mrb[0].mxu0 %v7894
  %v7896 = vpop.f32.mrb[0].mxu0
  %v7897 = vadd.f32 %v6836, %v7896
  %v7898 = vpop.f32.mrb[0].mxu0
  %7899 = vmatprep.mubr.f32.mxu0 0.0
  %v7900 = vand.u32 %v4532, 4294901760
  %v7901 = vsub.f32 %v4532, %v7900
  %7902 = vmatmul.mubr.f32.gmra.mrb[0].mxu0 %v7901
  %v7903 = vpop.f32.mrb[0].mxu0
  %v7904 = vadd.f32 %v6842, %v7903
  %v7905 = vpop.f32.mrb[0].mxu0
  %7906 = vmatprep.mubr.f32.mxu0 0.0
  %v7907 = vand.u32 %v4533, 4294901760
  %v7908 = vsub.f32 %v4533, %v7907
  %7909 = vmatmul.mubr.f32.gmra.mrb[0].mxu0 %v7908
  %v7910 = vpop.f32.mrb[0].mxu0
  %v7911 = vadd.f32 %v6848, %v7910
  %v7912 = vpop.f32.mrb[0].mxu0
  %7913 = vmatprep.mubr.f32.mxu0 0.0
  %v7914 = vand.u32 %v4534, 4294901760
  %v7915 = vsub.f32 %v4534, %v7914
  %7916 = vmatmul.mubr.f32.gmra.mrb[0].mxu0 %v7915
  %v7917 = vpop.f32.mrb[0].mxu0
  %v7918 = vadd.f32 %v6854, %v7917
  %v7919 = vpop.f32.mrb[0].mxu0
  %7920 = vmatprep.mubr.f32.mxu0 0.0
  %v7921 = vand.u32 %v4535, 4294901760
  %v7922 = vsub.f32 %v4535, %v7921
  %7923 = vmatmul.mubr.f32.gmra.mrb[0].mxu0 %v7922
  %v7924 = vpop.f32.mrb[0].mxu0
  %v7925 = vadd.f32 %v6860, %v7924
  %v7926 = vpop.f32.mrb[0].mxu0
  %7927 = vmatprep.mubr.f32.mxu0 0.0
  %v7928 = vand.u32 %v4536, 4294901760
  %v7929 = vsub.f32 %v4536, %v7928
  %7930 = vmatmul.mubr.f32.gmra.mrb[0].mxu0 %v7929
  %v7931 = vpop.f32.mrb[0].mxu0
  %v7932 = vadd.f32 %v6866, %v7931
  %v7933 = vpop.f32.mrb[0].mxu0
  %7934 = vmatprep.mubr.f32.mxu0 0.0
  %v7935 = vand.u32 %v4537, 4294901760
  %v7936 = vsub.f32 %v4537, %v7935
  %7937 = vmatmul.mubr.f32.gmra.mrb[0].mxu0 %v7936
  %v7938 = vpop.f32.mrb[0].mxu0
  %v7939 = vadd.f32 %v6872, %v7938
  %v7940 = vpop.f32.mrb[0].mxu0
  %7941 = vmatprep.mubr.f32.mxu0 0.0
  %v7942 = vand.u32 %v4538, 4294901760
  %v7943 = vsub.f32 %v4538, %v7942
  %7944 = vmatmul.mubr.f32.gmra.mrb[0].mxu0 %v7943
  %v7945 = vpop.f32.mrb[0].mxu0
  %v7946 = vadd.f32 %v6878, %v7945
  %v7947 = vpop.f32.mrb[0].mxu0
  %7948 = vmatprep.mubr.f32.mxu0 0.0
  %v7949 = vand.u32 %v4539, 4294901760
  %v7950 = vsub.f32 %v4539, %v7949
  %7951 = vmatmul.mubr.f32.gmra.mrb[0].mxu0 %v7950
  %v7952 = vpop.f32.mrb[0].mxu0
  %v7953 = vadd.f32 %v6884, %v7952
  %v7954 = vpop.f32.mrb[0].mxu0
  %7955 = vmatprep.mubr.f32.mxu0 0.0
  %v7956 = vand.u32 %v4540, 4294901760
  %v7957 = vsub.f32 %v4540, %v7956
  %7958 = vmatmul.mubr.f32.gmra.mrb[0].mxu0 %v7957
  %v7959 = vpop.f32.mrb[0].mxu0
  %v7960 = vadd.f32 %v6890, %v7959
  %v7961 = vpop.f32.mrb[0].mxu0
  %7962 = vmatprep.mubr.f32.mxu0 0.0
  %v7963 = vand.u32 %v4541, 4294901760
  %v7964 = vsub.f32 %v4541, %v7963
  %7965 = vmatmul.mubr.f32.gmra.mrb[0].mxu0 %v7964
  %v7966 = vpop.f32.mrb[0].mxu0
  %v7967 = vadd.f32 %v6896, %v7966
  %v7968 = vpop.f32.mrb[0].mxu0
  %7969 = vmatprep.mubr.f32.mxu0 0.0
  %v7970 = vand.u32 %v4542, 4294901760
  %v7971 = vsub.f32 %v4542, %v7970
  %7972 = vmatmul.mubr.f32.gmra.mrb[0].mxu0 %v7971
  %v7973 = vpop.f32.mrb[0].mxu0
  %v7974 = vadd.f32 %v6902, %v7973
  %v7975 = vpop.f32.mrb[0].mxu0
  %7976 = vmatprep.mubr.f32.mxu0 0.0
  %v7977 = vand.u32 %v4543, 4294901760
  %v7978 = vsub.f32 %v4543, %v7977
  %7979 = vmatmul.mubr.f32.gmra.mrb[0].mxu0 %v7978
  %v7980 = vpop.f32.mrb[0].mxu0
  %v7981 = vadd.f32 %v6908, %v7980
  %v7982 = vpop.f32.mrb[0].mxu0
  %7983 = vmatprep.mubr.f32.mxu0 0.0
  %v7984 = vand.u32 %v4544, 4294901760
  %v7985 = vsub.f32 %v4544, %v7984
  %7986 = vmatmul.mubr.f32.gmra.mrb[0].mxu0 %v7985
  %v7987 = vpop.f32.mrb[0].mxu0
  %v7988 = vadd.f32 %v6914, %v7987
  %v7989 = vpop.f32.mrb[0].mxu0
  %7990 = vmatprep.mubr.f32.mxu0 0.0
  %v7991 = vand.u32 %v4545, 4294901760
  %v7992 = vsub.f32 %v4545, %v7991
  %7993 = vmatmul.mubr.f32.gmra.mrb[0].mxu0 %v7992
  %v7994 = vpop.f32.mrb[0].mxu0
  %v7995 = vadd.f32 %v6920, %v7994
  %v7996 = vpop.f32.mrb[0].mxu0
  %7997 = vmatprep.mubr.f32.mxu0 0.0
  %v7998 = vand.u32 %v4546, 4294901760
  %v7999 = vsub.f32 %v4546, %v7998
  %8000 = vmatmul.mubr.f32.gmra.mrb[0].mxu0 %v7999
  %v8001 = vpop.f32.mrb[0].mxu0
  %v8002 = vadd.f32 %v6926, %v8001
  %v8003 = vpop.f32.mrb[0].mxu0
  %8004 = vmatprep.mubr.f32.mxu0 0.0
  %v8005 = vand.u32 %v4547, 4294901760
  %v8006 = vsub.f32 %v4547, %v8005
  %8007 = vmatmul.mubr.f32.gmra.mrb[0].mxu0 %v8006
  %v8008 = vpop.f32.mrb[0].mxu0
  %v8009 = vadd.f32 %v6932, %v8008
  %v8010 = vpop.f32.mrb[0].mxu0
  %8011 = vmatprep.mubr.f32.mxu0 0.0
  %v8012 = vand.u32 %v4548, 4294901760
  %v8013 = vsub.f32 %v4548, %v8012
  %8014 = vmatmul.mubr.f32.gmra.mrb[0].mxu0 %v8013
  %v8015 = vpop.f32.mrb[0].mxu0
  %v8016 = vadd.f32 %v6938, %v8015
  %v8017 = vpop.f32.mrb[0].mxu0
  %8018 = vmatprep.mubr.f32.mxu0 0.0
  %v8019 = vand.u32 %v4549, 4294901760
  %v8020 = vsub.f32 %v4549, %v8019
  %8021 = vmatmul.mubr.f32.gmra.mrb[0].mxu0 %v8020
  %v8022 = vpop.f32.mrb[0].mxu0
  %v8023 = vadd.f32 %v6944, %v8022
  %v8024 = vpop.f32.mrb[0].mxu0
  %8025 = vmatprep.mubr.f32.mxu0 0.0
  %v8026 = vand.u32 %v4550, 4294901760
  %v8027 = vsub.f32 %v4550, %v8026
  %8028 = vmatmul.mubr.f32.gmra.mrb[0].mxu0 %v8027
  %v8029 = vpop.f32.mrb[0].mxu0
  %v8030 = vadd.f32 %v6950, %v8029
  %v8031 = vpop.f32.mrb[0].mxu0
  %8032 = vmatprep.mubr.f32.mxu0 0.0
  %v8033 = vand.u32 %v4551, 4294901760
  %v8034 = vsub.f32 %v4551, %v8033
  %8035 = vmatmul.mubr.f32.gmra.mrb[0].mxu0 %v8034
  %v8036 = vpop.f32.mrb[0].mxu0
  %v8037 = vadd.f32 %v6956, %v8036
  %v8038 = vpop.f32.mrb[0].mxu0
  %8039 = vmatprep.mubr.f32.mxu0 0.0
  %v8040 = vand.u32 %v4552, 4294901760
  %v8041 = vsub.f32 %v4552, %v8040
  %8042 = vmatmul.mubr.f32.gmra.mrb[0].mxu0 %v8041
  %v8043 = vpop.f32.mrb[0].mxu0
  %v8044 = vadd.f32 %v6962, %v8043
  %v8045 = vpop.f32.mrb[0].mxu0
  %8046 = vmatprep.mubr.f32.mxu0 0.0
  %v8047 = vand.u32 %v4553, 4294901760
  %v8048 = vsub.f32 %v4553, %v8047
  %8049 = vmatmul.mubr.f32.gmra.mrb[0].mxu0 %v8048
  %v8050 = vpop.f32.mrb[0].mxu0
  %v8051 = vadd.f32 %v6968, %v8050
  %v8052 = vpop.f32.mrb[0].mxu0
  %8053 = vmatprep.mubr.f32.mxu0 0.0
  %v8054 = vand.u32 %v4554, 4294901760
  %v8055 = vsub.f32 %v4554, %v8054
  %8056 = vmatmul.mubr.f32.gmra.mrb[0].mxu0 %v8055
  %v8057 = vpop.f32.mrb[0].mxu0
  %v8058 = vadd.f32 %v6974, %v8057
  %v8059 = vpop.f32.mrb[0].mxu0
  %8060 = vmatprep.mubr.f32.mxu0 0.0
  %v8061 = vand.u32 %v4555, 4294901760
  %v8062 = vsub.f32 %v4555, %v8061
  %8063 = vmatmul.mubr.f32.gmra.mrb[0].mxu0 %v8062
  %v8064 = vpop.f32.mrb[0].mxu0
  %v8065 = vadd.f32 %v6980, %v8064
  %v8066 = vpop.f32.mrb[0].mxu0
  %8067 = vmatprep.mubr.f32.mxu0 0.0
  %v8068 = vand.u32 %v4556, 4294901760
  %v8069 = vsub.f32 %v4556, %v8068
  %8070 = vmatmul.mubr.f32.gmra.mrb[0].mxu0 %v8069
  %v8071 = vpop.f32.mrb[0].mxu0
  %v8072 = vadd.f32 %v6986, %v8071
  %v8073 = vpop.f32.mrb[0].mxu0
  %8074 = vmatprep.mubr.f32.mxu0 0.0
  %v8075 = vand.u32 %v4557, 4294901760
  %v8076 = vsub.f32 %v4557, %v8075
  %8077 = vmatmul.mubr.f32.gmra.mrb[0].mxu0 %v8076
  %v8078 = vpop.f32.mrb[0].mxu0
  %v8079 = vadd.f32 %v6992, %v8078
  %v8080 = vpop.f32.mrb[0].mxu0
  %8081 = vmatprep.mubr.f32.mxu0 0.0
  %v8082 = vand.u32 %v4558, 4294901760
  %v8083 = vsub.f32 %v4558, %v8082
  %8084 = vmatmul.mubr.f32.gmra.mrb[0].mxu0 %v8083
  %v8085 = vpop.f32.mrb[0].mxu0
  %v8086 = vadd.f32 %v6998, %v8085
  %v8087 = vpop.f32.mrb[0].mxu0
  %8088 = vmatprep.mubr.f32.mxu0 0.0
  %v8089 = vand.u32 %v4559, 4294901760
  %v8090 = vsub.f32 %v4559, %v8089
  %8091 = vmatmul.mubr.f32.gmra.mrb[0].mxu0 %v8090
  %v8092 = vpop.f32.mrb[0].mxu0
  %v8093 = vadd.f32 %v7004, %v8092
  %v8094 = vpop.f32.mrb[0].mxu0
  %8095 = vmatprep.mubr.f32.mxu0 0.0
  %v8096 = vand.u32 %v4560, 4294901760
  %v8097 = vsub.f32 %v4560, %v8096
  %8098 = vmatmul.mubr.f32.gmra.mrb[0].mxu0 %v8097
  %v8099 = vpop.f32.mrb[0].mxu0
  %v8100 = vadd.f32 %v7010, %v8099
  %v8101 = vpop.f32.mrb[0].mxu0
  %8102 = vmatprep.mubr.f32.mxu0 0.0
  %v8103 = vand.u32 %v4561, 4294901760
  %v8104 = vsub.f32 %v4561, %v8103
  %8105 = vmatmul.mubr.f32.gmra.mrb[0].mxu0 %v8104
  %v8106 = vpop.f32.mrb[0].mxu0
  %v8107 = vadd.f32 %v7016, %v8106
  %v8108 = vpop.f32.mrb[0].mxu0
  %8109 = vmatprep.mubr.f32.mxu0 0.0
  %v8110 = vand.u32 %v4562, 4294901760
  %v8111 = vsub.f32 %v4562, %v8110
  %8112 = vmatmul.mubr.f32.gmra.mrb[0].mxu0 %v8111
  %v8113 = vpop.f32.mrb[0].mxu0
  %v8114 = vadd.f32 %v7022, %v8113
  %v8115 = vpop.f32.mrb[0].mxu0
  %8116 = vmatprep.mubr.f32.mxu0 0.0
  %v8117 = vand.u32 %v4563, 4294901760
  %v8118 = vsub.f32 %v4563, %v8117
  %8119 = vmatmul.mubr.f32.gmra.mrb[0].mxu0 %v8118
  %v8120 = vpop.f32.mrb[0].mxu0
  %v8121 = vadd.f32 %v7028, %v8120
  %v8122 = vpop.f32.mrb[0].mxu0
  %8123 = vmatprep.mubr.f32.mxu0 0.0
  %v8124 = vand.u32 %v4564, 4294901760
  %v8125 = vsub.f32 %v4564, %v8124
  %8126 = vmatmul.mubr.f32.gmra.mrb[0].mxu0 %v8125
  %v8127 = vpop.f32.mrb[0].mxu0
  %v8128 = vadd.f32 %v7034, %v8127
  %v8129 = vpop.f32.mrb[0].mxu0
  %8130 = vmatprep.mubr.f32.mxu0 0.0
  %v8131 = vand.u32 %v4565, 4294901760
  %v8132 = vsub.f32 %v4565, %v8131
  %8133 = vmatmul.mubr.f32.gmra.mrb[0].mxu0 %v8132
  %v8134 = vpop.f32.mrb[0].mxu0
  %v8135 = vadd.f32 %v7040, %v8134
  %v8136 = vpop.f32.mrb[0].mxu0
  %8137 = vmatprep.mubr.f32.mxu0 0.0
  %v8138 = vand.u32 %v4566, 4294901760
  %v8139 = vsub.f32 %v4566, %v8138
  %8140 = vmatmul.mubr.f32.gmra.mrb[0].mxu0 %v8139
  %v8141 = vpop.f32.mrb[0].mxu0
  %v8142 = vadd.f32 %v7046, %v8141
  %v8143 = vpop.f32.mrb[0].mxu0
  %8144 = vmatprep.mubr.f32.mxu0 0.0
  %v8145 = vand.u32 %v4567, 4294901760
  %v8146 = vsub.f32 %v4567, %v8145
  %8147 = vmatmul.mubr.f32.gmra.mrb[0].mxu0 %v8146
  %v8148 = vpop.f32.mrb[0].mxu0
  %v8149 = vadd.f32 %v7052, %v8148
  %v8150 = vpop.f32.mrb[0].mxu0
  %8151 = vmatprep.mubr.f32.mxu0 0.0
  %v8152 = vand.u32 %v4568, 4294901760
  %v8153 = vsub.f32 %v4568, %v8152
  %8154 = vmatmul.mubr.f32.gmra.mrb[0].mxu0 %v8153
  %v8155 = vpop.f32.mrb[0].mxu0
  %v8156 = vadd.f32 %v7058, %v8155
  %v8157 = vpop.f32.mrb[0].mxu0
  %8158 = vmatprep.mubr.f32.mxu0 0.0
  %v8159 = vand.u32 %v4569, 4294901760
  %v8160 = vsub.f32 %v4569, %v8159
  %8161 = vmatmul.mubr.f32.gmra.mrb[0].mxu0 %v8160
  %v8162 = vpop.f32.mrb[0].mxu0
  %v8163 = vadd.f32 %v7064, %v8162
  %v8164 = vpop.f32.mrb[0].mxu0
  %8165 = vmatprep.mubr.f32.mxu0 0.0
  %v8166 = vand.u32 %v4570, 4294901760
  %v8167 = vsub.f32 %v4570, %v8166
  %8168 = vmatmul.mubr.f32.gmra.mrb[0].mxu0 %v8167
  %v8169 = vpop.f32.mrb[0].mxu0
  %v8170 = vadd.f32 %v7070, %v8169
  %v8171 = vpop.f32.mrb[0].mxu0
  %8172 = vmatprep.mubr.f32.mxu0 0.0
  %v8173 = vand.u32 %v4571, 4294901760
  %v8174 = vsub.f32 %v4571, %v8173
  %8175 = vmatmul.mubr.f32.gmra.mrb[0].mxu0 %v8174
  %v8176 = vpop.f32.mrb[0].mxu0
  %v8177 = vadd.f32 %v7076, %v8176
  %v8178 = vpop.f32.mrb[0].mxu0
  %8179 = vmatprep.mubr.f32.mxu0 0.0
  %v8180 = vand.u32 %v4572, 4294901760
  %v8181 = vsub.f32 %v4572, %v8180
  %8182 = vmatmul.mubr.f32.gmra.mrb[0].mxu0 %v8181
  %v8183 = vpop.f32.mrb[0].mxu0
  %v8184 = vadd.f32 %v7082, %v8183
  %v8185 = vpop.f32.mrb[0].mxu0
  %8186 = vmatprep.mubr.f32.mxu0 0.0
  %v8187 = vand.u32 %v4573, 4294901760
  %v8188 = vsub.f32 %v4573, %v8187
  %8189 = vmatmul.mubr.f32.gmra.mrb[0].mxu0 %v8188
  %v8190 = vpop.f32.mrb[0].mxu0
  %v8191 = vadd.f32 %v7088, %v8190
  %v8192 = vpop.f32.mrb[0].mxu0
  %8193 = vmatprep.mubr.f32.mxu0 0.0
  %v8194 = vand.u32 %v4574, 4294901760
  %v8195 = vsub.f32 %v4574, %v8194
  %8196 = vmatmul.mubr.f32.gmra.mrb[0].mxu0 %v8195
  %v8197 = vpop.f32.mrb[0].mxu0
  %v8198 = vadd.f32 %v7094, %v8197
  %v8199 = vpop.f32.mrb[0].mxu0
  %8200 = vmatprep.mubr.f32.mxu0 0.0
  %v8201 = vand.u32 %v4575, 4294901760
  %v8202 = vsub.f32 %v4575, %v8201
  %8203 = vmatmul.mubr.f32.gmra.mrb[0].mxu0 %v8202
  %v8204 = vpop.f32.mrb[0].mxu0
  %v8205 = vadd.f32 %v7100, %v8204
  %v8206 = vpop.f32.mrb[0].mxu0
  %8207 = vmatprep.mubr.f32.mxu0 0.0
  %v8208 = vand.u32 %v4576, 4294901760
  %v8209 = vsub.f32 %v4576, %v8208
  %8210 = vmatmul.mubr.f32.gmra.mrb[0].mxu0 %v8209
  %v8211 = vpop.f32.mrb[0].mxu0
  %v8212 = vadd.f32 %v7106, %v8211
  %v8213 = vpop.f32.mrb[0].mxu0
  %8214 = vmatprep.mubr.f32.mxu0 0.0
  %v8215 = vand.u32 %v4577, 4294901760
  %v8216 = vsub.f32 %v4577, %v8215
  %8217 = vmatmul.mubr.f32.gmra.mrb[0].mxu0 %v8216
  %v8218 = vpop.f32.mrb[0].mxu0
  %v8219 = vadd.f32 %v7112, %v8218
  %v8220 = vpop.f32.mrb[0].mxu0
  %8221 = vmatprep.mubr.f32.mxu0 0.0
  %v8222 = vand.u32 %v4578, 4294901760
  %v8223 = vsub.f32 %v4578, %v8222
  %8224 = vmatmul.mubr.f32.gmra.mrb[0].mxu0 %v8223
  %v8225 = vpop.f32.mrb[0].mxu0
  %v8226 = vadd.f32 %v7118, %v8225
  %v8227 = vpop.f32.mrb[0].mxu0
  %8228 = vmatprep.mubr.f32.mxu0 0.0
  %v8229 = vand.u32 %v4579, 4294901760
  %v8230 = vsub.f32 %v4579, %v8229
  %8231 = vmatmul.mubr.f32.gmra.mrb[0].mxu0 %v8230
  %v8232 = vpop.f32.mrb[0].mxu0
  %v8233 = vadd.f32 %v7124, %v8232
  %v8234 = vpop.f32.mrb[0].mxu0
  %8235 = vmatprep.mubr.f32.mxu0 0.0
  %v8236 = vand.u32 %v4580, 4294901760
  %v8237 = vsub.f32 %v4580, %v8236
  %8238 = vmatmul.mubr.f32.gmra.mrb[0].mxu0 %v8237
  %v8239 = vpop.f32.mrb[0].mxu0
  %v8240 = vadd.f32 %v7130, %v8239
  %v8241 = vpop.f32.mrb[0].mxu0
  %8242 = vmatprep.mubr.f32.mxu0 0.0
  %v8243 = vand.u32 %v4581, 4294901760
  %v8244 = vsub.f32 %v4581, %v8243
  %8245 = vmatmul.mubr.f32.gmra.mrb[0].mxu0 %v8244
  %v8246 = vpop.f32.mrb[0].mxu0
  %v8247 = vadd.f32 %v7136, %v8246
  %v8248 = vpop.f32.mrb[0].mxu0
  %8249 = vmatprep.mubr.f32.mxu0 0.0
  %v8250 = vand.u32 %v4582, 4294901760
  %v8251 = vsub.f32 %v4582, %v8250
  %8252 = vmatmul.mubr.f32.gmra.mrb[0].mxu0 %v8251
  %v8253 = vpop.f32.mrb[0].mxu0
  %v8254 = vadd.f32 %v7142, %v8253
  %v8255 = vpop.f32.mrb[0].mxu0
  %8256 = vdwg.mxu0
  %8257 = vmatprep.subr.mxu0 0.0
  %v8258 = vand.u32 %v4583, 4294901760
  %8259 = vmatpush1.msra.mxu0 %v8258
  %8260 = vmatprep.subr.mxu0 0.0
  %v8261 = vand.u32 %v4584, 4294901760
  %8262 = vmatpush1.msra.mxu0 %v8261
  %8263 = vmatprep.subr.mxu0 0.0
  %v8264 = vand.u32 %v4585, 4294901760
  %8265 = vmatpush1.msra.mxu0 %v8264
  %8266 = vmatprep.subr.mxu0 0.0
  %v8267 = vand.u32 %v4586, 4294901760
  %8268 = vmatpush1.msra.mxu0 %v8267
  %8269 = vmatprep.subr.mxu0 0.0
  %v8270 = vand.u32 %v4587, 4294901760
  %8271 = vmatpush1.msra.mxu0 %v8270
  %8272 = vmatprep.subr.mxu0 0.0
  %v8273 = vand.u32 %v4588, 4294901760
  %8274 = vmatpush1.msra.mxu0 %v8273
  %8275 = vmatprep.subr.mxu0 0.0
  %v8276 = vand.u32 %v4589, 4294901760
  %8277 = vmatpush1.msra.mxu0 %v8276
  %8278 = vmatprep.subr.mxu0 0.0
  %v8279 = vand.u32 %v4590, 4294901760
  %8280 = vmatpush1.msra.mxu0 %v8279
  %8281 = vmatprep.subr.mxu0 0.0
  %v8282 = vand.u32 %v4591, 4294901760
  %8283 = vmatpush1.msra.mxu0 %v8282
  %8284 = vmatprep.subr.mxu0 0.0
  %v8285 = vand.u32 %v4592, 4294901760
  %8286 = vmatpush1.msra.mxu0 %v8285
  %8287 = vmatprep.subr.mxu0 0.0
  %v8288 = vand.u32 %v4593, 4294901760
  %8289 = vmatpush1.msra.mxu0 %v8288
  %8290 = vmatprep.subr.mxu0 0.0
  %v8291 = vand.u32 %v4594, 4294901760
  %8292 = vmatpush1.msra.mxu0 %v8291
  %8293 = vmatprep.subr.mxu0 0.0
  %v8294 = vand.u32 %v4595, 4294901760
  %8295 = vmatpush1.msra.mxu0 %v8294
  %8296 = vmatprep.subr.mxu0 0.0
  %v8297 = vand.u32 %v4596, 4294901760
  %8298 = vmatpush1.msra.mxu0 %v8297
  %8299 = vmatprep.subr.mxu0 0.0
  %v8300 = vand.u32 %v4597, 4294901760
  %8301 = vmatpush1.msra.mxu0 %v8300
  %8302 = vmatprep.subr.mxu0 0.0
  %v8303 = vand.u32 %v4598, 4294901760
  %8304 = vmatpush1.msra.mxu0 %v8303
  %8305 = vmatprep.subr.mxu0 0.0
  %8306 = vmatpush1.msra.mxu0 0.0
  %8307 = vmatprep.subr.mxu0 0.0
  %8308 = vmatpush1.msra.mxu0 0.0
  %8309 = vmatprep.subr.mxu0 0.0
  %8310 = vmatpush1.msra.mxu0 0.0
  %8311 = vmatprep.subr.mxu0 0.0
  %8312 = vmatpush1.msra.mxu0 0.0
  %8313 = vmatprep.subr.mxu0 0.0
  %8314 = vmatpush1.msra.mxu0 0.0
  %8315 = vmatprep.subr.mxu0 0.0
  %8316 = vmatpush1.msra.mxu0 0.0
  %8317 = vmatprep.subr.mxu0 0.0
  %8318 = vmatpush1.msra.mxu0 0.0
  %8319 = vmatprep.subr.mxu0 0.0
  %8320 = vmatpush1.msra.mxu0 0.0
  %8321 = vmatprep.subr.mxu0 0.0
  %8322 = vmatpush1.msra.mxu0 0.0
  %8323 = vmatprep.subr.mxu0 0.0
  %8324 = vmatpush1.msra.mxu0 0.0
  %8325 = vmatprep.subr.mxu0 0.0
  %8326 = vmatpush1.msra.mxu0 0.0
  %8327 = vmatprep.subr.mxu0 0.0
  %8328 = vmatpush1.msra.mxu0 0.0
  %8329 = vmatprep.subr.mxu0 0.0
  %8330 = vmatpush1.msra.mxu0 0.0
  %8331 = vmatprep.subr.mxu0 0.0
  %8332 = vmatpush1.msra.mxu0 0.0
  %8333 = vmatprep.subr.mxu0 0.0
  %8334 = vmatpush1.msra.mxu0 0.0
  %8335 = vmatprep.subr.mxu0 0.0
  %8336 = vmatpush1.msra.mxu0 0.0
  %8337 = vmatprep.mubr.f32.mxu0 0.0
  %v8338 = vand.u32 %v4438, 4294901760
  %v8339 = vsub.f32 %v4438, %v8338
  %v8340 = vand.u32 %v8339, 4294901760
  %8341 = vmatmul.mubr.f32.gmra.mrb[0].mxu0 %v8340
  %v8342 = vpop.f32.mrb[0].mxu0
  %v8343 = vadd.f32 %v7246, %v8342
  %v8344 = vpop.f32.mrb[0].mxu0
  %8345 = vmatprep.mubr.f32.mxu0 0.0
  %v8346 = vand.u32 %v4439, 4294901760
  %v8347 = vsub.f32 %v4439, %v8346
  %v8348 = vand.u32 %v8347, 4294901760
  %8349 = vmatmul.mubr.f32.gmra.mrb[0].mxu0 %v8348
  %v8350 = vpop.f32.mrb[0].mxu0
  %v8351 = vadd.f32 %v7253, %v8350
  %v8352 = vpop.f32.mrb[0].mxu0
  %8353 = vmatprep.mubr.f32.mxu0 0.0
  %v8354 = vand.u32 %v4440, 4294901760
  %v8355 = vsub.f32 %v4440, %v8354
  %v8356 = vand.u32 %v8355, 4294901760
  %8357 = vmatmul.mubr.f32.gmra.mrb[0].mxu0 %v8356
  %v8358 = vpop.f32.mrb[0].mxu0
  %v8359 = vadd.f32 %v7260, %v8358
  %v8360 = vpop.f32.mrb[0].mxu0
  %8361 = vmatprep.mubr.f32.mxu0 0.0
  %v8362 = vand.u32 %v4441, 4294901760
  %v8363 = vsub.f32 %v4441, %v8362
  %v8364 = vand.u32 %v8363, 4294901760
  %8365 = vmatmul.mubr.f32.gmra.mrb[0].mxu0 %v8364
  %v8366 = vpop.f32.mrb[0].mxu0
  %v8367 = vadd.f32 %v7267, %v8366
  %v8368 = vpop.f32.mrb[0].mxu0
  %8369 = vmatprep.mubr.f32.mxu0 0.0
  %v8370 = vand.u32 %v4442, 4294901760
  %v8371 = vsub.f32 %v4442, %v8370
  %v8372 = vand.u32 %v8371, 4294901760
  %8373 = vmatmul.mubr.f32.gmra.mrb[0].mxu0 %v8372
  %v8374 = vpop.f32.mrb[0].mxu0
  %v8375 = vadd.f32 %v7274, %v8374
  %v8376 = vpop.f32.mrb[0].mxu0
  %8377 = vmatprep.mubr.f32.mxu0 0.0
  %v8378 = vand.u32 %v4443, 4294901760
  %v8379 = vsub.f32 %v4443, %v8378
  %v8380 = vand.u32 %v8379, 4294901760
  %8381 = vmatmul.mubr.f32.gmra.mrb[0].mxu0 %v8380
  %v8382 = vpop.f32.mrb[0].mxu0
  %v8383 = vadd.f32 %v7281, %v8382
  %v8384 = vpop.f32.mrb[0].mxu0
  %8385 = vmatprep.mubr.f32.mxu0 0.0
  %v8386 = vand.u32 %v4444, 4294901760
  %v8387 = vsub.f32 %v4444, %v8386
  %v8388 = vand.u32 %v8387, 4294901760
  %8389 = vmatmul.mubr.f32.gmra.mrb[0].mxu0 %v8388
  %v8390 = vpop.f32.mrb[0].mxu0
  %v8391 = vadd.f32 %v7288, %v8390
  %v8392 = vpop.f32.mrb[0].mxu0
  %8393 = vmatprep.mubr.f32.mxu0 0.0
  %v8394 = vand.u32 %v4445, 4294901760
  %v8395 = vsub.f32 %v4445, %v8394
  %v8396 = vand.u32 %v8395, 4294901760
  %8397 = vmatmul.mubr.f32.gmra.mrb[0].mxu0 %v8396
  %v8398 = vpop.f32.mrb[0].mxu0
  %v8399 = vadd.f32 %v7295, %v8398
  %v8400 = vpop.f32.mrb[0].mxu0
  %8401 = vmatprep.mubr.f32.mxu0 0.0
  %v8402 = vand.u32 %v4446, 4294901760
  %v8403 = vsub.f32 %v4446, %v8402
  %v8404 = vand.u32 %v8403, 4294901760
  %8405 = vmatmul.mubr.f32.gmra.mrb[0].mxu0 %v8404
  %v8406 = vpop.f32.mrb[0].mxu0
  %v8407 = vadd.f32 %v7302, %v8406
  %v8408 = vpop.f32.mrb[0].mxu0
  %8409 = vmatprep.mubr.f32.mxu0 0.0
  %v8410 = vand.u32 %v4447, 4294901760
  %v8411 = vsub.f32 %v4447, %v8410
  %v8412 = vand.u32 %v8411, 4294901760
  %8413 = vmatmul.mubr.f32.gmra.mrb[0].mxu0 %v8412
  %v8414 = vpop.f32.mrb[0].mxu0
  %v8415 = vadd.f32 %v7309, %v8414
  %v8416 = vpop.f32.mrb[0].mxu0
  %8417 = vmatprep.mubr.f32.mxu0 0.0
  %v8418 = vand.u32 %v4448, 4294901760
  %v8419 = vsub.f32 %v4448, %v8418
  %v8420 = vand.u32 %v8419, 4294901760
  %8421 = vmatmul.mubr.f32.gmra.mrb[0].mxu0 %v8420
  %v8422 = vpop.f32.mrb[0].mxu0
  %v8423 = vadd.f32 %v7316, %v8422
  %v8424 = vpop.f32.mrb[0].mxu0
  %8425 = vmatprep.mubr.f32.mxu0 0.0
  %v8426 = vand.u32 %v4449, 4294901760
  %v8427 = vsub.f32 %v4449, %v8426
  %v8428 = vand.u32 %v8427, 4294901760
  %8429 = vmatmul.mubr.f32.gmra.mrb[0].mxu0 %v8428
  %v8430 = vpop.f32.mrb[0].mxu0
  %v8431 = vadd.f32 %v7323, %v8430
  %v8432 = vpop.f32.mrb[0].mxu0
  %8433 = vmatprep.mubr.f32.mxu0 0.0
  %v8434 = vand.u32 %v4450, 4294901760
  %v8435 = vsub.f32 %v4450, %v8434
  %v8436 = vand.u32 %v8435, 4294901760
  %8437 = vmatmul.mubr.f32.gmra.mrb[0].mxu0 %v8436
  %v8438 = vpop.f32.mrb[0].mxu0
  %v8439 = vadd.f32 %v7330, %v8438
  %v8440 = vpop.f32.mrb[0].mxu0
  %8441 = vmatprep.mubr.f32.mxu0 0.0
  %v8442 = vand.u32 %v4451, 4294901760
  %v8443 = vsub.f32 %v4451, %v8442
  %v8444 = vand.u32 %v8443, 4294901760
  %8445 = vmatmul.mubr.f32.gmra.mrb[0].mxu0 %v8444
  %v8446 = vpop.f32.mrb[0].mxu0
  %v8447 = vadd.f32 %v7337, %v8446
  %v8448 = vpop.f32.mrb[0].mxu0
  %8449 = vmatprep.mubr.f32.mxu0 0.0
  %v8450 = vand.u32 %v4452, 4294901760
  %v8451 = vsub.f32 %v4452, %v8450
  %v8452 = vand.u32 %v8451, 4294901760
  %8453 = vmatmul.mubr.f32.gmra.mrb[0].mxu0 %v8452
  %v8454 = vpop.f32.mrb[0].mxu0
  %v8455 = vadd.f32 %v7344, %v8454
  %v8456 = vpop.f32.mrb[0].mxu0
  %8457 = vmatprep.mubr.f32.mxu0 0.0
  %v8458 = vand.u32 %v4453, 4294901760
  %v8459 = vsub.f32 %v4453, %v8458
  %v8460 = vand.u32 %v8459, 4294901760
  %8461 = vmatmul.mubr.f32.gmra.mrb[0].mxu0 %v8460
  %v8462 = vpop.f32.mrb[0].mxu0
  %v8463 = vadd.f32 %v7351, %v8462
  %v8464 = vpop.f32.mrb[0].mxu0
  %8465 = vmatprep.mubr.f32.mxu0 0.0
  %v8466 = vand.u32 %v4454, 4294901760
  %v8467 = vsub.f32 %v4454, %v8466
  %v8468 = vand.u32 %v8467, 4294901760
  %8469 = vmatmul.mubr.f32.gmra.mrb[0].mxu0 %v8468
  %v8470 = vpop.f32.mrb[0].mxu0
  %v8471 = vadd.f32 %v7358, %v8470
  %v8472 = vpop.f32.mrb[0].mxu0
  %8473 = vmatprep.mubr.f32.mxu0 0.0
  %v8474 = vand.u32 %v4455, 4294901760
  %v8475 = vsub.f32 %v4455, %v8474
  %v8476 = vand.u32 %v8475, 4294901760
  %8477 = vmatmul.mubr.f32.gmra.mrb[0].mxu0 %v8476
  %v8478 = vpop.f32.mrb[0].mxu0
  %v8479 = vadd.f32 %v7365, %v8478
  %v8480 = vpop.f32.mrb[0].mxu0
  %8481 = vmatprep.mubr.f32.mxu0 0.0
  %v8482 = vand.u32 %v4456, 4294901760
  %v8483 = vsub.f32 %v4456, %v8482
  %v8484 = vand.u32 %v8483, 4294901760
  %8485 = vmatmul.mubr.f32.gmra.mrb[0].mxu0 %v8484
  %v8486 = vpop.f32.mrb[0].mxu0
  %v8487 = vadd.f32 %v7372, %v8486
  %v8488 = vpop.f32.mrb[0].mxu0
  %8489 = vmatprep.mubr.f32.mxu0 0.0
  %v8490 = vand.u32 %v4457, 4294901760
  %v8491 = vsub.f32 %v4457, %v8490
  %v8492 = vand.u32 %v8491, 4294901760
  %8493 = vmatmul.mubr.f32.gmra.mrb[0].mxu0 %v8492
  %v8494 = vpop.f32.mrb[0].mxu0
  %v8495 = vadd.f32 %v7379, %v8494
  %v8496 = vpop.f32.mrb[0].mxu0
  %8497 = vmatprep.mubr.f32.mxu0 0.0
  %v8498 = vand.u32 %v4458, 4294901760
  %v8499 = vsub.f32 %v4458, %v8498
  %v8500 = vand.u32 %v8499, 4294901760
  %8501 = vmatmul.mubr.f32.gmra.mrb[0].mxu0 %v8500
  %v8502 = vpop.f32.mrb[0].mxu0
  %v8503 = vadd.f32 %v7386, %v8502
  %v8504 = vpop.f32.mrb[0].mxu0
  %8505 = vmatprep.mubr.f32.mxu0 0.0
  %v8506 = vand.u32 %v4459, 4294901760
  %v8507 = vsub.f32 %v4459, %v8506
  %v8508 = vand.u32 %v8507, 4294901760
  %8509 = vmatmul.mubr.f32.gmra.mrb[0].mxu0 %v8508
  %v8510 = vpop.f32.mrb[0].mxu0
  %v8511 = vadd.f32 %v7393, %v8510
  %v8512 = vpop.f32.mrb[0].mxu0
  %8513 = vmatprep.mubr.f32.mxu0 0.0
  %v8514 = vand.u32 %v4460, 4294901760
  %v8515 = vsub.f32 %v4460, %v8514
  %v8516 = vand.u32 %v8515, 4294901760
  %8517 = vmatmul.mubr.f32.gmra.mrb[0].mxu0 %v8516
  %v8518 = vpop.f32.mrb[0].mxu0
  %v8519 = vadd.f32 %v7400, %v8518
  %v8520 = vpop.f32.mrb[0].mxu0
  %8521 = vmatprep.mubr.f32.mxu0 0.0
  %v8522 = vand.u32 %v4461, 4294901760
  %v8523 = vsub.f32 %v4461, %v8522
  %v8524 = vand.u32 %v8523, 4294901760
  %8525 = vmatmul.mubr.f32.gmra.mrb[0].mxu0 %v8524
  %v8526 = vpop.f32.mrb[0].mxu0
  %v8527 = vadd.f32 %v7407, %v8526
  %v8528 = vpop.f32.mrb[0].mxu0
  %8529 = vmatprep.mubr.f32.mxu0 0.0
  %v8530 = vand.u32 %v4462, 4294901760
  %v8531 = vsub.f32 %v4462, %v8530
  %v8532 = vand.u32 %v8531, 4294901760
  %8533 = vmatmul.mubr.f32.gmra.mrb[0].mxu0 %v8532
  %v8534 = vpop.f32.mrb[0].mxu0
  %v8535 = vadd.f32 %v7414, %v8534
  %v8536 = vpop.f32.mrb[0].mxu0
  %8537 = vmatprep.mubr.f32.mxu0 0.0
  %v8538 = vand.u32 %v4463, 4294901760
  %v8539 = vsub.f32 %v4463, %v8538
  %v8540 = vand.u32 %v8539, 4294901760
  %8541 = vmatmul.mubr.f32.gmra.mrb[0].mxu0 %v8540
  %v8542 = vpop.f32.mrb[0].mxu0
  %v8543 = vadd.f32 %v7421, %v8542
  %v8544 = vpop.f32.mrb[0].mxu0
  %8545 = vmatprep.mubr.f32.mxu0 0.0
  %v8546 = vand.u32 %v4464, 4294901760
  %v8547 = vsub.f32 %v4464, %v8546
  %v8548 = vand.u32 %v8547, 4294901760
  %8549 = vmatmul.mubr.f32.gmra.mrb[0].mxu0 %v8548
  %v8550 = vpop.f32.mrb[0].mxu0
  %v8551 = vadd.f32 %v7428, %v8550
  %v8552 = vpop.f32.mrb[0].mxu0
  %8553 = vmatprep.mubr.f32.mxu0 0.0
  %v8554 = vand.u32 %v4465, 4294901760
  %v8555 = vsub.f32 %v4465, %v8554
  %v8556 = vand.u32 %v8555, 4294901760
  %8557 = vmatmul.mubr.f32.gmra.mrb[0].mxu0 %v8556
  %v8558 = vpop.f32.mrb[0].mxu0
  %v8559 = vadd.f32 %v7435, %v8558
  %v8560 = vpop.f32.mrb[0].mxu0
  %8561 = vmatprep.mubr.f32.mxu0 0.0
  %v8562 = vand.u32 %v4466, 4294901760
  %v8563 = vsub.f32 %v4466, %v8562
  %v8564 = vand.u32 %v8563, 4294901760
  %8565 = vmatmul.mubr.f32.gmra.mrb[0].mxu0 %v8564
  %v8566 = vpop.f32.mrb[0].mxu0
  %v8567 = vadd.f32 %v7442, %v8566
  %v8568 = vpop.f32.mrb[0].mxu0
  %8569 = vmatprep.mubr.f32.mxu0 0.0
  %v8570 = vand.u32 %v4467, 4294901760
  %v8571 = vsub.f32 %v4467, %v8570
  %v8572 = vand.u32 %v8571, 4294901760
  %8573 = vmatmul.mubr.f32.gmra.mrb[0].mxu0 %v8572
  %v8574 = vpop.f32.mrb[0].mxu0
  %v8575 = vadd.f32 %v7449, %v8574
  %v8576 = vpop.f32.mrb[0].mxu0
  %8577 = vmatprep.mubr.f32.mxu0 0.0
  %v8578 = vand.u32 %v4468, 4294901760
  %v8579 = vsub.f32 %v4468, %v8578
  %v8580 = vand.u32 %v8579, 4294901760
  %8581 = vmatmul.mubr.f32.gmra.mrb[0].mxu0 %v8580
  %v8582 = vpop.f32.mrb[0].mxu0
  %v8583 = vadd.f32 %v7456, %v8582
  %v8584 = vpop.f32.mrb[0].mxu0
  %8585 = vmatprep.mubr.f32.mxu0 0.0
  %v8586 = vand.u32 %v4469, 4294901760
  %v8587 = vsub.f32 %v4469, %v8586
  %v8588 = vand.u32 %v8587, 4294901760
  %8589 = vmatmul.mubr.f32.gmra.mrb[0].mxu0 %v8588
  %v8590 = vpop.f32.mrb[0].mxu0
  %v8591 = vadd.f32 %v7463, %v8590
  %v8592 = vpop.f32.mrb[0].mxu0
  %8593 = vmatprep.mubr.f32.mxu0 0.0
  %v8594 = vand.u32 %v4470, 4294901760
  %v8595 = vsub.f32 %v4470, %v8594
  %v8596 = vand.u32 %v8595, 4294901760
  %8597 = vmatmul.mubr.f32.gmra.mrb[0].mxu0 %v8596
  %v8598 = vpop.f32.mrb[0].mxu0
  %v8599 = vadd.f32 %v7470, %v8598
  %v8600 = vpop.f32.mrb[0].mxu0
  %8601 = vmatprep.mubr.f32.mxu0 0.0
  %v8602 = vand.u32 %v4471, 4294901760
  %v8603 = vsub.f32 %v4471, %v8602
  %v8604 = vand.u32 %v8603, 4294901760
  %8605 = vmatmul.mubr.f32.gmra.mrb[0].mxu0 %v8604
  %v8606 = vpop.f32.mrb[0].mxu0
  %v8607 = vadd.f32 %v7477, %v8606
  %v8608 = vpop.f32.mrb[0].mxu0
  %8609 = vmatprep.mubr.f32.mxu0 0.0
  %v8610 = vand.u32 %v4472, 4294901760
  %v8611 = vsub.f32 %v4472, %v8610
  %v8612 = vand.u32 %v8611, 4294901760
  %8613 = vmatmul.mubr.f32.gmra.mrb[0].mxu0 %v8612
  %v8614 = vpop.f32.mrb[0].mxu0
  %v8615 = vadd.f32 %v7484, %v8614
  %v8616 = vpop.f32.mrb[0].mxu0
  %8617 = vmatprep.mubr.f32.mxu0 0.0
  %v8618 = vand.u32 %v4473, 4294901760
  %v8619 = vsub.f32 %v4473, %v8618
  %v8620 = vand.u32 %v8619, 4294901760
  %8621 = vmatmul.mubr.f32.gmra.mrb[0].mxu0 %v8620
  %v8622 = vpop.f32.mrb[0].mxu0
  %v8623 = vadd.f32 %v7491, %v8622
  %v8624 = vpop.f32.mrb[0].mxu0
  %8625 = vmatprep.mubr.f32.mxu0 0.0
  %v8626 = vand.u32 %v4474, 4294901760
  %v8627 = vsub.f32 %v4474, %v8626
  %v8628 = vand.u32 %v8627, 4294901760
  %8629 = vmatmul.mubr.f32.gmra.mrb[0].mxu0 %v8628
  %v8630 = vpop.f32.mrb[0].mxu0
  %v8631 = vadd.f32 %v7498, %v8630
  %v8632 = vpop.f32.mrb[0].mxu0
  %8633 = vmatprep.mubr.f32.mxu0 0.0
  %v8634 = vand.u32 %v4475, 4294901760
  %v8635 = vsub.f32 %v4475, %v8634
  %v8636 = vand.u32 %v8635, 4294901760
  %8637 = vmatmul.mubr.f32.gmra.mrb[0].mxu0 %v8636
  %v8638 = vpop.f32.mrb[0].mxu0
  %v8639 = vadd.f32 %v7505, %v8638
  %v8640 = vpop.f32.mrb[0].mxu0
  %8641 = vmatprep.mubr.f32.mxu0 0.0
  %v8642 = vand.u32 %v4476, 4294901760
  %v8643 = vsub.f32 %v4476, %v8642
  %v8644 = vand.u32 %v8643, 4294901760
  %8645 = vmatmul.mubr.f32.gmra.mrb[0].mxu0 %v8644
  %v8646 = vpop.f32.mrb[0].mxu0
  %v8647 = vadd.f32 %v7512, %v8646
  %v8648 = vpop.f32.mrb[0].mxu0
  %8649 = vmatprep.mubr.f32.mxu0 0.0
  %v8650 = vand.u32 %v4477, 4294901760
  %v8651 = vsub.f32 %v4477, %v8650
  %v8652 = vand.u32 %v8651, 4294901760
  %8653 = vmatmul.mubr.f32.gmra.mrb[0].mxu0 %v8652
  %v8654 = vpop.f32.mrb[0].mxu0
  %v8655 = vadd.f32 %v7519, %v8654
  %v8656 = vpop.f32.mrb[0].mxu0
  %8657 = vmatprep.mubr.f32.mxu0 0.0
  %v8658 = vand.u32 %v4478, 4294901760
  %v8659 = vsub.f32 %v4478, %v8658
  %v8660 = vand.u32 %v8659, 4294901760
  %8661 = vmatmul.mubr.f32.gmra.mrb[0].mxu0 %v8660
  %v8662 = vpop.f32.mrb[0].mxu0
  %v8663 = vadd.f32 %v7526, %v8662
  %v8664 = vpop.f32.mrb[0].mxu0
  %8665 = vmatprep.mubr.f32.mxu0 0.0
  %v8666 = vand.u32 %v4479, 4294901760
  %v8667 = vsub.f32 %v4479, %v8666
  %v8668 = vand.u32 %v8667, 4294901760
  %8669 = vmatmul.mubr.f32.gmra.mrb[0].mxu0 %v8668
  %v8670 = vpop.f32.mrb[0].mxu0
  %v8671 = vadd.f32 %v7533, %v8670
  %v8672 = vpop.f32.mrb[0].mxu0
  %8673 = vmatprep.mubr.f32.mxu0 0.0
  %v8674 = vand.u32 %v4480, 4294901760
  %v8675 = vsub.f32 %v4480, %v8674
  %v8676 = vand.u32 %v8675, 4294901760
  %8677 = vmatmul.mubr.f32.gmra.mrb[0].mxu0 %v8676
  %v8678 = vpop.f32.mrb[0].mxu0
  %v8679 = vadd.f32 %v7540, %v8678
  %v8680 = vpop.f32.mrb[0].mxu0
  %8681 = vmatprep.mubr.f32.mxu0 0.0
  %v8682 = vand.u32 %v4481, 4294901760
  %v8683 = vsub.f32 %v4481, %v8682
  %v8684 = vand.u32 %v8683, 4294901760
  %8685 = vmatmul.mubr.f32.gmra.mrb[0].mxu0 %v8684
  %v8686 = vpop.f32.mrb[0].mxu0
  %v8687 = vadd.f32 %v7547, %v8686
  %v8688 = vpop.f32.mrb[0].mxu0
  %8689 = vmatprep.mubr.f32.mxu0 0.0
  %v8690 = vand.u32 %v4482, 4294901760
  %v8691 = vsub.f32 %v4482, %v8690
  %v8692 = vand.u32 %v8691, 4294901760
  %8693 = vmatmul.mubr.f32.gmra.mrb[0].mxu0 %v8692
  %v8694 = vpop.f32.mrb[0].mxu0
  %v8695 = vadd.f32 %v7554, %v8694
  %v8696 = vpop.f32.mrb[0].mxu0
  %8697 = vmatprep.mubr.f32.mxu0 0.0
  %v8698 = vand.u32 %v4483, 4294901760
  %v8699 = vsub.f32 %v4483, %v8698
  %v8700 = vand.u32 %v8699, 4294901760
  %8701 = vmatmul.mubr.f32.gmra.mrb[0].mxu0 %v8700
  %v8702 = vpop.f32.mrb[0].mxu0
  %v8703 = vadd.f32 %v7561, %v8702
  %v8704 = vpop.f32.mrb[0].mxu0
  %8705 = vmatprep.mubr.f32.mxu0 0.0
  %v8706 = vand.u32 %v4484, 4294901760
  %v8707 = vsub.f32 %v4484, %v8706
  %v8708 = vand.u32 %v8707, 4294901760
  %8709 = vmatmul.mubr.f32.gmra.mrb[0].mxu0 %v8708
  %v8710 = vpop.f32.mrb[0].mxu0
  %v8711 = vadd.f32 %v7568, %v8710
  %v8712 = vpop.f32.mrb[0].mxu0
  %8713 = vmatprep.mubr.f32.mxu0 0.0
  %v8714 = vand.u32 %v4485, 4294901760
  %v8715 = vsub.f32 %v4485, %v8714
  %v8716 = vand.u32 %v8715, 4294901760
  %8717 = vmatmul.mubr.f32.gmra.mrb[0].mxu0 %v8716
  %v8718 = vpop.f32.mrb[0].mxu0
  %v8719 = vadd.f32 %v7575, %v8718
  %v8720 = vpop.f32.mrb[0].mxu0
  %8721 = vmatprep.mubr.f32.mxu0 0.0
  %v8722 = vand.u32 %v4486, 4294901760
  %v8723 = vsub.f32 %v4486, %v8722
  %v8724 = vand.u32 %v8723, 4294901760
  %8725 = vmatmul.mubr.f32.gmra.mrb[0].mxu0 %v8724
  %v8726 = vpop.f32.mrb[0].mxu0
  %v8727 = vadd.f32 %v7582, %v8726
  %v8728 = vpop.f32.mrb[0].mxu0
  %8729 = vmatprep.mubr.f32.mxu0 0.0
  %v8730 = vand.u32 %v4487, 4294901760
  %v8731 = vsub.f32 %v4487, %v8730
  %v8732 = vand.u32 %v8731, 4294901760
  %8733 = vmatmul.mubr.f32.gmra.mrb[0].mxu0 %v8732
  %v8734 = vpop.f32.mrb[0].mxu0
  %v8735 = vadd.f32 %v7589, %v8734
  %v8736 = vpop.f32.mrb[0].mxu0
  %8737 = vmatprep.mubr.f32.mxu0 0.0
  %v8738 = vand.u32 %v4488, 4294901760
  %v8739 = vsub.f32 %v4488, %v8738
  %v8740 = vand.u32 %v8739, 4294901760
  %8741 = vmatmul.mubr.f32.gmra.mrb[0].mxu0 %v8740
  %v8742 = vpop.f32.mrb[0].mxu0
  %v8743 = vadd.f32 %v7596, %v8742
  %v8744 = vpop.f32.mrb[0].mxu0
  %8745 = vmatprep.mubr.f32.mxu0 0.0
  %v8746 = vand.u32 %v4489, 4294901760
  %v8747 = vsub.f32 %v4489, %v8746
  %v8748 = vand.u32 %v8747, 4294901760
  %8749 = vmatmul.mubr.f32.gmra.mrb[0].mxu0 %v8748
  %v8750 = vpop.f32.mrb[0].mxu0
  %v8751 = vadd.f32 %v7603, %v8750
  %v8752 = vpop.f32.mrb[0].mxu0
  %8753 = vmatprep.mubr.f32.mxu0 0.0
  %v8754 = vand.u32 %v4490, 4294901760
  %v8755 = vsub.f32 %v4490, %v8754
  %v8756 = vand.u32 %v8755, 4294901760
  %8757 = vmatmul.mubr.f32.gmra.mrb[0].mxu0 %v8756
  %v8758 = vpop.f32.mrb[0].mxu0
  %v8759 = vadd.f32 %v7610, %v8758
  %v8760 = vpop.f32.mrb[0].mxu0
  %8761 = vmatprep.mubr.f32.mxu0 0.0
  %v8762 = vand.u32 %v4491, 4294901760
  %v8763 = vsub.f32 %v4491, %v8762
  %v8764 = vand.u32 %v8763, 4294901760
  %8765 = vmatmul.mubr.f32.gmra.mrb[0].mxu0 %v8764
  %v8766 = vpop.f32.mrb[0].mxu0
  %v8767 = vadd.f32 %v7617, %v8766
  %v8768 = vpop.f32.mrb[0].mxu0
  %8769 = vmatprep.mubr.f32.mxu0 0.0
  %v8770 = vand.u32 %v4492, 4294901760
  %v8771 = vsub.f32 %v4492, %v8770
  %v8772 = vand.u32 %v8771, 4294901760
  %8773 = vmatmul.mubr.f32.gmra.mrb[0].mxu0 %v8772
  %v8774 = vpop.f32.mrb[0].mxu0
  %v8775 = vadd.f32 %v7624, %v8774
  %v8776 = vpop.f32.mrb[0].mxu0
  %8777 = vmatprep.mubr.f32.mxu0 0.0
  %v8778 = vand.u32 %v4493, 4294901760
  %v8779 = vsub.f32 %v4493, %v8778
  %v8780 = vand.u32 %v8779, 4294901760
  %8781 = vmatmul.mubr.f32.gmra.mrb[0].mxu0 %v8780
  %v8782 = vpop.f32.mrb[0].mxu0
  %v8783 = vadd.f32 %v7631, %v8782
  %v8784 = vpop.f32.mrb[0].mxu0
  %8785 = vmatprep.mubr.f32.mxu0 0.0
  %v8786 = vand.u32 %v4494, 4294901760
  %v8787 = vsub.f32 %v4494, %v8786
  %v8788 = vand.u32 %v8787, 4294901760
  %8789 = vmatmul.mubr.f32.gmra.mrb[0].mxu0 %v8788
  %v8790 = vpop.f32.mrb[0].mxu0
  %v8791 = vadd.f32 %v7638, %v8790
  %v8792 = vpop.f32.mrb[0].mxu0
  %8793 = vmatprep.mubr.f32.mxu0 0.0
  %v8794 = vand.u32 %v4495, 4294901760
  %v8795 = vsub.f32 %v4495, %v8794
  %v8796 = vand.u32 %v8795, 4294901760
  %8797 = vmatmul.mubr.f32.gmra.mrb[0].mxu0 %v8796
  %v8798 = vpop.f32.mrb[0].mxu0
  %v8799 = vadd.f32 %v7645, %v8798
  %v8800 = vpop.f32.mrb[0].mxu0
  %8801 = vmatprep.mubr.f32.mxu0 0.0
  %v8802 = vand.u32 %v4496, 4294901760
  %v8803 = vsub.f32 %v4496, %v8802
  %v8804 = vand.u32 %v8803, 4294901760
  %8805 = vmatmul.mubr.f32.gmra.mrb[0].mxu0 %v8804
  %v8806 = vpop.f32.mrb[0].mxu0
  %v8807 = vadd.f32 %v7652, %v8806
  %v8808 = vpop.f32.mrb[0].mxu0
  %8809 = vmatprep.mubr.f32.mxu0 0.0
  %v8810 = vand.u32 %v4497, 4294901760
  %v8811 = vsub.f32 %v4497, %v8810
  %v8812 = vand.u32 %v8811, 4294901760
  %8813 = vmatmul.mubr.f32.gmra.mrb[0].mxu0 %v8812
  %v8814 = vpop.f32.mrb[0].mxu0
  %v8815 = vadd.f32 %v7659, %v8814
  %v8816 = vpop.f32.mrb[0].mxu0
  %8817 = vmatprep.mubr.f32.mxu0 0.0
  %v8818 = vand.u32 %v4498, 4294901760
  %v8819 = vsub.f32 %v4498, %v8818
  %v8820 = vand.u32 %v8819, 4294901760
  %8821 = vmatmul.mubr.f32.gmra.mrb[0].mxu0 %v8820
  %v8822 = vpop.f32.mrb[0].mxu0
  %v8823 = vadd.f32 %v7666, %v8822
  %v8824 = vpop.f32.mrb[0].mxu0
  %8825 = vmatprep.mubr.f32.mxu0 0.0
  %v8826 = vand.u32 %v4499, 4294901760
  %v8827 = vsub.f32 %v4499, %v8826
  %v8828 = vand.u32 %v8827, 4294901760
  %8829 = vmatmul.mubr.f32.gmra.mrb[0].mxu0 %v8828
  %v8830 = vpop.f32.mrb[0].mxu0
  %v8831 = vadd.f32 %v7673, %v8830
  %v8832 = vpop.f32.mrb[0].mxu0
  %8833 = vmatprep.mubr.f32.mxu0 0.0
  %v8834 = vand.u32 %v4500, 4294901760
  %v8835 = vsub.f32 %v4500, %v8834
  %v8836 = vand.u32 %v8835, 4294901760
  %8837 = vmatmul.mubr.f32.gmra.mrb[0].mxu0 %v8836
  %v8838 = vpop.f32.mrb[0].mxu0
  %v8839 = vadd.f32 %v7680, %v8838
  %v8840 = vpop.f32.mrb[0].mxu0
  %8841 = vmatprep.mubr.f32.mxu0 0.0
  %v8842 = vand.u32 %v4501, 4294901760
  %v8843 = vsub.f32 %v4501, %v8842
  %v8844 = vand.u32 %v8843, 4294901760
  %8845 = vmatmul.mubr.f32.gmra.mrb[0].mxu0 %v8844
  %v8846 = vpop.f32.mrb[0].mxu0
  %v8847 = vadd.f32 %v7687, %v8846
  %v8848 = vpop.f32.mrb[0].mxu0
  %8849 = vmatprep.mubr.f32.mxu0 0.0
  %v8850 = vand.u32 %v4502, 4294901760
  %v8851 = vsub.f32 %v4502, %v8850
  %v8852 = vand.u32 %v8851, 4294901760
  %8853 = vmatmul.mubr.f32.gmra.mrb[0].mxu0 %v8852
  %v8854 = vpop.f32.mrb[0].mxu0
  %v8855 = vadd.f32 %v7694, %v8854
  %v8856 = vpop.f32.mrb[0].mxu0
  %8857 = vmatprep.mubr.f32.mxu0 0.0
  %v8858 = vand.u32 %v4503, 4294901760
  %v8859 = vsub.f32 %v4503, %v8858
  %v8860 = vand.u32 %v8859, 4294901760
  %8861 = vmatmul.mubr.f32.gmra.mrb[0].mxu0 %v8860
  %v8862 = vpop.f32.mrb[0].mxu0
  %v8863 = vadd.f32 %v7701, %v8862
  %v8864 = vpop.f32.mrb[0].mxu0
  %8865 = vmatprep.mubr.f32.mxu0 0.0
  %v8866 = vand.u32 %v4504, 4294901760
  %v8867 = vsub.f32 %v4504, %v8866
  %v8868 = vand.u32 %v8867, 4294901760
  %8869 = vmatmul.mubr.f32.gmra.mrb[0].mxu0 %v8868
  %v8870 = vpop.f32.mrb[0].mxu0
  %v8871 = vadd.f32 %v7708, %v8870
  %v8872 = vpop.f32.mrb[0].mxu0
  %8873 = vmatprep.mubr.f32.mxu0 0.0
  %v8874 = vand.u32 %v4505, 4294901760
  %v8875 = vsub.f32 %v4505, %v8874
  %v8876 = vand.u32 %v8875, 4294901760
  %8877 = vmatmul.mubr.f32.gmra.mrb[0].mxu0 %v8876
  %v8878 = vpop.f32.mrb[0].mxu0
  %v8879 = vadd.f32 %v7715, %v8878
  %v8880 = vpop.f32.mrb[0].mxu0
  %8881 = vmatprep.mubr.f32.mxu0 0.0
  %v8882 = vand.u32 %v4506, 4294901760
  %v8883 = vsub.f32 %v4506, %v8882
  %v8884 = vand.u32 %v8883, 4294901760
  %8885 = vmatmul.mubr.f32.gmra.mrb[0].mxu0 %v8884
  %v8886 = vpop.f32.mrb[0].mxu0
  %v8887 = vadd.f32 %v7722, %v8886
  %v8888 = vpop.f32.mrb[0].mxu0
  %8889 = vmatprep.mubr.f32.mxu0 0.0
  %v8890 = vand.u32 %v4507, 4294901760
  %v8891 = vsub.f32 %v4507, %v8890
  %v8892 = vand.u32 %v8891, 4294901760
  %8893 = vmatmul.mubr.f32.gmra.mrb[0].mxu0 %v8892
  %v8894 = vpop.f32.mrb[0].mxu0
  %v8895 = vadd.f32 %v7729, %v8894
  %v8896 = vpop.f32.mrb[0].mxu0
  %8897 = vmatprep.mubr.f32.mxu0 0.0
  %v8898 = vand.u32 %v4508, 4294901760
  %v8899 = vsub.f32 %v4508, %v8898
  %v8900 = vand.u32 %v8899, 4294901760
  %8901 = vmatmul.mubr.f32.gmra.mrb[0].mxu0 %v8900
  %v8902 = vpop.f32.mrb[0].mxu0
  %v8903 = vadd.f32 %v7736, %v8902
  %v8904 = vpop.f32.mrb[0].mxu0
  %8905 = vmatprep.mubr.f32.mxu0 0.0
  %v8906 = vand.u32 %v4509, 4294901760
  %v8907 = vsub.f32 %v4509, %v8906
  %v8908 = vand.u32 %v8907, 4294901760
  %8909 = vmatmul.mubr.f32.gmra.mrb[0].mxu0 %v8908
  %v8910 = vpop.f32.mrb[0].mxu0
  %v8911 = vadd.f32 %v7743, %v8910
  %v8912 = vpop.f32.mrb[0].mxu0
  %8913 = vmatprep.mubr.f32.mxu0 0.0
  %v8914 = vand.u32 %v4510, 4294901760
  %v8915 = vsub.f32 %v4510, %v8914
  %v8916 = vand.u32 %v8915, 4294901760
  %8917 = vmatmul.mubr.f32.gmra.mrb[0].mxu0 %v8916
  %v8918 = vpop.f32.mrb[0].mxu0
  %v8919 = vadd.f32 %v7750, %v8918
  %v8920 = vpop.f32.mrb[0].mxu0
  %8921 = vmatprep.mubr.f32.mxu0 0.0
  %v8922 = vand.u32 %v4511, 4294901760
  %v8923 = vsub.f32 %v4511, %v8922
  %v8924 = vand.u32 %v8923, 4294901760
  %8925 = vmatmul.mubr.f32.gmra.mrb[0].mxu0 %v8924
  %v8926 = vpop.f32.mrb[0].mxu0
  %v8927 = vadd.f32 %v7757, %v8926
  %v8928 = vpop.f32.mrb[0].mxu0
  %8929 = vmatprep.mubr.f32.mxu0 0.0
  %v8930 = vand.u32 %v4512, 4294901760
  %v8931 = vsub.f32 %v4512, %v8930
  %v8932 = vand.u32 %v8931, 4294901760
  %8933 = vmatmul.mubr.f32.gmra.mrb[0].mxu0 %v8932
  %v8934 = vpop.f32.mrb[0].mxu0
  %v8935 = vadd.f32 %v7764, %v8934
  %v8936 = vpop.f32.mrb[0].mxu0
  %8937 = vmatprep.mubr.f32.mxu0 0.0
  %v8938 = vand.u32 %v4513, 4294901760
  %v8939 = vsub.f32 %v4513, %v8938
  %v8940 = vand.u32 %v8939, 4294901760
  %8941 = vmatmul.mubr.f32.gmra.mrb[0].mxu0 %v8940
  %v8942 = vpop.f32.mrb[0].mxu0
  %v8943 = vadd.f32 %v7771, %v8942
  %v8944 = vpop.f32.mrb[0].mxu0
  %8945 = vmatprep.mubr.f32.mxu0 0.0
  %v8946 = vand.u32 %v4514, 4294901760
  %v8947 = vsub.f32 %v4514, %v8946
  %v8948 = vand.u32 %v8947, 4294901760
  %8949 = vmatmul.mubr.f32.gmra.mrb[0].mxu0 %v8948
  %v8950 = vpop.f32.mrb[0].mxu0
  %v8951 = vadd.f32 %v7778, %v8950
  %v8952 = vpop.f32.mrb[0].mxu0
  %8953 = vmatprep.mubr.f32.mxu0 0.0
  %v8954 = vand.u32 %v4515, 4294901760
  %v8955 = vsub.f32 %v4515, %v8954
  %v8956 = vand.u32 %v8955, 4294901760
  %8957 = vmatmul.mubr.f32.gmra.mrb[0].mxu0 %v8956
  %v8958 = vpop.f32.mrb[0].mxu0
  %v8959 = vadd.f32 %v7785, %v8958
  %v8960 = vpop.f32.mrb[0].mxu0
  %8961 = vmatprep.mubr.f32.mxu0 0.0
  %v8962 = vand.u32 %v4516, 4294901760
  %v8963 = vsub.f32 %v4516, %v8962
  %v8964 = vand.u32 %v8963, 4294901760
  %8965 = vmatmul.mubr.f32.gmra.mrb[0].mxu0 %v8964
  %v8966 = vpop.f32.mrb[0].mxu0
  %v8967 = vadd.f32 %v7792, %v8966
  %v8968 = vpop.f32.mrb[0].mxu0
  %8969 = vmatprep.mubr.f32.mxu0 0.0
  %v8970 = vand.u32 %v4517, 4294901760
  %v8971 = vsub.f32 %v4517, %v8970
  %v8972 = vand.u32 %v8971, 4294901760
  %8973 = vmatmul.mubr.f32.gmra.mrb[0].mxu0 %v8972
  %v8974 = vpop.f32.mrb[0].mxu0
  %v8975 = vadd.f32 %v7799, %v8974
  %v8976 = vpop.f32.mrb[0].mxu0
  %8977 = vmatprep.mubr.f32.mxu0 0.0
  %v8978 = vand.u32 %v4518, 4294901760
  %v8979 = vsub.f32 %v4518, %v8978
  %v8980 = vand.u32 %v8979, 4294901760
  %8981 = vmatmul.mubr.f32.gmra.mrb[0].mxu0 %v8980
  %v8982 = vpop.f32.mrb[0].mxu0
  %v8983 = vadd.f32 %v7806, %v8982
  %v8984 = vpop.f32.mrb[0].mxu0
  %8985 = vmatprep.mubr.f32.mxu0 0.0
  %v8986 = vand.u32 %v4519, 4294901760
  %v8987 = vsub.f32 %v4519, %v8986
  %v8988 = vand.u32 %v8987, 4294901760
  %8989 = vmatmul.mubr.f32.gmra.mrb[0].mxu0 %v8988
  %v8990 = vpop.f32.mrb[0].mxu0
  %v8991 = vadd.f32 %v7813, %v8990
  %v8992 = vpop.f32.mrb[0].mxu0
  %8993 = vmatprep.mubr.f32.mxu0 0.0
  %v8994 = vand.u32 %v4520, 4294901760
  %v8995 = vsub.f32 %v4520, %v8994
  %v8996 = vand.u32 %v8995, 4294901760
  %8997 = vmatmul.mubr.f32.gmra.mrb[0].mxu0 %v8996
  %v8998 = vpop.f32.mrb[0].mxu0
  %v8999 = vadd.f32 %v7820, %v8998
  %v9000 = vpop.f32.mrb[0].mxu0
  %9001 = vmatprep.mubr.f32.mxu0 0.0
  %v9002 = vand.u32 %v4521, 4294901760
  %v9003 = vsub.f32 %v4521, %v9002
  %v9004 = vand.u32 %v9003, 4294901760
  %9005 = vmatmul.mubr.f32.gmra.mrb[0].mxu0 %v9004
  %v9006 = vpop.f32.mrb[0].mxu0
  %v9007 = vadd.f32 %v7827, %v9006
  %v9008 = vpop.f32.mrb[0].mxu0
  %9009 = vmatprep.mubr.f32.mxu0 0.0
  %v9010 = vand.u32 %v4522, 4294901760
  %v9011 = vsub.f32 %v4522, %v9010
  %v9012 = vand.u32 %v9011, 4294901760
  %9013 = vmatmul.mubr.f32.gmra.mrb[0].mxu0 %v9012
  %v9014 = vpop.f32.mrb[0].mxu0
  %v9015 = vadd.f32 %v7834, %v9014
  %v9016 = vpop.f32.mrb[0].mxu0
  %9017 = vmatprep.mubr.f32.mxu0 0.0
  %v9018 = vand.u32 %v4523, 4294901760
  %v9019 = vsub.f32 %v4523, %v9018
  %v9020 = vand.u32 %v9019, 4294901760
  %9021 = vmatmul.mubr.f32.gmra.mrb[0].mxu0 %v9020
  %v9022 = vpop.f32.mrb[0].mxu0
  %v9023 = vadd.f32 %v7841, %v9022
  %v9024 = vpop.f32.mrb[0].mxu0
  %9025 = vmatprep.mubr.f32.mxu0 0.0
  %v9026 = vand.u32 %v4524, 4294901760
  %v9027 = vsub.f32 %v4524, %v9026
  %v9028 = vand.u32 %v9027, 4294901760
  %9029 = vmatmul.mubr.f32.gmra.mrb[0].mxu0 %v9028
  %v9030 = vpop.f32.mrb[0].mxu0
  %v9031 = vadd.f32 %v7848, %v9030
  %v9032 = vpop.f32.mrb[0].mxu0
  %9033 = vmatprep.mubr.f32.mxu0 0.0
  %v9034 = vand.u32 %v4525, 4294901760
  %v9035 = vsub.f32 %v4525, %v9034
  %v9036 = vand.u32 %v9035, 4294901760
  %9037 = vmatmul.mubr.f32.gmra.mrb[0].mxu0 %v9036
  %v9038 = vpop.f32.mrb[0].mxu0
  %v9039 = vadd.f32 %v7855, %v9038
  %v9040 = vpop.f32.mrb[0].mxu0
  %9041 = vmatprep.mubr.f32.mxu0 0.0
  %v9042 = vand.u32 %v4526, 4294901760
  %v9043 = vsub.f32 %v4526, %v9042
  %v9044 = vand.u32 %v9043, 4294901760
  %9045 = vmatmul.mubr.f32.gmra.mrb[0].mxu0 %v9044
  %v9046 = vpop.f32.mrb[0].mxu0
  %v9047 = vadd.f32 %v7862, %v9046
  %v9048 = vpop.f32.mrb[0].mxu0
  %9049 = vmatprep.mubr.f32.mxu0 0.0
  %v9050 = vand.u32 %v4527, 4294901760
  %v9051 = vsub.f32 %v4527, %v9050
  %v9052 = vand.u32 %v9051, 4294901760
  %9053 = vmatmul.mubr.f32.gmra.mrb[0].mxu0 %v9052
  %v9054 = vpop.f32.mrb[0].mxu0
  %v9055 = vadd.f32 %v7869, %v9054
  %v9056 = vpop.f32.mrb[0].mxu0
  %9057 = vmatprep.mubr.f32.mxu0 0.0
  %v9058 = vand.u32 %v4528, 4294901760
  %v9059 = vsub.f32 %v4528, %v9058
  %v9060 = vand.u32 %v9059, 4294901760
  %9061 = vmatmul.mubr.f32.gmra.mrb[0].mxu0 %v9060
  %v9062 = vpop.f32.mrb[0].mxu0
  %v9063 = vadd.f32 %v7876, %v9062
  %v9064 = vpop.f32.mrb[0].mxu0
  %9065 = vmatprep.mubr.f32.mxu0 0.0
  %v9066 = vand.u32 %v4529, 4294901760
  %v9067 = vsub.f32 %v4529, %v9066
  %v9068 = vand.u32 %v9067, 4294901760
  %9069 = vmatmul.mubr.f32.gmra.mrb[0].mxu0 %v9068
  %v9070 = vpop.f32.mrb[0].mxu0
  %v9071 = vadd.f32 %v7883, %v9070
  %v9072 = vpop.f32.mrb[0].mxu0
  %9073 = vmatprep.mubr.f32.mxu0 0.0
  %v9074 = vand.u32 %v4530, 4294901760
  %v9075 = vsub.f32 %v4530, %v9074
  %v9076 = vand.u32 %v9075, 4294901760
  %9077 = vmatmul.mubr.f32.gmra.mrb[0].mxu0 %v9076
  %v9078 = vpop.f32.mrb[0].mxu0
  %v9079 = vadd.f32 %v7890, %v9078
  %v9080 = vpop.f32.mrb[0].mxu0
  %9081 = vmatprep.mubr.f32.mxu0 0.0
  %v9082 = vand.u32 %v4531, 4294901760
  %v9083 = vsub.f32 %v4531, %v9082
  %v9084 = vand.u32 %v9083, 4294901760
  %9085 = vmatmul.mubr.f32.gmra.mrb[0].mxu0 %v9084
  %v9086 = vpop.f32.mrb[0].mxu0
  %v9087 = vadd.f32 %v7897, %v9086
  %v9088 = vpop.f32.mrb[0].mxu0
  %9089 = vmatprep.mubr.f32.mxu0 0.0
  %v9090 = vand.u32 %v4532, 4294901760
  %v9091 = vsub.f32 %v4532, %v9090
  %v9092 = vand.u32 %v9091, 4294901760
  %9093 = vmatmul.mubr.f32.gmra.mrb[0].mxu0 %v9092
  %v9094 = vpop.f32.mrb[0].mxu0
  %v9095 = vadd.f32 %v7904, %v9094
  %v9096 = vpop.f32.mrb[0].mxu0
  %9097 = vmatprep.mubr.f32.mxu0 0.0
  %v9098 = vand.u32 %v4533, 4294901760
  %v9099 = vsub.f32 %v4533, %v9098
  %v9100 = vand.u32 %v9099, 4294901760
  %9101 = vmatmul.mubr.f32.gmra.mrb[0].mxu0 %v9100
  %v9102 = vpop.f32.mrb[0].mxu0
  %v9103 = vadd.f32 %v7911, %v9102
  %v9104 = vpop.f32.mrb[0].mxu0
  %9105 = vmatprep.mubr.f32.mxu0 0.0
  %v9106 = vand.u32 %v4534, 4294901760
  %v9107 = vsub.f32 %v4534, %v9106
  %v9108 = vand.u32 %v9107, 4294901760
  %9109 = vmatmul.mubr.f32.gmra.mrb[0].mxu0 %v9108
  %v9110 = vpop.f32.mrb[0].mxu0
  %v9111 = vadd.f32 %v7918, %v9110
  %v9112 = vpop.f32.mrb[0].mxu0
  %9113 = vmatprep.mubr.f32.mxu0 0.0
  %v9114 = vand.u32 %v4535, 4294901760
  %v9115 = vsub.f32 %v4535, %v9114
  %v9116 = vand.u32 %v9115, 4294901760
  %9117 = vmatmul.mubr.f32.gmra.mrb[0].mxu0 %v9116
  %v9118 = vpop.f32.mrb[0].mxu0
  %v9119 = vadd.f32 %v7925, %v9118
  %v9120 = vpop.f32.mrb[0].mxu0
  %9121 = vmatprep.mubr.f32.mxu0 0.0
  %v9122 = vand.u32 %v4536, 4294901760
  %v9123 = vsub.f32 %v4536, %v9122
  %v9124 = vand.u32 %v9123, 4294901760
  %9125 = vmatmul.mubr.f32.gmra.mrb[0].mxu0 %v9124
  %v9126 = vpop.f32.mrb[0].mxu0
  %v9127 = vadd.f32 %v7932, %v9126
  %v9128 = vpop.f32.mrb[0].mxu0
  %9129 = vmatprep.mubr.f32.mxu0 0.0
  %v9130 = vand.u32 %v4537, 4294901760
  %v9131 = vsub.f32 %v4537, %v9130
  %v9132 = vand.u32 %v9131, 4294901760
  %9133 = vmatmul.mubr.f32.gmra.mrb[0].mxu0 %v9132
  %v9134 = vpop.f32.mrb[0].mxu0
  %v9135 = vadd.f32 %v7939, %v9134
  %v9136 = vpop.f32.mrb[0].mxu0
  %9137 = vmatprep.mubr.f32.mxu0 0.0
  %v9138 = vand.u32 %v4538, 4294901760
  %v9139 = vsub.f32 %v4538, %v9138
  %v9140 = vand.u32 %v9139, 4294901760
  %9141 = vmatmul.mubr.f32.gmra.mrb[0].mxu0 %v9140
  %v9142 = vpop.f32.mrb[0].mxu0
  %v9143 = vadd.f32 %v7946, %v9142
  %v9144 = vpop.f32.mrb[0].mxu0
  %9145 = vmatprep.mubr.f32.mxu0 0.0
  %v9146 = vand.u32 %v4539, 4294901760
  %v9147 = vsub.f32 %v4539, %v9146
  %v9148 = vand.u32 %v9147, 4294901760
  %9149 = vmatmul.mubr.f32.gmra.mrb[0].mxu0 %v9148
  %v9150 = vpop.f32.mrb[0].mxu0
  %v9151 = vadd.f32 %v7953, %v9150
  %v9152 = vpop.f32.mrb[0].mxu0
  %9153 = vmatprep.mubr.f32.mxu0 0.0
  %v9154 = vand.u32 %v4540, 4294901760
  %v9155 = vsub.f32 %v4540, %v9154
  %v9156 = vand.u32 %v9155, 4294901760
  %9157 = vmatmul.mubr.f32.gmra.mrb[0].mxu0 %v9156
  %v9158 = vpop.f32.mrb[0].mxu0
  %v9159 = vadd.f32 %v7960, %v9158
  %v9160 = vpop.f32.mrb[0].mxu0
  %9161 = vmatprep.mubr.f32.mxu0 0.0
  %v9162 = vand.u32 %v4541, 4294901760
  %v9163 = vsub.f32 %v4541, %v9162
  %v9164 = vand.u32 %v9163, 4294901760
  %9165 = vmatmul.mubr.f32.gmra.mrb[0].mxu0 %v9164
  %v9166 = vpop.f32.mrb[0].mxu0
  %v9167 = vadd.f32 %v7967, %v9166
  %v9168 = vpop.f32.mrb[0].mxu0
  %9169 = vmatprep.mubr.f32.mxu0 0.0
  %v9170 = vand.u32 %v4542, 4294901760
  %v9171 = vsub.f32 %v4542, %v9170
  %v9172 = vand.u32 %v9171, 4294901760
  %9173 = vmatmul.mubr.f32.gmra.mrb[0].mxu0 %v9172
  %v9174 = vpop.f32.mrb[0].mxu0
  %v9175 = vadd.f32 %v7974, %v9174
  %v9176 = vpop.f32.mrb[0].mxu0
  %9177 = vmatprep.mubr.f32.mxu0 0.0
  %v9178 = vand.u32 %v4543, 4294901760
  %v9179 = vsub.f32 %v4543, %v9178
  %v9180 = vand.u32 %v9179, 4294901760
  %9181 = vmatmul.mubr.f32.gmra.mrb[0].mxu0 %v9180
  %v9182 = vpop.f32.mrb[0].mxu0
  %v9183 = vadd.f32 %v7981, %v9182
  %v9184 = vpop.f32.mrb[0].mxu0
  %9185 = vmatprep.mubr.f32.mxu0 0.0
  %v9186 = vand.u32 %v4544, 4294901760
  %v9187 = vsub.f32 %v4544, %v9186
  %v9188 = vand.u32 %v9187, 4294901760
  %9189 = vmatmul.mubr.f32.gmra.mrb[0].mxu0 %v9188
  %v9190 = vpop.f32.mrb[0].mxu0
  %v9191 = vadd.f32 %v7988, %v9190
  %v9192 = vpop.f32.mrb[0].mxu0
  %9193 = vmatprep.mubr.f32.mxu0 0.0
  %v9194 = vand.u32 %v4545, 4294901760
  %v9195 = vsub.f32 %v4545, %v9194
  %v9196 = vand.u32 %v9195, 4294901760
  %9197 = vmatmul.mubr.f32.gmra.mrb[0].mxu0 %v9196
  %v9198 = vpop.f32.mrb[0].mxu0
  %v9199 = vadd.f32 %v7995, %v9198
  %v9200 = vpop.f32.mrb[0].mxu0
  %9201 = vmatprep.mubr.f32.mxu0 0.0
  %v9202 = vand.u32 %v4546, 4294901760
  %v9203 = vsub.f32 %v4546, %v9202
  %v9204 = vand.u32 %v9203, 4294901760
  %9205 = vmatmul.mubr.f32.gmra.mrb[0].mxu0 %v9204
  %v9206 = vpop.f32.mrb[0].mxu0
  %v9207 = vadd.f32 %v8002, %v9206
  %v9208 = vpop.f32.mrb[0].mxu0
  %9209 = vmatprep.mubr.f32.mxu0 0.0
  %v9210 = vand.u32 %v4547, 4294901760
  %v9211 = vsub.f32 %v4547, %v9210
  %v9212 = vand.u32 %v9211, 4294901760
  %9213 = vmatmul.mubr.f32.gmra.mrb[0].mxu0 %v9212
  %v9214 = vpop.f32.mrb[0].mxu0
  %v9215 = vadd.f32 %v8009, %v9214
  %v9216 = vpop.f32.mrb[0].mxu0
  %9217 = vmatprep.mubr.f32.mxu0 0.0
  %v9218 = vand.u32 %v4548, 4294901760
  %v9219 = vsub.f32 %v4548, %v9218
  %v9220 = vand.u32 %v9219, 4294901760
  %9221 = vmatmul.mubr.f32.gmra.mrb[0].mxu0 %v9220
  %v9222 = vpop.f32.mrb[0].mxu0
  %v9223 = vadd.f32 %v8016, %v9222
  %v9224 = vpop.f32.mrb[0].mxu0
  %9225 = vmatprep.mubr.f32.mxu0 0.0
  %v9226 = vand.u32 %v4549, 4294901760
  %v9227 = vsub.f32 %v4549, %v9226
  %v9228 = vand.u32 %v9227, 4294901760
  %9229 = vmatmul.mubr.f32.gmra.mrb[0].mxu0 %v9228
  %v9230 = vpop.f32.mrb[0].mxu0
  %v9231 = vadd.f32 %v8023, %v9230
  %v9232 = vpop.f32.mrb[0].mxu0
  %9233 = vmatprep.mubr.f32.mxu0 0.0
  %v9234 = vand.u32 %v4550, 4294901760
  %v9235 = vsub.f32 %v4550, %v9234
  %v9236 = vand.u32 %v9235, 4294901760
  %9237 = vmatmul.mubr.f32.gmra.mrb[0].mxu0 %v9236
  %v9238 = vpop.f32.mrb[0].mxu0
  %v9239 = vadd.f32 %v8030, %v9238
  %v9240 = vpop.f32.mrb[0].mxu0
  %9241 = vmatprep.mubr.f32.mxu0 0.0
  %v9242 = vand.u32 %v4551, 4294901760
  %v9243 = vsub.f32 %v4551, %v9242
  %v9244 = vand.u32 %v9243, 4294901760
  %9245 = vmatmul.mubr.f32.gmra.mrb[0].mxu0 %v9244
  %v9246 = vpop.f32.mrb[0].mxu0
  %v9247 = vadd.f32 %v8037, %v9246
  %v9248 = vpop.f32.mrb[0].mxu0
  %9249 = vmatprep.mubr.f32.mxu0 0.0
  %v9250 = vand.u32 %v4552, 4294901760
  %v9251 = vsub.f32 %v4552, %v9250
  %v9252 = vand.u32 %v9251, 4294901760
  %9253 = vmatmul.mubr.f32.gmra.mrb[0].mxu0 %v9252
  %v9254 = vpop.f32.mrb[0].mxu0
  %v9255 = vadd.f32 %v8044, %v9254
  %v9256 = vpop.f32.mrb[0].mxu0
  %9257 = vmatprep.mubr.f32.mxu0 0.0
  %v9258 = vand.u32 %v4553, 4294901760
  %v9259 = vsub.f32 %v4553, %v9258
  %v9260 = vand.u32 %v9259, 4294901760
  %9261 = vmatmul.mubr.f32.gmra.mrb[0].mxu0 %v9260
  %v9262 = vpop.f32.mrb[0].mxu0
  %v9263 = vadd.f32 %v8051, %v9262
  %v9264 = vpop.f32.mrb[0].mxu0
  %9265 = vmatprep.mubr.f32.mxu0 0.0
  %v9266 = vand.u32 %v4554, 4294901760
  %v9267 = vsub.f32 %v4554, %v9266
  %v9268 = vand.u32 %v9267, 4294901760
  %9269 = vmatmul.mubr.f32.gmra.mrb[0].mxu0 %v9268
  %v9270 = vpop.f32.mrb[0].mxu0
  %v9271 = vadd.f32 %v8058, %v9270
  %v9272 = vpop.f32.mrb[0].mxu0
  %9273 = vmatprep.mubr.f32.mxu0 0.0
  %v9274 = vand.u32 %v4555, 4294901760
  %v9275 = vsub.f32 %v4555, %v9274
  %v9276 = vand.u32 %v9275, 4294901760
  %9277 = vmatmul.mubr.f32.gmra.mrb[0].mxu0 %v9276
  %v9278 = vpop.f32.mrb[0].mxu0
  %v9279 = vadd.f32 %v8065, %v9278
  %v9280 = vpop.f32.mrb[0].mxu0
  %9281 = vmatprep.mubr.f32.mxu0 0.0
  %v9282 = vand.u32 %v4556, 4294901760
  %v9283 = vsub.f32 %v4556, %v9282
  %v9284 = vand.u32 %v9283, 4294901760
  %9285 = vmatmul.mubr.f32.gmra.mrb[0].mxu0 %v9284
  %v9286 = vpop.f32.mrb[0].mxu0
  %v9287 = vadd.f32 %v8072, %v9286
  %v9288 = vpop.f32.mrb[0].mxu0
  %9289 = vmatprep.mubr.f32.mxu0 0.0
  %v9290 = vand.u32 %v4557, 4294901760
  %v9291 = vsub.f32 %v4557, %v9290
  %v9292 = vand.u32 %v9291, 4294901760
  %9293 = vmatmul.mubr.f32.gmra.mrb[0].mxu0 %v9292
  %v9294 = vpop.f32.mrb[0].mxu0
  %v9295 = vadd.f32 %v8079, %v9294
  %v9296 = vpop.f32.mrb[0].mxu0
  %9297 = vmatprep.mubr.f32.mxu0 0.0
  %v9298 = vand.u32 %v4558, 4294901760
  %v9299 = vsub.f32 %v4558, %v9298
  %v9300 = vand.u32 %v9299, 4294901760
  %9301 = vmatmul.mubr.f32.gmra.mrb[0].mxu0 %v9300
  %v9302 = vpop.f32.mrb[0].mxu0
  %v9303 = vadd.f32 %v8086, %v9302
  %v9304 = vpop.f32.mrb[0].mxu0
  %9305 = vmatprep.mubr.f32.mxu0 0.0
  %v9306 = vand.u32 %v4559, 4294901760
  %v9307 = vsub.f32 %v4559, %v9306
  %v9308 = vand.u32 %v9307, 4294901760
  %9309 = vmatmul.mubr.f32.gmra.mrb[0].mxu0 %v9308
  %v9310 = vpop.f32.mrb[0].mxu0
  %v9311 = vadd.f32 %v8093, %v9310
  %v9312 = vpop.f32.mrb[0].mxu0
  %9313 = vmatprep.mubr.f32.mxu0 0.0
  %v9314 = vand.u32 %v4560, 4294901760
  %v9315 = vsub.f32 %v4560, %v9314
  %v9316 = vand.u32 %v9315, 4294901760
  %9317 = vmatmul.mubr.f32.gmra.mrb[0].mxu0 %v9316
  %v9318 = vpop.f32.mrb[0].mxu0
  %v9319 = vadd.f32 %v8100, %v9318
  %v9320 = vpop.f32.mrb[0].mxu0
  %9321 = vmatprep.mubr.f32.mxu0 0.0
  %v9322 = vand.u32 %v4561, 4294901760
  %v9323 = vsub.f32 %v4561, %v9322
  %v9324 = vand.u32 %v9323, 4294901760
  %9325 = vmatmul.mubr.f32.gmra.mrb[0].mxu0 %v9324
  %v9326 = vpop.f32.mrb[0].mxu0
  %v9327 = vadd.f32 %v8107, %v9326
  %v9328 = vpop.f32.mrb[0].mxu0
  %9329 = vmatprep.mubr.f32.mxu0 0.0
  %v9330 = vand.u32 %v4562, 4294901760
  %v9331 = vsub.f32 %v4562, %v9330
  %v9332 = vand.u32 %v9331, 4294901760
  %9333 = vmatmul.mubr.f32.gmra.mrb[0].mxu0 %v9332
  %v9334 = vpop.f32.mrb[0].mxu0
  %v9335 = vadd.f32 %v8114, %v9334
  %v9336 = vpop.f32.mrb[0].mxu0
  %9337 = vmatprep.mubr.f32.mxu0 0.0
  %v9338 = vand.u32 %v4563, 4294901760
  %v9339 = vsub.f32 %v4563, %v9338
  %v9340 = vand.u32 %v9339, 4294901760
  %9341 = vmatmul.mubr.f32.gmra.mrb[0].mxu0 %v9340
  %v9342 = vpop.f32.mrb[0].mxu0
  %v9343 = vadd.f32 %v8121, %v9342
  %v9344 = vpop.f32.mrb[0].mxu0
  %9345 = vmatprep.mubr.f32.mxu0 0.0
  %v9346 = vand.u32 %v4564, 4294901760
  %v9347 = vsub.f32 %v4564, %v9346
  %v9348 = vand.u32 %v9347, 4294901760
  %9349 = vmatmul.mubr.f32.gmra.mrb[0].mxu0 %v9348
  %v9350 = vpop.f32.mrb[0].mxu0
  %v9351 = vadd.f32 %v8128, %v9350
  %v9352 = vpop.f32.mrb[0].mxu0
  %9353 = vmatprep.mubr.f32.mxu0 0.0
  %v9354 = vand.u32 %v4565, 4294901760
  %v9355 = vsub.f32 %v4565, %v9354
  %v9356 = vand.u32 %v9355, 4294901760
  %9357 = vmatmul.mubr.f32.gmra.mrb[0].mxu0 %v9356
  %v9358 = vpop.f32.mrb[0].mxu0
  %v9359 = vadd.f32 %v8135, %v9358
  %v9360 = vpop.f32.mrb[0].mxu0
  %9361 = vmatprep.mubr.f32.mxu0 0.0
  %v9362 = vand.u32 %v4566, 4294901760
  %v9363 = vsub.f32 %v4566, %v9362
  %v9364 = vand.u32 %v9363, 4294901760
  %9365 = vmatmul.mubr.f32.gmra.mrb[0].mxu0 %v9364
  %v9366 = vpop.f32.mrb[0].mxu0
  %v9367 = vadd.f32 %v8142, %v9366
  %v9368 = vpop.f32.mrb[0].mxu0
  %9369 = vmatprep.mubr.f32.mxu0 0.0
  %v9370 = vand.u32 %v4567, 4294901760
  %v9371 = vsub.f32 %v4567, %v9370
  %v9372 = vand.u32 %v9371, 4294901760
  %9373 = vmatmul.mubr.f32.gmra.mrb[0].mxu0 %v9372
  %v9374 = vpop.f32.mrb[0].mxu0
  %v9375 = vadd.f32 %v8149, %v9374
  %v9376 = vpop.f32.mrb[0].mxu0
  %9377 = vmatprep.mubr.f32.mxu0 0.0
  %v9378 = vand.u32 %v4568, 4294901760
  %v9379 = vsub.f32 %v4568, %v9378
  %v9380 = vand.u32 %v9379, 4294901760
  %9381 = vmatmul.mubr.f32.gmra.mrb[0].mxu0 %v9380
  %v9382 = vpop.f32.mrb[0].mxu0
  %v9383 = vadd.f32 %v8156, %v9382
  %v9384 = vpop.f32.mrb[0].mxu0
  %9385 = vmatprep.mubr.f32.mxu0 0.0
  %v9386 = vand.u32 %v4569, 4294901760
  %v9387 = vsub.f32 %v4569, %v9386
  %v9388 = vand.u32 %v9387, 4294901760
  %9389 = vmatmul.mubr.f32.gmra.mrb[0].mxu0 %v9388
  %v9390 = vpop.f32.mrb[0].mxu0
  %v9391 = vadd.f32 %v8163, %v9390
  %v9392 = vpop.f32.mrb[0].mxu0
  %9393 = vmatprep.mubr.f32.mxu0 0.0
  %v9394 = vand.u32 %v4570, 4294901760
  %v9395 = vsub.f32 %v4570, %v9394
  %v9396 = vand.u32 %v9395, 4294901760
  %9397 = vmatmul.mubr.f32.gmra.mrb[0].mxu0 %v9396
  %v9398 = vpop.f32.mrb[0].mxu0
  %v9399 = vadd.f32 %v8170, %v9398
  %v9400 = vpop.f32.mrb[0].mxu0
  %9401 = vmatprep.mubr.f32.mxu0 0.0
  %v9402 = vand.u32 %v4571, 4294901760
  %v9403 = vsub.f32 %v4571, %v9402
  %v9404 = vand.u32 %v9403, 4294901760
  %9405 = vmatmul.mubr.f32.gmra.mrb[0].mxu0 %v9404
  %v9406 = vpop.f32.mrb[0].mxu0
  %v9407 = vadd.f32 %v8177, %v9406
  %v9408 = vpop.f32.mrb[0].mxu0
  %9409 = vmatprep.mubr.f32.mxu0 0.0
  %v9410 = vand.u32 %v4572, 4294901760
  %v9411 = vsub.f32 %v4572, %v9410
  %v9412 = vand.u32 %v9411, 4294901760
  %9413 = vmatmul.mubr.f32.gmra.mrb[0].mxu0 %v9412
  %v9414 = vpop.f32.mrb[0].mxu0
  %v9415 = vadd.f32 %v8184, %v9414
  %v9416 = vpop.f32.mrb[0].mxu0
  %9417 = vmatprep.mubr.f32.mxu0 0.0
  %v9418 = vand.u32 %v4573, 4294901760
  %v9419 = vsub.f32 %v4573, %v9418
  %v9420 = vand.u32 %v9419, 4294901760
  %9421 = vmatmul.mubr.f32.gmra.mrb[0].mxu0 %v9420
  %v9422 = vpop.f32.mrb[0].mxu0
  %v9423 = vadd.f32 %v8191, %v9422
  %v9424 = vpop.f32.mrb[0].mxu0
  %9425 = vmatprep.mubr.f32.mxu0 0.0
  %v9426 = vand.u32 %v4574, 4294901760
  %v9427 = vsub.f32 %v4574, %v9426
  %v9428 = vand.u32 %v9427, 4294901760
  %9429 = vmatmul.mubr.f32.gmra.mrb[0].mxu0 %v9428
  %v9430 = vpop.f32.mrb[0].mxu0
  %v9431 = vadd.f32 %v8198, %v9430
  %v9432 = vpop.f32.mrb[0].mxu0
  %9433 = vmatprep.mubr.f32.mxu0 0.0
  %v9434 = vand.u32 %v4575, 4294901760
  %v9435 = vsub.f32 %v4575, %v9434
  %v9436 = vand.u32 %v9435, 4294901760
  %9437 = vmatmul.mubr.f32.gmra.mrb[0].mxu0 %v9436
  %v9438 = vpop.f32.mrb[0].mxu0
  %v9439 = vadd.f32 %v8205, %v9438
  %v9440 = vpop.f32.mrb[0].mxu0
  %9441 = vmatprep.mubr.f32.mxu0 0.0
  %v9442 = vand.u32 %v4576, 4294901760
  %v9443 = vsub.f32 %v4576, %v9442
  %v9444 = vand.u32 %v9443, 4294901760
  %9445 = vmatmul.mubr.f32.gmra.mrb[0].mxu0 %v9444
  %v9446 = vpop.f32.mrb[0].mxu0
  %v9447 = vadd.f32 %v8212, %v9446
  %v9448 = vpop.f32.mrb[0].mxu0
  %9449 = vmatprep.mubr.f32.mxu0 0.0
  %v9450 = vand.u32 %v4577, 4294901760
  %v9451 = vsub.f32 %v4577, %v9450
  %v9452 = vand.u32 %v9451, 4294901760
  %9453 = vmatmul.mubr.f32.gmra.mrb[0].mxu0 %v9452
  %v9454 = vpop.f32.mrb[0].mxu0
  %v9455 = vadd.f32 %v8219, %v9454
  %v9456 = vpop.f32.mrb[0].mxu0
  %9457 = vmatprep.mubr.f32.mxu0 0.0
  %v9458 = vand.u32 %v4578, 4294901760
  %v9459 = vsub.f32 %v4578, %v9458
  %v9460 = vand.u32 %v9459, 4294901760
  %9461 = vmatmul.mubr.f32.gmra.mrb[0].mxu0 %v9460
  %v9462 = vpop.f32.mrb[0].mxu0
  %v9463 = vadd.f32 %v8226, %v9462
  %v9464 = vpop.f32.mrb[0].mxu0
  %9465 = vmatprep.mubr.f32.mxu0 0.0
  %v9466 = vand.u32 %v4579, 4294901760
  %v9467 = vsub.f32 %v4579, %v9466
  %v9468 = vand.u32 %v9467, 4294901760
  %9469 = vmatmul.mubr.f32.gmra.mrb[0].mxu0 %v9468
  %v9470 = vpop.f32.mrb[0].mxu0
  %v9471 = vadd.f32 %v8233, %v9470
  %v9472 = vpop.f32.mrb[0].mxu0
  %9473 = vmatprep.mubr.f32.mxu0 0.0
  %v9474 = vand.u32 %v4580, 4294901760
  %v9475 = vsub.f32 %v4580, %v9474
  %v9476 = vand.u32 %v9475, 4294901760
  %9477 = vmatmul.mubr.f32.gmra.mrb[0].mxu0 %v9476
  %v9478 = vpop.f32.mrb[0].mxu0
  %v9479 = vadd.f32 %v8240, %v9478
  %v9480 = vpop.f32.mrb[0].mxu0
  %9481 = vmatprep.mubr.f32.mxu0 0.0
  %v9482 = vand.u32 %v4581, 4294901760
  %v9483 = vsub.f32 %v4581, %v9482
  %v9484 = vand.u32 %v9483, 4294901760
  %9485 = vmatmul.mubr.f32.gmra.mrb[0].mxu0 %v9484
  %v9486 = vpop.f32.mrb[0].mxu0
  %v9487 = vadd.f32 %v8247, %v9486
  %v9488 = vpop.f32.mrb[0].mxu0
  %9489 = vmatprep.mubr.f32.mxu0 0.0
  %v9490 = vand.u32 %v4582, 4294901760
  %v9491 = vsub.f32 %v4582, %v9490
  %v9492 = vand.u32 %v9491, 4294901760
  %9493 = vmatmul.mubr.f32.gmra.mrb[0].mxu0 %v9492
  %v9494 = vpop.f32.mrb[0].mxu0
  %v9495 = vadd.f32 %v8254, %v9494
  %v9496 = vpop.f32.mrb[0].mxu0
  %9497 = vdwg.mxu0
  %9498 = vmatprep.subr.mxu0 0.0
  %v9499 = vand.u32 %v4583, 4294901760
  %v9500 = vsub.f32 %v4583, %v9499
  %v9501 = vand.u32 %v9500, 4294901760
  %9502 = vmatpush1.msra.mxu0 %v9501
  %9503 = vmatprep.subr.mxu0 0.0
  %v9504 = vand.u32 %v4584, 4294901760
  %v9505 = vsub.f32 %v4584, %v9504
  %v9506 = vand.u32 %v9505, 4294901760
  %9507 = vmatpush1.msra.mxu0 %v9506
  %9508 = vmatprep.subr.mxu0 0.0
  %v9509 = vand.u32 %v4585, 4294901760
  %v9510 = vsub.f32 %v4585, %v9509
  %v9511 = vand.u32 %v9510, 4294901760
  %9512 = vmatpush1.msra.mxu0 %v9511
  %9513 = vmatprep.subr.mxu0 0.0
  %v9514 = vand.u32 %v4586, 4294901760
  %v9515 = vsub.f32 %v4586, %v9514
  %v9516 = vand.u32 %v9515, 4294901760
  %9517 = vmatpush1.msra.mxu0 %v9516
  %9518 = vmatprep.subr.mxu0 0.0
  %v9519 = vand.u32 %v4587, 4294901760
  %v9520 = vsub.f32 %v4587, %v9519
  %v9521 = vand.u32 %v9520, 4294901760
  %9522 = vmatpush1.msra.mxu0 %v9521
  %9523 = vmatprep.subr.mxu0 0.0
  %v9524 = vand.u32 %v4588, 4294901760
  %v9525 = vsub.f32 %v4588, %v9524
  %v9526 = vand.u32 %v9525, 4294901760
  %9527 = vmatpush1.msra.mxu0 %v9526
  %9528 = vmatprep.subr.mxu0 0.0
  %v9529 = vand.u32 %v4589, 4294901760
  %v9530 = vsub.f32 %v4589, %v9529
  %v9531 = vand.u32 %v9530, 4294901760
  %9532 = vmatpush1.msra.mxu0 %v9531
  %9533 = vmatprep.subr.mxu0 0.0
  %v9534 = vand.u32 %v4590, 4294901760
  %v9535 = vsub.f32 %v4590, %v9534
  %v9536 = vand.u32 %v9535, 4294901760
  %9537 = vmatpush1.msra.mxu0 %v9536
  %9538 = vmatprep.subr.mxu0 0.0
  %v9539 = vand.u32 %v4591, 4294901760
  %v9540 = vsub.f32 %v4591, %v9539
  %v9541 = vand.u32 %v9540, 4294901760
  %9542 = vmatpush1.msra.mxu0 %v9541
  %9543 = vmatprep.subr.mxu0 0.0
  %v9544 = vand.u32 %v4592, 4294901760
  %v9545 = vsub.f32 %v4592, %v9544
  %v9546 = vand.u32 %v9545, 4294901760
  %9547 = vmatpush1.msra.mxu0 %v9546
  %9548 = vmatprep.subr.mxu0 0.0
  %v9549 = vand.u32 %v4593, 4294901760
  %v9550 = vsub.f32 %v4593, %v9549
  %v9551 = vand.u32 %v9550, 4294901760
  %9552 = vmatpush1.msra.mxu0 %v9551
  %9553 = vmatprep.subr.mxu0 0.0
  %v9554 = vand.u32 %v4594, 4294901760
  %v9555 = vsub.f32 %v4594, %v9554
  %v9556 = vand.u32 %v9555, 4294901760
  %9557 = vmatpush1.msra.mxu0 %v9556
  %9558 = vmatprep.subr.mxu0 0.0
  %v9559 = vand.u32 %v4595, 4294901760
  %v9560 = vsub.f32 %v4595, %v9559
  %v9561 = vand.u32 %v9560, 4294901760
  %9562 = vmatpush1.msra.mxu0 %v9561
  %9563 = vmatprep.subr.mxu0 0.0
  %v9564 = vand.u32 %v4596, 4294901760
  %v9565 = vsub.f32 %v4596, %v9564
  %v9566 = vand.u32 %v9565, 4294901760
  %9567 = vmatpush1.msra.mxu0 %v9566
  %9568 = vmatprep.subr.mxu0 0.0
  %v9569 = vand.u32 %v4597, 4294901760
  %v9570 = vsub.f32 %v4597, %v9569
  %v9571 = vand.u32 %v9570, 4294901760
  %9572 = vmatpush1.msra.mxu0 %v9571
  %9573 = vmatprep.subr.mxu0 0.0
  %v9574 = vand.u32 %v4598, 4294901760
  %v9575 = vsub.f32 %v4598, %v9574
  %v9576 = vand.u32 %v9575, 4294901760
  %9577 = vmatpush1.msra.mxu0 %v9576
  %9578 = vmatprep.subr.mxu0 0.0
  %9579 = vmatpush1.msra.mxu0 0.0
  %9580 = vmatprep.subr.mxu0 0.0
  %9581 = vmatpush1.msra.mxu0 0.0
  %9582 = vmatprep.subr.mxu0 0.0
  %9583 = vmatpush1.msra.mxu0 0.0
  %9584 = vmatprep.subr.mxu0 0.0
  %9585 = vmatpush1.msra.mxu0 0.0
  %9586 = vmatprep.subr.mxu0 0.0
  %9587 = vmatpush1.msra.mxu0 0.0
  %9588 = vmatprep.subr.mxu0 0.0
  %9589 = vmatpush1.msra.mxu0 0.0
  %9590 = vmatprep.subr.mxu0 0.0
  %9591 = vmatpush1.msra.mxu0 0.0
  %9592 = vmatprep.subr.mxu0 0.0
  %9593 = vmatpush1.msra.mxu0 0.0
  %9594 = vmatprep.subr.mxu0 0.0
  %9595 = vmatpush1.msra.mxu0 0.0
  %9596 = vmatprep.subr.mxu0 0.0
  %9597 = vmatpush1.msra.mxu0 0.0
  %9598 = vmatprep.subr.mxu0 0.0
  %9599 = vmatpush1.msra.mxu0 0.0
  %9600 = vmatprep.subr.mxu0 0.0
  %9601 = vmatpush1.msra.mxu0 0.0
  %9602 = vmatprep.subr.mxu0 0.0
  %9603 = vmatpush1.msra.mxu0 0.0
  %9604 = vmatprep.subr.mxu0 0.0
  %9605 = vmatpush1.msra.mxu0 0.0
  %9606 = vmatprep.subr.mxu0 0.0
  %9607 = vmatpush1.msra.mxu0 0.0
  %9608 = vmatprep.subr.mxu0 0.0
  %9609 = vmatpush1.msra.mxu0 0.0
  %9610 = vmatprep.mubr.f32.mxu0 0.0
  %v9611 = vand.u32 %v4438, 4294901760
  %9612 = vmatmul.mubr.f32.gmra.mrb[0].mxu0 %v9611
  %v9613 = vpop.f32.mrb[0].mxu0
  %v9614 = vadd.f32 %v8343, %v9613
  %v9615 = vpop.f32.mrb[0].mxu0
  %9616 = vmatprep.mubr.f32.mxu0 0.0
  %v9617 = vand.u32 %v4439, 4294901760
  %9618 = vmatmul.mubr.f32.gmra.mrb[0].mxu0 %v9617
  %v9619 = vpop.f32.mrb[0].mxu0
  %v9620 = vadd.f32 %v8351, %v9619
  %v9621 = vpop.f32.mrb[0].mxu0
  %9622 = vmatprep.mubr.f32.mxu0 0.0
  %v9623 = vand.u32 %v4440, 4294901760
  %9624 = vmatmul.mubr.f32.gmra.mrb[0].mxu0 %v9623
  %v9625 = vpop.f32.mrb[0].mxu0
  %v9626 = vadd.f32 %v8359, %v9625
  %v9627 = vpop.f32.mrb[0].mxu0
  %9628 = vmatprep.mubr.f32.mxu0 0.0
  %v9629 = vand.u32 %v4441, 4294901760
  %9630 = vmatmul.mubr.f32.gmra.mrb[0].mxu0 %v9629
  %v9631 = vpop.f32.mrb[0].mxu0
  %v9632 = vadd.f32 %v8367, %v9631
  %v9633 = vpop.f32.mrb[0].mxu0
  %9634 = vmatprep.mubr.f32.mxu0 0.0
  %v9635 = vand.u32 %v4442, 4294901760
  %9636 = vmatmul.mubr.f32.gmra.mrb[0].mxu0 %v9635
  %v9637 = vpop.f32.mrb[0].mxu0
  %v9638 = vadd.f32 %v8375, %v9637
  %v9639 = vpop.f32.mrb[0].mxu0
  %9640 = vmatprep.mubr.f32.mxu0 0.0
  %v9641 = vand.u32 %v4443, 4294901760
  %9642 = vmatmul.mubr.f32.gmra.mrb[0].mxu0 %v9641
  %v9643 = vpop.f32.mrb[0].mxu0
  %v9644 = vadd.f32 %v8383, %v9643
  %v9645 = vpop.f32.mrb[0].mxu0
  %9646 = vmatprep.mubr.f32.mxu0 0.0
  %v9647 = vand.u32 %v4444, 4294901760
  %9648 = vmatmul.mubr.f32.gmra.mrb[0].mxu0 %v9647
  %v9649 = vpop.f32.mrb[0].mxu0
  %v9650 = vadd.f32 %v8391, %v9649
  %v9651 = vpop.f32.mrb[0].mxu0
  %9652 = vmatprep.mubr.f32.mxu0 0.0
  %v9653 = vand.u32 %v4445, 4294901760
  %9654 = vmatmul.mubr.f32.gmra.mrb[0].mxu0 %v9653
  %v9655 = vpop.f32.mrb[0].mxu0
  %v9656 = vadd.f32 %v8399, %v9655
  %v9657 = vpop.f32.mrb[0].mxu0
  %9658 = vmatprep.mubr.f32.mxu0 0.0
  %v9659 = vand.u32 %v4446, 4294901760
  %9660 = vmatmul.mubr.f32.gmra.mrb[0].mxu0 %v9659
  %v9661 = vpop.f32.mrb[0].mxu0
  %v9662 = vadd.f32 %v8407, %v9661
  %v9663 = vpop.f32.mrb[0].mxu0
  %9664 = vmatprep.mubr.f32.mxu0 0.0
  %v9665 = vand.u32 %v4447, 4294901760
  %9666 = vmatmul.mubr.f32.gmra.mrb[0].mxu0 %v9665
  %v9667 = vpop.f32.mrb[0].mxu0
  %v9668 = vadd.f32 %v8415, %v9667
  %v9669 = vpop.f32.mrb[0].mxu0
  %9670 = vmatprep.mubr.f32.mxu0 0.0
  %v9671 = vand.u32 %v4448, 4294901760
  %9672 = vmatmul.mubr.f32.gmra.mrb[0].mxu0 %v9671
  %v9673 = vpop.f32.mrb[0].mxu0
  %v9674 = vadd.f32 %v8423, %v9673
  %v9675 = vpop.f32.mrb[0].mxu0
  %9676 = vmatprep.mubr.f32.mxu0 0.0
  %v9677 = vand.u32 %v4449, 4294901760
  %9678 = vmatmul.mubr.f32.gmra.mrb[0].mxu0 %v9677
  %v9679 = vpop.f32.mrb[0].mxu0
  %v9680 = vadd.f32 %v8431, %v9679
  %v9681 = vpop.f32.mrb[0].mxu0
  %9682 = vmatprep.mubr.f32.mxu0 0.0
  %v9683 = vand.u32 %v4450, 4294901760
  %9684 = vmatmul.mubr.f32.gmra.mrb[0].mxu0 %v9683
  %v9685 = vpop.f32.mrb[0].mxu0
  %v9686 = vadd.f32 %v8439, %v9685
  %v9687 = vpop.f32.mrb[0].mxu0
  %9688 = vmatprep.mubr.f32.mxu0 0.0
  %v9689 = vand.u32 %v4451, 4294901760
  %9690 = vmatmul.mubr.f32.gmra.mrb[0].mxu0 %v9689
  %v9691 = vpop.f32.mrb[0].mxu0
  %v9692 = vadd.f32 %v8447, %v9691
  %v9693 = vpop.f32.mrb[0].mxu0
  %9694 = vmatprep.mubr.f32.mxu0 0.0
  %v9695 = vand.u32 %v4452, 4294901760
  %9696 = vmatmul.mubr.f32.gmra.mrb[0].mxu0 %v9695
  %v9697 = vpop.f32.mrb[0].mxu0
  %v9698 = vadd.f32 %v8455, %v9697
  %v9699 = vpop.f32.mrb[0].mxu0
  %9700 = vmatprep.mubr.f32.mxu0 0.0
  %v9701 = vand.u32 %v4453, 4294901760
  %9702 = vmatmul.mubr.f32.gmra.mrb[0].mxu0 %v9701
  %v9703 = vpop.f32.mrb[0].mxu0
  %v9704 = vadd.f32 %v8463, %v9703
  %v9705 = vpop.f32.mrb[0].mxu0
  %9706 = vmatprep.mubr.f32.mxu0 0.0
  %v9707 = vand.u32 %v4454, 4294901760
  %9708 = vmatmul.mubr.f32.gmra.mrb[0].mxu0 %v9707
  %v9709 = vpop.f32.mrb[0].mxu0
  %v9710 = vadd.f32 %v8471, %v9709
  %v9711 = vpop.f32.mrb[0].mxu0
  %9712 = vmatprep.mubr.f32.mxu0 0.0
  %v9713 = vand.u32 %v4455, 4294901760
  %9714 = vmatmul.mubr.f32.gmra.mrb[0].mxu0 %v9713
  %v9715 = vpop.f32.mrb[0].mxu0
  %v9716 = vadd.f32 %v8479, %v9715
  %v9717 = vpop.f32.mrb[0].mxu0
  %9718 = vmatprep.mubr.f32.mxu0 0.0
  %v9719 = vand.u32 %v4456, 4294901760
  %9720 = vmatmul.mubr.f32.gmra.mrb[0].mxu0 %v9719
  %v9721 = vpop.f32.mrb[0].mxu0
  %v9722 = vadd.f32 %v8487, %v9721
  %v9723 = vpop.f32.mrb[0].mxu0
  %9724 = vmatprep.mubr.f32.mxu0 0.0
  %v9725 = vand.u32 %v4457, 4294901760
  %9726 = vmatmul.mubr.f32.gmra.mrb[0].mxu0 %v9725
  %v9727 = vpop.f32.mrb[0].mxu0
  %v9728 = vadd.f32 %v8495, %v9727
  %v9729 = vpop.f32.mrb[0].mxu0
  %9730 = vmatprep.mubr.f32.mxu0 0.0
  %v9731 = vand.u32 %v4458, 4294901760
  %9732 = vmatmul.mubr.f32.gmra.mrb[0].mxu0 %v9731
  %v9733 = vpop.f32.mrb[0].mxu0
  %v9734 = vadd.f32 %v8503, %v9733
  %v9735 = vpop.f32.mrb[0].mxu0
  %9736 = vmatprep.mubr.f32.mxu0 0.0
  %v9737 = vand.u32 %v4459, 4294901760
  %9738 = vmatmul.mubr.f32.gmra.mrb[0].mxu0 %v9737
  %v9739 = vpop.f32.mrb[0].mxu0
  %v9740 = vadd.f32 %v8511, %v9739
  %v9741 = vpop.f32.mrb[0].mxu0
  %9742 = vmatprep.mubr.f32.mxu0 0.0
  %v9743 = vand.u32 %v4460, 4294901760
  %9744 = vmatmul.mubr.f32.gmra.mrb[0].mxu0 %v9743
  %v9745 = vpop.f32.mrb[0].mxu0
  %v9746 = vadd.f32 %v8519, %v9745
  %v9747 = vpop.f32.mrb[0].mxu0
  %9748 = vmatprep.mubr.f32.mxu0 0.0
  %v9749 = vand.u32 %v4461, 4294901760
  %9750 = vmatmul.mubr.f32.gmra.mrb[0].mxu0 %v9749
  %v9751 = vpop.f32.mrb[0].mxu0
  %v9752 = vadd.f32 %v8527, %v9751
  %v9753 = vpop.f32.mrb[0].mxu0
  %9754 = vmatprep.mubr.f32.mxu0 0.0
  %v9755 = vand.u32 %v4462, 4294901760
  %9756 = vmatmul.mubr.f32.gmra.mrb[0].mxu0 %v9755
  %v9757 = vpop.f32.mrb[0].mxu0
  %v9758 = vadd.f32 %v8535, %v9757
  %v9759 = vpop.f32.mrb[0].mxu0
  %9760 = vmatprep.mubr.f32.mxu0 0.0
  %v9761 = vand.u32 %v4463, 4294901760
  %9762 = vmatmul.mubr.f32.gmra.mrb[0].mxu0 %v9761
  %v9763 = vpop.f32.mrb[0].mxu0
  %v9764 = vadd.f32 %v8543, %v9763
  %v9765 = vpop.f32.mrb[0].mxu0
  %9766 = vmatprep.mubr.f32.mxu0 0.0
  %v9767 = vand.u32 %v4464, 4294901760
  %9768 = vmatmul.mubr.f32.gmra.mrb[0].mxu0 %v9767
  %v9769 = vpop.f32.mrb[0].mxu0
  %v9770 = vadd.f32 %v8551, %v9769
  %v9771 = vpop.f32.mrb[0].mxu0
  %9772 = vmatprep.mubr.f32.mxu0 0.0
  %v9773 = vand.u32 %v4465, 4294901760
  %9774 = vmatmul.mubr.f32.gmra.mrb[0].mxu0 %v9773
  %v9775 = vpop.f32.mrb[0].mxu0
  %v9776 = vadd.f32 %v8559, %v9775
  %v9777 = vpop.f32.mrb[0].mxu0
  %9778 = vmatprep.mubr.f32.mxu0 0.0
  %v9779 = vand.u32 %v4466, 4294901760
  %9780 = vmatmul.mubr.f32.gmra.mrb[0].mxu0 %v9779
  %v9781 = vpop.f32.mrb[0].mxu0
  %v9782 = vadd.f32 %v8567, %v9781
  %v9783 = vpop.f32.mrb[0].mxu0
  %9784 = vmatprep.mubr.f32.mxu0 0.0
  %v9785 = vand.u32 %v4467, 4294901760
  %9786 = vmatmul.mubr.f32.gmra.mrb[0].mxu0 %v9785
  %v9787 = vpop.f32.mrb[0].mxu0
  %v9788 = vadd.f32 %v8575, %v9787
  %v9789 = vpop.f32.mrb[0].mxu0
  %9790 = vmatprep.mubr.f32.mxu0 0.0
  %v9791 = vand.u32 %v4468, 4294901760
  %9792 = vmatmul.mubr.f32.gmra.mrb[0].mxu0 %v9791
  %v9793 = vpop.f32.mrb[0].mxu0
  %v9794 = vadd.f32 %v8583, %v9793
  %v9795 = vpop.f32.mrb[0].mxu0
  %9796 = vmatprep.mubr.f32.mxu0 0.0
  %v9797 = vand.u32 %v4469, 4294901760
  %9798 = vmatmul.mubr.f32.gmra.mrb[0].mxu0 %v9797
  %v9799 = vpop.f32.mrb[0].mxu0
  %v9800 = vadd.f32 %v8591, %v9799
  %v9801 = vpop.f32.mrb[0].mxu0
  %9802 = vmatprep.mubr.f32.mxu0 0.0
  %v9803 = vand.u32 %v4470, 4294901760
  %9804 = vmatmul.mubr.f32.gmra.mrb[0].mxu0 %v9803
  %v9805 = vpop.f32.mrb[0].mxu0
  %v9806 = vadd.f32 %v8599, %v9805
  %v9807 = vpop.f32.mrb[0].mxu0
  %9808 = vmatprep.mubr.f32.mxu0 0.0
  %v9809 = vand.u32 %v4471, 4294901760
  %9810 = vmatmul.mubr.f32.gmra.mrb[0].mxu0 %v9809
  %v9811 = vpop.f32.mrb[0].mxu0
  %v9812 = vadd.f32 %v8607, %v9811
  %v9813 = vpop.f32.mrb[0].mxu0
  %9814 = vmatprep.mubr.f32.mxu0 0.0
  %v9815 = vand.u32 %v4472, 4294901760
  %9816 = vmatmul.mubr.f32.gmra.mrb[0].mxu0 %v9815
  %v9817 = vpop.f32.mrb[0].mxu0
  %v9818 = vadd.f32 %v8615, %v9817
  %v9819 = vpop.f32.mrb[0].mxu0
  %9820 = vmatprep.mubr.f32.mxu0 0.0
  %v9821 = vand.u32 %v4473, 4294901760
  %9822 = vmatmul.mubr.f32.gmra.mrb[0].mxu0 %v9821
  %v9823 = vpop.f32.mrb[0].mxu0
  %v9824 = vadd.f32 %v8623, %v9823
  %v9825 = vpop.f32.mrb[0].mxu0
  %9826 = vmatprep.mubr.f32.mxu0 0.0
  %v9827 = vand.u32 %v4474, 4294901760
  %9828 = vmatmul.mubr.f32.gmra.mrb[0].mxu0 %v9827
  %v9829 = vpop.f32.mrb[0].mxu0
  %v9830 = vadd.f32 %v8631, %v9829
  %v9831 = vpop.f32.mrb[0].mxu0
  %9832 = vmatprep.mubr.f32.mxu0 0.0
  %v9833 = vand.u32 %v4475, 4294901760
  %9834 = vmatmul.mubr.f32.gmra.mrb[0].mxu0 %v9833
  %v9835 = vpop.f32.mrb[0].mxu0
  %v9836 = vadd.f32 %v8639, %v9835
  %v9837 = vpop.f32.mrb[0].mxu0
  %9838 = vmatprep.mubr.f32.mxu0 0.0
  %v9839 = vand.u32 %v4476, 4294901760
  %9840 = vmatmul.mubr.f32.gmra.mrb[0].mxu0 %v9839
  %v9841 = vpop.f32.mrb[0].mxu0
  %v9842 = vadd.f32 %v8647, %v9841
  %v9843 = vpop.f32.mrb[0].mxu0
  %9844 = vmatprep.mubr.f32.mxu0 0.0
  %v9845 = vand.u32 %v4477, 4294901760
  %9846 = vmatmul.mubr.f32.gmra.mrb[0].mxu0 %v9845
  %v9847 = vpop.f32.mrb[0].mxu0
  %v9848 = vadd.f32 %v8655, %v9847
  %v9849 = vpop.f32.mrb[0].mxu0
  %9850 = vmatprep.mubr.f32.mxu0 0.0
  %v9851 = vand.u32 %v4478, 4294901760
  %9852 = vmatmul.mubr.f32.gmra.mrb[0].mxu0 %v9851
  %v9853 = vpop.f32.mrb[0].mxu0
  %v9854 = vadd.f32 %v8663, %v9853
  %v9855 = vpop.f32.mrb[0].mxu0
  %9856 = vmatprep.mubr.f32.mxu0 0.0
  %v9857 = vand.u32 %v4479, 4294901760
  %9858 = vmatmul.mubr.f32.gmra.mrb[0].mxu0 %v9857
  %v9859 = vpop.f32.mrb[0].mxu0
  %v9860 = vadd.f32 %v8671, %v9859
  %v9861 = vpop.f32.mrb[0].mxu0
  %9862 = vmatprep.mubr.f32.mxu0 0.0
  %v9863 = vand.u32 %v4480, 4294901760
  %9864 = vmatmul.mubr.f32.gmra.mrb[0].mxu0 %v9863
  %v9865 = vpop.f32.mrb[0].mxu0
  %v9866 = vadd.f32 %v8679, %v9865
  %v9867 = vpop.f32.mrb[0].mxu0
  %9868 = vmatprep.mubr.f32.mxu0 0.0
  %v9869 = vand.u32 %v4481, 4294901760
  %9870 = vmatmul.mubr.f32.gmra.mrb[0].mxu0 %v9869
  %v9871 = vpop.f32.mrb[0].mxu0
  %v9872 = vadd.f32 %v8687, %v9871
  %v9873 = vpop.f32.mrb[0].mxu0
  %9874 = vmatprep.mubr.f32.mxu0 0.0
  %v9875 = vand.u32 %v4482, 4294901760
  %9876 = vmatmul.mubr.f32.gmra.mrb[0].mxu0 %v9875
  %v9877 = vpop.f32.mrb[0].mxu0
  %v9878 = vadd.f32 %v8695, %v9877
  %v9879 = vpop.f32.mrb[0].mxu0
  %9880 = vmatprep.mubr.f32.mxu0 0.0
  %v9881 = vand.u32 %v4483, 4294901760
  %9882 = vmatmul.mubr.f32.gmra.mrb[0].mxu0 %v9881
  %v9883 = vpop.f32.mrb[0].mxu0
  %v9884 = vadd.f32 %v8703, %v9883
  %v9885 = vpop.f32.mrb[0].mxu0
  %9886 = vmatprep.mubr.f32.mxu0 0.0
  %v9887 = vand.u32 %v4484, 4294901760
  %9888 = vmatmul.mubr.f32.gmra.mrb[0].mxu0 %v9887
  %v9889 = vpop.f32.mrb[0].mxu0
  %v9890 = vadd.f32 %v8711, %v9889
  %v9891 = vpop.f32.mrb[0].mxu0
  %9892 = vmatprep.mubr.f32.mxu0 0.0
  %v9893 = vand.u32 %v4485, 4294901760
  %9894 = vmatmul.mubr.f32.gmra.mrb[0].mxu0 %v9893
  %v9895 = vpop.f32.mrb[0].mxu0
  %v9896 = vadd.f32 %v8719, %v9895
  %v9897 = vpop.f32.mrb[0].mxu0
  %9898 = vmatprep.mubr.f32.mxu0 0.0
  %v9899 = vand.u32 %v4486, 4294901760
  %9900 = vmatmul.mubr.f32.gmra.mrb[0].mxu0 %v9899
  %v9901 = vpop.f32.mrb[0].mxu0
  %v9902 = vadd.f32 %v8727, %v9901
  %v9903 = vpop.f32.mrb[0].mxu0
  %9904 = vmatprep.mubr.f32.mxu0 0.0
  %v9905 = vand.u32 %v4487, 4294901760
  %9906 = vmatmul.mubr.f32.gmra.mrb[0].mxu0 %v9905
  %v9907 = vpop.f32.mrb[0].mxu0
  %v9908 = vadd.f32 %v8735, %v9907
  %v9909 = vpop.f32.mrb[0].mxu0
  %9910 = vmatprep.mubr.f32.mxu0 0.0
  %v9911 = vand.u32 %v4488, 4294901760
  %9912 = vmatmul.mubr.f32.gmra.mrb[0].mxu0 %v9911
  %v9913 = vpop.f32.mrb[0].mxu0
  %v9914 = vadd.f32 %v8743, %v9913
  %v9915 = vpop.f32.mrb[0].mxu0
  %9916 = vmatprep.mubr.f32.mxu0 0.0
  %v9917 = vand.u32 %v4489, 4294901760
  %9918 = vmatmul.mubr.f32.gmra.mrb[0].mxu0 %v9917
  %v9919 = vpop.f32.mrb[0].mxu0
  %v9920 = vadd.f32 %v8751, %v9919
  %v9921 = vpop.f32.mrb[0].mxu0
  %9922 = vmatprep.mubr.f32.mxu0 0.0
  %v9923 = vand.u32 %v4490, 4294901760
  %9924 = vmatmul.mubr.f32.gmra.mrb[0].mxu0 %v9923
  %v9925 = vpop.f32.mrb[0].mxu0
  %v9926 = vadd.f32 %v8759, %v9925
  %v9927 = vpop.f32.mrb[0].mxu0
  %9928 = vmatprep.mubr.f32.mxu0 0.0
  %v9929 = vand.u32 %v4491, 4294901760
  %9930 = vmatmul.mubr.f32.gmra.mrb[0].mxu0 %v9929
  %v9931 = vpop.f32.mrb[0].mxu0
  %v9932 = vadd.f32 %v8767, %v9931
  %v9933 = vpop.f32.mrb[0].mxu0
  %9934 = vmatprep.mubr.f32.mxu0 0.0
  %v9935 = vand.u32 %v4492, 4294901760
  %9936 = vmatmul.mubr.f32.gmra.mrb[0].mxu0 %v9935
  %v9937 = vpop.f32.mrb[0].mxu0
  %v9938 = vadd.f32 %v8775, %v9937
  %v9939 = vpop.f32.mrb[0].mxu0
  %9940 = vmatprep.mubr.f32.mxu0 0.0
  %v9941 = vand.u32 %v4493, 4294901760
  %9942 = vmatmul.mubr.f32.gmra.mrb[0].mxu0 %v9941
  %v9943 = vpop.f32.mrb[0].mxu0
  %v9944 = vadd.f32 %v8783, %v9943
  %v9945 = vpop.f32.mrb[0].mxu0
  %9946 = vmatprep.mubr.f32.mxu0 0.0
  %v9947 = vand.u32 %v4494, 4294901760
  %9948 = vmatmul.mubr.f32.gmra.mrb[0].mxu0 %v9947
  %v9949 = vpop.f32.mrb[0].mxu0
  %v9950 = vadd.f32 %v8791, %v9949
  %v9951 = vpop.f32.mrb[0].mxu0
  %9952 = vmatprep.mubr.f32.mxu0 0.0
  %v9953 = vand.u32 %v4495, 4294901760
  %9954 = vmatmul.mubr.f32.gmra.mrb[0].mxu0 %v9953
  %v9955 = vpop.f32.mrb[0].mxu0
  %v9956 = vadd.f32 %v8799, %v9955
  %v9957 = vpop.f32.mrb[0].mxu0
  %9958 = vmatprep.mubr.f32.mxu0 0.0
  %v9959 = vand.u32 %v4496, 4294901760
  %9960 = vmatmul.mubr.f32.gmra.mrb[0].mxu0 %v9959
  %v9961 = vpop.f32.mrb[0].mxu0
  %v9962 = vadd.f32 %v8807, %v9961
  %v9963 = vpop.f32.mrb[0].mxu0
  %9964 = vmatprep.mubr.f32.mxu0 0.0
  %v9965 = vand.u32 %v4497, 4294901760
  %9966 = vmatmul.mubr.f32.gmra.mrb[0].mxu0 %v9965
  %v9967 = vpop.f32.mrb[0].mxu0
  %v9968 = vadd.f32 %v8815, %v9967
  %v9969 = vpop.f32.mrb[0].mxu0
  %9970 = vmatprep.mubr.f32.mxu0 0.0
  %v9971 = vand.u32 %v4498, 4294901760
  %9972 = vmatmul.mubr.f32.gmra.mrb[0].mxu0 %v9971
  %v9973 = vpop.f32.mrb[0].mxu0
  %v9974 = vadd.f32 %v8823, %v9973
  %v9975 = vpop.f32.mrb[0].mxu0
  %9976 = vmatprep.mubr.f32.mxu0 0.0
  %v9977 = vand.u32 %v4499, 4294901760
  %9978 = vmatmul.mubr.f32.gmra.mrb[0].mxu0 %v9977
  %v9979 = vpop.f32.mrb[0].mxu0
  %v9980 = vadd.f32 %v8831, %v9979
  %v9981 = vpop.f32.mrb[0].mxu0
  %9982 = vmatprep.mubr.f32.mxu0 0.0
  %v9983 = vand.u32 %v4500, 4294901760
  %9984 = vmatmul.mubr.f32.gmra.mrb[0].mxu0 %v9983
  %v9985 = vpop.f32.mrb[0].mxu0
  %v9986 = vadd.f32 %v8839, %v9985
  %v9987 = vpop.f32.mrb[0].mxu0
  %9988 = vmatprep.mubr.f32.mxu0 0.0
  %v9989 = vand.u32 %v4501, 4294901760
  %9990 = vmatmul.mubr.f32.gmra.mrb[0].mxu0 %v9989
  %v9991 = vpop.f32.mrb[0].mxu0
  %v9992 = vadd.f32 %v8847, %v9991
  %v9993 = vpop.f32.mrb[0].mxu0
  %9994 = vmatprep.mubr.f32.mxu0 0.0
  %v9995 = vand.u32 %v4502, 4294901760
  %9996 = vmatmul.mubr.f32.gmra.mrb[0].mxu0 %v9995
  %v9997 = vpop.f32.mrb[0].mxu0
  %v9998 = vadd.f32 %v8855, %v9997
  %v9999 = vpop.f32.mrb[0].mxu0
  %10000 = vmatprep.mubr.f32.mxu0 0.0
  %v10001 = vand.u32 %v4503, 4294901760
  %10002 = vmatmul.mubr.f32.gmra.mrb[0].mxu0 %v10001
  %v10003 = vpop.f32.mrb[0].mxu0
  %v10004 = vadd.f32 %v8863, %v10003
  %v10005 = vpop.f32.mrb[0].mxu0
  %10006 = vmatprep.mubr.f32.mxu0 0.0
  %v10007 = vand.u32 %v4504, 4294901760
  %10008 = vmatmul.mubr.f32.gmra.mrb[0].mxu0 %v10007
  %v10009 = vpop.f32.mrb[0].mxu0
  %v10010 = vadd.f32 %v8871, %v10009
  %v10011 = vpop.f32.mrb[0].mxu0
  %10012 = vmatprep.mubr.f32.mxu0 0.0
  %v10013 = vand.u32 %v4505, 4294901760
  %10014 = vmatmul.mubr.f32.gmra.mrb[0].mxu0 %v10013
  %v10015 = vpop.f32.mrb[0].mxu0
  %v10016 = vadd.f32 %v8879, %v10015
  %v10017 = vpop.f32.mrb[0].mxu0
  %10018 = vmatprep.mubr.f32.mxu0 0.0
  %v10019 = vand.u32 %v4506, 4294901760
  %10020 = vmatmul.mubr.f32.gmra.mrb[0].mxu0 %v10019
  %v10021 = vpop.f32.mrb[0].mxu0
  %v10022 = vadd.f32 %v8887, %v10021
  %v10023 = vpop.f32.mrb[0].mxu0
  %10024 = vmatprep.mubr.f32.mxu0 0.0
  %v10025 = vand.u32 %v4507, 4294901760
  %10026 = vmatmul.mubr.f32.gmra.mrb[0].mxu0 %v10025
  %v10027 = vpop.f32.mrb[0].mxu0
  %v10028 = vadd.f32 %v8895, %v10027
  %v10029 = vpop.f32.mrb[0].mxu0
  %10030 = vmatprep.mubr.f32.mxu0 0.0
  %v10031 = vand.u32 %v4508, 4294901760
  %10032 = vmatmul.mubr.f32.gmra.mrb[0].mxu0 %v10031
  %v10033 = vpop.f32.mrb[0].mxu0
  %v10034 = vadd.f32 %v8903, %v10033
  %v10035 = vpop.f32.mrb[0].mxu0
  %10036 = vmatprep.mubr.f32.mxu0 0.0
  %v10037 = vand.u32 %v4509, 4294901760
  %10038 = vmatmul.mubr.f32.gmra.mrb[0].mxu0 %v10037
  %v10039 = vpop.f32.mrb[0].mxu0
  %v10040 = vadd.f32 %v8911, %v10039
  %v10041 = vpop.f32.mrb[0].mxu0
  %10042 = vmatprep.mubr.f32.mxu0 0.0
  %v10043 = vand.u32 %v4510, 4294901760
  %10044 = vmatmul.mubr.f32.gmra.mrb[0].mxu0 %v10043
  %v10045 = vpop.f32.mrb[0].mxu0
  %v10046 = vadd.f32 %v8919, %v10045
  %v10047 = vpop.f32.mrb[0].mxu0
  %10048 = vmatprep.mubr.f32.mxu0 0.0
  %v10049 = vand.u32 %v4511, 4294901760
  %10050 = vmatmul.mubr.f32.gmra.mrb[0].mxu0 %v10049
  %v10051 = vpop.f32.mrb[0].mxu0
  %v10052 = vadd.f32 %v8927, %v10051
  %v10053 = vpop.f32.mrb[0].mxu0
  %10054 = vmatprep.mubr.f32.mxu0 0.0
  %v10055 = vand.u32 %v4512, 4294901760
  %10056 = vmatmul.mubr.f32.gmra.mrb[0].mxu0 %v10055
  %v10057 = vpop.f32.mrb[0].mxu0
  %v10058 = vadd.f32 %v8935, %v10057
  %v10059 = vpop.f32.mrb[0].mxu0
  %10060 = vmatprep.mubr.f32.mxu0 0.0
  %v10061 = vand.u32 %v4513, 4294901760
  %10062 = vmatmul.mubr.f32.gmra.mrb[0].mxu0 %v10061
  %v10063 = vpop.f32.mrb[0].mxu0
  %v10064 = vadd.f32 %v8943, %v10063
  %v10065 = vpop.f32.mrb[0].mxu0
  %10066 = vmatprep.mubr.f32.mxu0 0.0
  %v10067 = vand.u32 %v4514, 4294901760
  %10068 = vmatmul.mubr.f32.gmra.mrb[0].mxu0 %v10067
  %v10069 = vpop.f32.mrb[0].mxu0
  %v10070 = vadd.f32 %v8951, %v10069
  %v10071 = vpop.f32.mrb[0].mxu0
  %10072 = vmatprep.mubr.f32.mxu0 0.0
  %v10073 = vand.u32 %v4515, 4294901760
  %10074 = vmatmul.mubr.f32.gmra.mrb[0].mxu0 %v10073
  %v10075 = vpop.f32.mrb[0].mxu0
  %v10076 = vadd.f32 %v8959, %v10075
  %v10077 = vpop.f32.mrb[0].mxu0
  %10078 = vmatprep.mubr.f32.mxu0 0.0
  %v10079 = vand.u32 %v4516, 4294901760
  %10080 = vmatmul.mubr.f32.gmra.mrb[0].mxu0 %v10079
  %v10081 = vpop.f32.mrb[0].mxu0
  %v10082 = vadd.f32 %v8967, %v10081
  %v10083 = vpop.f32.mrb[0].mxu0
  %10084 = vmatprep.mubr.f32.mxu0 0.0
  %v10085 = vand.u32 %v4517, 4294901760
  %10086 = vmatmul.mubr.f32.gmra.mrb[0].mxu0 %v10085
  %v10087 = vpop.f32.mrb[0].mxu0
  %v10088 = vadd.f32 %v8975, %v10087
  %v10089 = vpop.f32.mrb[0].mxu0
  %10090 = vmatprep.mubr.f32.mxu0 0.0
  %v10091 = vand.u32 %v4518, 4294901760
  %10092 = vmatmul.mubr.f32.gmra.mrb[0].mxu0 %v10091
  %v10093 = vpop.f32.mrb[0].mxu0
  %v10094 = vadd.f32 %v8983, %v10093
  %v10095 = vpop.f32.mrb[0].mxu0
  %10096 = vmatprep.mubr.f32.mxu0 0.0
  %v10097 = vand.u32 %v4519, 4294901760
  %10098 = vmatmul.mubr.f32.gmra.mrb[0].mxu0 %v10097
  %v10099 = vpop.f32.mrb[0].mxu0
  %v10100 = vadd.f32 %v8991, %v10099
  %v10101 = vpop.f32.mrb[0].mxu0
  %10102 = vmatprep.mubr.f32.mxu0 0.0
  %v10103 = vand.u32 %v4520, 4294901760
  %10104 = vmatmul.mubr.f32.gmra.mrb[0].mxu0 %v10103
  %v10105 = vpop.f32.mrb[0].mxu0
  %v10106 = vadd.f32 %v8999, %v10105
  %v10107 = vpop.f32.mrb[0].mxu0
  %10108 = vmatprep.mubr.f32.mxu0 0.0
  %v10109 = vand.u32 %v4521, 4294901760
  %10110 = vmatmul.mubr.f32.gmra.mrb[0].mxu0 %v10109
  %v10111 = vpop.f32.mrb[0].mxu0
  %v10112 = vadd.f32 %v9007, %v10111
  %v10113 = vpop.f32.mrb[0].mxu0
  %10114 = vmatprep.mubr.f32.mxu0 0.0
  %v10115 = vand.u32 %v4522, 4294901760
  %10116 = vmatmul.mubr.f32.gmra.mrb[0].mxu0 %v10115
  %v10117 = vpop.f32.mrb[0].mxu0
  %v10118 = vadd.f32 %v9015, %v10117
  %v10119 = vpop.f32.mrb[0].mxu0
  %10120 = vmatprep.mubr.f32.mxu0 0.0
  %v10121 = vand.u32 %v4523, 4294901760
  %10122 = vmatmul.mubr.f32.gmra.mrb[0].mxu0 %v10121
  %v10123 = vpop.f32.mrb[0].mxu0
  %v10124 = vadd.f32 %v9023, %v10123
  %v10125 = vpop.f32.mrb[0].mxu0
  %10126 = vmatprep.mubr.f32.mxu0 0.0
  %v10127 = vand.u32 %v4524, 4294901760
  %10128 = vmatmul.mubr.f32.gmra.mrb[0].mxu0 %v10127
  %v10129 = vpop.f32.mrb[0].mxu0
  %v10130 = vadd.f32 %v9031, %v10129
  %v10131 = vpop.f32.mrb[0].mxu0
  %10132 = vmatprep.mubr.f32.mxu0 0.0
  %v10133 = vand.u32 %v4525, 4294901760
  %10134 = vmatmul.mubr.f32.gmra.mrb[0].mxu0 %v10133
  %v10135 = vpop.f32.mrb[0].mxu0
  %v10136 = vadd.f32 %v9039, %v10135
  %v10137 = vpop.f32.mrb[0].mxu0
  %10138 = vmatprep.mubr.f32.mxu0 0.0
  %v10139 = vand.u32 %v4526, 4294901760
  %10140 = vmatmul.mubr.f32.gmra.mrb[0].mxu0 %v10139
  %v10141 = vpop.f32.mrb[0].mxu0
  %v10142 = vadd.f32 %v9047, %v10141
  %v10143 = vpop.f32.mrb[0].mxu0
  %10144 = vmatprep.mubr.f32.mxu0 0.0
  %v10145 = vand.u32 %v4527, 4294901760
  %10146 = vmatmul.mubr.f32.gmra.mrb[0].mxu0 %v10145
  %v10147 = vpop.f32.mrb[0].mxu0
  %v10148 = vadd.f32 %v9055, %v10147
  %v10149 = vpop.f32.mrb[0].mxu0
  %10150 = vmatprep.mubr.f32.mxu0 0.0
  %v10151 = vand.u32 %v4528, 4294901760
  %10152 = vmatmul.mubr.f32.gmra.mrb[0].mxu0 %v10151
  %v10153 = vpop.f32.mrb[0].mxu0
  %v10154 = vadd.f32 %v9063, %v10153
  %v10155 = vpop.f32.mrb[0].mxu0
  %10156 = vmatprep.mubr.f32.mxu0 0.0
  %v10157 = vand.u32 %v4529, 4294901760
  %10158 = vmatmul.mubr.f32.gmra.mrb[0].mxu0 %v10157
  %v10159 = vpop.f32.mrb[0].mxu0
  %v10160 = vadd.f32 %v9071, %v10159
  %v10161 = vpop.f32.mrb[0].mxu0
  %10162 = vmatprep.mubr.f32.mxu0 0.0
  %v10163 = vand.u32 %v4530, 4294901760
  %10164 = vmatmul.mubr.f32.gmra.mrb[0].mxu0 %v10163
  %v10165 = vpop.f32.mrb[0].mxu0
  %v10166 = vadd.f32 %v9079, %v10165
  %v10167 = vpop.f32.mrb[0].mxu0
  %10168 = vmatprep.mubr.f32.mxu0 0.0
  %v10169 = vand.u32 %v4531, 4294901760
  %10170 = vmatmul.mubr.f32.gmra.mrb[0].mxu0 %v10169
  %v10171 = vpop.f32.mrb[0].mxu0
  %v10172 = vadd.f32 %v9087, %v10171
  %v10173 = vpop.f32.mrb[0].mxu0
  %10174 = vmatprep.mubr.f32.mxu0 0.0
  %v10175 = vand.u32 %v4532, 4294901760
  %10176 = vmatmul.mubr.f32.gmra.mrb[0].mxu0 %v10175
  %v10177 = vpop.f32.mrb[0].mxu0
  %v10178 = vadd.f32 %v9095, %v10177
  %v10179 = vpop.f32.mrb[0].mxu0
  %10180 = vmatprep.mubr.f32.mxu0 0.0
  %v10181 = vand.u32 %v4533, 4294901760
  %10182 = vmatmul.mubr.f32.gmra.mrb[0].mxu0 %v10181
  %v10183 = vpop.f32.mrb[0].mxu0
  %v10184 = vadd.f32 %v9103, %v10183
  %v10185 = vpop.f32.mrb[0].mxu0
  %10186 = vmatprep.mubr.f32.mxu0 0.0
  %v10187 = vand.u32 %v4534, 4294901760
  %10188 = vmatmul.mubr.f32.gmra.mrb[0].mxu0 %v10187
  %v10189 = vpop.f32.mrb[0].mxu0
  %v10190 = vadd.f32 %v9111, %v10189
  %v10191 = vpop.f32.mrb[0].mxu0
  %10192 = vmatprep.mubr.f32.mxu0 0.0
  %v10193 = vand.u32 %v4535, 4294901760
  %10194 = vmatmul.mubr.f32.gmra.mrb[0].mxu0 %v10193
  %v10195 = vpop.f32.mrb[0].mxu0
  %v10196 = vadd.f32 %v9119, %v10195
  %v10197 = vpop.f32.mrb[0].mxu0
  %10198 = vmatprep.mubr.f32.mxu0 0.0
  %v10199 = vand.u32 %v4536, 4294901760
  %10200 = vmatmul.mubr.f32.gmra.mrb[0].mxu0 %v10199
  %v10201 = vpop.f32.mrb[0].mxu0
  %v10202 = vadd.f32 %v9127, %v10201
  %v10203 = vpop.f32.mrb[0].mxu0
  %10204 = vmatprep.mubr.f32.mxu0 0.0
  %v10205 = vand.u32 %v4537, 4294901760
  %10206 = vmatmul.mubr.f32.gmra.mrb[0].mxu0 %v10205
  %v10207 = vpop.f32.mrb[0].mxu0
  %v10208 = vadd.f32 %v9135, %v10207
  %v10209 = vpop.f32.mrb[0].mxu0
  %10210 = vmatprep.mubr.f32.mxu0 0.0
  %v10211 = vand.u32 %v4538, 4294901760
  %10212 = vmatmul.mubr.f32.gmra.mrb[0].mxu0 %v10211
  %v10213 = vpop.f32.mrb[0].mxu0
  %v10214 = vadd.f32 %v9143, %v10213
  %v10215 = vpop.f32.mrb[0].mxu0
  %10216 = vmatprep.mubr.f32.mxu0 0.0
  %v10217 = vand.u32 %v4539, 4294901760
  %10218 = vmatmul.mubr.f32.gmra.mrb[0].mxu0 %v10217
  %v10219 = vpop.f32.mrb[0].mxu0
  %v10220 = vadd.f32 %v9151, %v10219
  %v10221 = vpop.f32.mrb[0].mxu0
  %10222 = vmatprep.mubr.f32.mxu0 0.0
  %v10223 = vand.u32 %v4540, 4294901760
  %10224 = vmatmul.mubr.f32.gmra.mrb[0].mxu0 %v10223
  %v10225 = vpop.f32.mrb[0].mxu0
  %v10226 = vadd.f32 %v9159, %v10225
  %v10227 = vpop.f32.mrb[0].mxu0
  %10228 = vmatprep.mubr.f32.mxu0 0.0
  %v10229 = vand.u32 %v4541, 4294901760
  %10230 = vmatmul.mubr.f32.gmra.mrb[0].mxu0 %v10229
  %v10231 = vpop.f32.mrb[0].mxu0
  %v10232 = vadd.f32 %v9167, %v10231
  %v10233 = vpop.f32.mrb[0].mxu0
  %10234 = vmatprep.mubr.f32.mxu0 0.0
  %v10235 = vand.u32 %v4542, 4294901760
  %10236 = vmatmul.mubr.f32.gmra.mrb[0].mxu0 %v10235
  %v10237 = vpop.f32.mrb[0].mxu0
  %v10238 = vadd.f32 %v9175, %v10237
  %v10239 = vpop.f32.mrb[0].mxu0
  %10240 = vmatprep.mubr.f32.mxu0 0.0
  %v10241 = vand.u32 %v4543, 4294901760
  %10242 = vmatmul.mubr.f32.gmra.mrb[0].mxu0 %v10241
  %v10243 = vpop.f32.mrb[0].mxu0
  %v10244 = vadd.f32 %v9183, %v10243
  %v10245 = vpop.f32.mrb[0].mxu0
  %10246 = vmatprep.mubr.f32.mxu0 0.0
  %v10247 = vand.u32 %v4544, 4294901760
  %10248 = vmatmul.mubr.f32.gmra.mrb[0].mxu0 %v10247
  %v10249 = vpop.f32.mrb[0].mxu0
  %v10250 = vadd.f32 %v9191, %v10249
  %v10251 = vpop.f32.mrb[0].mxu0
  %10252 = vmatprep.mubr.f32.mxu0 0.0
  %v10253 = vand.u32 %v4545, 4294901760
  %10254 = vmatmul.mubr.f32.gmra.mrb[0].mxu0 %v10253
  %v10255 = vpop.f32.mrb[0].mxu0
  %v10256 = vadd.f32 %v9199, %v10255
  %v10257 = vpop.f32.mrb[0].mxu0
  %10258 = vmatprep.mubr.f32.mxu0 0.0
  %v10259 = vand.u32 %v4546, 4294901760
  %10260 = vmatmul.mubr.f32.gmra.mrb[0].mxu0 %v10259
  %v10261 = vpop.f32.mrb[0].mxu0
  %v10262 = vadd.f32 %v9207, %v10261
  %v10263 = vpop.f32.mrb[0].mxu0
  %10264 = vmatprep.mubr.f32.mxu0 0.0
  %v10265 = vand.u32 %v4547, 4294901760
  %10266 = vmatmul.mubr.f32.gmra.mrb[0].mxu0 %v10265
  %v10267 = vpop.f32.mrb[0].mxu0
  %v10268 = vadd.f32 %v9215, %v10267
  %v10269 = vpop.f32.mrb[0].mxu0
  %10270 = vmatprep.mubr.f32.mxu0 0.0
  %v10271 = vand.u32 %v4548, 4294901760
  %10272 = vmatmul.mubr.f32.gmra.mrb[0].mxu0 %v10271
  %v10273 = vpop.f32.mrb[0].mxu0
  %v10274 = vadd.f32 %v9223, %v10273
  %v10275 = vpop.f32.mrb[0].mxu0
  %10276 = vmatprep.mubr.f32.mxu0 0.0
  %v10277 = vand.u32 %v4549, 4294901760
  %10278 = vmatmul.mubr.f32.gmra.mrb[0].mxu0 %v10277
  %v10279 = vpop.f32.mrb[0].mxu0
  %v10280 = vadd.f32 %v9231, %v10279
  %v10281 = vpop.f32.mrb[0].mxu0
  %10282 = vmatprep.mubr.f32.mxu0 0.0
  %v10283 = vand.u32 %v4550, 4294901760
  %10284 = vmatmul.mubr.f32.gmra.mrb[0].mxu0 %v10283
  %v10285 = vpop.f32.mrb[0].mxu0
  %v10286 = vadd.f32 %v9239, %v10285
  %v10287 = vpop.f32.mrb[0].mxu0
  %10288 = vmatprep.mubr.f32.mxu0 0.0
  %v10289 = vand.u32 %v4551, 4294901760
  %10290 = vmatmul.mubr.f32.gmra.mrb[0].mxu0 %v10289
  %v10291 = vpop.f32.mrb[0].mxu0
  %v10292 = vadd.f32 %v9247, %v10291
  %v10293 = vpop.f32.mrb[0].mxu0
  %10294 = vmatprep.mubr.f32.mxu0 0.0
  %v10295 = vand.u32 %v4552, 4294901760
  %10296 = vmatmul.mubr.f32.gmra.mrb[0].mxu0 %v10295
  %v10297 = vpop.f32.mrb[0].mxu0
  %v10298 = vadd.f32 %v9255, %v10297
  %v10299 = vpop.f32.mrb[0].mxu0
  %10300 = vmatprep.mubr.f32.mxu0 0.0
  %v10301 = vand.u32 %v4553, 4294901760
  %10302 = vmatmul.mubr.f32.gmra.mrb[0].mxu0 %v10301
  %v10303 = vpop.f32.mrb[0].mxu0
  %v10304 = vadd.f32 %v9263, %v10303
  %v10305 = vpop.f32.mrb[0].mxu0
  %10306 = vmatprep.mubr.f32.mxu0 0.0
  %v10307 = vand.u32 %v4554, 4294901760
  %10308 = vmatmul.mubr.f32.gmra.mrb[0].mxu0 %v10307
  %v10309 = vpop.f32.mrb[0].mxu0
  %v10310 = vadd.f32 %v9271, %v10309
  %v10311 = vpop.f32.mrb[0].mxu0
  %10312 = vmatprep.mubr.f32.mxu0 0.0
  %v10313 = vand.u32 %v4555, 4294901760
  %10314 = vmatmul.mubr.f32.gmra.mrb[0].mxu0 %v10313
  %v10315 = vpop.f32.mrb[0].mxu0
  %v10316 = vadd.f32 %v9279, %v10315
  %v10317 = vpop.f32.mrb[0].mxu0
  %10318 = vmatprep.mubr.f32.mxu0 0.0
  %v10319 = vand.u32 %v4556, 4294901760
  %10320 = vmatmul.mubr.f32.gmra.mrb[0].mxu0 %v10319
  %v10321 = vpop.f32.mrb[0].mxu0
  %v10322 = vadd.f32 %v9287, %v10321
  %v10323 = vpop.f32.mrb[0].mxu0
  %10324 = vmatprep.mubr.f32.mxu0 0.0
  %v10325 = vand.u32 %v4557, 4294901760
  %10326 = vmatmul.mubr.f32.gmra.mrb[0].mxu0 %v10325
  %v10327 = vpop.f32.mrb[0].mxu0
  %v10328 = vadd.f32 %v9295, %v10327
  %v10329 = vpop.f32.mrb[0].mxu0
  %10330 = vmatprep.mubr.f32.mxu0 0.0
  %v10331 = vand.u32 %v4558, 4294901760
  %10332 = vmatmul.mubr.f32.gmra.mrb[0].mxu0 %v10331
  %v10333 = vpop.f32.mrb[0].mxu0
  %v10334 = vadd.f32 %v9303, %v10333
  %v10335 = vpop.f32.mrb[0].mxu0
  %10336 = vmatprep.mubr.f32.mxu0 0.0
  %v10337 = vand.u32 %v4559, 4294901760
  %10338 = vmatmul.mubr.f32.gmra.mrb[0].mxu0 %v10337
  %v10339 = vpop.f32.mrb[0].mxu0
  %v10340 = vadd.f32 %v9311, %v10339
  %v10341 = vpop.f32.mrb[0].mxu0
  %10342 = vmatprep.mubr.f32.mxu0 0.0
  %v10343 = vand.u32 %v4560, 4294901760
  %10344 = vmatmul.mubr.f32.gmra.mrb[0].mxu0 %v10343
  %v10345 = vpop.f32.mrb[0].mxu0
  %v10346 = vadd.f32 %v9319, %v10345
  %v10347 = vpop.f32.mrb[0].mxu0
  %10348 = vmatprep.mubr.f32.mxu0 0.0
  %v10349 = vand.u32 %v4561, 4294901760
  %10350 = vmatmul.mubr.f32.gmra.mrb[0].mxu0 %v10349
  %v10351 = vpop.f32.mrb[0].mxu0
  %v10352 = vadd.f32 %v9327, %v10351
  %v10353 = vpop.f32.mrb[0].mxu0
  %10354 = vmatprep.mubr.f32.mxu0 0.0
  %v10355 = vand.u32 %v4562, 4294901760
  %10356 = vmatmul.mubr.f32.gmra.mrb[0].mxu0 %v10355
  %v10357 = vpop.f32.mrb[0].mxu0
  %v10358 = vadd.f32 %v9335, %v10357
  %v10359 = vpop.f32.mrb[0].mxu0
  %10360 = vmatprep.mubr.f32.mxu0 0.0
  %v10361 = vand.u32 %v4563, 4294901760
  %10362 = vmatmul.mubr.f32.gmra.mrb[0].mxu0 %v10361
  %v10363 = vpop.f32.mrb[0].mxu0
  %v10364 = vadd.f32 %v9343, %v10363
  %v10365 = vpop.f32.mrb[0].mxu0
  %10366 = vmatprep.mubr.f32.mxu0 0.0
  %v10367 = vand.u32 %v4564, 4294901760
  %10368 = vmatmul.mubr.f32.gmra.mrb[0].mxu0 %v10367
  %v10369 = vpop.f32.mrb[0].mxu0
  %v10370 = vadd.f32 %v9351, %v10369
  %v10371 = vpop.f32.mrb[0].mxu0
  %10372 = vmatprep.mubr.f32.mxu0 0.0
  %v10373 = vand.u32 %v4565, 4294901760
  %10374 = vmatmul.mubr.f32.gmra.mrb[0].mxu0 %v10373
  %v10375 = vpop.f32.mrb[0].mxu0
  %v10376 = vadd.f32 %v9359, %v10375
  %v10377 = vpop.f32.mrb[0].mxu0
  %10378 = vmatprep.mubr.f32.mxu0 0.0
  %v10379 = vand.u32 %v4566, 4294901760
  %10380 = vmatmul.mubr.f32.gmra.mrb[0].mxu0 %v10379
  %v10381 = vpop.f32.mrb[0].mxu0
  %v10382 = vadd.f32 %v9367, %v10381
  %v10383 = vpop.f32.mrb[0].mxu0
  %10384 = vmatprep.mubr.f32.mxu0 0.0
  %v10385 = vand.u32 %v4567, 4294901760
  %10386 = vmatmul.mubr.f32.gmra.mrb[0].mxu0 %v10385
  %v10387 = vpop.f32.mrb[0].mxu0
  %v10388 = vadd.f32 %v9375, %v10387
  %v10389 = vpop.f32.mrb[0].mxu0
  %10390 = vmatprep.mubr.f32.mxu0 0.0
  %v10391 = vand.u32 %v4568, 4294901760
  %10392 = vmatmul.mubr.f32.gmra.mrb[0].mxu0 %v10391
  %v10393 = vpop.f32.mrb[0].mxu0
  %v10394 = vadd.f32 %v9383, %v10393
  %v10395 = vpop.f32.mrb[0].mxu0
  %10396 = vmatprep.mubr.f32.mxu0 0.0
  %v10397 = vand.u32 %v4569, 4294901760
  %10398 = vmatmul.mubr.f32.gmra.mrb[0].mxu0 %v10397
  %v10399 = vpop.f32.mrb[0].mxu0
  %v10400 = vadd.f32 %v9391, %v10399
  %v10401 = vpop.f32.mrb[0].mxu0
  %10402 = vmatprep.mubr.f32.mxu0 0.0
  %v10403 = vand.u32 %v4570, 4294901760
  %10404 = vmatmul.mubr.f32.gmra.mrb[0].mxu0 %v10403
  %v10405 = vpop.f32.mrb[0].mxu0
  %v10406 = vadd.f32 %v9399, %v10405
  %v10407 = vpop.f32.mrb[0].mxu0
  %10408 = vmatprep.mubr.f32.mxu0 0.0
  %v10409 = vand.u32 %v4571, 4294901760
  %10410 = vmatmul.mubr.f32.gmra.mrb[0].mxu0 %v10409
  %v10411 = vpop.f32.mrb[0].mxu0
  %v10412 = vadd.f32 %v9407, %v10411
  %v10413 = vpop.f32.mrb[0].mxu0
  %10414 = vmatprep.mubr.f32.mxu0 0.0
  %v10415 = vand.u32 %v4572, 4294901760
  %10416 = vmatmul.mubr.f32.gmra.mrb[0].mxu0 %v10415
  %v10417 = vpop.f32.mrb[0].mxu0
  %v10418 = vadd.f32 %v9415, %v10417
  %v10419 = vpop.f32.mrb[0].mxu0
  %10420 = vmatprep.mubr.f32.mxu0 0.0
  %v10421 = vand.u32 %v4573, 4294901760
  %10422 = vmatmul.mubr.f32.gmra.mrb[0].mxu0 %v10421
  %v10423 = vpop.f32.mrb[0].mxu0
  %v10424 = vadd.f32 %v9423, %v10423
  %v10425 = vpop.f32.mrb[0].mxu0
  %10426 = vmatprep.mubr.f32.mxu0 0.0
  %v10427 = vand.u32 %v4574, 4294901760
  %10428 = vmatmul.mubr.f32.gmra.mrb[0].mxu0 %v10427
  %v10429 = vpop.f32.mrb[0].mxu0
  %v10430 = vadd.f32 %v9431, %v10429
  %v10431 = vpop.f32.mrb[0].mxu0
  %10432 = vmatprep.mubr.f32.mxu0 0.0
  %v10433 = vand.u32 %v4575, 4294901760
  %10434 = vmatmul.mubr.f32.gmra.mrb[0].mxu0 %v10433
  %v10435 = vpop.f32.mrb[0].mxu0
  %v10436 = vadd.f32 %v9439, %v10435
  %v10437 = vpop.f32.mrb[0].mxu0
  %10438 = vmatprep.mubr.f32.mxu0 0.0
  %v10439 = vand.u32 %v4576, 4294901760
  %10440 = vmatmul.mubr.f32.gmra.mrb[0].mxu0 %v10439
  %v10441 = vpop.f32.mrb[0].mxu0
  %v10442 = vadd.f32 %v9447, %v10441
  %v10443 = vpop.f32.mrb[0].mxu0
  %10444 = vmatprep.mubr.f32.mxu0 0.0
  %v10445 = vand.u32 %v4577, 4294901760
  %10446 = vmatmul.mubr.f32.gmra.mrb[0].mxu0 %v10445
  %v10447 = vpop.f32.mrb[0].mxu0
  %v10448 = vadd.f32 %v9455, %v10447
  %v10449 = vpop.f32.mrb[0].mxu0
  %10450 = vmatprep.mubr.f32.mxu0 0.0
  %v10451 = vand.u32 %v4578, 4294901760
  %10452 = vmatmul.mubr.f32.gmra.mrb[0].mxu0 %v10451
  %v10453 = vpop.f32.mrb[0].mxu0
  %v10454 = vadd.f32 %v9463, %v10453
  %v10455 = vpop.f32.mrb[0].mxu0
  %10456 = vmatprep.mubr.f32.mxu0 0.0
  %v10457 = vand.u32 %v4579, 4294901760
  %10458 = vmatmul.mubr.f32.gmra.mrb[0].mxu0 %v10457
  %v10459 = vpop.f32.mrb[0].mxu0
  %v10460 = vadd.f32 %v9471, %v10459
  %v10461 = vpop.f32.mrb[0].mxu0
  %10462 = vmatprep.mubr.f32.mxu0 0.0
  %v10463 = vand.u32 %v4580, 4294901760
  %10464 = vmatmul.mubr.f32.gmra.mrb[0].mxu0 %v10463
  %v10465 = vpop.f32.mrb[0].mxu0
  %v10466 = vadd.f32 %v9479, %v10465
  %v10467 = vpop.f32.mrb[0].mxu0
  %10468 = vmatprep.mubr.f32.mxu0 0.0
  %v10469 = vand.u32 %v4581, 4294901760
  %10470 = vmatmul.mubr.f32.gmra.mrb[0].mxu0 %v10469
  %v10471 = vpop.f32.mrb[0].mxu0
  %v10472 = vadd.f32 %v9487, %v10471
  %v10473 = vpop.f32.mrb[0].mxu0
  %10474 = vmatprep.mubr.f32.mxu0 0.0
  %v10475 = vand.u32 %v4582, 4294901760
  %10476 = vmatmul.mubr.f32.gmra.mrb[0].mxu0 %v10475
  %v10477 = vpop.f32.mrb[0].mxu0
  %v10478 = vadd.f32 %v9495, %v10477
  %v10479 = vpop.f32.mrb[0].mxu0
  %10480 = vdwg.mxu0
  %10481 = vmatprep.subr.mxu0 0.0
  %v10482 = vand.u32 %v4583, 4294901760
  %10483 = vmatpush1.msra.mxu0 %v10482
  %10484 = vmatprep.subr.mxu0 0.0
  %v10485 = vand.u32 %v4584, 4294901760
  %10486 = vmatpush1.msra.mxu0 %v10485
  %10487 = vmatprep.subr.mxu0 0.0
  %v10488 = vand.u32 %v4585, 4294901760
  %10489 = vmatpush1.msra.mxu0 %v10488
  %10490 = vmatprep.subr.mxu0 0.0
  %v10491 = vand.u32 %v4586, 4294901760
  %10492 = vmatpush1.msra.mxu0 %v10491
  %10493 = vmatprep.subr.mxu0 0.0
  %v10494 = vand.u32 %v4587, 4294901760
  %10495 = vmatpush1.msra.mxu0 %v10494
  %10496 = vmatprep.subr.mxu0 0.0
  %v10497 = vand.u32 %v4588, 4294901760
  %10498 = vmatpush1.msra.mxu0 %v10497
  %10499 = vmatprep.subr.mxu0 0.0
  %v10500 = vand.u32 %v4589, 4294901760
  %10501 = vmatpush1.msra.mxu0 %v10500
  %10502 = vmatprep.subr.mxu0 0.0
  %v10503 = vand.u32 %v4590, 4294901760
  %10504 = vmatpush1.msra.mxu0 %v10503
  %10505 = vmatprep.subr.mxu0 0.0
  %v10506 = vand.u32 %v4591, 4294901760
  %10507 = vmatpush1.msra.mxu0 %v10506
  %10508 = vmatprep.subr.mxu0 0.0
  %v10509 = vand.u32 %v4592, 4294901760
  %10510 = vmatpush1.msra.mxu0 %v10509
  %10511 = vmatprep.subr.mxu0 0.0
  %v10512 = vand.u32 %v4593, 4294901760
  %10513 = vmatpush1.msra.mxu0 %v10512
  %10514 = vmatprep.subr.mxu0 0.0
  %v10515 = vand.u32 %v4594, 4294901760
  %10516 = vmatpush1.msra.mxu0 %v10515
  %10517 = vmatprep.subr.mxu0 0.0
  %v10518 = vand.u32 %v4595, 4294901760
  %10519 = vmatpush1.msra.mxu0 %v10518
  %10520 = vmatprep.subr.mxu0 0.0
  %v10521 = vand.u32 %v4596, 4294901760
  %10522 = vmatpush1.msra.mxu0 %v10521
  %10523 = vmatprep.subr.mxu0 0.0
  %v10524 = vand.u32 %v4597, 4294901760
  %10525 = vmatpush1.msra.mxu0 %v10524
  %10526 = vmatprep.subr.mxu0 0.0
  %v10527 = vand.u32 %v4598, 4294901760
  %10528 = vmatpush1.msra.mxu0 %v10527
  %10529 = vmatprep.subr.mxu0 0.0
  %10530 = vmatpush1.msra.mxu0 0.0
  %10531 = vmatprep.subr.mxu0 0.0
  %10532 = vmatpush1.msra.mxu0 0.0
  %10533 = vmatprep.subr.mxu0 0.0
  %10534 = vmatpush1.msra.mxu0 0.0
  %10535 = vmatprep.subr.mxu0 0.0
  %10536 = vmatpush1.msra.mxu0 0.0
  %10537 = vmatprep.subr.mxu0 0.0
  %10538 = vmatpush1.msra.mxu0 0.0
  %10539 = vmatprep.subr.mxu0 0.0
  %10540 = vmatpush1.msra.mxu0 0.0
  %10541 = vmatprep.subr.mxu0 0.0
  %10542 = vmatpush1.msra.mxu0 0.0
  %10543 = vmatprep.subr.mxu0 0.0
  %10544 = vmatpush1.msra.mxu0 0.0
  %10545 = vmatprep.subr.mxu0 0.0
  %10546 = vmatpush1.msra.mxu0 0.0
  %10547 = vmatprep.subr.mxu0 0.0
  %10548 = vmatpush1.msra.mxu0 0.0
  %10549 = vmatprep.subr.mxu0 0.0
  %10550 = vmatpush1.msra.mxu0 0.0
  %10551 = vmatprep.subr.mxu0 0.0
  %10552 = vmatpush1.msra.mxu0 0.0
  %10553 = vmatprep.subr.mxu0 0.0
  %10554 = vmatpush1.msra.mxu0 0.0
  %10555 = vmatprep.subr.mxu0 0.0
  %10556 = vmatpush1.msra.mxu0 0.0
  %10557 = vmatprep.subr.mxu0 0.0
  %10558 = vmatpush1.msra.mxu0 0.0
  %10559 = vmatprep.subr.mxu0 0.0
  %10560 = vmatpush1.msra.mxu0 0.0
  %10561 = vmatprep.mubr.f32.mxu0 0.0
  %v10562 = vand.u32 %v4438, 4294901760
  %10563 = vmatmul.mubr.f32.gmra.mrb[0].mxu0 %v10562
  %v10564 = vpop.f32.mrb[0].mxu0
  %v10565 = vadd.f32 %v9614, %v10564
  %v10566 = vpop.f32.mrb[0].mxu0
  %10567 = vmatprep.mubr.f32.mxu0 0.0
  %v10568 = vand.u32 %v4439, 4294901760
  %10569 = vmatmul.mubr.f32.gmra.mrb[0].mxu0 %v10568
  %v10570 = vpop.f32.mrb[0].mxu0
  %v10571 = vadd.f32 %v9620, %v10570
  %v10572 = vpop.f32.mrb[0].mxu0
  %10573 = vmatprep.mubr.f32.mxu0 0.0
  %v10574 = vand.u32 %v4440, 4294901760
  %10575 = vmatmul.mubr.f32.gmra.mrb[0].mxu0 %v10574
  %v10576 = vpop.f32.mrb[0].mxu0
  %v10577 = vadd.f32 %v9626, %v10576
  %v10578 = vpop.f32.mrb[0].mxu0
  %10579 = vmatprep.mubr.f32.mxu0 0.0
  %v10580 = vand.u32 %v4441, 4294901760
  %10581 = vmatmul.mubr.f32.gmra.mrb[0].mxu0 %v10580
  %v10582 = vpop.f32.mrb[0].mxu0
  %v10583 = vadd.f32 %v9632, %v10582
  %v10584 = vpop.f32.mrb[0].mxu0
  %10585 = vmatprep.mubr.f32.mxu0 0.0
  %v10586 = vand.u32 %v4442, 4294901760
  %10587 = vmatmul.mubr.f32.gmra.mrb[0].mxu0 %v10586
  %v10588 = vpop.f32.mrb[0].mxu0
  %v10589 = vadd.f32 %v9638, %v10588
  %v10590 = vpop.f32.mrb[0].mxu0
  %10591 = vmatprep.mubr.f32.mxu0 0.0
  %v10592 = vand.u32 %v4443, 4294901760
  %10593 = vmatmul.mubr.f32.gmra.mrb[0].mxu0 %v10592
  %v10594 = vpop.f32.mrb[0].mxu0
  %v10595 = vadd.f32 %v9644, %v10594
  %v10596 = vpop.f32.mrb[0].mxu0
  %10597 = vmatprep.mubr.f32.mxu0 0.0
  %v10598 = vand.u32 %v4444, 4294901760
  %10599 = vmatmul.mubr.f32.gmra.mrb[0].mxu0 %v10598
  %v10600 = vpop.f32.mrb[0].mxu0
  %v10601 = vadd.f32 %v9650, %v10600
  %v10602 = vpop.f32.mrb[0].mxu0
  %10603 = vmatprep.mubr.f32.mxu0 0.0
  %v10604 = vand.u32 %v4445, 4294901760
  %10605 = vmatmul.mubr.f32.gmra.mrb[0].mxu0 %v10604
  %v10606 = vpop.f32.mrb[0].mxu0
  %v10607 = vadd.f32 %v9656, %v10606
  %v10608 = vpop.f32.mrb[0].mxu0
  %10609 = vmatprep.mubr.f32.mxu0 0.0
  %v10610 = vand.u32 %v4446, 4294901760
  %10611 = vmatmul.mubr.f32.gmra.mrb[0].mxu0 %v10610
  %v10612 = vpop.f32.mrb[0].mxu0
  %v10613 = vadd.f32 %v9662, %v10612
  %v10614 = vpop.f32.mrb[0].mxu0
  %10615 = vmatprep.mubr.f32.mxu0 0.0
  %v10616 = vand.u32 %v4447, 4294901760
  %10617 = vmatmul.mubr.f32.gmra.mrb[0].mxu0 %v10616
  %v10618 = vpop.f32.mrb[0].mxu0
  %v10619 = vadd.f32 %v9668, %v10618
  %v10620 = vpop.f32.mrb[0].mxu0
  %10621 = vmatprep.mubr.f32.mxu0 0.0
  %v10622 = vand.u32 %v4448, 4294901760
  %10623 = vmatmul.mubr.f32.gmra.mrb[0].mxu0 %v10622
  %v10624 = vpop.f32.mrb[0].mxu0
  %v10625 = vadd.f32 %v9674, %v10624
  %v10626 = vpop.f32.mrb[0].mxu0
  %10627 = vmatprep.mubr.f32.mxu0 0.0
  %v10628 = vand.u32 %v4449, 4294901760
  %10629 = vmatmul.mubr.f32.gmra.mrb[0].mxu0 %v10628
  %v10630 = vpop.f32.mrb[0].mxu0
  %v10631 = vadd.f32 %v9680, %v10630
  %v10632 = vpop.f32.mrb[0].mxu0
  %10633 = vmatprep.mubr.f32.mxu0 0.0
  %v10634 = vand.u32 %v4450, 4294901760
  %10635 = vmatmul.mubr.f32.gmra.mrb[0].mxu0 %v10634
  %v10636 = vpop.f32.mrb[0].mxu0
  %v10637 = vadd.f32 %v9686, %v10636
  %v10638 = vpop.f32.mrb[0].mxu0
  %10639 = vmatprep.mubr.f32.mxu0 0.0
  %v10640 = vand.u32 %v4451, 4294901760
  %10641 = vmatmul.mubr.f32.gmra.mrb[0].mxu0 %v10640
  %v10642 = vpop.f32.mrb[0].mxu0
  %v10643 = vadd.f32 %v9692, %v10642
  %v10644 = vpop.f32.mrb[0].mxu0
  %10645 = vmatprep.mubr.f32.mxu0 0.0
  %v10646 = vand.u32 %v4452, 4294901760
  %10647 = vmatmul.mubr.f32.gmra.mrb[0].mxu0 %v10646
  %v10648 = vpop.f32.mrb[0].mxu0
  %v10649 = vadd.f32 %v9698, %v10648
  %v10650 = vpop.f32.mrb[0].mxu0
  %10651 = vmatprep.mubr.f32.mxu0 0.0
  %v10652 = vand.u32 %v4453, 4294901760
  %10653 = vmatmul.mubr.f32.gmra.mrb[0].mxu0 %v10652
  %v10654 = vpop.f32.mrb[0].mxu0
  %v10655 = vadd.f32 %v9704, %v10654
  %v10656 = vpop.f32.mrb[0].mxu0
  %10657 = vmatprep.mubr.f32.mxu0 0.0
  %v10658 = vand.u32 %v4454, 4294901760
  %10659 = vmatmul.mubr.f32.gmra.mrb[0].mxu0 %v10658
  %v10660 = vpop.f32.mrb[0].mxu0
  %v10661 = vadd.f32 %v9710, %v10660
  %v10662 = vpop.f32.mrb[0].mxu0
  %10663 = vmatprep.mubr.f32.mxu0 0.0
  %v10664 = vand.u32 %v4455, 4294901760
  %10665 = vmatmul.mubr.f32.gmra.mrb[0].mxu0 %v10664
  %v10666 = vpop.f32.mrb[0].mxu0
  %v10667 = vadd.f32 %v9716, %v10666
  %v10668 = vpop.f32.mrb[0].mxu0
  %10669 = vmatprep.mubr.f32.mxu0 0.0
  %v10670 = vand.u32 %v4456, 4294901760
  %10671 = vmatmul.mubr.f32.gmra.mrb[0].mxu0 %v10670
  %v10672 = vpop.f32.mrb[0].mxu0
  %v10673 = vadd.f32 %v9722, %v10672
  %v10674 = vpop.f32.mrb[0].mxu0
  %10675 = vmatprep.mubr.f32.mxu0 0.0
  %v10676 = vand.u32 %v4457, 4294901760
  %10677 = vmatmul.mubr.f32.gmra.mrb[0].mxu0 %v10676
  %v10678 = vpop.f32.mrb[0].mxu0
  %v10679 = vadd.f32 %v9728, %v10678
  %v10680 = vpop.f32.mrb[0].mxu0
  %10681 = vmatprep.mubr.f32.mxu0 0.0
  %v10682 = vand.u32 %v4458, 4294901760
  %10683 = vmatmul.mubr.f32.gmra.mrb[0].mxu0 %v10682
  %v10684 = vpop.f32.mrb[0].mxu0
  %v10685 = vadd.f32 %v9734, %v10684
  %v10686 = vpop.f32.mrb[0].mxu0
  %10687 = vmatprep.mubr.f32.mxu0 0.0
  %v10688 = vand.u32 %v4459, 4294901760
  %10689 = vmatmul.mubr.f32.gmra.mrb[0].mxu0 %v10688
  %v10690 = vpop.f32.mrb[0].mxu0
  %v10691 = vadd.f32 %v9740, %v10690
  %v10692 = vpop.f32.mrb[0].mxu0
  %10693 = vmatprep.mubr.f32.mxu0 0.0
  %v10694 = vand.u32 %v4460, 4294901760
  %10695 = vmatmul.mubr.f32.gmra.mrb[0].mxu0 %v10694
  %v10696 = vpop.f32.mrb[0].mxu0
  %v10697 = vadd.f32 %v9746, %v10696
  %v10698 = vpop.f32.mrb[0].mxu0
  %10699 = vmatprep.mubr.f32.mxu0 0.0
  %v10700 = vand.u32 %v4461, 4294901760
  %10701 = vmatmul.mubr.f32.gmra.mrb[0].mxu0 %v10700
  %v10702 = vpop.f32.mrb[0].mxu0
  %v10703 = vadd.f32 %v9752, %v10702
  %v10704 = vpop.f32.mrb[0].mxu0
  %10705 = vmatprep.mubr.f32.mxu0 0.0
  %v10706 = vand.u32 %v4462, 4294901760
  %10707 = vmatmul.mubr.f32.gmra.mrb[0].mxu0 %v10706
  %v10708 = vpop.f32.mrb[0].mxu0
  %v10709 = vadd.f32 %v9758, %v10708
  %v10710 = vpop.f32.mrb[0].mxu0
  %10711 = vmatprep.mubr.f32.mxu0 0.0
  %v10712 = vand.u32 %v4463, 4294901760
  %10713 = vmatmul.mubr.f32.gmra.mrb[0].mxu0 %v10712
  %v10714 = vpop.f32.mrb[0].mxu0
  %v10715 = vadd.f32 %v9764, %v10714
  %v10716 = vpop.f32.mrb[0].mxu0
  %10717 = vmatprep.mubr.f32.mxu0 0.0
  %v10718 = vand.u32 %v4464, 4294901760
  %10719 = vmatmul.mubr.f32.gmra.mrb[0].mxu0 %v10718
  %v10720 = vpop.f32.mrb[0].mxu0
  %v10721 = vadd.f32 %v9770, %v10720
  %v10722 = vpop.f32.mrb[0].mxu0
  %10723 = vmatprep.mubr.f32.mxu0 0.0
  %v10724 = vand.u32 %v4465, 4294901760
  %10725 = vmatmul.mubr.f32.gmra.mrb[0].mxu0 %v10724
  %v10726 = vpop.f32.mrb[0].mxu0
  %v10727 = vadd.f32 %v9776, %v10726
  %v10728 = vpop.f32.mrb[0].mxu0
  %10729 = vmatprep.mubr.f32.mxu0 0.0
  %v10730 = vand.u32 %v4466, 4294901760
  %10731 = vmatmul.mubr.f32.gmra.mrb[0].mxu0 %v10730
  %v10732 = vpop.f32.mrb[0].mxu0
  %v10733 = vadd.f32 %v9782, %v10732
  %v10734 = vpop.f32.mrb[0].mxu0
  %10735 = vmatprep.mubr.f32.mxu0 0.0
  %v10736 = vand.u32 %v4467, 4294901760
  %10737 = vmatmul.mubr.f32.gmra.mrb[0].mxu0 %v10736
  %v10738 = vpop.f32.mrb[0].mxu0
  %v10739 = vadd.f32 %v9788, %v10738
  %v10740 = vpop.f32.mrb[0].mxu0
  %10741 = vmatprep.mubr.f32.mxu0 0.0
  %v10742 = vand.u32 %v4468, 4294901760
  %10743 = vmatmul.mubr.f32.gmra.mrb[0].mxu0 %v10742
  %v10744 = vpop.f32.mrb[0].mxu0
  %v10745 = vadd.f32 %v9794, %v10744
  %v10746 = vpop.f32.mrb[0].mxu0
  %10747 = vmatprep.mubr.f32.mxu0 0.0
  %v10748 = vand.u32 %v4469, 4294901760
  %10749 = vmatmul.mubr.f32.gmra.mrb[0].mxu0 %v10748
  %v10750 = vpop.f32.mrb[0].mxu0
  %v10751 = vadd.f32 %v9800, %v10750
  %v10752 = vpop.f32.mrb[0].mxu0
  %10753 = vmatprep.mubr.f32.mxu0 0.0
  %v10754 = vand.u32 %v4470, 4294901760
  %10755 = vmatmul.mubr.f32.gmra.mrb[0].mxu0 %v10754
  %v10756 = vpop.f32.mrb[0].mxu0
  %v10757 = vadd.f32 %v9806, %v10756
  %v10758 = vpop.f32.mrb[0].mxu0
  %10759 = vmatprep.mubr.f32.mxu0 0.0
  %v10760 = vand.u32 %v4471, 4294901760
  %10761 = vmatmul.mubr.f32.gmra.mrb[0].mxu0 %v10760
  %v10762 = vpop.f32.mrb[0].mxu0
  %v10763 = vadd.f32 %v9812, %v10762
  %v10764 = vpop.f32.mrb[0].mxu0
  %10765 = vmatprep.mubr.f32.mxu0 0.0
  %v10766 = vand.u32 %v4472, 4294901760
  %10767 = vmatmul.mubr.f32.gmra.mrb[0].mxu0 %v10766
  %v10768 = vpop.f32.mrb[0].mxu0
  %v10769 = vadd.f32 %v9818, %v10768
  %v10770 = vpop.f32.mrb[0].mxu0
  %10771 = vmatprep.mubr.f32.mxu0 0.0
  %v10772 = vand.u32 %v4473, 4294901760
  %10773 = vmatmul.mubr.f32.gmra.mrb[0].mxu0 %v10772
  %v10774 = vpop.f32.mrb[0].mxu0
  %v10775 = vadd.f32 %v9824, %v10774
  %v10776 = vpop.f32.mrb[0].mxu0
  %10777 = vmatprep.mubr.f32.mxu0 0.0
  %v10778 = vand.u32 %v4474, 4294901760
  %10779 = vmatmul.mubr.f32.gmra.mrb[0].mxu0 %v10778
  %v10780 = vpop.f32.mrb[0].mxu0
  %v10781 = vadd.f32 %v9830, %v10780
  %v10782 = vpop.f32.mrb[0].mxu0
  %10783 = vmatprep.mubr.f32.mxu0 0.0
  %v10784 = vand.u32 %v4475, 4294901760
  %10785 = vmatmul.mubr.f32.gmra.mrb[0].mxu0 %v10784
  %v10786 = vpop.f32.mrb[0].mxu0
  %v10787 = vadd.f32 %v9836, %v10786
  %v10788 = vpop.f32.mrb[0].mxu0
  %10789 = vmatprep.mubr.f32.mxu0 0.0
  %v10790 = vand.u32 %v4476, 4294901760
  %10791 = vmatmul.mubr.f32.gmra.mrb[0].mxu0 %v10790
  %v10792 = vpop.f32.mrb[0].mxu0
  %v10793 = vadd.f32 %v9842, %v10792
  %v10794 = vpop.f32.mrb[0].mxu0
  %10795 = vmatprep.mubr.f32.mxu0 0.0
  %v10796 = vand.u32 %v4477, 4294901760
  %10797 = vmatmul.mubr.f32.gmra.mrb[0].mxu0 %v10796
  %v10798 = vpop.f32.mrb[0].mxu0
  %v10799 = vadd.f32 %v9848, %v10798
  %v10800 = vpop.f32.mrb[0].mxu0
  %10801 = vmatprep.mubr.f32.mxu0 0.0
  %v10802 = vand.u32 %v4478, 4294901760
  %10803 = vmatmul.mubr.f32.gmra.mrb[0].mxu0 %v10802
  %v10804 = vpop.f32.mrb[0].mxu0
  %v10805 = vadd.f32 %v9854, %v10804
  %v10806 = vpop.f32.mrb[0].mxu0
  %10807 = vmatprep.mubr.f32.mxu0 0.0
  %v10808 = vand.u32 %v4479, 4294901760
  %10809 = vmatmul.mubr.f32.gmra.mrb[0].mxu0 %v10808
  %v10810 = vpop.f32.mrb[0].mxu0
  %v10811 = vadd.f32 %v9860, %v10810
  %v10812 = vpop.f32.mrb[0].mxu0
  %10813 = vmatprep.mubr.f32.mxu0 0.0
  %v10814 = vand.u32 %v4480, 4294901760
  %10815 = vmatmul.mubr.f32.gmra.mrb[0].mxu0 %v10814
  %v10816 = vpop.f32.mrb[0].mxu0
  %v10817 = vadd.f32 %v9866, %v10816
  %v10818 = vpop.f32.mrb[0].mxu0
  %10819 = vmatprep.mubr.f32.mxu0 0.0
  %v10820 = vand.u32 %v4481, 4294901760
  %10821 = vmatmul.mubr.f32.gmra.mrb[0].mxu0 %v10820
  %v10822 = vpop.f32.mrb[0].mxu0
  %v10823 = vadd.f32 %v9872, %v10822
  %v10824 = vpop.f32.mrb[0].mxu0
  %10825 = vmatprep.mubr.f32.mxu0 0.0
  %v10826 = vand.u32 %v4482, 4294901760
  %10827 = vmatmul.mubr.f32.gmra.mrb[0].mxu0 %v10826
  %v10828 = vpop.f32.mrb[0].mxu0
  %v10829 = vadd.f32 %v9878, %v10828
  %v10830 = vpop.f32.mrb[0].mxu0
  %10831 = vmatprep.mubr.f32.mxu0 0.0
  %v10832 = vand.u32 %v4483, 4294901760
  %10833 = vmatmul.mubr.f32.gmra.mrb[0].mxu0 %v10832
  %v10834 = vpop.f32.mrb[0].mxu0
  %v10835 = vadd.f32 %v9884, %v10834
  %v10836 = vpop.f32.mrb[0].mxu0
  %10837 = vmatprep.mubr.f32.mxu0 0.0
  %v10838 = vand.u32 %v4484, 4294901760
  %10839 = vmatmul.mubr.f32.gmra.mrb[0].mxu0 %v10838
  %v10840 = vpop.f32.mrb[0].mxu0
  %v10841 = vadd.f32 %v9890, %v10840
  %v10842 = vpop.f32.mrb[0].mxu0
  %10843 = vmatprep.mubr.f32.mxu0 0.0
  %v10844 = vand.u32 %v4485, 4294901760
  %10845 = vmatmul.mubr.f32.gmra.mrb[0].mxu0 %v10844
  %v10846 = vpop.f32.mrb[0].mxu0
  %v10847 = vadd.f32 %v9896, %v10846
  %v10848 = vpop.f32.mrb[0].mxu0
  %10849 = vmatprep.mubr.f32.mxu0 0.0
  %v10850 = vand.u32 %v4486, 4294901760
  %10851 = vmatmul.mubr.f32.gmra.mrb[0].mxu0 %v10850
  %v10852 = vpop.f32.mrb[0].mxu0
  %v10853 = vadd.f32 %v9902, %v10852
  %v10854 = vpop.f32.mrb[0].mxu0
  %10855 = vmatprep.mubr.f32.mxu0 0.0
  %v10856 = vand.u32 %v4487, 4294901760
  %10857 = vmatmul.mubr.f32.gmra.mrb[0].mxu0 %v10856
  %v10858 = vpop.f32.mrb[0].mxu0
  %v10859 = vadd.f32 %v9908, %v10858
  %v10860 = vpop.f32.mrb[0].mxu0
  %10861 = vmatprep.mubr.f32.mxu0 0.0
  %v10862 = vand.u32 %v4488, 4294901760
  %10863 = vmatmul.mubr.f32.gmra.mrb[0].mxu0 %v10862
  %v10864 = vpop.f32.mrb[0].mxu0
  %v10865 = vadd.f32 %v9914, %v10864
  %v10866 = vpop.f32.mrb[0].mxu0
  %10867 = vmatprep.mubr.f32.mxu0 0.0
  %v10868 = vand.u32 %v4489, 4294901760
  %10869 = vmatmul.mubr.f32.gmra.mrb[0].mxu0 %v10868
  %v10870 = vpop.f32.mrb[0].mxu0
  %v10871 = vadd.f32 %v9920, %v10870
  %v10872 = vpop.f32.mrb[0].mxu0
  %10873 = vmatprep.mubr.f32.mxu0 0.0
  %v10874 = vand.u32 %v4490, 4294901760
  %10875 = vmatmul.mubr.f32.gmra.mrb[0].mxu0 %v10874
  %v10876 = vpop.f32.mrb[0].mxu0
  %v10877 = vadd.f32 %v9926, %v10876
  %v10878 = vpop.f32.mrb[0].mxu0
  %10879 = vmatprep.mubr.f32.mxu0 0.0
  %v10880 = vand.u32 %v4491, 4294901760
  %10881 = vmatmul.mubr.f32.gmra.mrb[0].mxu0 %v10880
  %v10882 = vpop.f32.mrb[0].mxu0
  %v10883 = vadd.f32 %v9932, %v10882
  %v10884 = vpop.f32.mrb[0].mxu0
  %10885 = vmatprep.mubr.f32.mxu0 0.0
  %v10886 = vand.u32 %v4492, 4294901760
  %10887 = vmatmul.mubr.f32.gmra.mrb[0].mxu0 %v10886
  %v10888 = vpop.f32.mrb[0].mxu0
  %v10889 = vadd.f32 %v9938, %v10888
  %v10890 = vpop.f32.mrb[0].mxu0
  %10891 = vmatprep.mubr.f32.mxu0 0.0
  %v10892 = vand.u32 %v4493, 4294901760
  %10893 = vmatmul.mubr.f32.gmra.mrb[0].mxu0 %v10892
  %v10894 = vpop.f32.mrb[0].mxu0
  %v10895 = vadd.f32 %v9944, %v10894
  %v10896 = vpop.f32.mrb[0].mxu0
  %10897 = vmatprep.mubr.f32.mxu0 0.0
  %v10898 = vand.u32 %v4494, 4294901760
  %10899 = vmatmul.mubr.f32.gmra.mrb[0].mxu0 %v10898
  %v10900 = vpop.f32.mrb[0].mxu0
  %v10901 = vadd.f32 %v9950, %v10900
  %v10902 = vpop.f32.mrb[0].mxu0
  %10903 = vmatprep.mubr.f32.mxu0 0.0
  %v10904 = vand.u32 %v4495, 4294901760
  %10905 = vmatmul.mubr.f32.gmra.mrb[0].mxu0 %v10904
  %v10906 = vpop.f32.mrb[0].mxu0
  %v10907 = vadd.f32 %v9956, %v10906
  %v10908 = vpop.f32.mrb[0].mxu0
  %10909 = vmatprep.mubr.f32.mxu0 0.0
  %v10910 = vand.u32 %v4496, 4294901760
  %10911 = vmatmul.mubr.f32.gmra.mrb[0].mxu0 %v10910
  %v10912 = vpop.f32.mrb[0].mxu0
  %v10913 = vadd.f32 %v9962, %v10912
  %v10914 = vpop.f32.mrb[0].mxu0
  %10915 = vmatprep.mubr.f32.mxu0 0.0
  %v10916 = vand.u32 %v4497, 4294901760
  %10917 = vmatmul.mubr.f32.gmra.mrb[0].mxu0 %v10916
  %v10918 = vpop.f32.mrb[0].mxu0
  %v10919 = vadd.f32 %v9968, %v10918
  %v10920 = vpop.f32.mrb[0].mxu0
  %10921 = vmatprep.mubr.f32.mxu0 0.0
  %v10922 = vand.u32 %v4498, 4294901760
  %10923 = vmatmul.mubr.f32.gmra.mrb[0].mxu0 %v10922
  %v10924 = vpop.f32.mrb[0].mxu0
  %v10925 = vadd.f32 %v9974, %v10924
  %v10926 = vpop.f32.mrb[0].mxu0
  %10927 = vmatprep.mubr.f32.mxu0 0.0
  %v10928 = vand.u32 %v4499, 4294901760
  %10929 = vmatmul.mubr.f32.gmra.mrb[0].mxu0 %v10928
  %v10930 = vpop.f32.mrb[0].mxu0
  %v10931 = vadd.f32 %v9980, %v10930
  %v10932 = vpop.f32.mrb[0].mxu0
  %10933 = vmatprep.mubr.f32.mxu0 0.0
  %v10934 = vand.u32 %v4500, 4294901760
  %10935 = vmatmul.mubr.f32.gmra.mrb[0].mxu0 %v10934
  %v10936 = vpop.f32.mrb[0].mxu0
  %v10937 = vadd.f32 %v9986, %v10936
  %v10938 = vpop.f32.mrb[0].mxu0
  %10939 = vmatprep.mubr.f32.mxu0 0.0
  %v10940 = vand.u32 %v4501, 4294901760
  %10941 = vmatmul.mubr.f32.gmra.mrb[0].mxu0 %v10940
  %v10942 = vpop.f32.mrb[0].mxu0
  %v10943 = vadd.f32 %v9992, %v10942
  %v10944 = vpop.f32.mrb[0].mxu0
  %10945 = vmatprep.mubr.f32.mxu0 0.0
  %v10946 = vand.u32 %v4502, 4294901760
  %10947 = vmatmul.mubr.f32.gmra.mrb[0].mxu0 %v10946
  %v10948 = vpop.f32.mrb[0].mxu0
  %v10949 = vadd.f32 %v9998, %v10948
  %v10950 = vpop.f32.mrb[0].mxu0
  %10951 = vmatprep.mubr.f32.mxu0 0.0
  %v10952 = vand.u32 %v4503, 4294901760
  %10953 = vmatmul.mubr.f32.gmra.mrb[0].mxu0 %v10952
  %v10954 = vpop.f32.mrb[0].mxu0
  %v10955 = vadd.f32 %v10004, %v10954
  %v10956 = vpop.f32.mrb[0].mxu0
  %10957 = vmatprep.mubr.f32.mxu0 0.0
  %v10958 = vand.u32 %v4504, 4294901760
  %10959 = vmatmul.mubr.f32.gmra.mrb[0].mxu0 %v10958
  %v10960 = vpop.f32.mrb[0].mxu0
  %v10961 = vadd.f32 %v10010, %v10960
  %v10962 = vpop.f32.mrb[0].mxu0
  %10963 = vmatprep.mubr.f32.mxu0 0.0
  %v10964 = vand.u32 %v4505, 4294901760
  %10965 = vmatmul.mubr.f32.gmra.mrb[0].mxu0 %v10964
  %v10966 = vpop.f32.mrb[0].mxu0
  %v10967 = vadd.f32 %v10016, %v10966
  %v10968 = vpop.f32.mrb[0].mxu0
  %10969 = vmatprep.mubr.f32.mxu0 0.0
  %v10970 = vand.u32 %v4506, 4294901760
  %10971 = vmatmul.mubr.f32.gmra.mrb[0].mxu0 %v10970
  %v10972 = vpop.f32.mrb[0].mxu0
  %v10973 = vadd.f32 %v10022, %v10972
  %v10974 = vpop.f32.mrb[0].mxu0
  %10975 = vmatprep.mubr.f32.mxu0 0.0
  %v10976 = vand.u32 %v4507, 4294901760
  %10977 = vmatmul.mubr.f32.gmra.mrb[0].mxu0 %v10976
  %v10978 = vpop.f32.mrb[0].mxu0
  %v10979 = vadd.f32 %v10028, %v10978
  %v10980 = vpop.f32.mrb[0].mxu0
  %10981 = vmatprep.mubr.f32.mxu0 0.0
  %v10982 = vand.u32 %v4508, 4294901760
  %10983 = vmatmul.mubr.f32.gmra.mrb[0].mxu0 %v10982
  %v10984 = vpop.f32.mrb[0].mxu0
  %v10985 = vadd.f32 %v10034, %v10984
  %v10986 = vpop.f32.mrb[0].mxu0
  %10987 = vmatprep.mubr.f32.mxu0 0.0
  %v10988 = vand.u32 %v4509, 4294901760
  %10989 = vmatmul.mubr.f32.gmra.mrb[0].mxu0 %v10988
  %v10990 = vpop.f32.mrb[0].mxu0
  %v10991 = vadd.f32 %v10040, %v10990
  %v10992 = vpop.f32.mrb[0].mxu0
  %10993 = vmatprep.mubr.f32.mxu0 0.0
  %v10994 = vand.u32 %v4510, 4294901760
  %10995 = vmatmul.mubr.f32.gmra.mrb[0].mxu0 %v10994
  %v10996 = vpop.f32.mrb[0].mxu0
  %v10997 = vadd.f32 %v10046, %v10996
  %v10998 = vpop.f32.mrb[0].mxu0
  %10999 = vmatprep.mubr.f32.mxu0 0.0
  %v11000 = vand.u32 %v4511, 4294901760
  %11001 = vmatmul.mubr.f32.gmra.mrb[0].mxu0 %v11000
  %v11002 = vpop.f32.mrb[0].mxu0
  %v11003 = vadd.f32 %v10052, %v11002
  %v11004 = vpop.f32.mrb[0].mxu0
  %11005 = vmatprep.mubr.f32.mxu0 0.0
  %v11006 = vand.u32 %v4512, 4294901760
  %11007 = vmatmul.mubr.f32.gmra.mrb[0].mxu0 %v11006
  %v11008 = vpop.f32.mrb[0].mxu0
  %v11009 = vadd.f32 %v10058, %v11008
  %v11010 = vpop.f32.mrb[0].mxu0
  %11011 = vmatprep.mubr.f32.mxu0 0.0
  %v11012 = vand.u32 %v4513, 4294901760
  %11013 = vmatmul.mubr.f32.gmra.mrb[0].mxu0 %v11012
  %v11014 = vpop.f32.mrb[0].mxu0
  %v11015 = vadd.f32 %v10064, %v11014
  %v11016 = vpop.f32.mrb[0].mxu0
  %11017 = vmatprep.mubr.f32.mxu0 0.0
  %v11018 = vand.u32 %v4514, 4294901760
  %11019 = vmatmul.mubr.f32.gmra.mrb[0].mxu0 %v11018
  %v11020 = vpop.f32.mrb[0].mxu0
  %v11021 = vadd.f32 %v10070, %v11020
  %v11022 = vpop.f32.mrb[0].mxu0
  %11023 = vmatprep.mubr.f32.mxu0 0.0
  %v11024 = vand.u32 %v4515, 4294901760
  %11025 = vmatmul.mubr.f32.gmra.mrb[0].mxu0 %v11024
  %v11026 = vpop.f32.mrb[0].mxu0
  %v11027 = vadd.f32 %v10076, %v11026
  %v11028 = vpop.f32.mrb[0].mxu0
  %11029 = vmatprep.mubr.f32.mxu0 0.0
  %v11030 = vand.u32 %v4516, 4294901760
  %11031 = vmatmul.mubr.f32.gmra.mrb[0].mxu0 %v11030
  %v11032 = vpop.f32.mrb[0].mxu0
  %v11033 = vadd.f32 %v10082, %v11032
  %v11034 = vpop.f32.mrb[0].mxu0
  %11035 = vmatprep.mubr.f32.mxu0 0.0
  %v11036 = vand.u32 %v4517, 4294901760
  %11037 = vmatmul.mubr.f32.gmra.mrb[0].mxu0 %v11036
  %v11038 = vpop.f32.mrb[0].mxu0
  %v11039 = vadd.f32 %v10088, %v11038
  %v11040 = vpop.f32.mrb[0].mxu0
  %11041 = vmatprep.mubr.f32.mxu0 0.0
  %v11042 = vand.u32 %v4518, 4294901760
  %11043 = vmatmul.mubr.f32.gmra.mrb[0].mxu0 %v11042
  %v11044 = vpop.f32.mrb[0].mxu0
  %v11045 = vadd.f32 %v10094, %v11044
  %v11046 = vpop.f32.mrb[0].mxu0
  %11047 = vmatprep.mubr.f32.mxu0 0.0
  %v11048 = vand.u32 %v4519, 4294901760
  %11049 = vmatmul.mubr.f32.gmra.mrb[0].mxu0 %v11048
  %v11050 = vpop.f32.mrb[0].mxu0
  %v11051 = vadd.f32 %v10100, %v11050
  %v11052 = vpop.f32.mrb[0].mxu0
  %11053 = vmatprep.mubr.f32.mxu0 0.0
  %v11054 = vand.u32 %v4520, 4294901760
  %11055 = vmatmul.mubr.f32.gmra.mrb[0].mxu0 %v11054
  %v11056 = vpop.f32.mrb[0].mxu0
  %v11057 = vadd.f32 %v10106, %v11056
  %v11058 = vpop.f32.mrb[0].mxu0
  %11059 = vmatprep.mubr.f32.mxu0 0.0
  %v11060 = vand.u32 %v4521, 4294901760
  %11061 = vmatmul.mubr.f32.gmra.mrb[0].mxu0 %v11060
  %v11062 = vpop.f32.mrb[0].mxu0
  %v11063 = vadd.f32 %v10112, %v11062
  %v11064 = vpop.f32.mrb[0].mxu0
  %11065 = vmatprep.mubr.f32.mxu0 0.0
  %v11066 = vand.u32 %v4522, 4294901760
  %11067 = vmatmul.mubr.f32.gmra.mrb[0].mxu0 %v11066
  %v11068 = vpop.f32.mrb[0].mxu0
  %v11069 = vadd.f32 %v10118, %v11068
  %v11070 = vpop.f32.mrb[0].mxu0
  %11071 = vmatprep.mubr.f32.mxu0 0.0
  %v11072 = vand.u32 %v4523, 4294901760
  %11073 = vmatmul.mubr.f32.gmra.mrb[0].mxu0 %v11072
  %v11074 = vpop.f32.mrb[0].mxu0
  %v11075 = vadd.f32 %v10124, %v11074
  %v11076 = vpop.f32.mrb[0].mxu0
  %11077 = vmatprep.mubr.f32.mxu0 0.0
  %v11078 = vand.u32 %v4524, 4294901760
  %11079 = vmatmul.mubr.f32.gmra.mrb[0].mxu0 %v11078
  %v11080 = vpop.f32.mrb[0].mxu0
  %v11081 = vadd.f32 %v10130, %v11080
  %v11082 = vpop.f32.mrb[0].mxu0
  %11083 = vmatprep.mubr.f32.mxu0 0.0
  %v11084 = vand.u32 %v4525, 4294901760
  %11085 = vmatmul.mubr.f32.gmra.mrb[0].mxu0 %v11084
  %v11086 = vpop.f32.mrb[0].mxu0
  %v11087 = vadd.f32 %v10136, %v11086
  %v11088 = vpop.f32.mrb[0].mxu0
  %11089 = vmatprep.mubr.f32.mxu0 0.0
  %v11090 = vand.u32 %v4526, 4294901760
  %11091 = vmatmul.mubr.f32.gmra.mrb[0].mxu0 %v11090
  %v11092 = vpop.f32.mrb[0].mxu0
  %v11093 = vadd.f32 %v10142, %v11092
  %v11094 = vpop.f32.mrb[0].mxu0
  %11095 = vmatprep.mubr.f32.mxu0 0.0
  %v11096 = vand.u32 %v4527, 4294901760
  %11097 = vmatmul.mubr.f32.gmra.mrb[0].mxu0 %v11096
  %v11098 = vpop.f32.mrb[0].mxu0
  %v11099 = vadd.f32 %v10148, %v11098
  %v11100 = vpop.f32.mrb[0].mxu0
  %11101 = vmatprep.mubr.f32.mxu0 0.0
  %v11102 = vand.u32 %v4528, 4294901760
  %11103 = vmatmul.mubr.f32.gmra.mrb[0].mxu0 %v11102
  %v11104 = vpop.f32.mrb[0].mxu0
  %v11105 = vadd.f32 %v10154, %v11104
  %v11106 = vpop.f32.mrb[0].mxu0
  %11107 = vmatprep.mubr.f32.mxu0 0.0
  %v11108 = vand.u32 %v4529, 4294901760
  %11109 = vmatmul.mubr.f32.gmra.mrb[0].mxu0 %v11108
  %v11110 = vpop.f32.mrb[0].mxu0
  %v11111 = vadd.f32 %v10160, %v11110
  %v11112 = vpop.f32.mrb[0].mxu0
  %11113 = vmatprep.mubr.f32.mxu0 0.0
  %v11114 = vand.u32 %v4530, 4294901760
  %11115 = vmatmul.mubr.f32.gmra.mrb[0].mxu0 %v11114
  %v11116 = vpop.f32.mrb[0].mxu0
  %v11117 = vadd.f32 %v10166, %v11116
  %v11118 = vpop.f32.mrb[0].mxu0
  %11119 = vmatprep.mubr.f32.mxu0 0.0
  %v11120 = vand.u32 %v4531, 4294901760
  %11121 = vmatmul.mubr.f32.gmra.mrb[0].mxu0 %v11120
  %v11122 = vpop.f32.mrb[0].mxu0
  %v11123 = vadd.f32 %v10172, %v11122
  %v11124 = vpop.f32.mrb[0].mxu0
  %11125 = vmatprep.mubr.f32.mxu0 0.0
  %v11126 = vand.u32 %v4532, 4294901760
  %11127 = vmatmul.mubr.f32.gmra.mrb[0].mxu0 %v11126
  %v11128 = vpop.f32.mrb[0].mxu0
  %v11129 = vadd.f32 %v10178, %v11128
  %v11130 = vpop.f32.mrb[0].mxu0
  %11131 = vmatprep.mubr.f32.mxu0 0.0
  %v11132 = vand.u32 %v4533, 4294901760
  %11133 = vmatmul.mubr.f32.gmra.mrb[0].mxu0 %v11132
  %v11134 = vpop.f32.mrb[0].mxu0
  %v11135 = vadd.f32 %v10184, %v11134
  %v11136 = vpop.f32.mrb[0].mxu0
  %11137 = vmatprep.mubr.f32.mxu0 0.0
  %v11138 = vand.u32 %v4534, 4294901760
  %11139 = vmatmul.mubr.f32.gmra.mrb[0].mxu0 %v11138
  %v11140 = vpop.f32.mrb[0].mxu0
  %v11141 = vadd.f32 %v10190, %v11140
  %v11142 = vpop.f32.mrb[0].mxu0
  %11143 = vmatprep.mubr.f32.mxu0 0.0
  %v11144 = vand.u32 %v4535, 4294901760
  %11145 = vmatmul.mubr.f32.gmra.mrb[0].mxu0 %v11144
  %v11146 = vpop.f32.mrb[0].mxu0
  %v11147 = vadd.f32 %v10196, %v11146
  %v11148 = vpop.f32.mrb[0].mxu0
  %11149 = vmatprep.mubr.f32.mxu0 0.0
  %v11150 = vand.u32 %v4536, 4294901760
  %11151 = vmatmul.mubr.f32.gmra.mrb[0].mxu0 %v11150
  %v11152 = vpop.f32.mrb[0].mxu0
  %v11153 = vadd.f32 %v10202, %v11152
  %v11154 = vpop.f32.mrb[0].mxu0
  %11155 = vmatprep.mubr.f32.mxu0 0.0
  %v11156 = vand.u32 %v4537, 4294901760
  %11157 = vmatmul.mubr.f32.gmra.mrb[0].mxu0 %v11156
  %v11158 = vpop.f32.mrb[0].mxu0
  %v11159 = vadd.f32 %v10208, %v11158
  %v11160 = vpop.f32.mrb[0].mxu0
  %11161 = vmatprep.mubr.f32.mxu0 0.0
  %v11162 = vand.u32 %v4538, 4294901760
  %11163 = vmatmul.mubr.f32.gmra.mrb[0].mxu0 %v11162
  %v11164 = vpop.f32.mrb[0].mxu0
  %v11165 = vadd.f32 %v10214, %v11164
  %v11166 = vpop.f32.mrb[0].mxu0
  %11167 = vmatprep.mubr.f32.mxu0 0.0
  %v11168 = vand.u32 %v4539, 4294901760
  %11169 = vmatmul.mubr.f32.gmra.mrb[0].mxu0 %v11168
  %v11170 = vpop.f32.mrb[0].mxu0
  %v11171 = vadd.f32 %v10220, %v11170
  %v11172 = vpop.f32.mrb[0].mxu0
  %11173 = vmatprep.mubr.f32.mxu0 0.0
  %v11174 = vand.u32 %v4540, 4294901760
  %11175 = vmatmul.mubr.f32.gmra.mrb[0].mxu0 %v11174
  %v11176 = vpop.f32.mrb[0].mxu0
  %v11177 = vadd.f32 %v10226, %v11176
  %v11178 = vpop.f32.mrb[0].mxu0
  %11179 = vmatprep.mubr.f32.mxu0 0.0
  %v11180 = vand.u32 %v4541, 4294901760
  %11181 = vmatmul.mubr.f32.gmra.mrb[0].mxu0 %v11180
  %v11182 = vpop.f32.mrb[0].mxu0
  %v11183 = vadd.f32 %v10232, %v11182
  %v11184 = vpop.f32.mrb[0].mxu0
  %11185 = vmatprep.mubr.f32.mxu0 0.0
  %v11186 = vand.u32 %v4542, 4294901760
  %11187 = vmatmul.mubr.f32.gmra.mrb[0].mxu0 %v11186
  %v11188 = vpop.f32.mrb[0].mxu0
  %v11189 = vadd.f32 %v10238, %v11188
  %v11190 = vpop.f32.mrb[0].mxu0
  %11191 = vmatprep.mubr.f32.mxu0 0.0
  %v11192 = vand.u32 %v4543, 4294901760
  %11193 = vmatmul.mubr.f32.gmra.mrb[0].mxu0 %v11192
  %v11194 = vpop.f32.mrb[0].mxu0
  %v11195 = vadd.f32 %v10244, %v11194
  %v11196 = vpop.f32.mrb[0].mxu0
  %11197 = vmatprep.mubr.f32.mxu0 0.0
  %v11198 = vand.u32 %v4544, 4294901760
  %11199 = vmatmul.mubr.f32.gmra.mrb[0].mxu0 %v11198
  %v11200 = vpop.f32.mrb[0].mxu0
  %v11201 = vadd.f32 %v10250, %v11200
  %v11202 = vpop.f32.mrb[0].mxu0
  %11203 = vmatprep.mubr.f32.mxu0 0.0
  %v11204 = vand.u32 %v4545, 4294901760
  %11205 = vmatmul.mubr.f32.gmra.mrb[0].mxu0 %v11204
  %v11206 = vpop.f32.mrb[0].mxu0
  %v11207 = vadd.f32 %v10256, %v11206
  %v11208 = vpop.f32.mrb[0].mxu0
  %11209 = vmatprep.mubr.f32.mxu0 0.0
  %v11210 = vand.u32 %v4546, 4294901760
  %11211 = vmatmul.mubr.f32.gmra.mrb[0].mxu0 %v11210
  %v11212 = vpop.f32.mrb[0].mxu0
  %v11213 = vadd.f32 %v10262, %v11212
  %v11214 = vpop.f32.mrb[0].mxu0
  %11215 = vmatprep.mubr.f32.mxu0 0.0
  %v11216 = vand.u32 %v4547, 4294901760
  %11217 = vmatmul.mubr.f32.gmra.mrb[0].mxu0 %v11216
  %v11218 = vpop.f32.mrb[0].mxu0
  %v11219 = vadd.f32 %v10268, %v11218
  %v11220 = vpop.f32.mrb[0].mxu0
  %11221 = vmatprep.mubr.f32.mxu0 0.0
  %v11222 = vand.u32 %v4548, 4294901760
  %11223 = vmatmul.mubr.f32.gmra.mrb[0].mxu0 %v11222
  %v11224 = vpop.f32.mrb[0].mxu0
  %v11225 = vadd.f32 %v10274, %v11224
  %v11226 = vpop.f32.mrb[0].mxu0
  %11227 = vmatprep.mubr.f32.mxu0 0.0
  %v11228 = vand.u32 %v4549, 4294901760
  %11229 = vmatmul.mubr.f32.gmra.mrb[0].mxu0 %v11228
  %v11230 = vpop.f32.mrb[0].mxu0
  %v11231 = vadd.f32 %v10280, %v11230
  %v11232 = vpop.f32.mrb[0].mxu0
  %11233 = vmatprep.mubr.f32.mxu0 0.0
  %v11234 = vand.u32 %v4550, 4294901760
  %11235 = vmatmul.mubr.f32.gmra.mrb[0].mxu0 %v11234
  %v11236 = vpop.f32.mrb[0].mxu0
  %v11237 = vadd.f32 %v10286, %v11236
  %v11238 = vpop.f32.mrb[0].mxu0
  %11239 = vmatprep.mubr.f32.mxu0 0.0
  %v11240 = vand.u32 %v4551, 4294901760
  %11241 = vmatmul.mubr.f32.gmra.mrb[0].mxu0 %v11240
  %v11242 = vpop.f32.mrb[0].mxu0
  %v11243 = vadd.f32 %v10292, %v11242
  %v11244 = vpop.f32.mrb[0].mxu0
  %11245 = vmatprep.mubr.f32.mxu0 0.0
  %v11246 = vand.u32 %v4552, 4294901760
  %11247 = vmatmul.mubr.f32.gmra.mrb[0].mxu0 %v11246
  %v11248 = vpop.f32.mrb[0].mxu0
  %v11249 = vadd.f32 %v10298, %v11248
  %v11250 = vpop.f32.mrb[0].mxu0
  %11251 = vmatprep.mubr.f32.mxu0 0.0
  %v11252 = vand.u32 %v4553, 4294901760
  %11253 = vmatmul.mubr.f32.gmra.mrb[0].mxu0 %v11252
  %v11254 = vpop.f32.mrb[0].mxu0
  %v11255 = vadd.f32 %v10304, %v11254
  %v11256 = vpop.f32.mrb[0].mxu0
  %11257 = vmatprep.mubr.f32.mxu0 0.0
  %v11258 = vand.u32 %v4554, 4294901760
  %11259 = vmatmul.mubr.f32.gmra.mrb[0].mxu0 %v11258
  %v11260 = vpop.f32.mrb[0].mxu0
  %v11261 = vadd.f32 %v10310, %v11260
  %v11262 = vpop.f32.mrb[0].mxu0
  %11263 = vmatprep.mubr.f32.mxu0 0.0
  %v11264 = vand.u32 %v4555, 4294901760
  %11265 = vmatmul.mubr.f32.gmra.mrb[0].mxu0 %v11264
  %v11266 = vpop.f32.mrb[0].mxu0
  %v11267 = vadd.f32 %v10316, %v11266
  %v11268 = vpop.f32.mrb[0].mxu0
  %11269 = vmatprep.mubr.f32.mxu0 0.0
  %v11270 = vand.u32 %v4556, 4294901760
  %11271 = vmatmul.mubr.f32.gmra.mrb[0].mxu0 %v11270
  %v11272 = vpop.f32.mrb[0].mxu0
  %v11273 = vadd.f32 %v10322, %v11272
  %v11274 = vpop.f32.mrb[0].mxu0
  %11275 = vmatprep.mubr.f32.mxu0 0.0
  %v11276 = vand.u32 %v4557, 4294901760
  %11277 = vmatmul.mubr.f32.gmra.mrb[0].mxu0 %v11276
  %v11278 = vpop.f32.mrb[0].mxu0
  %v11279 = vadd.f32 %v10328, %v11278
  %v11280 = vpop.f32.mrb[0].mxu0
  %11281 = vmatprep.mubr.f32.mxu0 0.0
  %v11282 = vand.u32 %v4558, 4294901760
  %11283 = vmatmul.mubr.f32.gmra.mrb[0].mxu0 %v11282
  %v11284 = vpop.f32.mrb[0].mxu0
  %v11285 = vadd.f32 %v10334, %v11284
  %v11286 = vpop.f32.mrb[0].mxu0
  %11287 = vmatprep.mubr.f32.mxu0 0.0
  %v11288 = vand.u32 %v4559, 4294901760
  %11289 = vmatmul.mubr.f32.gmra.mrb[0].mxu0 %v11288
  %v11290 = vpop.f32.mrb[0].mxu0
  %v11291 = vadd.f32 %v10340, %v11290
  %v11292 = vpop.f32.mrb[0].mxu0
  %11293 = vmatprep.mubr.f32.mxu0 0.0
  %v11294 = vand.u32 %v4560, 4294901760
  %11295 = vmatmul.mubr.f32.gmra.mrb[0].mxu0 %v11294
  %v11296 = vpop.f32.mrb[0].mxu0
  %v11297 = vadd.f32 %v10346, %v11296
  %v11298 = vpop.f32.mrb[0].mxu0
  %11299 = vmatprep.mubr.f32.mxu0 0.0
  %v11300 = vand.u32 %v4561, 4294901760
  %11301 = vmatmul.mubr.f32.gmra.mrb[0].mxu0 %v11300
  %v11302 = vpop.f32.mrb[0].mxu0
  %v11303 = vadd.f32 %v10352, %v11302
  %v11304 = vpop.f32.mrb[0].mxu0
  %11305 = vmatprep.mubr.f32.mxu0 0.0
  %v11306 = vand.u32 %v4562, 4294901760
  %11307 = vmatmul.mubr.f32.gmra.mrb[0].mxu0 %v11306
  %v11308 = vpop.f32.mrb[0].mxu0
  %v11309 = vadd.f32 %v10358, %v11308
  %v11310 = vpop.f32.mrb[0].mxu0
  %11311 = vmatprep.mubr.f32.mxu0 0.0
  %v11312 = vand.u32 %v4563, 4294901760
  %11313 = vmatmul.mubr.f32.gmra.mrb[0].mxu0 %v11312
  %v11314 = vpop.f32.mrb[0].mxu0
  %v11315 = vadd.f32 %v10364, %v11314
  %v11316 = vpop.f32.mrb[0].mxu0
  %11317 = vmatprep.mubr.f32.mxu0 0.0
  %v11318 = vand.u32 %v4564, 4294901760
  %11319 = vmatmul.mubr.f32.gmra.mrb[0].mxu0 %v11318
  %v11320 = vpop.f32.mrb[0].mxu0
  %v11321 = vadd.f32 %v10370, %v11320
  %v11322 = vpop.f32.mrb[0].mxu0
  %11323 = vmatprep.mubr.f32.mxu0 0.0
  %v11324 = vand.u32 %v4565, 4294901760
  %11325 = vmatmul.mubr.f32.gmra.mrb[0].mxu0 %v11324
  %v11326 = vpop.f32.mrb[0].mxu0
  %v11327 = vadd.f32 %v10376, %v11326
  %v11328 = vpop.f32.mrb[0].mxu0
  %11329 = vmatprep.mubr.f32.mxu0 0.0
  %v11330 = vand.u32 %v4566, 4294901760
  %11331 = vmatmul.mubr.f32.gmra.mrb[0].mxu0 %v11330
  %v11332 = vpop.f32.mrb[0].mxu0
  %v11333 = vadd.f32 %v10382, %v11332
  %v11334 = vpop.f32.mrb[0].mxu0
  %11335 = vmatprep.mubr.f32.mxu0 0.0
  %v11336 = vand.u32 %v4567, 4294901760
  %11337 = vmatmul.mubr.f32.gmra.mrb[0].mxu0 %v11336
  %v11338 = vpop.f32.mrb[0].mxu0
  %v11339 = vadd.f32 %v10388, %v11338
  %v11340 = vpop.f32.mrb[0].mxu0
  %11341 = vmatprep.mubr.f32.mxu0 0.0
  %v11342 = vand.u32 %v4568, 4294901760
  %11343 = vmatmul.mubr.f32.gmra.mrb[0].mxu0 %v11342
  %v11344 = vpop.f32.mrb[0].mxu0
  %v11345 = vadd.f32 %v10394, %v11344
  %v11346 = vpop.f32.mrb[0].mxu0
  %11347 = vmatprep.mubr.f32.mxu0 0.0
  %v11348 = vand.u32 %v4569, 4294901760
  %11349 = vmatmul.mubr.f32.gmra.mrb[0].mxu0 %v11348
  %v11350 = vpop.f32.mrb[0].mxu0
  %v11351 = vadd.f32 %v10400, %v11350
  %v11352 = vpop.f32.mrb[0].mxu0
  %11353 = vmatprep.mubr.f32.mxu0 0.0
  %v11354 = vand.u32 %v4570, 4294901760
  %11355 = vmatmul.mubr.f32.gmra.mrb[0].mxu0 %v11354
  %v11356 = vpop.f32.mrb[0].mxu0
  %v11357 = vadd.f32 %v10406, %v11356
  %v11358 = vpop.f32.mrb[0].mxu0
  %11359 = vmatprep.mubr.f32.mxu0 0.0
  %v11360 = vand.u32 %v4571, 4294901760
  %11361 = vmatmul.mubr.f32.gmra.mrb[0].mxu0 %v11360
  %v11362 = vpop.f32.mrb[0].mxu0
  %v11363 = vadd.f32 %v10412, %v11362
  %v11364 = vpop.f32.mrb[0].mxu0
  %11365 = vmatprep.mubr.f32.mxu0 0.0
  %v11366 = vand.u32 %v4572, 4294901760
  %11367 = vmatmul.mubr.f32.gmra.mrb[0].mxu0 %v11366
  %v11368 = vpop.f32.mrb[0].mxu0
  %v11369 = vadd.f32 %v10418, %v11368
  %v11370 = vpop.f32.mrb[0].mxu0
  %11371 = vmatprep.mubr.f32.mxu0 0.0
  %v11372 = vand.u32 %v4573, 4294901760
  %11373 = vmatmul.mubr.f32.gmra.mrb[0].mxu0 %v11372
  %v11374 = vpop.f32.mrb[0].mxu0
  %v11375 = vadd.f32 %v10424, %v11374
  %v11376 = vpop.f32.mrb[0].mxu0
  %11377 = vmatprep.mubr.f32.mxu0 0.0
  %v11378 = vand.u32 %v4574, 4294901760
  %11379 = vmatmul.mubr.f32.gmra.mrb[0].mxu0 %v11378
  %v11380 = vpop.f32.mrb[0].mxu0
  %v11381 = vadd.f32 %v10430, %v11380
  %v11382 = vpop.f32.mrb[0].mxu0
  %11383 = vmatprep.mubr.f32.mxu0 0.0
  %v11384 = vand.u32 %v4575, 4294901760
  %11385 = vmatmul.mubr.f32.gmra.mrb[0].mxu0 %v11384
  %v11386 = vpop.f32.mrb[0].mxu0
  %v11387 = vadd.f32 %v10436, %v11386
  %v11388 = vpop.f32.mrb[0].mxu0
  %11389 = vmatprep.mubr.f32.mxu0 0.0
  %v11390 = vand.u32 %v4576, 4294901760
  %11391 = vmatmul.mubr.f32.gmra.mrb[0].mxu0 %v11390
  %v11392 = vpop.f32.mrb[0].mxu0
  %v11393 = vadd.f32 %v10442, %v11392
  %v11394 = vpop.f32.mrb[0].mxu0
  %11395 = vmatprep.mubr.f32.mxu0 0.0
  %v11396 = vand.u32 %v4577, 4294901760
  %11397 = vmatmul.mubr.f32.gmra.mrb[0].mxu0 %v11396
  %v11398 = vpop.f32.mrb[0].mxu0
  %v11399 = vadd.f32 %v10448, %v11398
  %v11400 = vpop.f32.mrb[0].mxu0
  %11401 = vmatprep.mubr.f32.mxu0 0.0
  %v11402 = vand.u32 %v4578, 4294901760
  %11403 = vmatmul.mubr.f32.gmra.mrb[0].mxu0 %v11402
  %v11404 = vpop.f32.mrb[0].mxu0
  %v11405 = vadd.f32 %v10454, %v11404
  %v11406 = vpop.f32.mrb[0].mxu0
  %11407 = vmatprep.mubr.f32.mxu0 0.0
  %v11408 = vand.u32 %v4579, 4294901760
  %11409 = vmatmul.mubr.f32.gmra.mrb[0].mxu0 %v11408
  %v11410 = vpop.f32.mrb[0].mxu0
  %v11411 = vadd.f32 %v10460, %v11410
  %v11412 = vpop.f32.mrb[0].mxu0
  %11413 = vmatprep.mubr.f32.mxu0 0.0
  %v11414 = vand.u32 %v4580, 4294901760
  %11415 = vmatmul.mubr.f32.gmra.mrb[0].mxu0 %v11414
  %v11416 = vpop.f32.mrb[0].mxu0
  %v11417 = vadd.f32 %v10466, %v11416
  %v11418 = vpop.f32.mrb[0].mxu0
  %11419 = vmatprep.mubr.f32.mxu0 0.0
  %v11420 = vand.u32 %v4581, 4294901760
  %11421 = vmatmul.mubr.f32.gmra.mrb[0].mxu0 %v11420
  %v11422 = vpop.f32.mrb[0].mxu0
  %v11423 = vadd.f32 %v10472, %v11422
  %v11424 = vpop.f32.mrb[0].mxu0
  %11425 = vmatprep.mubr.f32.mxu0 0.0
  %v11426 = vand.u32 %v4582, 4294901760
  %11427 = vmatmul.mubr.f32.gmra.mrb[0].mxu0 %v11426
  %v11428 = vpop.f32.mrb[0].mxu0
  %v11429 = vadd.f32 %v10478, %v11428
  %v11430 = vpop.f32.mrb[0].mxu0
  %11431 = vdwg.mxu0
  %11432 = vst [vmem:[%s4] sm:$0xff] %v10565
  %11433 = vst [vmem:[%s4 + $0x8] sm:$0xff] %v10571
  %11434 = vst [vmem:[%s4 + $0x10] sm:$0xff] %v10577
  %11435 = vst [vmem:[%s4 + $0x18] sm:$0xff] %v10583
  %11436 = vst [vmem:[%s4 + $0x20] sm:$0xff] %v10589
  %11437 = vst [vmem:[%s4 + $0x28] sm:$0xff] %v10595
  %11438 = vst [vmem:[%s4 + $0x30] sm:$0xff] %v10601
  %11439 = vst [vmem:[%s4 + $0x38] sm:$0xff] %v10607
  %11440 = vst [vmem:[%s4 + $0x40] sm:$0xff] %v10613
  %11441 = vst [vmem:[%s4 + $0x48] sm:$0xff] %v10619
  %11442 = vst [vmem:[%s4 + $0x50] sm:$0xff] %v10625
  %11443 = vst [vmem:[%s4 + $0x58] sm:$0xff] %v10631
  %11444 = vst [vmem:[%s4 + $0x60] sm:$0xff] %v10637
  %11445 = vst [vmem:[%s4 + $0x68] sm:$0xff] %v10643
  %11446 = vst [vmem:[%s4 + $0x70] sm:$0xff] %v10649
  %11447 = vst [vmem:[%s4 + $0x78] sm:$0xff] %v10655
  %11448 = vst [vmem:[%s4 + $0x80] sm:$0xff] %v10661
  %11449 = vst [vmem:[%s4 + $0x88] sm:$0xff] %v10667
  %11450 = vst [vmem:[%s4 + $0x90] sm:$0xff] %v10673
  %11451 = vst [vmem:[%s4 + $0x98] sm:$0xff] %v10679
  %11452 = vst [vmem:[%s4 + $0xa0] sm:$0xff] %v10685
  %11453 = vst [vmem:[%s4 + $0xa8] sm:$0xff] %v10691
  %11454 = vst [vmem:[%s4 + $0xb0] sm:$0xff] %v10697
  %11455 = vst [vmem:[%s4 + $0xb8] sm:$0xff] %v10703
  %11456 = vst [vmem:[%s4 + $0xc0] sm:$0xff] %v10709
  %11457 = vst [vmem:[%s4 + $0xc8] sm:$0xff] %v10715
  %11458 = vst [vmem:[%s4 + $0xd0] sm:$0xff] %v10721
  %11459 = vst [vmem:[%s4 + $0xd8] sm:$0xff] %v10727
  %11460 = vst [vmem:[%s4 + $0xe0] sm:$0xff] %v10733
  %11461 = vst [vmem:[%s4 + $0xe8] sm:$0xff] %v10739
  %11462 = vst [vmem:[%s4 + $0xf0] sm:$0xff] %v10745
  %11463 = vst [vmem:[%s4 + $0xf8] sm:$0xff] %v10751
  %11464 = vst [vmem:[%s4 + $0x100] sm:$0xff] %v10757
  %11465 = vst [vmem:[%s4 + $0x108] sm:$0xff] %v10763
  %11466 = vst [vmem:[%s4 + $0x110] sm:$0xff] %v10769
  %11467 = vst [vmem:[%s4 + $0x118] sm:$0xff] %v10775
  %11468 = vst [vmem:[%s4 + $0x120] sm:$0xff] %v10781
  %11469 = vst [vmem:[%s4 + $0x128] sm:$0xff] %v10787
  %11470 = vst [vmem:[%s4 + $0x130] sm:$0xff] %v10793
  %11471 = vst [vmem:[%s4 + $0x138] sm:$0xff] %v10799
  %11472 = vst [vmem:[%s4 + $0x140] sm:$0xff] %v10805
  %11473 = vst [vmem:[%s4 + $0x148] sm:$0xff] %v10811
  %11474 = vst [vmem:[%s4 + $0x150] sm:$0xff] %v10817
  %11475 = vst [vmem:[%s4 + $0x158] sm:$0xff] %v10823
  %11476 = vst [vmem:[%s4 + $0x160] sm:$0xff] %v10829
  %11477 = vst [vmem:[%s4 + $0x168] sm:$0xff] %v10835
  %11478 = vst [vmem:[%s4 + $0x170] sm:$0xff] %v10841
  %11479 = vst [vmem:[%s4 + $0x178] sm:$0xff] %v10847
  %11480 = vst [vmem:[%s4 + $0x180] sm:$0xff] %v10853
  %11481 = vst [vmem:[%s4 + $0x188] sm:$0xff] %v10859
  %11482 = vst [vmem:[%s4 + $0x190] sm:$0xff] %v10865
  %11483 = vst [vmem:[%s4 + $0x198] sm:$0xff] %v10871
  %11484 = vst [vmem:[%s4 + $0x1a0] sm:$0xff] %v10877
  %11485 = vst [vmem:[%s4 + $0x1a8] sm:$0xff] %v10883
  %11486 = vst [vmem:[%s4 + $0x1b0] sm:$0xff] %v10889
  %11487 = vst [vmem:[%s4 + $0x1b8] sm:$0xff] %v10895
  %11488 = vst [vmem:[%s4 + $0x1c0] sm:$0xff] %v10901
  %11489 = vst [vmem:[%s4 + $0x1c8] sm:$0xff] %v10907
  %11490 = vst [vmem:[%s4 + $0x1d0] sm:$0xff] %v10913
  %11491 = vst [vmem:[%s4 + $0x1d8] sm:$0xff] %v10919
  %11492 = vst [vmem:[%s4 + $0x1e0] sm:$0xff] %v10925
  %11493 = vst [vmem:[%s4 + $0x1e8] sm:$0xff] %v10931
  %11494 = vst [vmem:[%s4 + $0x1f0] sm:$0xff] %v10937
  %11495 = vst [vmem:[%s4 + $0x1f8] sm:$0xff] %v10943
  %11496 = vst [vmem:[%s4 + $0x200] sm:$0xff] %v10949
  %11497 = vst [vmem:[%s4 + $0x208] sm:$0xff] %v10955
  %11498 = vst [vmem:[%s4 + $0x210] sm:$0xff] %v10961
  %11499 = vst [vmem:[%s4 + $0x218] sm:$0xff] %v10967
  %11500 = vst [vmem:[%s4 + $0x220] sm:$0xff] %v10973
  %11501 = vst [vmem:[%s4 + $0x228] sm:$0xff] %v10979
  %11502 = vst [vmem:[%s4 + $0x230] sm:$0xff] %v10985
  %11503 = vst [vmem:[%s4 + $0x238] sm:$0xff] %v10991
  %11504 = vst [vmem:[%s4 + $0x240] sm:$0xff] %v10997
  %11505 = vst [vmem:[%s4 + $0x248] sm:$0xff] %v11003
  %11506 = vst [vmem:[%s4 + $0x250] sm:$0xff] %v11009
  %11507 = vst [vmem:[%s4 + $0x258] sm:$0xff] %v11015
  %11508 = vst [vmem:[%s4 + $0x260] sm:$0xff] %v11021
  %11509 = vst [vmem:[%s4 + $0x268] sm:$0xff] %v11027
  %11510 = vst [vmem:[%s4 + $0x270] sm:$0xff] %v11033
  %11511 = vst [vmem:[%s4 + $0x278] sm:$0xff] %v11039
  %11512 = vst [vmem:[%s4 + $0x280] sm:$0xff] %v11045
  %11513 = vst [vmem:[%s4 + $0x288] sm:$0xff] %v11051
  %11514 = vst [vmem:[%s4 + $0x290] sm:$0xff] %v11057
  %11515 = vst [vmem:[%s4 + $0x298] sm:$0xff] %v11063
  %11516 = vst [vmem:[%s4 + $0x2a0] sm:$0xff] %v11069
  %11517 = vst [vmem:[%s4 + $0x2a8] sm:$0xff] %v11075
  %11518 = vst [vmem:[%s4 + $0x2b0] sm:$0xff] %v11081
  %11519 = vst [vmem:[%s4 + $0x2b8] sm:$0xff] %v11087
  %11520 = vst [vmem:[%s4 + $0x2c0] sm:$0xff] %v11093
  %11521 = vst [vmem:[%s4 + $0x2c8] sm:$0xff] %v11099
  %11522 = vst [vmem:[%s4 + $0x2d0] sm:$0xff] %v11105
  %11523 = vst [vmem:[%s4 + $0x2d8] sm:$0xff] %v11111
  %11524 = vst [vmem:[%s4 + $0x2e0] sm:$0xff] %v11117
  %11525 = vst [vmem:[%s4 + $0x2e8] sm:$0xff] %v11123
  %11526 = vst [vmem:[%s4 + $0x2f0] sm:$0xff] %v11129
  %11527 = vst [vmem:[%s4 + $0x2f8] sm:$0xff] %v11135
  %11528 = vst [vmem:[%s4 + $0x300] sm:$0xff] %v11141
  %11529 = vst [vmem:[%s4 + $0x308] sm:$0xff] %v11147
  %11530 = vst [vmem:[%s4 + $0x310] sm:$0xff] %v11153
  %11531 = vst [vmem:[%s4 + $0x318] sm:$0xff] %v11159
  %11532 = vst [vmem:[%s4 + $0x320] sm:$0xff] %v11165
  %11533 = vst [vmem:[%s4 + $0x328] sm:$0xff] %v11171
  %11534 = vst [vmem:[%s4 + $0x330] sm:$0xff] %v11177
  %11535 = vst [vmem:[%s4 + $0x338] sm:$0xff] %v11183
  %11536 = vst [vmem:[%s4 + $0x340] sm:$0xff] %v11189
  %11537 = vst [vmem:[%s4 + $0x348] sm:$0xff] %v11195
  %11538 = vst [vmem:[%s4 + $0x350] sm:$0xff] %v11201
  %11539 = vst [vmem:[%s4 + $0x358] sm:$0xff] %v11207
  %11540 = vst [vmem:[%s4 + $0x360] sm:$0xff] %v11213
  %11541 = vst [vmem:[%s4 + $0x368] sm:$0xff] %v11219
  %11542 = vst [vmem:[%s4 + $0x370] sm:$0xff] %v11225
  %11543 = vst [vmem:[%s4 + $0x378] sm:$0xff] %v11231
  %11544 = vst [vmem:[%s4 + $0x380] sm:$0xff] %v11237
  %11545 = vst [vmem:[%s4 + $0x388] sm:$0xff] %v11243
  %11546 = vst [vmem:[%s4 + $0x390] sm:$0xff] %v11249
  %11547 = vst [vmem:[%s4 + $0x398] sm:$0xff] %v11255
  %11548 = vst [vmem:[%s4 + $0x3a0] sm:$0xff] %v11261
  %11549 = vst [vmem:[%s4 + $0x3a8] sm:$0xff] %v11267
  %11550 = vst [vmem:[%s4 + $0x3b0] sm:$0xff] %v11273
  %11551 = vst [vmem:[%s4 + $0x3b8] sm:$0xff] %v11279
  %11552 = vst [vmem:[%s4 + $0x3c0] sm:$0xff] %v11285
  %11553 = vst [vmem:[%s4 + $0x3c8] sm:$0xff] %v11291
  %11554 = vst [vmem:[%s4 + $0x3d0] sm:$0xff] %v11297
  %11555 = vst [vmem:[%s4 + $0x3d8] sm:$0xff] %v11303
  %11556 = vst [vmem:[%s4 + $0x3e0] sm:$0xff] %v11309
  %11557 = vst [vmem:[%s4 + $0x3e8] sm:$0xff] %v11315
  %11558 = vst [vmem:[%s4 + $0x3f0] sm:$0xff] %v11321
  %11559 = vst [vmem:[%s4 + $0x3f8] sm:$0xff] %v11327
  %11560 = vst [vmem:[%s4 + $0x400] sm:$0xff] %v11333
  %11561 = vst [vmem:[%s4 + $0x408] sm:$0xff] %v11339
  %11562 = vst [vmem:[%s4 + $0x410] sm:$0xff] %v11345
  %11563 = vst [vmem:[%s4 + $0x418] sm:$0xff] %v11351
  %11564 = vst [vmem:[%s4 + $0x420] sm:$0xff] %v11357
  %11565 = vst [vmem:[%s4 + $0x428] sm:$0xff] %v11363
  %11566 = vst [vmem:[%s4 + $0x430] sm:$0xff] %v11369
  %11567 = vst [vmem:[%s4 + $0x438] sm:$0xff] %v11375
  %11568 = vst [vmem:[%s4 + $0x440] sm:$0xff] %v11381
  %11569 = vst [vmem:[%s4 + $0x448] sm:$0xff] %v11387
  %11570 = vst [vmem:[%s4 + $0x450] sm:$0xff] %v11393
  %11571 = vst [vmem:[%s4 + $0x458] sm:$0xff] %v11399
  %11572 = vst [vmem:[%s4 + $0x460] sm:$0xff] %v11405
  %11573 = vst [vmem:[%s4 + $0x468] sm:$0xff] %v11411
  %11574 = vst [vmem:[%s4 + $0x470] sm:$0xff] %v11417
  %11575 = vst [vmem:[%s4 + $0x478] sm:$0xff] %v11423
  %11576 = vst [vmem:[%s4 + $0x480] sm:$0xff] %v11429
  // Predicated region
  $region18: #{_neuralmem_forward.1} parent=0 // pred_check
    _
  $region19: #{_neuralmem_forward.1} parent=0 // pred_check_branch
    %11578 = sbr.rel (0) target = $region21
  $region20: #{_neuralmem_forward.1} parent=0 // pred_region
    _
  $region21: #{_neuralmem_forward.1} parent=0 // pred_fallthru
    _
  // Predicated region
  $region22: #{_neuralmem_forward.1} parent=0 // pred_check
    _
  $region23: #{_neuralmem_forward.1} parent=0 // pred_check_branch
    %11580 = sbr.rel (0) target = $region25
  $region24: #{_neuralmem_forward.1} parent=0 // pred_region
    _
  $region25: #{_neuralmem_forward.1} parent=0 // pred_fallthru
    _

</llo_original>
